<compile_context>
chip_gen: v5e
topology: v5e:2x2
jax: 0.10.0
libtpu: 0.0.40
codegen_flags: <defaults>
</compile_context>

<pallas_src>
import jax
import jax.numpy as jnp
import numpy as np
from jax import lax
from jax.experimental import pallas as pl
from jax.experimental.pallas import tpu as pltpu


# ------------------------------------------------------------------ fused kernel
def _fused_kernel(xp1_ref, w1_ref, b1_ref, w2_ref, b2_ref,
                  wf1_ref, bf1_ref, wf2_ref, bf2_ref,
                  o_ref,
                  acc1_ref, xp2_ref, acc2_ref, fcin_ref):
    f32 = jnp.float32
    bf16 = jnp.bfloat16

    # ---- conv1 + bias + relu: one MXU matmul (896,16)@(16,32) on wrapper-side im2col.
    acc1_ref[...] = jnp.maximum(
        jnp.dot(xp1_ref[...], w1_ref[...], preferred_element_type=f32) + b1_ref[...],
        0.0)

    # ---- zero ONLY the pad row-groups of the padded conv2 input (ph=0 and ph=15,16).
    xp2_ref[pl.ds(0, 16), :] = jnp.zeros((16, 32), bf16)
    xp2_ref[pl.ds(240, 32), :] = jnp.zeros((32, 32), bf16)

    # ---- pool1 (2x2 max, 28x28x32 -> 14x14x32) written directly into the padded conv2
    #      input slab with full 16-row aligned stores; pad columns folded in-register.
    zrow = jnp.zeros((1, 32), f32)
    for i in range(14):
        r = 64 * i
        e0 = acc1_ref[pl.ds(r, 16, stride=2), :]        # h=2i,   w even
        o0 = acc1_ref[pl.ds(r + 1, 16, stride=2), :]    # h=2i,   w odd
        e1 = acc1_ref[pl.ds(r + 32, 16, stride=2), :]   # h=2i+1, w even
        o1 = acc1_ref[pl.ds(r + 33, 16, stride=2), :]   # h=2i+1, w odd
        v16 = jnp.maximum(jnp.maximum(e0, o0), jnp.maximum(e1, o1))     # (16,32) f32
        vv = jnp.concatenate([zrow, v16[0:14, :], zrow], axis=0)        # pads at pw=0,15
        xp2_ref[pl.ds((i + 1) * 16, 16), :] = vv.astype(bf16)

    # ---- conv2 + bias + relu: K-fused im2col (9 taps -> K=288), 2 chunks of 112 rows.
    w2 = w2_ref[...]
    b2 = b2_ref[...]
    for base in (0, 112):
        patches = jnp.concatenate(
            [xp2_ref[pl.ds(base + 16 * ky + kx, 112), :]
             for ky in range(3) for kx in range(3)],
            axis=1)                                                      # (112,288) bf16
        acc2_ref[pl.ds(base, 112), :] = jnp.maximum(
            jnp.dot(patches, w2, preferred_element_type=f32) + b2, 0.0)

    # ---- pool2 (2x2 max, 14x14x64 -> 7x7x64) + flatten into (1, 3136) flat features
    #      (feature index = (i2*7 + j2)*64 + c; matches the permuted fc1 weight).
    for i2 in range(7):
        r = 32 * i2
        e0 = acc2_ref[pl.ds(r, 8, stride=2), :]
        o0 = acc2_ref[pl.ds(r + 1, 8, stride=2), :]
        e1 = acc2_ref[pl.ds(r + 16, 8, stride=2), :]
        o1 = acc2_ref[pl.ds(r + 17, 8, stride=2), :]
        v = jnp.maximum(jnp.maximum(e0, o0), jnp.maximum(e1, o1))       # (8,64) f32
        for jj in range(7):                                             # j2=7 is garbage
            p = i2 * 7 + jj
            fcin_ref[:, p * 64:(p + 1) * 64] = v[jj:jj + 1, :].astype(bf16)

    # ---- fc1 + relu + fc2 on the in-VMEM flat features; write (1, 2) logits.
    h = jnp.maximum(
        jnp.dot(fcin_ref[...], wf1_ref[...], preferred_element_type=f32) + bf1_ref[...],
        0.0)
    o_ref[...] = (jnp.dot(h, wf2_ref[...], preferred_element_type=f32)
                  + bf2_ref[...]).astype(o_ref.dtype)


# ------------------------------------------------------------------ wrapper
def prepare_params(params):
    """One-time (per-parameter-set) repacking of weights into kernel layouts."""
    w1, b1, w2, b2, wf1, bf1, wf2, bf2 = params
    # conv1 taps (ky,kx,ci=0) -> rows t=3*ky+kx, padded K 9->16, bf16.
    w1k = jnp.pad(w1.reshape(9, 32), ((0, 7), (0, 0))).astype(jnp.bfloat16)       # (16,32)
    # conv2 taps (ky,kx,ci) -> rows t*32+ci, bf16.
    w2k = w2.reshape(9 * 32, 64).astype(jnp.bfloat16)                              # (288,64)
    # torch flatten index = c*49 + p  ->  kernel feature index = p*64 + c.
    wf1k = (wf1.reshape(64, 49, 128).transpose(1, 0, 2)
            .reshape(49 * 64, 128).astype(jnp.bfloat16))                           # (3136,128)
    return dict(w1k=w1k, b1=b1.reshape(1, 32),
                w2k=w2k, b2=b2.reshape(1, 64),
                wf1k=wf1k, bf1=bf1.reshape(1, 128),
                wf2=wf2, bf2=bf2.reshape(1, 2))


def simple_cnn_forward(x_nchw, kp):
    """x: (B, 1, 28, 28) f32 NCHW -> logits (B, 2) f32."""
    B = x_nchw.shape[0]
    x = x_nchw[:, 0, :, :]                                           # (B,28,28)
    # Wrapper-side im2col for conv1 ('SAME', 3x3, cin=1): row = h*32 + w, K tap t=3ky+kx.
    xpad = jnp.pad(x, ((0, 0), (1, 1), (1, 1)))                      # (B,30,30)
    taps = [xpad[:, ky:ky + 28, kx:kx + 28]
            for ky in range(3) for kx in range(3)]
    patches = jnp.stack(taps, axis=-1)                               # (B,28,28,9)
    patches = jnp.pad(patches, ((0, 0), (0, 0), (0, 4), (0, 7)))     # (B,28,32,16)
    xp1 = patches.reshape(B, 28 * 32, 16).astype(jnp.bfloat16)       # (B,896,16)

    out = pl.pallas_call(
        _fused_kernel,
        out_shape=jax.ShapeDtypeStruct((B, 1, 2), jnp.float32),
        grid=(B,),
        in_specs=[
            pl.BlockSpec((None, 896, 16), lambda b: (b, 0, 0)),      # conv1 patches
            pl.BlockSpec((16, 32), lambda b: (0, 0)),                # w1k
            pl.BlockSpec((1, 32), lambda b: (0, 0)),                 # b1
            pl.BlockSpec((288, 64), lambda b: (0, 0)),               # w2k
            pl.BlockSpec((1, 64), lambda b: (0, 0)),                 # b2
            pl.BlockSpec((3136, 128), lambda b: (0, 0)),             # wf1k (permuted)
            pl.BlockSpec((1, 128), lambda b: (0, 0)),                # bf1
            pl.BlockSpec((128, 2), lambda b: (0, 0)),                # wf2
            pl.BlockSpec((1, 2), lambda b: (0, 0)),                  # bf2
        ],
        out_specs=pl.BlockSpec((None, 1, 2), lambda b: (b, 0, 0)),
        scratch_shapes=[
            pltpu.VMEM((896, 32), jnp.float32),    # acc1: conv1 output (row h*32+w)
            pltpu.VMEM((272, 32), jnp.bfloat16),   # xp2 : padded conv2 input (row ph*16+pw)
            pltpu.VMEM((224, 64), jnp.float32),    # acc2: conv2 output (row i*16+j)
            pltpu.VMEM((1, 3136), jnp.bfloat16),   # fcin: flat features
        ],
        compiler_params=pltpu.CompilerParams(dimension_semantics=("parallel",)),
    )(xp1, kp["w1k"], kp["b1"], kp["w2k"], kp["b2"],
      kp["wf1k"], kp["bf1"], kp["wf2"], kp["bf2"])
    return out.reshape(B, 2)


# ------------------------------------------------------------------ pure-JAX reference
def reference_forward(x_nchw, params):
    """Mirrors the torch module exactly (f32, HIGHEST precision)."""
    w1, b1, w2, b2, wf1, bf1, wf2, bf2 = params
    x = jnp.transpose(x_nchw, (0, 2, 3, 1))

    def conv(x, w, b):
        y = lax.conv_general_dilated(x, w, (1, 1), "SAME",
                                     dimension_numbers=("NHWC", "HWIO", "NHWC"),
                                     precision=lax.Precision.HIGHEST)
        return jnp.maximum(y + b, 0.0)

    def pool(x):
        B, H, W, C = x.shape
        return jnp.max(x.reshape(B, H // 2, 2, W // 2, 2, C), axis=(2, 4))

    x = pool(conv(x, w1, b1))
    x = pool(conv(x, w2, b2))
    x = jnp.transpose(x, (0, 3, 1, 2)).reshape(x.shape[0], -1)       # torch view(-1, 64*7*7)
    x = jnp.maximum(jnp.dot(x, wf1, precision=lax.Precision.HIGHEST) + bf1, 0.0)
    return jnp.dot(x, wf2, precision=lax.Precision.HIGHEST) + bf2


# ------------------------------------------------------------------ main
if __name__ == "__main__":
    key = jax.random.PRNGKey(0)
    ks = jax.random.split(key, 9)
    B = 2

    # Input consistent with the module's hard-coded 64*7*7 flatten: (B, 1, 28, 28) NCHW.
    x = jax.random.normal(ks[0], (B, 1, 28, 28), jnp.float32)

    # Deterministic parameters (shapes from SimpleCNN.__init__); HWIO conv weights,
    # (in, out) fc weights; fc1 rows follow torch's NCHW flatten order (c*49 + i*7 + j).
    w1 = jax.random.normal(ks[1], (3, 3, 1, 32), jnp.float32) / np.sqrt(9 * 1)
    b1 = jax.random.normal(ks[2], (32,), jnp.float32) * 0.01
    w2 = jax.random.normal(ks[3], (3, 3, 32, 64), jnp.float32) / np.sqrt(9 * 32)
    b2 = jax.random.normal(ks[4], (64,), jnp.float32) * 0.01
    wf1 = jax.random.normal(ks[5], (64 * 7 * 7, 128), jnp.float32) / np.sqrt(64 * 7 * 7)
    bf1 = jax.random.normal(ks[6], (128,), jnp.float32) * 0.01
    wf2 = jax.random.normal(ks[7], (128, 2), jnp.float32) / np.sqrt(128)
    bf2 = jax.random.normal(ks[8], (2,), jnp.float32) * 0.01

    params = (w1, b1, w2, b2, wf1, bf1, wf2, bf2)
    kparams = prepare_params(params)                 # one-time weight repack (outside jit)

    fwd = jax.jit(simple_cnn_forward)
    out = jax.block_until_ready(fwd(x, kparams))

    ref = jax.block_until_ready(reference_forward(x, params))
    # bf16 MXU operands (f32 accumulate) vs. an f32 HIGHEST-precision reference.
    np.testing.assert_allclose(np.asarray(out), np.asarray(ref), rtol=3e-2, atol=3e-2)

    print("KERNEL_OK")
</pallas_src>

<mosaic_0001>
module attributes {stable_mosaic.version = 11 : i64} {
  func.func @_fused_kernel(%arg0: i32, %arg1: memref<1x896x16xbf16, #tpu.memory_space<vmem>>, %arg2: memref<16x32xbf16, #tpu.memory_space<vmem>>, %arg3: memref<1x32xf32, #tpu.memory_space<vmem>>, %arg4: memref<288x64xbf16, #tpu.memory_space<vmem>>, %arg5: memref<1x64xf32, #tpu.memory_space<vmem>>, %arg6: memref<3136x128xbf16, #tpu.memory_space<vmem>>, %arg7: memref<1x128xf32, #tpu.memory_space<vmem>>, %arg8: memref<128x2xf32, #tpu.memory_space<vmem>>, %arg9: memref<1x2xf32, #tpu.memory_space<vmem>>, %arg10: memref<1x1x2xf32, #tpu.memory_space<vmem>>, %arg11: memref<896x32xf32, #tpu.memory_space<vmem>>, %arg12: memref<272x32xbf16, #tpu.memory_space<vmem>>, %arg13: memref<224x64xf32, #tpu.memory_space<vmem>>, %arg14: memref<1x3136xbf16, #tpu.memory_space<vmem>>) attributes {dimension_semantics = [#tpu.dimension_semantics<parallel>], iteration_bounds = array<i64: 2>, scalar_prefetch = 0 : i64, scratch_operands = 4 : i64, tpu.core_type = #tpu.core_type<tc>, window_params = [{transform_indices = @transform_0, window_bounds = array<i64: 1, 896, 16>}, {pipeline_mode = #tpu.pipeline_mode<synchronous>, transform_indices = @transform_1, window_bounds = array<i64: 16, 32>}, {pipeline_mode = #tpu.pipeline_mode<synchronous>, transform_indices = @transform_2, window_bounds = array<i64: 1, 32>}, {pipeline_mode = #tpu.pipeline_mode<synchronous>, transform_indices = @transform_3, window_bounds = array<i64: 288, 64>}, {pipeline_mode = #tpu.pipeline_mode<synchronous>, transform_indices = @transform_4, window_bounds = array<i64: 1, 64>}, {pipeline_mode = #tpu.pipeline_mode<synchronous>, transform_indices = @transform_5, window_bounds = array<i64: 3136, 128>}, {pipeline_mode = #tpu.pipeline_mode<synchronous>, transform_indices = @transform_6, window_bounds = array<i64: 1, 128>}, {pipeline_mode = #tpu.pipeline_mode<synchronous>, transform_indices = @transform_7, window_bounds = array<i64: 128, 2>}, {pipeline_mode = #tpu.pipeline_mode<synchronous>, transform_indices = @transform_8, window_bounds = array<i64: 1, 2>}, {transform_indices = @transform_9, window_bounds = array<i64: 1, 1, 2>}]} {
    %c0 = arith.constant 0 : index
    %c0_0 = arith.constant 0 : index
    %c0_1 = arith.constant 0 : index
    %0 = vector.load %arg1[%c0, %c0_0, %c0_1] : memref<1x896x16xbf16, #tpu.memory_space<vmem>>, vector<1x896x16xbf16>
    %1 = vector.shape_cast %0 : vector<1x896x16xbf16> to vector<896x16xbf16>
    %c0_2 = arith.constant 0 : index
    %c0_3 = arith.constant 0 : index
    %2 = vector.load %arg2[%c0_2, %c0_3] : memref<16x32xbf16, #tpu.memory_space<vmem>>, vector<16x32xbf16>
    %cst = arith.constant dense<0.000000e+00> : vector<896x32xf32>
    %3 = tpu.matmul %1, %2, %cst {dimension_numbers = #tpu.dot_dimension_numbers<[1], [0], [0], [1], [0, 0, 1, 1], [], []>} : vector<896x16xbf16>, vector<16x32xbf16>, vector<896x32xf32> -> vector<896x32xf32>
    %c0_4 = arith.constant 0 : index
    %c0_5 = arith.constant 0 : index
    %4 = vector.load %arg3[%c0_4, %c0_5] : memref<1x32xf32, #tpu.memory_space<vmem>>, vector<1x32xf32>
    %5 = vector.broadcast %4 : vector<1x32xf32> to vector<896x32xf32>
    %6 = arith.addf %3, %5 : vector<896x32xf32>
    %cst_6 = arith.constant 0.000000e+00 : f32
    %7 = vector.broadcast %cst_6 : f32 to vector<896x32xf32>
    %8 = arith.maximumf %6, %7 : vector<896x32xf32>
    %c0_7 = arith.constant 0 : index
    %c0_8 = arith.constant 0 : index
    %9 = vector.load %arg11[%c0_7, %c0_8] : memref<896x32xf32, #tpu.memory_space<vmem>>, vector<896x32xf32>
    tpu.vector_store %arg11[%c0_7, %c0_8], %8 {strides = array<i32>} : memref<896x32xf32, #tpu.memory_space<vmem>>, vector<896x32xf32>,
    %cst_9 = arith.constant 0.000000e+00 : bf16
    %10 = vector.broadcast %cst_9 : bf16 to vector<16x32xbf16>
    %c0_10 = arith.constant 0 : index
    %c0_11 = arith.constant 0 : index
    %11 = vector.load %arg12[%c0_10, %c0_11] : memref<272x32xbf16, #tpu.memory_space<vmem>>, vector<16x32xbf16>
    tpu.vector_store %arg12[%c0_10, %c0_11], %10 {strides = array<i32>} : memref<272x32xbf16, #tpu.memory_space<vmem>>, vector<16x32xbf16>,
    %cst_12 = arith.constant 0.000000e+00 : bf16
    %12 = vector.broadcast %cst_12 : bf16 to vector<32x32xbf16>
    %c240 = arith.constant 240 : index
    %c0_13 = arith.constant 0 : index
    %13 = vector.load %arg12[%c240, %c0_13] : memref<272x32xbf16, #tpu.memory_space<vmem>>, vector<32x32xbf16>
    tpu.vector_store %arg12[%c240, %c0_13], %12 {strides = array<i32>} : memref<272x32xbf16, #tpu.memory_space<vmem>>, vector<32x32xbf16>,
    %cst_14 = arith.constant 0.000000e+00 : f32
    %14 = vector.broadcast %cst_14 : f32 to vector<1x32xf32>
    %c0_15 = arith.constant 0 : index
    %c0_16 = arith.constant 0 : index
    %15 = tpu.strided_load %arg11[%c0_15, %c0_16] {strides = array<i32: 2, 1>} : memref<896x32xf32, #tpu.memory_space<vmem>>, vector<16x32xf32>
    %c1 = arith.constant 1 : index
    %c0_17 = arith.constant 0 : index
    %16 = tpu.strided_load %arg11[%c1, %c0_17] {strides = array<i32: 2, 1>} : memref<896x32xf32, #tpu.memory_space<vmem>>, vector<16x32xf32>
    %c32 = arith.constant 32 : index
    %c0_18 = arith.constant 0 : index
    %17 = tpu.strided_load %arg11[%c32, %c0_18] {strides = array<i32: 2, 1>} : memref<896x32xf32, #tpu.memory_space<vmem>>, vector<16x32xf32>
    %c33 = arith.constant 33 : index
    %c0_19 = arith.constant 0 : index
    %18 = tpu.strided_load %arg11[%c33, %c0_19] {strides = array<i32: 2, 1>} : memref<896x32xf32, #tpu.memory_space<vmem>>, vector<16x32xf32>
    %19 = arith.maximumf %15, %16 : vector<16x32xf32>
    %20 = arith.maximumf %17, %18 : vector<16x32xf32>
    %21 = arith.maximumf %19, %20 : vector<16x32xf32>
    %22 = vector.extract_strided_slice %21 {offsets = [0, 0], sizes = [14, 32], strides = [1, 1]} : vector<16x32xf32> to vector<14x32xf32>
    %23 = tpu.concatenate %14, %22, %14 in 0 : vector<1x32xf32>, vector<14x32xf32>, vector<1x32xf32> -> vector<16x32xf32>
    %24 = arith.truncf %23 : vector<16x32xf32> to vector<16x32xbf16>
    %c16 = arith.constant 16 : index
    %c0_20 = arith.constant 0 : index
    %25 = vector.load %arg12[%c16, %c0_20] : memref<272x32xbf16, #tpu.memory_space<vmem>>, vector<16x32xbf16>
    tpu.vector_store %arg12[%c16, %c0_20], %24 {strides = array<i32>} : memref<272x32xbf16, #tpu.memory_space<vmem>>, vector<16x32xbf16>,
    %c64 = arith.constant 64 : index
    %c0_21 = arith.constant 0 : index
    %26 = tpu.strided_load %arg11[%c64, %c0_21] {strides = array<i32: 2, 1>} : memref<896x32xf32, #tpu.memory_space<vmem>>, vector<16x32xf32>
    %c65 = arith.constant 65 : index
    %c0_22 = arith.constant 0 : index
    %27 = tpu.strided_load %arg11[%c65, %c0_22] {strides = array<i32: 2, 1>} : memref<896x32xf32, #tpu.memory_space<vmem>>, vector<16x32xf32>
    %c96 = arith.constant 96 : index
    %c0_23 = arith.constant 0 : index
    %28 = tpu.strided_load %arg11[%c96, %c0_23] {strides = array<i32: 2, 1>} : memref<896x32xf32, #tpu.memory_space<vmem>>, vector<16x32xf32>
    %c97 = arith.constant 97 : index
    %c0_24 = arith.constant 0 : index
    %29 = tpu.strided_load %arg11[%c97, %c0_24] {strides = array<i32: 2, 1>} : memref<896x32xf32, #tpu.memory_space<vmem>>, vector<16x32xf32>
    %30 = arith.maximumf %26, %27 : vector<16x32xf32>
    %31 = arith.maximumf %28, %29 : vector<16x32xf32>
    %32 = arith.maximumf %30, %31 : vector<16x32xf32>
    %33 = vector.extract_strided_slice %32 {offsets = [0, 0], sizes = [14, 32], strides = [1, 1]} : vector<16x32xf32> to vector<14x32xf32>
    %34 = tpu.concatenate %14, %33, %14 in 0 : vector<1x32xf32>, vector<14x32xf32>, vector<1x32xf32> -> vector<16x32xf32>
    %35 = arith.truncf %34 : vector<16x32xf32> to vector<16x32xbf16>
    %c32_25 = arith.constant 32 : index
    %c0_26 = arith.constant 0 : index
    %36 = vector.load %arg12[%c32_25, %c0_26] : memref<272x32xbf16, #tpu.memory_space<vmem>>, vector<16x32xbf16>
    tpu.vector_store %arg12[%c32_25, %c0_26], %35 {strides = array<i32>} : memref<272x32xbf16, #tpu.memory_space<vmem>>, vector<16x32xbf16>,
    %c128 = arith.constant 128 : index
    %c0_27 = arith.constant 0 : index
    %37 = tpu.strided_load %arg11[%c128, %c0_27] {strides = array<i32: 2, 1>} : memref<896x32xf32, #tpu.memory_space<vmem>>, vector<16x32xf32>
    %c129 = arith.constant 129 : index
    %c0_28 = arith.constant 0 : index
    %38 = tpu.strided_load %arg11[%c129, %c0_28] {strides = array<i32: 2, 1>} : memref<896x32xf32, #tpu.memory_space<vmem>>, vector<16x32xf32>
    %c160 = arith.constant 160 : index
    %c0_29 = arith.constant 0 : index
    %39 = tpu.strided_load %arg11[%c160, %c0_29] {strides = array<i32: 2, 1>} : memref<896x32xf32, #tpu.memory_space<vmem>>, vector<16x32xf32>
    %c161 = arith.constant 161 : index
    %c0_30 = arith.constant 0 : index
    %40 = tpu.strided_load %arg11[%c161, %c0_30] {strides = array<i32: 2, 1>} : memref<896x32xf32, #tpu.memory_space<vmem>>, vector<16x32xf32>
    %41 = arith.maximumf %37, %38 : vector<16x32xf32>
    %42 = arith.maximumf %39, %40 : vector<16x32xf32>
    %43 = arith.maximumf %41, %42 : vector<16x32xf32>
    %44 = vector.extract_strided_slice %43 {offsets = [0, 0], sizes = [14, 32], strides = [1, 1]} : vector<16x32xf32> to vector<14x32xf32>
    %45 = tpu.concatenate %14, %44, %14 in 0 : vector<1x32xf32>, vector<14x32xf32>, vector<1x32xf32> -> vector<16x32xf32>
    %46 = arith.truncf %45 : vector<16x32xf32> to vector<16x32xbf16>
    %c48 = arith.constant 48 : index
    %c0_31 = arith.constant 0 : index
    %47 = vector.load %arg12[%c48, %c0_31] : memref<272x32xbf16, #tpu.memory_space<vmem>>, vector<16x32xbf16>
    tpu.vector_store %arg12[%c48, %c0_31], %46 {strides = array<i32>} : memref<272x32xbf16, #tpu.memory_space<vmem>>, vector<16x32xbf16>,
    %c192 = arith.constant 192 : index
    %c0_32 = arith.constant 0 : index
    %48 = tpu.strided_load %arg11[%c192, %c0_32] {strides = array<i32: 2, 1>} : memref<896x32xf32, #tpu.memory_space<vmem>>, vector<16x32xf32>
    %c193 = arith.constant 193 : index
    %c0_33 = arith.constant 0 : index
    %49 = tpu.strided_load %arg11[%c193, %c0_33] {strides = array<i32: 2, 1>} : memref<896x32xf32, #tpu.memory_space<vmem>>, vector<16x32xf32>
    %c224 = arith.constant 224 : index
    %c0_34 = arith.constant 0 : index
    %50 = tpu.strided_load %arg11[%c224, %c0_34] {strides = array<i32: 2, 1>} : memref<896x32xf32, #tpu.memory_space<vmem>>, vector<16x32xf32>
    %c225 = arith.constant 225 : index
    %c0_35 = arith.constant 0 : index
    %51 = tpu.strided_load %arg11[%c225, %c0_35] {strides = array<i32: 2, 1>} : memref<896x32xf32, #tpu.memory_space<vmem>>, vector<16x32xf32>
    %52 = arith.maximumf %48, %49 : vector<16x32xf32>
    %53 = arith.maximumf %50, %51 : vector<16x32xf32>
    %54 = arith.maximumf %52, %53 : vector<16x32xf32>
    %55 = vector.extract_strided_slice %54 {offsets = [0, 0], sizes = [14, 32], strides = [1, 1]} : vector<16x32xf32> to vector<14x32xf32>
    %56 = tpu.concatenate %14, %55, %14 in 0 : vector<1x32xf32>, vector<14x32xf32>, vector<1x32xf32> -> vector<16x32xf32>
    %57 = arith.truncf %56 : vector<16x32xf32> to vector<16x32xbf16>
    %c64_36 = arith.constant 64 : index
    %c0_37 = arith.constant 0 : index
    %58 = vector.load %arg12[%c64_36, %c0_37] : memref<272x32xbf16, #tpu.memory_space<vmem>>, vector<16x32xbf16>
    tpu.vector_store %arg12[%c64_36, %c0_37], %57 {strides = array<i32>} : memref<272x32xbf16, #tpu.memory_space<vmem>>, vector<16x32xbf16>,
    %c256 = arith.constant 256 : index
    %c0_38 = arith.constant 0 : index
    %59 = tpu.strided_load %arg11[%c256, %c0_38] {strides = array<i32: 2, 1>} : memref<896x32xf32, #tpu.memory_space<vmem>>, vector<16x32xf32>
    %c257 = arith.constant 257 : index
    %c0_39 = arith.constant 0 : index
    %60 = tpu.strided_load %arg11[%c257, %c0_39] {strides = array<i32: 2, 1>} : memref<896x32xf32, #tpu.memory_space<vmem>>, vector<16x32xf32>
    %c288 = arith.constant 288 : index
    %c0_40 = arith.constant 0 : index
    %61 = tpu.strided_load %arg11[%c288, %c0_40] {strides = array<i32: 2, 1>} : memref<896x32xf32, #tpu.memory_space<vmem>>, vector<16x32xf32>
    %c289 = arith.constant 289 : index
    %c0_41 = arith.constant 0 : index
    %62 = tpu.strided_load %arg11[%c289, %c0_41] {strides = array<i32: 2, 1>} : memref<896x32xf32, #tpu.memory_space<vmem>>, vector<16x32xf32>
    %63 = arith.maximumf %59, %60 : vector<16x32xf32>
    %64 = arith.maximumf %61, %62 : vector<16x32xf32>
    %65 = arith.maximumf %63, %64 : vector<16x32xf32>
    %66 = vector.extract_strided_slice %65 {offsets = [0, 0], sizes = [14, 32], strides = [1, 1]} : vector<16x32xf32> to vector<14x32xf32>
    %67 = tpu.concatenate %14, %66, %14 in 0 : vector<1x32xf32>, vector<14x32xf32>, vector<1x32xf32> -> vector<16x32xf32>
    %68 = arith.truncf %67 : vector<16x32xf32> to vector<16x32xbf16>
    %c80 = arith.constant 80 : index
    %c0_42 = arith.constant 0 : index
    %69 = vector.load %arg12[%c80, %c0_42] : memref<272x32xbf16, #tpu.memory_space<vmem>>, vector<16x32xbf16>
    tpu.vector_store %arg12[%c80, %c0_42], %68 {strides = array<i32>} : memref<272x32xbf16, #tpu.memory_space<vmem>>, vector<16x32xbf16>,
    %c320 = arith.constant 320 : index
    %c0_43 = arith.constant 0 : index
    %70 = tpu.strided_load %arg11[%c320, %c0_43] {strides = array<i32: 2, 1>} : memref<896x32xf32, #tpu.memory_space<vmem>>, vector<16x32xf32>
    %c321 = arith.constant 321 : index
    %c0_44 = arith.constant 0 : index
    %71 = tpu.strided_load %arg11[%c321, %c0_44] {strides = array<i32: 2, 1>} : memref<896x32xf32, #tpu.memory_space<vmem>>, vector<16x32xf32>
    %c352 = arith.constant 352 : index
    %c0_45 = arith.constant 0 : index
    %72 = tpu.strided_load %arg11[%c352, %c0_45] {strides = array<i32: 2, 1>} : memref<896x32xf32, #tpu.memory_space<vmem>>, vector<16x32xf32>
    %c353 = arith.constant 353 : index
    %c0_46 = arith.constant 0 : index
    %73 = tpu.strided_load %arg11[%c353, %c0_46] {strides = array<i32: 2, 1>} : memref<896x32xf32, #tpu.memory_space<vmem>>, vector<16x32xf32>
    %74 = arith.maximumf %70, %71 : vector<16x32xf32>
    %75 = arith.maximumf %72, %73 : vector<16x32xf32>
    %76 = arith.maximumf %74, %75 : vector<16x32xf32>
    %77 = vector.extract_strided_slice %76 {offsets = [0, 0], sizes = [14, 32], strides = [1, 1]} : vector<16x32xf32> to vector<14x32xf32>
    %78 = tpu.concatenate %14, %77, %14 in 0 : vector<1x32xf32>, vector<14x32xf32>, vector<1x32xf32> -> vector<16x32xf32>
    %79 = arith.truncf %78 : vector<16x32xf32> to vector<16x32xbf16>
    %c96_47 = arith.constant 96 : index
    %c0_48 = arith.constant 0 : index
    %80 = vector.load %arg12[%c96_47, %c0_48] : memref<272x32xbf16, #tpu.memory_space<vmem>>, vector<16x32xbf16>
    tpu.vector_store %arg12[%c96_47, %c0_48], %79 {strides = array<i32>} : memref<272x32xbf16, #tpu.memory_space<vmem>>, vector<16x32xbf16>,
    %c384 = arith.constant 384 : index
    %c0_49 = arith.constant 0 : index
    %81 = tpu.strided_load %arg11[%c384, %c0_49] {strides = array<i32: 2, 1>} : memref<896x32xf32, #tpu.memory_space<vmem>>, vector<16x32xf32>
    %c385 = arith.constant 385 : index
    %c0_50 = arith.constant 0 : index
    %82 = tpu.strided_load %arg11[%c385, %c0_50] {strides = array<i32: 2, 1>} : memref<896x32xf32, #tpu.memory_space<vmem>>, vector<16x32xf32>
    %c416 = arith.constant 416 : index
    %c0_51 = arith.constant 0 : index
    %83 = tpu.strided_load %arg11[%c416, %c0_51] {strides = array<i32: 2, 1>} : memref<896x32xf32, #tpu.memory_space<vmem>>, vector<16x32xf32>
    %c417 = arith.constant 417 : index
    %c0_52 = arith.constant 0 : index
    %84 = tpu.strided_load %arg11[%c417, %c0_52] {strides = array<i32: 2, 1>} : memref<896x32xf32, #tpu.memory_space<vmem>>, vector<16x32xf32>
    %85 = arith.maximumf %81, %82 : vector<16x32xf32>
    %86 = arith.maximumf %83, %84 : vector<16x32xf32>
    %87 = arith.maximumf %85, %86 : vector<16x32xf32>
    %88 = vector.extract_strided_slice %87 {offsets = [0, 0], sizes = [14, 32], strides = [1, 1]} : vector<16x32xf32> to vector<14x32xf32>
    %89 = tpu.concatenate %14, %88, %14 in 0 : vector<1x32xf32>, vector<14x32xf32>, vector<1x32xf32> -> vector<16x32xf32>
    %90 = arith.truncf %89 : vector<16x32xf32> to vector<16x32xbf16>
    %c112 = arith.constant 112 : index
    %c0_53 = arith.constant 0 : index
    %91 = vector.load %arg12[%c112, %c0_53] : memref<272x32xbf16, #tpu.memory_space<vmem>>, vector<16x32xbf16>
    tpu.vector_store %arg12[%c112, %c0_53], %90 {strides = array<i32>} : memref<272x32xbf16, #tpu.memory_space<vmem>>, vector<16x32xbf16>,
    %c448 = arith.constant 448 : index
    %c0_54 = arith.constant 0 : index
    %92 = tpu.strided_load %arg11[%c448, %c0_54] {strides = array<i32: 2, 1>} : memref<896x32xf32, #tpu.memory_space<vmem>>, vector<16x32xf32>
    %c449 = arith.constant 449 : index
    %c0_55 = arith.constant 0 : index
    %93 = tpu.strided_load %arg11[%c449, %c0_55] {strides = array<i32: 2, 1>} : memref<896x32xf32, #tpu.memory_space<vmem>>, vector<16x32xf32>
    %c480 = arith.constant 480 : index
    %c0_56 = arith.constant 0 : index
    %94 = tpu.strided_load %arg11[%c480, %c0_56] {strides = array<i32: 2, 1>} : memref<896x32xf32, #tpu.memory_space<vmem>>, vector<16x32xf32>
    %c481 = arith.constant 481 : index
    %c0_57 = arith.constant 0 : index
    %95 = tpu.strided_load %arg11[%c481, %c0_57] {strides = array<i32: 2, 1>} : memref<896x32xf32, #tpu.memory_space<vmem>>, vector<16x32xf32>
    %96 = arith.maximumf %92, %93 : vector<16x32xf32>
    %97 = arith.maximumf %94, %95 : vector<16x32xf32>
    %98 = arith.maximumf %96, %97 : vector<16x32xf32>
    %99 = vector.extract_strided_slice %98 {offsets = [0, 0], sizes = [14, 32], strides = [1, 1]} : vector<16x32xf32> to vector<14x32xf32>
    %100 = tpu.concatenate %14, %99, %14 in 0 : vector<1x32xf32>, vector<14x32xf32>, vector<1x32xf32> -> vector<16x32xf32>
    %101 = arith.truncf %100 : vector<16x32xf32> to vector<16x32xbf16>
    %c128_58 = arith.constant 128 : index
    %c0_59 = arith.constant 0 : index
    %102 = vector.load %arg12[%c128_58, %c0_59] : memref<272x32xbf16, #tpu.memory_space<vmem>>, vector<16x32xbf16>
    tpu.vector_store %arg12[%c128_58, %c0_59], %101 {strides = array<i32>} : memref<272x32xbf16, #tpu.memory_space<vmem>>, vector<16x32xbf16>,
    %c512 = arith.constant 512 : index
    %c0_60 = arith.constant 0 : index
    %103 = tpu.strided_load %arg11[%c512, %c0_60] {strides = array<i32: 2, 1>} : memref<896x32xf32, #tpu.memory_space<vmem>>, vector<16x32xf32>
    %c513 = arith.constant 513 : index
    %c0_61 = arith.constant 0 : index
    %104 = tpu.strided_load %arg11[%c513, %c0_61] {strides = array<i32: 2, 1>} : memref<896x32xf32, #tpu.memory_space<vmem>>, vector<16x32xf32>
    %c544 = arith.constant 544 : index
    %c0_62 = arith.constant 0 : index
    %105 = tpu.strided_load %arg11[%c544, %c0_62] {strides = array<i32: 2, 1>} : memref<896x32xf32, #tpu.memory_space<vmem>>, vector<16x32xf32>
    %c545 = arith.constant 545 : index
    %c0_63 = arith.constant 0 : index
    %106 = tpu.strided_load %arg11[%c545, %c0_63] {strides = array<i32: 2, 1>} : memref<896x32xf32, #tpu.memory_space<vmem>>, vector<16x32xf32>
    %107 = arith.maximumf %103, %104 : vector<16x32xf32>
    %108 = arith.maximumf %105, %106 : vector<16x32xf32>
    %109 = arith.maximumf %107, %108 : vector<16x32xf32>
    %110 = vector.extract_strided_slice %109 {offsets = [0, 0], sizes = [14, 32], strides = [1, 1]} : vector<16x32xf32> to vector<14x32xf32>
    %111 = tpu.concatenate %14, %110, %14 in 0 : vector<1x32xf32>, vector<14x32xf32>, vector<1x32xf32> -> vector<16x32xf32>
    %112 = arith.truncf %111 : vector<16x32xf32> to vector<16x32xbf16>
    %c144 = arith.constant 144 : index
    %c0_64 = arith.constant 0 : index
    %113 = vector.load %arg12[%c144, %c0_64] : memref<272x32xbf16, #tpu.memory_space<vmem>>, vector<16x32xbf16>
    tpu.vector_store %arg12[%c144, %c0_64], %112 {strides = array<i32>} : memref<272x32xbf16, #tpu.memory_space<vmem>>, vector<16x32xbf16>,
    %c576 = arith.constant 576 : index
    %c0_65 = arith.constant 0 : index
    %114 = tpu.strided_load %arg11[%c576, %c0_65] {strides = array<i32: 2, 1>} : memref<896x32xf32, #tpu.memory_space<vmem>>, vector<16x32xf32>
    %c577 = arith.constant 577 : index
    %c0_66 = arith.constant 0 : index
    %115 = tpu.strided_load %arg11[%c577, %c0_66] {strides = array<i32: 2, 1>} : memref<896x32xf32, #tpu.memory_space<vmem>>, vector<16x32xf32>
    %c608 = arith.constant 608 : index
    %c0_67 = arith.constant 0 : index
    %116 = tpu.strided_load %arg11[%c608, %c0_67] {strides = array<i32: 2, 1>} : memref<896x32xf32, #tpu.memory_space<vmem>>, vector<16x32xf32>
    %c609 = arith.constant 609 : index
    %c0_68 = arith.constant 0 : index
    %117 = tpu.strided_load %arg11[%c609, %c0_68] {strides = array<i32: 2, 1>} : memref<896x32xf32, #tpu.memory_space<vmem>>, vector<16x32xf32>
    %118 = arith.maximumf %114, %115 : vector<16x32xf32>
    %119 = arith.maximumf %116, %117 : vector<16x32xf32>
    %120 = arith.maximumf %118, %119 : vector<16x32xf32>
    %121 = vector.extract_strided_slice %120 {offsets = [0, 0], sizes = [14, 32], strides = [1, 1]} : vector<16x32xf32> to vector<14x32xf32>
    %122 = tpu.concatenate %14, %121, %14 in 0 : vector<1x32xf32>, vector<14x32xf32>, vector<1x32xf32> -> vector<16x32xf32>
    %123 = arith.truncf %122 : vector<16x32xf32> to vector<16x32xbf16>
    %c160_69 = arith.constant 160 : index
    %c0_70 = arith.constant 0 : index
    %124 = vector.load %arg12[%c160_69, %c0_70] : memref<272x32xbf16, #tpu.memory_space<vmem>>, vector<16x32xbf16>
    tpu.vector_store %arg12[%c160_69, %c0_70], %123 {strides = array<i32>} : memref<272x32xbf16, #tpu.memory_space<vmem>>, vector<16x32xbf16>,
    %c640 = arith.constant 640 : index
    %c0_71 = arith.constant 0 : index
    %125 = tpu.strided_load %arg11[%c640, %c0_71] {strides = array<i32: 2, 1>} : memref<896x32xf32, #tpu.memory_space<vmem>>, vector<16x32xf32>
    %c641 = arith.constant 641 : index
    %c0_72 = arith.constant 0 : index
    %126 = tpu.strided_load %arg11[%c641, %c0_72] {strides = array<i32: 2, 1>} : memref<896x32xf32, #tpu.memory_space<vmem>>, vector<16x32xf32>
    %c672 = arith.constant 672 : index
    %c0_73 = arith.constant 0 : index
    %127 = tpu.strided_load %arg11[%c672, %c0_73] {strides = array<i32: 2, 1>} : memref<896x32xf32, #tpu.memory_space<vmem>>, vector<16x32xf32>
    %c673 = arith.constant 673 : index
    %c0_74 = arith.constant 0 : index
    %128 = tpu.strided_load %arg11[%c673, %c0_74] {strides = array<i32: 2, 1>} : memref<896x32xf32, #tpu.memory_space<vmem>>, vector<16x32xf32>
    %129 = arith.maximumf %125, %126 : vector<16x32xf32>
    %130 = arith.maximumf %127, %128 : vector<16x32xf32>
    %131 = arith.maximumf %129, %130 : vector<16x32xf32>
    %132 = vector.extract_strided_slice %131 {offsets = [0, 0], sizes = [14, 32], strides = [1, 1]} : vector<16x32xf32> to vector<14x32xf32>
    %133 = tpu.concatenate %14, %132, %14 in 0 : vector<1x32xf32>, vector<14x32xf32>, vector<1x32xf32> -> vector<16x32xf32>
    %134 = arith.truncf %133 : vector<16x32xf32> to vector<16x32xbf16>
    %c176 = arith.constant 176 : index
    %c0_75 = arith.constant 0 : index
    %135 = vector.load %arg12[%c176, %c0_75] : memref<272x32xbf16, #tpu.memory_space<vmem>>, vector<16x32xbf16>
    tpu.vector_store %arg12[%c176, %c0_75], %134 {strides = array<i32>} : memref<272x32xbf16, #tpu.memory_space<vmem>>, vector<16x32xbf16>,
    %c704 = arith.constant 704 : index
    %c0_76 = arith.constant 0 : index
    %136 = tpu.strided_load %arg11[%c704, %c0_76] {strides = array<i32: 2, 1>} : memref<896x32xf32, #tpu.memory_space<vmem>>, vector<16x32xf32>
    %c705 = arith.constant 705 : index
    %c0_77 = arith.constant 0 : index
    %137 = tpu.strided_load %arg11[%c705, %c0_77] {strides = array<i32: 2, 1>} : memref<896x32xf32, #tpu.memory_space<vmem>>, vector<16x32xf32>
    %c736 = arith.constant 736 : index
    %c0_78 = arith.constant 0 : index
    %138 = tpu.strided_load %arg11[%c736, %c0_78] {strides = array<i32: 2, 1>} : memref<896x32xf32, #tpu.memory_space<vmem>>, vector<16x32xf32>
    %c737 = arith.constant 737 : index
    %c0_79 = arith.constant 0 : index
    %139 = tpu.strided_load %arg11[%c737, %c0_79] {strides = array<i32: 2, 1>} : memref<896x32xf32, #tpu.memory_space<vmem>>, vector<16x32xf32>
    %140 = arith.maximumf %136, %137 : vector<16x32xf32>
    %141 = arith.maximumf %138, %139 : vector<16x32xf32>
    %142 = arith.maximumf %140, %141 : vector<16x32xf32>
    %143 = vector.extract_strided_slice %142 {offsets = [0, 0], sizes = [14, 32], strides = [1, 1]} : vector<16x32xf32> to vector<14x32xf32>
    %144 = tpu.concatenate %14, %143, %14 in 0 : vector<1x32xf32>, vector<14x32xf32>, vector<1x32xf32> -> vector<16x32xf32>
    %145 = arith.truncf %144 : vector<16x32xf32> to vector<16x32xbf16>
    %c192_80 = arith.constant 192 : index
    %c0_81 = arith.constant 0 : index
    %146 = vector.load %arg12[%c192_80, %c0_81] : memref<272x32xbf16, #tpu.memory_space<vmem>>, vector<16x32xbf16>
    tpu.vector_store %arg12[%c192_80, %c0_81], %145 {strides = array<i32>} : memref<272x32xbf16, #tpu.memory_space<vmem>>, vector<16x32xbf16>,
    %c768 = arith.constant 768 : index
    %c0_82 = arith.constant 0 : index
    %147 = tpu.strided_load %arg11[%c768, %c0_82] {strides = array<i32: 2, 1>} : memref<896x32xf32, #tpu.memory_space<vmem>>, vector<16x32xf32>
    %c769 = arith.constant 769 : index
    %c0_83 = arith.constant 0 : index
    %148 = tpu.strided_load %arg11[%c769, %c0_83] {strides = array<i32: 2, 1>} : memref<896x32xf32, #tpu.memory_space<vmem>>, vector<16x32xf32>
    %c800 = arith.constant 800 : index
    %c0_84 = arith.constant 0 : index
    %149 = tpu.strided_load %arg11[%c800, %c0_84] {strides = array<i32: 2, 1>} : memref<896x32xf32, #tpu.memory_space<vmem>>, vector<16x32xf32>
    %c801 = arith.constant 801 : index
    %c0_85 = arith.constant 0 : index
    %150 = tpu.strided_load %arg11[%c801, %c0_85] {strides = array<i32: 2, 1>} : memref<896x32xf32, #tpu.memory_space<vmem>>, vector<16x32xf32>
    %151 = arith.maximumf %147, %148 : vector<16x32xf32>
    %152 = arith.maximumf %149, %150 : vector<16x32xf32>
    %153 = arith.maximumf %151, %152 : vector<16x32xf32>
    %154 = vector.extract_strided_slice %153 {offsets = [0, 0], sizes = [14, 32], strides = [1, 1]} : vector<16x32xf32> to vector<14x32xf32>
    %155 = tpu.concatenate %14, %154, %14 in 0 : vector<1x32xf32>, vector<14x32xf32>, vector<1x32xf32> -> vector<16x32xf32>
    %156 = arith.truncf %155 : vector<16x32xf32> to vector<16x32xbf16>
    %c208 = arith.constant 208 : index
    %c0_86 = arith.constant 0 : index
    %157 = vector.load %arg12[%c208, %c0_86] : memref<272x32xbf16, #tpu.memory_space<vmem>>, vector<16x32xbf16>
    tpu.vector_store %arg12[%c208, %c0_86], %156 {strides = array<i32>} : memref<272x32xbf16, #tpu.memory_space<vmem>>, vector<16x32xbf16>,
    %c832 = arith.constant 832 : index
    %c0_87 = arith.constant 0 : index
    %158 = tpu.strided_load %arg11[%c832, %c0_87] {strides = array<i32: 2, 1>} : memref<896x32xf32, #tpu.memory_space<vmem>>, vector<16x32xf32>
    %c833 = arith.constant 833 : index
    %c0_88 = arith.constant 0 : index
    %159 = tpu.strided_load %arg11[%c833, %c0_88] {strides = array<i32: 2, 1>} : memref<896x32xf32, #tpu.memory_space<vmem>>, vector<16x32xf32>
    %c864 = arith.constant 864 : index
    %c0_89 = arith.constant 0 : index
    %160 = tpu.strided_load %arg11[%c864, %c0_89] {strides = array<i32: 2, 1>} : memref<896x32xf32, #tpu.memory_space<vmem>>, vector<16x32xf32>
    %c865 = arith.constant 865 : index
    %c0_90 = arith.constant 0 : index
    %161 = tpu.strided_load %arg11[%c865, %c0_90] {strides = array<i32: 2, 1>} : memref<896x32xf32, #tpu.memory_space<vmem>>, vector<16x32xf32>
    %162 = arith.maximumf %158, %159 : vector<16x32xf32>
    %163 = arith.maximumf %160, %161 : vector<16x32xf32>
    %164 = arith.maximumf %162, %163 : vector<16x32xf32>
    %165 = vector.extract_strided_slice %164 {offsets = [0, 0], sizes = [14, 32], strides = [1, 1]} : vector<16x32xf32> to vector<14x32xf32>
    %166 = tpu.concatenate %14, %165, %14 in 0 : vector<1x32xf32>, vector<14x32xf32>, vector<1x32xf32> -> vector<16x32xf32>
    %167 = arith.truncf %166 : vector<16x32xf32> to vector<16x32xbf16>
    %c224_91 = arith.constant 224 : index
    %c0_92 = arith.constant 0 : index
    %168 = vector.load %arg12[%c224_91, %c0_92] : memref<272x32xbf16, #tpu.memory_space<vmem>>, vector<16x32xbf16>
    tpu.vector_store %arg12[%c224_91, %c0_92], %167 {strides = array<i32>} : memref<272x32xbf16, #tpu.memory_space<vmem>>, vector<16x32xbf16>,
    %c0_93 = arith.constant 0 : index
    %c0_94 = arith.constant 0 : index
    %169 = vector.load %arg4[%c0_93, %c0_94] : memref<288x64xbf16, #tpu.memory_space<vmem>>, vector<288x64xbf16>
    %c0_95 = arith.constant 0 : index
    %c0_96 = arith.constant 0 : index
    %170 = vector.load %arg5[%c0_95, %c0_96] : memref<1x64xf32, #tpu.memory_space<vmem>>, vector<1x64xf32>
    %c0_97 = arith.constant 0 : index
    %c0_98 = arith.constant 0 : index
    %171 = vector.load %arg12[%c0_97, %c0_98] : memref<272x32xbf16, #tpu.memory_space<vmem>>, vector<112x32xbf16>
    %c1_99 = arith.constant 1 : index
    %c0_100 = arith.constant 0 : index
    %172 = vector.load %arg12[%c1_99, %c0_100] : memref<272x32xbf16, #tpu.memory_space<vmem>>, vector<112x32xbf16>
    %c2 = arith.constant 2 : index
    %c0_101 = arith.constant 0 : index
    %173 = vector.load %arg12[%c2, %c0_101] : memref<272x32xbf16, #tpu.memory_space<vmem>>, vector<112x32xbf16>
    %c16_102 = arith.constant 16 : index
    %c0_103 = arith.constant 0 : index
    %174 = vector.load %arg12[%c16_102, %c0_103] : memref<272x32xbf16, #tpu.memory_space<vmem>>, vector<112x32xbf16>
    %c17 = arith.constant 17 : index
    %c0_104 = arith.constant 0 : index
    %175 = vector.load %arg12[%c17, %c0_104] : memref<272x32xbf16, #tpu.memory_space<vmem>>, vector<112x32xbf16>
    %c18 = arith.constant 18 : index
    %c0_105 = arith.constant 0 : index
    %176 = vector.load %arg12[%c18, %c0_105] : memref<272x32xbf16, #tpu.memory_space<vmem>>, vector<112x32xbf16>
    %c32_106 = arith.constant 32 : index
    %c0_107 = arith.constant 0 : index
    %177 = vector.load %arg12[%c32_106, %c0_107] : memref<272x32xbf16, #tpu.memory_space<vmem>>, vector<112x32xbf16>
    %c33_108 = arith.constant 33 : index
    %c0_109 = arith.constant 0 : index
    %178 = vector.load %arg12[%c33_108, %c0_109] : memref<272x32xbf16, #tpu.memory_space<vmem>>, vector<112x32xbf16>
    %c34 = arith.constant 34 : index
    %c0_110 = arith.constant 0 : index
    %179 = vector.load %arg12[%c34, %c0_110] : memref<272x32xbf16, #tpu.memory_space<vmem>>, vector<112x32xbf16>
    %180 = tpu.concatenate %171, %172, %173, %174, %175, %176, %177, %178, %179 in 1 : vector<112x32xbf16>, vector<112x32xbf16>, vector<112x32xbf16>, vector<112x32xbf16>, vector<112x32xbf16>, vector<112x32xbf16>, vector<112x32xbf16>, vector<112x32xbf16>, vector<112x32xbf16> -> vector<112x288xbf16>
    %cst_111 = arith.constant dense<0.000000e+00> : vector<112x64xf32>
    %181 = tpu.matmul %180, %169, %cst_111 {dimension_numbers = #tpu.dot_dimension_numbers<[1], [0], [0], [1], [0, 0, 1, 1], [], []>} : vector<112x288xbf16>, vector<288x64xbf16>, vector<112x64xf32> -> vector<112x64xf32>
    %182 = vector.broadcast %170 : vector<1x64xf32> to vector<112x64xf32>
    %183 = arith.addf %181, %182 : vector<112x64xf32>
    %cst_112 = arith.constant 0.000000e+00 : f32
    %184 = vector.broadcast %cst_112 : f32 to vector<112x64xf32>
    %185 = arith.maximumf %183, %184 : vector<112x64xf32>
    %c0_113 = arith.constant 0 : index
    %c0_114 = arith.constant 0 : index
    %186 = vector.load %arg13[%c0_113, %c0_114] : memref<224x64xf32, #tpu.memory_space<vmem>>, vector<112x64xf32>
    tpu.vector_store %arg13[%c0_113, %c0_114], %185 {strides = array<i32>} : memref<224x64xf32, #tpu.memory_space<vmem>>, vector<112x64xf32>,
    %c112_115 = arith.constant 112 : index
    %c0_116 = arith.constant 0 : index
    %187 = vector.load %arg12[%c112_115, %c0_116] : memref<272x32xbf16, #tpu.memory_space<vmem>>, vector<112x32xbf16>
    %c113 = arith.constant 113 : index
    %c0_117 = arith.constant 0 : index
    %188 = vector.load %arg12[%c113, %c0_117] : memref<272x32xbf16, #tpu.memory_space<vmem>>, vector<112x32xbf16>
    %c114 = arith.constant 114 : index
    %c0_118 = arith.constant 0 : index
    %189 = vector.load %arg12[%c114, %c0_118] : memref<272x32xbf16, #tpu.memory_space<vmem>>, vector<112x32xbf16>
    %c128_119 = arith.constant 128 : index
    %c0_120 = arith.constant 0 : index
    %190 = vector.load %arg12[%c128_119, %c0_120] : memref<272x32xbf16, #tpu.memory_space<vmem>>, vector<112x32xbf16>
    %c129_121 = arith.constant 129 : index
    %c0_122 = arith.constant 0 : index
    %191 = vector.load %arg12[%c129_121, %c0_122] : memref<272x32xbf16, #tpu.memory_space<vmem>>, vector<112x32xbf16>
    %c130 = arith.constant 130 : index
    %c0_123 = arith.constant 0 : index
    %192 = vector.load %arg12[%c130, %c0_123] : memref<272x32xbf16, #tpu.memory_space<vmem>>, vector<112x32xbf16>
    %c144_124 = arith.constant 144 : index
    %c0_125 = arith.constant 0 : index
    %193 = vector.load %arg12[%c144_124, %c0_125] : memref<272x32xbf16, #tpu.memory_space<vmem>>, vector<112x32xbf16>
    %c145 = arith.constant 145 : index
    %c0_126 = arith.constant 0 : index
    %194 = vector.load %arg12[%c145, %c0_126] : memref<272x32xbf16, #tpu.memory_space<vmem>>, vector<112x32xbf16>
    %c146 = arith.constant 146 : index
    %c0_127 = arith.constant 0 : index
    %195 = vector.load %arg12[%c146, %c0_127] : memref<272x32xbf16, #tpu.memory_space<vmem>>, vector<112x32xbf16>
    %196 = tpu.concatenate %187, %188, %189, %190, %191, %192, %193, %194, %195 in 1 : vector<112x32xbf16>, vector<112x32xbf16>, vector<112x32xbf16>, vector<112x32xbf16>, vector<112x32xbf16>, vector<112x32xbf16>, vector<112x32xbf16>, vector<112x32xbf16>, vector<112x32xbf16> -> vector<112x288xbf16>
    %cst_128 = arith.constant dense<0.000000e+00> : vector<112x64xf32>
    %197 = tpu.matmul %196, %169, %cst_128 {dimension_numbers = #tpu.dot_dimension_numbers<[1], [0], [0], [1], [0, 0, 1, 1], [], []>} : vector<112x288xbf16>, vector<288x64xbf16>, vector<112x64xf32> -> vector<112x64xf32>
    %198 = vector.broadcast %170 : vector<1x64xf32> to vector<112x64xf32>
    %199 = arith.addf %197, %198 : vector<112x64xf32>
    %cst_129 = arith.constant 0.000000e+00 : f32
    %200 = vector.broadcast %cst_129 : f32 to vector<112x64xf32>
    %201 = arith.maximumf %199, %200 : vector<112x64xf32>
    %c112_130 = arith.constant 112 : index
    %c0_131 = arith.constant 0 : index
    %202 = vector.load %arg13[%c112_130, %c0_131] : memref<224x64xf32, #tpu.memory_space<vmem>>, vector<112x64xf32>
    tpu.vector_store %arg13[%c112_130, %c0_131], %201 {strides = array<i32>} : memref<224x64xf32, #tpu.memory_space<vmem>>, vector<112x64xf32>,
    %c0_132 = arith.constant 0 : index
    %c0_133 = arith.constant 0 : index
    %203 = tpu.strided_load %arg13[%c0_132, %c0_133] {strides = array<i32: 2, 1>} : memref<224x64xf32, #tpu.memory_space<vmem>>, vector<8x64xf32>
    %c1_134 = arith.constant 1 : index
    %c0_135 = arith.constant 0 : index
    %204 = tpu.strided_load %arg13[%c1_134, %c0_135] {strides = array<i32: 2, 1>} : memref<224x64xf32, #tpu.memory_space<vmem>>, vector<8x64xf32>
    %c16_136 = arith.constant 16 : index
    %c0_137 = arith.constant 0 : index
    %205 = tpu.strided_load %arg13[%c16_136, %c0_137] {strides = array<i32: 2, 1>} : memref<224x64xf32, #tpu.memory_space<vmem>>, vector<8x64xf32>
    %c17_138 = arith.constant 17 : index
    %c0_139 = arith.constant 0 : index
    %206 = tpu.strided_load %arg13[%c17_138, %c0_139] {strides = array<i32: 2, 1>} : memref<224x64xf32, #tpu.memory_space<vmem>>, vector<8x64xf32>
    %207 = arith.maximumf %203, %204 : vector<8x64xf32>
    %208 = arith.maximumf %205, %206 : vector<8x64xf32>
    %209 = arith.maximumf %207, %208 : vector<8x64xf32>
    %210 = vector.extract_strided_slice %209 {offsets = [0, 0], sizes = [1, 64], strides = [1, 1]} : vector<8x64xf32> to vector<1x64xf32>
    %211 = arith.truncf %210 : vector<1x64xf32> to vector<1x64xbf16>
    %c0_140 = arith.constant 0 : index
    %c0_141 = arith.constant 0 : index
    %212 = vector.load %arg14[%c0_140, %c0_141] : memref<1x3136xbf16, #tpu.memory_space<vmem>>, vector<1x64xbf16>
    tpu.vector_store %arg14[%c0_140, %c0_141], %211 {strides = array<i32>} : memref<1x3136xbf16, #tpu.memory_space<vmem>>, vector<1x64xbf16>,
    %213 = vector.extract_strided_slice %209 {offsets = [1, 0], sizes = [1, 64], strides = [1, 1]} : vector<8x64xf32> to vector<1x64xf32>
    %214 = arith.truncf %213 : vector<1x64xf32> to vector<1x64xbf16>
    %c0_142 = arith.constant 0 : index
    %c64_143 = arith.constant 64 : index
    %215 = vector.load %arg14[%c0_142, %c64_143] : memref<1x3136xbf16, #tpu.memory_space<vmem>>, vector<1x64xbf16>
    tpu.vector_store %arg14[%c0_142, %c64_143], %214 {strides = array<i32>} : memref<1x3136xbf16, #tpu.memory_space<vmem>>, vector<1x64xbf16>,
    %216 = vector.extract_strided_slice %209 {offsets = [2, 0], sizes = [1, 64], strides = [1, 1]} : vector<8x64xf32> to vector<1x64xf32>
    %217 = arith.truncf %216 : vector<1x64xf32> to vector<1x64xbf16>
    %c0_144 = arith.constant 0 : index
    %c128_145 = arith.constant 128 : index
    %218 = vector.load %arg14[%c0_144, %c128_145] : memref<1x3136xbf16, #tpu.memory_space<vmem>>, vector<1x64xbf16>
    tpu.vector_store %arg14[%c0_144, %c128_145], %217 {strides = array<i32>} : memref<1x3136xbf16, #tpu.memory_space<vmem>>, vector<1x64xbf16>,
    %219 = vector.extract_strided_slice %209 {offsets = [3, 0], sizes = [1, 64], strides = [1, 1]} : vector<8x64xf32> to vector<1x64xf32>
    %220 = arith.truncf %219 : vector<1x64xf32> to vector<1x64xbf16>
    %c0_146 = arith.constant 0 : index
    %c192_147 = arith.constant 192 : index
    %221 = vector.load %arg14[%c0_146, %c192_147] : memref<1x3136xbf16, #tpu.memory_space<vmem>>, vector<1x64xbf16>
    tpu.vector_store %arg14[%c0_146, %c192_147], %220 {strides = array<i32>} : memref<1x3136xbf16, #tpu.memory_space<vmem>>, vector<1x64xbf16>,
    %222 = vector.extract_strided_slice %209 {offsets = [4, 0], sizes = [1, 64], strides = [1, 1]} : vector<8x64xf32> to vector<1x64xf32>
    %223 = arith.truncf %222 : vector<1x64xf32> to vector<1x64xbf16>
    %c0_148 = arith.constant 0 : index
    %c256_149 = arith.constant 256 : index
    %224 = vector.load %arg14[%c0_148, %c256_149] : memref<1x3136xbf16, #tpu.memory_space<vmem>>, vector<1x64xbf16>
    tpu.vector_store %arg14[%c0_148, %c256_149], %223 {strides = array<i32>} : memref<1x3136xbf16, #tpu.memory_space<vmem>>, vector<1x64xbf16>,
    %225 = vector.extract_strided_slice %209 {offsets = [5, 0], sizes = [1, 64], strides = [1, 1]} : vector<8x64xf32> to vector<1x64xf32>
    %226 = arith.truncf %225 : vector<1x64xf32> to vector<1x64xbf16>
    %c0_150 = arith.constant 0 : index
    %c320_151 = arith.constant 320 : index
    %227 = vector.load %arg14[%c0_150, %c320_151] : memref<1x3136xbf16, #tpu.memory_space<vmem>>, vector<1x64xbf16>
    tpu.vector_store %arg14[%c0_150, %c320_151], %226 {strides = array<i32>} : memref<1x3136xbf16, #tpu.memory_space<vmem>>, vector<1x64xbf16>,
    %228 = vector.extract_strided_slice %209 {offsets = [6, 0], sizes = [1, 64], strides = [1, 1]} : vector<8x64xf32> to vector<1x64xf32>
    %229 = arith.truncf %228 : vector<1x64xf32> to vector<1x64xbf16>
    %c0_152 = arith.constant 0 : index
    %c384_153 = arith.constant 384 : index
    %230 = vector.load %arg14[%c0_152, %c384_153] : memref<1x3136xbf16, #tpu.memory_space<vmem>>, vector<1x64xbf16>
    tpu.vector_store %arg14[%c0_152, %c384_153], %229 {strides = array<i32>} : memref<1x3136xbf16, #tpu.memory_space<vmem>>, vector<1x64xbf16>,
    %c32_154 = arith.constant 32 : index
    %c0_155 = arith.constant 0 : index
    %231 = tpu.strided_load %arg13[%c32_154, %c0_155] {strides = array<i32: 2, 1>} : memref<224x64xf32, #tpu.memory_space<vmem>>, vector<8x64xf32>
    %c33_156 = arith.constant 33 : index
    %c0_157 = arith.constant 0 : index
    %232 = tpu.strided_load %arg13[%c33_156, %c0_157] {strides = array<i32: 2, 1>} : memref<224x64xf32, #tpu.memory_space<vmem>>, vector<8x64xf32>
    %c48_158 = arith.constant 48 : index
    %c0_159 = arith.constant 0 : index
    %233 = tpu.strided_load %arg13[%c48_158, %c0_159] {strides = array<i32: 2, 1>} : memref<224x64xf32, #tpu.memory_space<vmem>>, vector<8x64xf32>
    %c49 = arith.constant 49 : index
    %c0_160 = arith.constant 0 : index
    %234 = tpu.strided_load %arg13[%c49, %c0_160] {strides = array<i32: 2, 1>} : memref<224x64xf32, #tpu.memory_space<vmem>>, vector<8x64xf32>
    %235 = arith.maximumf %231, %232 : vector<8x64xf32>
    %236 = arith.maximumf %233, %234 : vector<8x64xf32>
    %237 = arith.maximumf %235, %236 : vector<8x64xf32>
    %238 = vector.extract_strided_slice %237 {offsets = [0, 0], sizes = [1, 64], strides = [1, 1]} : vector<8x64xf32> to vector<1x64xf32>
    %239 = arith.truncf %238 : vector<1x64xf32> to vector<1x64xbf16>
    %c0_161 = arith.constant 0 : index
    %c448_162 = arith.constant 448 : index
    %240 = vector.load %arg14[%c0_161, %c448_162] : memref<1x3136xbf16, #tpu.memory_space<vmem>>, vector<1x64xbf16>
    tpu.vector_store %arg14[%c0_161, %c448_162], %239 {strides = array<i32>} : memref<1x3136xbf16, #tpu.memory_space<vmem>>, vector<1x64xbf16>,
    %241 = vector.extract_strided_slice %237 {offsets = [1, 0], sizes = [1, 64], strides = [1, 1]} : vector<8x64xf32> to vector<1x64xf32>
    %242 = arith.truncf %241 : vector<1x64xf32> to vector<1x64xbf16>
    %c0_163 = arith.constant 0 : index
    %c512_164 = arith.constant 512 : index
    %243 = vector.load %arg14[%c0_163, %c512_164] : memref<1x3136xbf16, #tpu.memory_space<vmem>>, vector<1x64xbf16>
    tpu.vector_store %arg14[%c0_163, %c512_164], %242 {strides = array<i32>} : memref<1x3136xbf16, #tpu.memory_space<vmem>>, vector<1x64xbf16>,
    %244 = vector.extract_strided_slice %237 {offsets = [2, 0], sizes = [1, 64], strides = [1, 1]} : vector<8x64xf32> to vector<1x64xf32>
    %245 = arith.truncf %244 : vector<1x64xf32> to vector<1x64xbf16>
    %c0_165 = arith.constant 0 : index
    %c576_166 = arith.constant 576 : index
    %246 = vector.load %arg14[%c0_165, %c576_166] : memref<1x3136xbf16, #tpu.memory_space<vmem>>, vector<1x64xbf16>
    tpu.vector_store %arg14[%c0_165, %c576_166], %245 {strides = array<i32>} : memref<1x3136xbf16, #tpu.memory_space<vmem>>, vector<1x64xbf16>,
    %247 = vector.extract_strided_slice %237 {offsets = [3, 0], sizes = [1, 64], strides = [1, 1]} : vector<8x64xf32> to vector<1x64xf32>
    %248 = arith.truncf %247 : vector<1x64xf32> to vector<1x64xbf16>
    %c0_167 = arith.constant 0 : index
    %c640_168 = arith.constant 640 : index
    %249 = vector.load %arg14[%c0_167, %c640_168] : memref<1x3136xbf16, #tpu.memory_space<vmem>>, vector<1x64xbf16>
    tpu.vector_store %arg14[%c0_167, %c640_168], %248 {strides = array<i32>} : memref<1x3136xbf16, #tpu.memory_space<vmem>>, vector<1x64xbf16>,
    %250 = vector.extract_strided_slice %237 {offsets = [4, 0], sizes = [1, 64], strides = [1, 1]} : vector<8x64xf32> to vector<1x64xf32>
    %251 = arith.truncf %250 : vector<1x64xf32> to vector<1x64xbf16>
    %c0_169 = arith.constant 0 : index
    %c704_170 = arith.constant 704 : index
    %252 = vector.load %arg14[%c0_169, %c704_170] : memref<1x3136xbf16, #tpu.memory_space<vmem>>, vector<1x64xbf16>
    tpu.vector_store %arg14[%c0_169, %c704_170], %251 {strides = array<i32>} : memref<1x3136xbf16, #tpu.memory_space<vmem>>, vector<1x64xbf16>,
    %253 = vector.extract_strided_slice %237 {offsets = [5, 0], sizes = [1, 64], strides = [1, 1]} : vector<8x64xf32> to vector<1x64xf32>
    %254 = arith.truncf %253 : vector<1x64xf32> to vector<1x64xbf16>
    %c0_171 = arith.constant 0 : index
    %c768_172 = arith.constant 768 : index
    %255 = vector.load %arg14[%c0_171, %c768_172] : memref<1x3136xbf16, #tpu.memory_space<vmem>>, vector<1x64xbf16>
    tpu.vector_store %arg14[%c0_171, %c768_172], %254 {strides = array<i32>} : memref<1x3136xbf16, #tpu.memory_space<vmem>>, vector<1x64xbf16>,
    %256 = vector.extract_strided_slice %237 {offsets = [6, 0], sizes = [1, 64], strides = [1, 1]} : vector<8x64xf32> to vector<1x64xf32>
    %257 = arith.truncf %256 : vector<1x64xf32> to vector<1x64xbf16>
    %c0_173 = arith.constant 0 : index
    %c832_174 = arith.constant 832 : index
    %258 = vector.load %arg14[%c0_173, %c832_174] : memref<1x3136xbf16, #tpu.memory_space<vmem>>, vector<1x64xbf16>
    tpu.vector_store %arg14[%c0_173, %c832_174], %257 {strides = array<i32>} : memref<1x3136xbf16, #tpu.memory_space<vmem>>, vector<1x64xbf16>,
    %c64_175 = arith.constant 64 : index
    %c0_176 = arith.constant 0 : index
    %259 = tpu.strided_load %arg13[%c64_175, %c0_176] {strides = array<i32: 2, 1>} : memref<224x64xf32, #tpu.memory_space<vmem>>, vector<8x64xf32>
    %c65_177 = arith.constant 65 : index
    %c0_178 = arith.constant 0 : index
    %260 = tpu.strided_load %arg13[%c65_177, %c0_178] {strides = array<i32: 2, 1>} : memref<224x64xf32, #tpu.memory_space<vmem>>, vector<8x64xf32>
    %c80_179 = arith.constant 80 : index
    %c0_180 = arith.constant 0 : index
    %261 = tpu.strided_load %arg13[%c80_179, %c0_180] {strides = array<i32: 2, 1>} : memref<224x64xf32, #tpu.memory_space<vmem>>, vector<8x64xf32>
    %c81 = arith.constant 81 : index
    %c0_181 = arith.constant 0 : index
    %262 = tpu.strided_load %arg13[%c81, %c0_181] {strides = array<i32: 2, 1>} : memref<224x64xf32, #tpu.memory_space<vmem>>, vector<8x64xf32>
    %263 = arith.maximumf %259, %260 : vector<8x64xf32>
    %264 = arith.maximumf %261, %262 : vector<8x64xf32>
    %265 = arith.maximumf %263, %264 : vector<8x64xf32>
    %266 = vector.extract_strided_slice %265 {offsets = [0, 0], sizes = [1, 64], strides = [1, 1]} : vector<8x64xf32> to vector<1x64xf32>
    %267 = arith.truncf %266 : vector<1x64xf32> to vector<1x64xbf16>
    %c0_182 = arith.constant 0 : index
    %c896 = arith.constant 896 : index
    %268 = vector.load %arg14[%c0_182, %c896] : memref<1x3136xbf16, #tpu.memory_space<vmem>>, vector<1x64xbf16>
    tpu.vector_store %arg14[%c0_182, %c896], %267 {strides = array<i32>} : memref<1x3136xbf16, #tpu.memory_space<vmem>>, vector<1x64xbf16>,
    %269 = vector.extract_strided_slice %265 {offsets = [1, 0], sizes = [1, 64], strides = [1, 1]} : vector<8x64xf32> to vector<1x64xf32>
    %270 = arith.truncf %269 : vector<1x64xf32> to vector<1x64xbf16>
    %c0_183 = arith.constant 0 : index
    %c960 = arith.constant 960 : index
    %271 = vector.load %arg14[%c0_183, %c960] : memref<1x3136xbf16, #tpu.memory_space<vmem>>, vector<1x64xbf16>
    tpu.vector_store %arg14[%c0_183, %c960], %270 {strides = array<i32>} : memref<1x3136xbf16, #tpu.memory_space<vmem>>, vector<1x64xbf16>,
    %272 = vector.extract_strided_slice %265 {offsets = [2, 0], sizes = [1, 64], strides = [1, 1]} : vector<8x64xf32> to vector<1x64xf32>
    %273 = arith.truncf %272 : vector<1x64xf32> to vector<1x64xbf16>
    %c0_184 = arith.constant 0 : index
    %c1024 = arith.constant 1024 : index
    %274 = vector.load %arg14[%c0_184, %c1024] : memref<1x3136xbf16, #tpu.memory_space<vmem>>, vector<1x64xbf16>
    tpu.vector_store %arg14[%c0_184, %c1024], %273 {strides = array<i32>} : memref<1x3136xbf16, #tpu.memory_space<vmem>>, vector<1x64xbf16>,
    %275 = vector.extract_strided_slice %265 {offsets = [3, 0], sizes = [1, 64], strides = [1, 1]} : vector<8x64xf32> to vector<1x64xf32>
    %276 = arith.truncf %275 : vector<1x64xf32> to vector<1x64xbf16>
    %c0_185 = arith.constant 0 : index
    %c1088 = arith.constant 1088 : index
    %277 = vector.load %arg14[%c0_185, %c1088] : memref<1x3136xbf16, #tpu.memory_space<vmem>>, vector<1x64xbf16>
    tpu.vector_store %arg14[%c0_185, %c1088], %276 {strides = array<i32>} : memref<1x3136xbf16, #tpu.memory_space<vmem>>, vector<1x64xbf16>,
    %278 = vector.extract_strided_slice %265 {offsets = [4, 0], sizes = [1, 64], strides = [1, 1]} : vector<8x64xf32> to vector<1x64xf32>
    %279 = arith.truncf %278 : vector<1x64xf32> to vector<1x64xbf16>
    %c0_186 = arith.constant 0 : index
    %c1152 = arith.constant 1152 : index
    %280 = vector.load %arg14[%c0_186, %c1152] : memref<1x3136xbf16, #tpu.memory_space<vmem>>, vector<1x64xbf16>
    tpu.vector_store %arg14[%c0_186, %c1152], %279 {strides = array<i32>} : memref<1x3136xbf16, #tpu.memory_space<vmem>>, vector<1x64xbf16>,
    %281 = vector.extract_strided_slice %265 {offsets = [5, 0], sizes = [1, 64], strides = [1, 1]} : vector<8x64xf32> to vector<1x64xf32>
    %282 = arith.truncf %281 : vector<1x64xf32> to vector<1x64xbf16>
    %c0_187 = arith.constant 0 : index
    %c1216 = arith.constant 1216 : index
    %283 = vector.load %arg14[%c0_187, %c1216] : memref<1x3136xbf16, #tpu.memory_space<vmem>>, vector<1x64xbf16>
    tpu.vector_store %arg14[%c0_187, %c1216], %282 {strides = array<i32>} : memref<1x3136xbf16, #tpu.memory_space<vmem>>, vector<1x64xbf16>,
    %284 = vector.extract_strided_slice %265 {offsets = [6, 0], sizes = [1, 64], strides = [1, 1]} : vector<8x64xf32> to vector<1x64xf32>
    %285 = arith.truncf %284 : vector<1x64xf32> to vector<1x64xbf16>
    %c0_188 = arith.constant 0 : index
    %c1280 = arith.constant 1280 : index
    %286 = vector.load %arg14[%c0_188, %c1280] : memref<1x3136xbf16, #tpu.memory_space<vmem>>, vector<1x64xbf16>
    tpu.vector_store %arg14[%c0_188, %c1280], %285 {strides = array<i32>} : memref<1x3136xbf16, #tpu.memory_space<vmem>>, vector<1x64xbf16>,
    %c96_189 = arith.constant 96 : index
    %c0_190 = arith.constant 0 : index
    %287 = tpu.strided_load %arg13[%c96_189, %c0_190] {strides = array<i32: 2, 1>} : memref<224x64xf32, #tpu.memory_space<vmem>>, vector<8x64xf32>
    %c97_191 = arith.constant 97 : index
    %c0_192 = arith.constant 0 : index
    %288 = tpu.strided_load %arg13[%c97_191, %c0_192] {strides = array<i32: 2, 1>} : memref<224x64xf32, #tpu.memory_space<vmem>>, vector<8x64xf32>
    %c112_193 = arith.constant 112 : index
    %c0_194 = arith.constant 0 : index
    %289 = tpu.strided_load %arg13[%c112_193, %c0_194] {strides = array<i32: 2, 1>} : memref<224x64xf32, #tpu.memory_space<vmem>>, vector<8x64xf32>
    %c113_195 = arith.constant 113 : index
    %c0_196 = arith.constant 0 : index
    %290 = tpu.strided_load %arg13[%c113_195, %c0_196] {strides = array<i32: 2, 1>} : memref<224x64xf32, #tpu.memory_space<vmem>>, vector<8x64xf32>
    %291 = arith.maximumf %287, %288 : vector<8x64xf32>
    %292 = arith.maximumf %289, %290 : vector<8x64xf32>
    %293 = arith.maximumf %291, %292 : vector<8x64xf32>
    %294 = vector.extract_strided_slice %293 {offsets = [0, 0], sizes = [1, 64], strides = [1, 1]} : vector<8x64xf32> to vector<1x64xf32>
    %295 = arith.truncf %294 : vector<1x64xf32> to vector<1x64xbf16>
    %c0_197 = arith.constant 0 : index
    %c1344 = arith.constant 1344 : index
    %296 = vector.load %arg14[%c0_197, %c1344] : memref<1x3136xbf16, #tpu.memory_space<vmem>>, vector<1x64xbf16>
    tpu.vector_store %arg14[%c0_197, %c1344], %295 {strides = array<i32>} : memref<1x3136xbf16, #tpu.memory_space<vmem>>, vector<1x64xbf16>,
    %297 = vector.extract_strided_slice %293 {offsets = [1, 0], sizes = [1, 64], strides = [1, 1]} : vector<8x64xf32> to vector<1x64xf32>
    %298 = arith.truncf %297 : vector<1x64xf32> to vector<1x64xbf16>
    %c0_198 = arith.constant 0 : index
    %c1408 = arith.constant 1408 : index
    %299 = vector.load %arg14[%c0_198, %c1408] : memref<1x3136xbf16, #tpu.memory_space<vmem>>, vector<1x64xbf16>
    tpu.vector_store %arg14[%c0_198, %c1408], %298 {strides = array<i32>} : memref<1x3136xbf16, #tpu.memory_space<vmem>>, vector<1x64xbf16>,
    %300 = vector.extract_strided_slice %293 {offsets = [2, 0], sizes = [1, 64], strides = [1, 1]} : vector<8x64xf32> to vector<1x64xf32>
    %301 = arith.truncf %300 : vector<1x64xf32> to vector<1x64xbf16>
    %c0_199 = arith.constant 0 : index
    %c1472 = arith.constant 1472 : index
    %302 = vector.load %arg14[%c0_199, %c1472] : memref<1x3136xbf16, #tpu.memory_space<vmem>>, vector<1x64xbf16>
    tpu.vector_store %arg14[%c0_199, %c1472], %301 {strides = array<i32>} : memref<1x3136xbf16, #tpu.memory_space<vmem>>, vector<1x64xbf16>,
    %303 = vector.extract_strided_slice %293 {offsets = [3, 0], sizes = [1, 64], strides = [1, 1]} : vector<8x64xf32> to vector<1x64xf32>
    %304 = arith.truncf %303 : vector<1x64xf32> to vector<1x64xbf16>
    %c0_200 = arith.constant 0 : index
    %c1536 = arith.constant 1536 : index
    %305 = vector.load %arg14[%c0_200, %c1536] : memref<1x3136xbf16, #tpu.memory_space<vmem>>, vector<1x64xbf16>
    tpu.vector_store %arg14[%c0_200, %c1536], %304 {strides = array<i32>} : memref<1x3136xbf16, #tpu.memory_space<vmem>>, vector<1x64xbf16>,
    %306 = vector.extract_strided_slice %293 {offsets = [4, 0], sizes = [1, 64], strides = [1, 1]} : vector<8x64xf32> to vector<1x64xf32>
    %307 = arith.truncf %306 : vector<1x64xf32> to vector<1x64xbf16>
    %c0_201 = arith.constant 0 : index
    %c1600 = arith.constant 1600 : index
    %308 = vector.load %arg14[%c0_201, %c1600] : memref<1x3136xbf16, #tpu.memory_space<vmem>>, vector<1x64xbf16>
    tpu.vector_store %arg14[%c0_201, %c1600], %307 {strides = array<i32>} : memref<1x3136xbf16, #tpu.memory_space<vmem>>, vector<1x64xbf16>,
    %309 = vector.extract_strided_slice %293 {offsets = [5, 0], sizes = [1, 64], strides = [1, 1]} : vector<8x64xf32> to vector<1x64xf32>
    %310 = arith.truncf %309 : vector<1x64xf32> to vector<1x64xbf16>
    %c0_202 = arith.constant 0 : index
    %c1664 = arith.constant 1664 : index
    %311 = vector.load %arg14[%c0_202, %c1664] : memref<1x3136xbf16, #tpu.memory_space<vmem>>, vector<1x64xbf16>
    tpu.vector_store %arg14[%c0_202, %c1664], %310 {strides = array<i32>} : memref<1x3136xbf16, #tpu.memory_space<vmem>>, vector<1x64xbf16>,
    %312 = vector.extract_strided_slice %293 {offsets = [6, 0], sizes = [1, 64], strides = [1, 1]} : vector<8x64xf32> to vector<1x64xf32>
    %313 = arith.truncf %312 : vector<1x64xf32> to vector<1x64xbf16>
    %c0_203 = arith.constant 0 : index
    %c1728 = arith.constant 1728 : index
    %314 = vector.load %arg14[%c0_203, %c1728] : memref<1x3136xbf16, #tpu.memory_space<vmem>>, vector<1x64xbf16>
    tpu.vector_store %arg14[%c0_203, %c1728], %313 {strides = array<i32>} : memref<1x3136xbf16, #tpu.memory_space<vmem>>, vector<1x64xbf16>,
    %c128_204 = arith.constant 128 : index
    %c0_205 = arith.constant 0 : index
    %315 = tpu.strided_load %arg13[%c128_204, %c0_205] {strides = array<i32: 2, 1>} : memref<224x64xf32, #tpu.memory_space<vmem>>, vector<8x64xf32>
    %c129_206 = arith.constant 129 : index
    %c0_207 = arith.constant 0 : index
    %316 = tpu.strided_load %arg13[%c129_206, %c0_207] {strides = array<i32: 2, 1>} : memref<224x64xf32, #tpu.memory_space<vmem>>, vector<8x64xf32>
    %c144_208 = arith.constant 144 : index
    %c0_209 = arith.constant 0 : index
    %317 = tpu.strided_load %arg13[%c144_208, %c0_209] {strides = array<i32: 2, 1>} : memref<224x64xf32, #tpu.memory_space<vmem>>, vector<8x64xf32>
    %c145_210 = arith.constant 145 : index
    %c0_211 = arith.constant 0 : index
    %318 = tpu.strided_load %arg13[%c145_210, %c0_211] {strides = array<i32: 2, 1>} : memref<224x64xf32, #tpu.memory_space<vmem>>, vector<8x64xf32>
    %319 = arith.maximumf %315, %316 : vector<8x64xf32>
    %320 = arith.maximumf %317, %318 : vector<8x64xf32>
    %321 = arith.maximumf %319, %320 : vector<8x64xf32>
    %322 = vector.extract_strided_slice %321 {offsets = [0, 0], sizes = [1, 64], strides = [1, 1]} : vector<8x64xf32> to vector<1x64xf32>
    %323 = arith.truncf %322 : vector<1x64xf32> to vector<1x64xbf16>
    %c0_212 = arith.constant 0 : index
    %c1792 = arith.constant 1792 : index
    %324 = vector.load %arg14[%c0_212, %c1792] : memref<1x3136xbf16, #tpu.memory_space<vmem>>, vector<1x64xbf16>
    tpu.vector_store %arg14[%c0_212, %c1792], %323 {strides = array<i32>} : memref<1x3136xbf16, #tpu.memory_space<vmem>>, vector<1x64xbf16>,
    %325 = vector.extract_strided_slice %321 {offsets = [1, 0], sizes = [1, 64], strides = [1, 1]} : vector<8x64xf32> to vector<1x64xf32>
    %326 = arith.truncf %325 : vector<1x64xf32> to vector<1x64xbf16>
    %c0_213 = arith.constant 0 : index
    %c1856 = arith.constant 1856 : index
    %327 = vector.load %arg14[%c0_213, %c1856] : memref<1x3136xbf16, #tpu.memory_space<vmem>>, vector<1x64xbf16>
    tpu.vector_store %arg14[%c0_213, %c1856], %326 {strides = array<i32>} : memref<1x3136xbf16, #tpu.memory_space<vmem>>, vector<1x64xbf16>,
    %328 = vector.extract_strided_slice %321 {offsets = [2, 0], sizes = [1, 64], strides = [1, 1]} : vector<8x64xf32> to vector<1x64xf32>
    %329 = arith.truncf %328 : vector<1x64xf32> to vector<1x64xbf16>
    %c0_214 = arith.constant 0 : index
    %c1920 = arith.constant 1920 : index
    %330 = vector.load %arg14[%c0_214, %c1920] : memref<1x3136xbf16, #tpu.memory_space<vmem>>, vector<1x64xbf16>
    tpu.vector_store %arg14[%c0_214, %c1920], %329 {strides = array<i32>} : memref<1x3136xbf16, #tpu.memory_space<vmem>>, vector<1x64xbf16>,
    %331 = vector.extract_strided_slice %321 {offsets = [3, 0], sizes = [1, 64], strides = [1, 1]} : vector<8x64xf32> to vector<1x64xf32>
    %332 = arith.truncf %331 : vector<1x64xf32> to vector<1x64xbf16>
    %c0_215 = arith.constant 0 : index
    %c1984 = arith.constant 1984 : index
    %333 = vector.load %arg14[%c0_215, %c1984] : memref<1x3136xbf16, #tpu.memory_space<vmem>>, vector<1x64xbf16>
    tpu.vector_store %arg14[%c0_215, %c1984], %332 {strides = array<i32>} : memref<1x3136xbf16, #tpu.memory_space<vmem>>, vector<1x64xbf16>,
    %334 = vector.extract_strided_slice %321 {offsets = [4, 0], sizes = [1, 64], strides = [1, 1]} : vector<8x64xf32> to vector<1x64xf32>
    %335 = arith.truncf %334 : vector<1x64xf32> to vector<1x64xbf16>
    %c0_216 = arith.constant 0 : index
    %c2048 = arith.constant 2048 : index
    %336 = vector.load %arg14[%c0_216, %c2048] : memref<1x3136xbf16, #tpu.memory_space<vmem>>, vector<1x64xbf16>
    tpu.vector_store %arg14[%c0_216, %c2048], %335 {strides = array<i32>} : memref<1x3136xbf16, #tpu.memory_space<vmem>>, vector<1x64xbf16>,
    %337 = vector.extract_strided_slice %321 {offsets = [5, 0], sizes = [1, 64], strides = [1, 1]} : vector<8x64xf32> to vector<1x64xf32>
    %338 = arith.truncf %337 : vector<1x64xf32> to vector<1x64xbf16>
    %c0_217 = arith.constant 0 : index
    %c2112 = arith.constant 2112 : index
    %339 = vector.load %arg14[%c0_217, %c2112] : memref<1x3136xbf16, #tpu.memory_space<vmem>>, vector<1x64xbf16>
    tpu.vector_store %arg14[%c0_217, %c2112], %338 {strides = array<i32>} : memref<1x3136xbf16, #tpu.memory_space<vmem>>, vector<1x64xbf16>,
    %340 = vector.extract_strided_slice %321 {offsets = [6, 0], sizes = [1, 64], strides = [1, 1]} : vector<8x64xf32> to vector<1x64xf32>
    %341 = arith.truncf %340 : vector<1x64xf32> to vector<1x64xbf16>
    %c0_218 = arith.constant 0 : index
    %c2176 = arith.constant 2176 : index
    %342 = vector.load %arg14[%c0_218, %c2176] : memref<1x3136xbf16, #tpu.memory_space<vmem>>, vector<1x64xbf16>
    tpu.vector_store %arg14[%c0_218, %c2176], %341 {strides = array<i32>} : memref<1x3136xbf16, #tpu.memory_space<vmem>>, vector<1x64xbf16>,
    %c160_219 = arith.constant 160 : index
    %c0_220 = arith.constant 0 : index
    %343 = tpu.strided_load %arg13[%c160_219, %c0_220] {strides = array<i32: 2, 1>} : memref<224x64xf32, #tpu.memory_space<vmem>>, vector<8x64xf32>
    %c161_221 = arith.constant 161 : index
    %c0_222 = arith.constant 0 : index
    %344 = tpu.strided_load %arg13[%c161_221, %c0_222] {strides = array<i32: 2, 1>} : memref<224x64xf32, #tpu.memory_space<vmem>>, vector<8x64xf32>
    %c176_223 = arith.constant 176 : index
    %c0_224 = arith.constant 0 : index
    %345 = tpu.strided_load %arg13[%c176_223, %c0_224] {strides = array<i32: 2, 1>} : memref<224x64xf32, #tpu.memory_space<vmem>>, vector<8x64xf32>
    %c177 = arith.constant 177 : index
    %c0_225 = arith.constant 0 : index
    %346 = tpu.strided_load %arg13[%c177, %c0_225] {strides = array<i32: 2, 1>} : memref<224x64xf32, #tpu.memory_space<vmem>>, vector<8x64xf32>
    %347 = arith.maximumf %343, %344 : vector<8x64xf32>
    %348 = arith.maximumf %345, %346 : vector<8x64xf32>
    %349 = arith.maximumf %347, %348 : vector<8x64xf32>
    %350 = vector.extract_strided_slice %349 {offsets = [0, 0], sizes = [1, 64], strides = [1, 1]} : vector<8x64xf32> to vector<1x64xf32>
    %351 = arith.truncf %350 : vector<1x64xf32> to vector<1x64xbf16>
    %c0_226 = arith.constant 0 : index
    %c2240 = arith.constant 2240 : index
    %352 = vector.load %arg14[%c0_226, %c2240] : memref<1x3136xbf16, #tpu.memory_space<vmem>>, vector<1x64xbf16>
    tpu.vector_store %arg14[%c0_226, %c2240], %351 {strides = array<i32>} : memref<1x3136xbf16, #tpu.memory_space<vmem>>, vector<1x64xbf16>,
    %353 = vector.extract_strided_slice %349 {offsets = [1, 0], sizes = [1, 64], strides = [1, 1]} : vector<8x64xf32> to vector<1x64xf32>
    %354 = arith.truncf %353 : vector<1x64xf32> to vector<1x64xbf16>
    %c0_227 = arith.constant 0 : index
    %c2304 = arith.constant 2304 : index
    %355 = vector.load %arg14[%c0_227, %c2304] : memref<1x3136xbf16, #tpu.memory_space<vmem>>, vector<1x64xbf16>
    tpu.vector_store %arg14[%c0_227, %c2304], %354 {strides = array<i32>} : memref<1x3136xbf16, #tpu.memory_space<vmem>>, vector<1x64xbf16>,
    %356 = vector.extract_strided_slice %349 {offsets = [2, 0], sizes = [1, 64], strides = [1, 1]} : vector<8x64xf32> to vector<1x64xf32>
    %357 = arith.truncf %356 : vector<1x64xf32> to vector<1x64xbf16>
    %c0_228 = arith.constant 0 : index
    %c2368 = arith.constant 2368 : index
    %358 = vector.load %arg14[%c0_228, %c2368] : memref<1x3136xbf16, #tpu.memory_space<vmem>>, vector<1x64xbf16>
    tpu.vector_store %arg14[%c0_228, %c2368], %357 {strides = array<i32>} : memref<1x3136xbf16, #tpu.memory_space<vmem>>, vector<1x64xbf16>,
    %359 = vector.extract_strided_slice %349 {offsets = [3, 0], sizes = [1, 64], strides = [1, 1]} : vector<8x64xf32> to vector<1x64xf32>
    %360 = arith.truncf %359 : vector<1x64xf32> to vector<1x64xbf16>
    %c0_229 = arith.constant 0 : index
    %c2432 = arith.constant 2432 : index
    %361 = vector.load %arg14[%c0_229, %c2432] : memref<1x3136xbf16, #tpu.memory_space<vmem>>, vector<1x64xbf16>
    tpu.vector_store %arg14[%c0_229, %c2432], %360 {strides = array<i32>} : memref<1x3136xbf16, #tpu.memory_space<vmem>>, vector<1x64xbf16>,
    %362 = vector.extract_strided_slice %349 {offsets = [4, 0], sizes = [1, 64], strides = [1, 1]} : vector<8x64xf32> to vector<1x64xf32>
    %363 = arith.truncf %362 : vector<1x64xf32> to vector<1x64xbf16>
    %c0_230 = arith.constant 0 : index
    %c2496 = arith.constant 2496 : index
    %364 = vector.load %arg14[%c0_230, %c2496] : memref<1x3136xbf16, #tpu.memory_space<vmem>>, vector<1x64xbf16>
    tpu.vector_store %arg14[%c0_230, %c2496], %363 {strides = array<i32>} : memref<1x3136xbf16, #tpu.memory_space<vmem>>, vector<1x64xbf16>,
    %365 = vector.extract_strided_slice %349 {offsets = [5, 0], sizes = [1, 64], strides = [1, 1]} : vector<8x64xf32> to vector<1x64xf32>
    %366 = arith.truncf %365 : vector<1x64xf32> to vector<1x64xbf16>
    %c0_231 = arith.constant 0 : index
    %c2560 = arith.constant 2560 : index
    %367 = vector.load %arg14[%c0_231, %c2560] : memref<1x3136xbf16, #tpu.memory_space<vmem>>, vector<1x64xbf16>
    tpu.vector_store %arg14[%c0_231, %c2560], %366 {strides = array<i32>} : memref<1x3136xbf16, #tpu.memory_space<vmem>>, vector<1x64xbf16>,
    %368 = vector.extract_strided_slice %349 {offsets = [6, 0], sizes = [1, 64], strides = [1, 1]} : vector<8x64xf32> to vector<1x64xf32>
    %369 = arith.truncf %368 : vector<1x64xf32> to vector<1x64xbf16>
    %c0_232 = arith.constant 0 : index
    %c2624 = arith.constant 2624 : index
    %370 = vector.load %arg14[%c0_232, %c2624] : memref<1x3136xbf16, #tpu.memory_space<vmem>>, vector<1x64xbf16>
    tpu.vector_store %arg14[%c0_232, %c2624], %369 {strides = array<i32>} : memref<1x3136xbf16, #tpu.memory_space<vmem>>, vector<1x64xbf16>,
    %c192_233 = arith.constant 192 : index
    %c0_234 = arith.constant 0 : index
    %371 = tpu.strided_load %arg13[%c192_233, %c0_234] {strides = array<i32: 2, 1>} : memref<224x64xf32, #tpu.memory_space<vmem>>, vector<8x64xf32>
    %c193_235 = arith.constant 193 : index
    %c0_236 = arith.constant 0 : index
    %372 = tpu.strided_load %arg13[%c193_235, %c0_236] {strides = array<i32: 2, 1>} : memref<224x64xf32, #tpu.memory_space<vmem>>, vector<8x64xf32>
    %c208_237 = arith.constant 208 : index
    %c0_238 = arith.constant 0 : index
    %373 = tpu.strided_load %arg13[%c208_237, %c0_238] {strides = array<i32: 2, 1>} : memref<224x64xf32, #tpu.memory_space<vmem>>, vector<8x64xf32>
    %c209 = arith.constant 209 : index
    %c0_239 = arith.constant 0 : index
    %374 = tpu.strided_load %arg13[%c209, %c0_239] {strides = array<i32: 2, 1>} : memref<224x64xf32, #tpu.memory_space<vmem>>, vector<8x64xf32>
    %375 = arith.maximumf %371, %372 : vector<8x64xf32>
    %376 = arith.maximumf %373, %374 : vector<8x64xf32>
    %377 = arith.maximumf %375, %376 : vector<8x64xf32>
    %378 = vector.extract_strided_slice %377 {offsets = [0, 0], sizes = [1, 64], strides = [1, 1]} : vector<8x64xf32> to vector<1x64xf32>
    %379 = arith.truncf %378 : vector<1x64xf32> to vector<1x64xbf16>
    %c0_240 = arith.constant 0 : index
    %c2688 = arith.constant 2688 : index
    %380 = vector.load %arg14[%c0_240, %c2688] : memref<1x3136xbf16, #tpu.memory_space<vmem>>, vector<1x64xbf16>
    tpu.vector_store %arg14[%c0_240, %c2688], %379 {strides = array<i32>} : memref<1x3136xbf16, #tpu.memory_space<vmem>>, vector<1x64xbf16>,
    %381 = vector.extract_strided_slice %377 {offsets = [1, 0], sizes = [1, 64], strides = [1, 1]} : vector<8x64xf32> to vector<1x64xf32>
    %382 = arith.truncf %381 : vector<1x64xf32> to vector<1x64xbf16>
    %c0_241 = arith.constant 0 : index
    %c2752 = arith.constant 2752 : index
    %383 = vector.load %arg14[%c0_241, %c2752] : memref<1x3136xbf16, #tpu.memory_space<vmem>>, vector<1x64xbf16>
    tpu.vector_store %arg14[%c0_241, %c2752], %382 {strides = array<i32>} : memref<1x3136xbf16, #tpu.memory_space<vmem>>, vector<1x64xbf16>,
    %384 = vector.extract_strided_slice %377 {offsets = [2, 0], sizes = [1, 64], strides = [1, 1]} : vector<8x64xf32> to vector<1x64xf32>
    %385 = arith.truncf %384 : vector<1x64xf32> to vector<1x64xbf16>
    %c0_242 = arith.constant 0 : index
    %c2816 = arith.constant 2816 : index
    %386 = vector.load %arg14[%c0_242, %c2816] : memref<1x3136xbf16, #tpu.memory_space<vmem>>, vector<1x64xbf16>
    tpu.vector_store %arg14[%c0_242, %c2816], %385 {strides = array<i32>} : memref<1x3136xbf16, #tpu.memory_space<vmem>>, vector<1x64xbf16>,
    %387 = vector.extract_strided_slice %377 {offsets = [3, 0], sizes = [1, 64], strides = [1, 1]} : vector<8x64xf32> to vector<1x64xf32>
    %388 = arith.truncf %387 : vector<1x64xf32> to vector<1x64xbf16>
    %c0_243 = arith.constant 0 : index
    %c2880 = arith.constant 2880 : index
    %389 = vector.load %arg14[%c0_243, %c2880] : memref<1x3136xbf16, #tpu.memory_space<vmem>>, vector<1x64xbf16>
    tpu.vector_store %arg14[%c0_243, %c2880], %388 {strides = array<i32>} : memref<1x3136xbf16, #tpu.memory_space<vmem>>, vector<1x64xbf16>,
    %390 = vector.extract_strided_slice %377 {offsets = [4, 0], sizes = [1, 64], strides = [1, 1]} : vector<8x64xf32> to vector<1x64xf32>
    %391 = arith.truncf %390 : vector<1x64xf32> to vector<1x64xbf16>
    %c0_244 = arith.constant 0 : index
    %c2944 = arith.constant 2944 : index
    %392 = vector.load %arg14[%c0_244, %c2944] : memref<1x3136xbf16, #tpu.memory_space<vmem>>, vector<1x64xbf16>
    tpu.vector_store %arg14[%c0_244, %c2944], %391 {strides = array<i32>} : memref<1x3136xbf16, #tpu.memory_space<vmem>>, vector<1x64xbf16>,
    %393 = vector.extract_strided_slice %377 {offsets = [5, 0], sizes = [1, 64], strides = [1, 1]} : vector<8x64xf32> to vector<1x64xf32>
    %394 = arith.truncf %393 : vector<1x64xf32> to vector<1x64xbf16>
    %c0_245 = arith.constant 0 : index
    %c3008 = arith.constant 3008 : index
    %395 = vector.load %arg14[%c0_245, %c3008] : memref<1x3136xbf16, #tpu.memory_space<vmem>>, vector<1x64xbf16>
    tpu.vector_store %arg14[%c0_245, %c3008], %394 {strides = array<i32>} : memref<1x3136xbf16, #tpu.memory_space<vmem>>, vector<1x64xbf16>,
    %396 = vector.extract_strided_slice %377 {offsets = [6, 0], sizes = [1, 64], strides = [1, 1]} : vector<8x64xf32> to vector<1x64xf32>
    %397 = arith.truncf %396 : vector<1x64xf32> to vector<1x64xbf16>
    %c0_246 = arith.constant 0 : index
    %c3072 = arith.constant 3072 : index
    %398 = vector.load %arg14[%c0_246, %c3072] : memref<1x3136xbf16, #tpu.memory_space<vmem>>, vector<1x64xbf16>
    tpu.vector_store %arg14[%c0_246, %c3072], %397 {strides = array<i32>} : memref<1x3136xbf16, #tpu.memory_space<vmem>>, vector<1x64xbf16>,
    %c0_247 = arith.constant 0 : index
    %c0_248 = arith.constant 0 : index
    %399 = vector.load %arg14[%c0_247, %c0_248] : memref<1x3136xbf16, #tpu.memory_space<vmem>>, vector<1x3136xbf16>
    %c0_249 = arith.constant 0 : index
    %c0_250 = arith.constant 0 : index
    %400 = vector.load %arg6[%c0_249, %c0_250] : memref<3136x128xbf16, #tpu.memory_space<vmem>>, vector<3136x128xbf16>
    %cst_251 = arith.constant dense<0.000000e+00> : vector<1x128xf32>
    %401 = tpu.matmul %399, %400, %cst_251 {dimension_numbers = #tpu.dot_dimension_numbers<[1], [0], [0], [1], [0, 0, 1, 1], [], []>} : vector<1x3136xbf16>, vector<3136x128xbf16>, vector<1x128xf32> -> vector<1x128xf32>
    %c0_252 = arith.constant 0 : index
    %c0_253 = arith.constant 0 : index
    %402 = vector.load %arg7[%c0_252, %c0_253] : memref<1x128xf32, #tpu.memory_space<vmem>>, vector<1x128xf32>
    %403 = arith.addf %401, %402 : vector<1x128xf32>
    %cst_254 = arith.constant 0.000000e+00 : f32
    %404 = vector.broadcast %cst_254 : f32 to vector<1x128xf32>
    %405 = arith.maximumf %403, %404 : vector<1x128xf32>
    %c0_255 = arith.constant 0 : index
    %c0_256 = arith.constant 0 : index
    %406 = vector.load %arg8[%c0_255, %c0_256] : memref<128x2xf32, #tpu.memory_space<vmem>>, vector<128x2xf32>
    %cst_257 = arith.constant dense<0.000000e+00> : vector<1x2xf32>
    %407 = tpu.matmul %405, %406, %cst_257 {dimension_numbers = #tpu.dot_dimension_numbers<[1], [0], [0], [1], [0, 0, 1, 1], [], []>} : vector<1x128xf32>, vector<128x2xf32>, vector<1x2xf32> -> vector<1x2xf32>
    %c0_258 = arith.constant 0 : index
    %c0_259 = arith.constant 0 : index
    %408 = vector.load %arg9[%c0_258, %c0_259] : memref<1x2xf32, #tpu.memory_space<vmem>>, vector<1x2xf32>
    %409 = arith.addf %407, %408 : vector<1x2xf32>
    %c0_260 = arith.constant 0 : index
    %c0_261 = arith.constant 0 : index
    %c0_262 = arith.constant 0 : index
    %410 = vector.load %arg10[%c0_260, %c0_261, %c0_262] : memref<1x1x2xf32, #tpu.memory_space<vmem>>, vector<1x1x2xf32>
    %411 = vector.shape_cast %410 : vector<1x1x2xf32> to vector<1x2xf32>
    %412 = vector.shape_cast %409 : vector<1x2xf32> to vector<1x1x2xf32>
    tpu.vector_store %arg10[%c0_260, %c0_261, %c0_262], %412 {strides = array<i32>} : memref<1x1x2xf32, #tpu.memory_space<vmem>>, vector<1x1x2xf32>,
    return
  }
  func.func @transform_0(%arg0: i32) -> (i32, i32, i32) {
    %c0_i32 = arith.constant 0 : i32
    %c0_i32_0 = arith.constant 0 : i32
    %c0_i32_1 = arith.constant 0 : i32
    return %arg0, %c0_i32, %c0_i32_0 : i32, i32, i32
  }
  func.func @transform_1(%arg0: i32) -> (i32, i32) {
    %c0_i32 = arith.constant 0 : i32
    %c0_i32_0 = arith.constant 0 : i32
    %c0_i32_1 = arith.constant 0 : i32
    return %c0_i32, %c0_i32_0 : i32, i32
  }
  func.func @transform_2(%arg0: i32) -> (i32, i32) {
    %c0_i32 = arith.constant 0 : i32
    %c0_i32_0 = arith.constant 0 : i32
    %c0_i32_1 = arith.constant 0 : i32
    return %c0_i32, %c0_i32_0 : i32, i32
  }
  func.func @transform_3(%arg0: i32) -> (i32, i32) {
    %c0_i32 = arith.constant 0 : i32
    %c0_i32_0 = arith.constant 0 : i32
    %c0_i32_1 = arith.constant 0 : i32
    return %c0_i32, %c0_i32_0 : i32, i32
  }
  func.func @transform_4(%arg0: i32) -> (i32, i32) {
    %c0_i32 = arith.constant 0 : i32
    %c0_i32_0 = arith.constant 0 : i32
    %c0_i32_1 = arith.constant 0 : i32
    return %c0_i32, %c0_i32_0 : i32, i32
  }
  func.func @transform_5(%arg0: i32) -> (i32, i32) {
    %c0_i32 = arith.constant 0 : i32
    %c0_i32_0 = arith.constant 0 : i32
    %c0_i32_1 = arith.constant 0 : i32
    return %c0_i32, %c0_i32_0 : i32, i32
  }
  func.func @transform_6(%arg0: i32) -> (i32, i32) {
    %c0_i32 = arith.constant 0 : i32
    %c0_i32_0 = arith.constant 0 : i32
    %c0_i32_1 = arith.constant 0 : i32
    return %c0_i32, %c0_i32_0 : i32, i32
  }
  func.func @transform_7(%arg0: i32) -> (i32, i32) {
    %c0_i32 = arith.constant 0 : i32
    %c0_i32_0 = arith.constant 0 : i32
    %c0_i32_1 = arith.constant 0 : i32
    return %c0_i32, %c0_i32_0 : i32, i32
  }
  func.func @transform_8(%arg0: i32) -> (i32, i32) {
    %c0_i32 = arith.constant 0 : i32
    %c0_i32_0 = arith.constant 0 : i32
    %c0_i32_1 = arith.constant 0 : i32
    return %c0_i32, %c0_i32_0 : i32, i32
  }
  func.func @transform_9(%arg0: i32) -> (i32, i32, i32) {
    %c0_i32 = arith.constant 0 : i32
    %c0_i32_0 = arith.constant 0 : i32
    %c0_i32_1 = arith.constant 0 : i32
    return %arg0, %c0_i32, %c0_i32_0 : i32, i32, i32
  }
}

</mosaic_0001>

<llo_original>
// kernel: simple_cnn_forward.1
$region0: #{simple_cnn_forward.1}
  #allocation0 [shape = 'u32[]', space=smem, size = 0x4, offset = 0x4, fixed_abs, tag = 'smem constant byte address 0x4 - core index']
  #allocation1 [shape = 'u32[72,128]{1,0:T(1,128)}', space=vmem, size = 0x9000, scoped, tag = 'internal scratch']
  #allocation2 [shape = 'f32[896,32]{1,0:T(8,128)}', space=vmem, size = 0x70000, scoped, tag = 'scratch operand']
  #allocation3 [shape = 'bf16[272,32]{1,0:T(8,128)(2,1)}', space=vmem, size = 0x11000, scoped, tag = 'scratch operand']
  #allocation4 [shape = 'f32[224,64]{1,0:T(8,128)}', space=vmem, size = 0x1c000, scoped, tag = 'scratch operand']
  #allocation5 [shape = 'bf16[1,3136]{1,0:T(2,128)(2,1)}', space=vmem, size = 0x3200, scoped, tag = 'scratch operand']
  %s0 = inlined_call_operand.vmem [shape: bf16[2,896,16], index: 0, kind: input, shape index: {}]
  %s1 = inlined_call_operand.vmem [shape: bf16[16,32], index: 1, kind: input, shape index: {}]
  %s2 = inlined_call_operand.vmem [shape: f32[1,32], index: 2, kind: input, shape index: {}]
  %s3 = inlined_call_operand.vmem [shape: bf16[288,64], index: 3, kind: input, shape index: {}]
  %s4 = inlined_call_operand.vmem [shape: f32[1,64], index: 4, kind: input, shape index: {}]
  %s5 = inlined_call_operand.vmem [shape: bf16[3136,128], index: 5, kind: input, shape index: {}]
  %s6 = inlined_call_operand.vmem [shape: f32[1,128], index: 6, kind: input, shape index: {}]
  %s7 = inlined_call_operand.vmem [shape: f32[128,2], index: 7, kind: input, shape index: {}]
  %s8 = inlined_call_operand.vmem [shape: f32[1,2], index: 8, kind: input, shape index: {}]
  %s9 = inlined_call_operand.hbm [shape: f32[2,1,2], index: 9, kind: output, shape index: {}]
  %s10 = sld [smem:[#allocation0]]
  $region69: #{simple_cnn_forward.1} parent=0
    _
  %s12 = ssub.s32 1, %s10
  %s13 = scalar_select 0, %s12, %s10
  $region1: #{simple_cnn_forward.1} parent=0
    #allocation6 [shape = 'u8[1024]{0}', space=vmem, size = 0x400, scoped, tag = 'output window, operand 0']
    #allocation7 [shape = 's32[2]{0}', space=sflag, size = 0x8, scoped, tag = 'scoped memory for simple_cnn_forward.1']
    %14 = vsyncpa [#allocation7], 0
    %s15 = scalar_lea.sflag [#allocation7], 1
    %16 = vsyncpa %s15, 0
    loop: start=0, step=1, limit=4
    $region2: #{simple_cnn_forward.1} parent=1 // loop_pre_header
      _
    $region3: #{simple_cnn_forward.1} parent=1 // loop_header
      %s18 = sphi 0, %s22
      %p19 = scmp.ge.s32.totalorder %s18, 4
      %s28 = sphi 0, %s30
      %s31 = sphi 0, %s28
      %s32 = sphi 0, %s31
      %s48 = sphi 0, %s32
      %s52 = sphi 0, %s52
      %s54 = sphi 0, %s52
      %s55 = sphi 0, %s54
      %s69 = sphi 0, %s55
      %s73 = sphi 0, %s73
      %s75 = sphi 0, %s73
      %s76 = sphi 0, %s75
      %s90 = sphi 0, %s76
      %s94 = sphi 0, %s94
      %s96 = sphi 0, %s94
      %s97 = sphi 0, %s96
      %s111 = sphi 0, %s97
      %s115 = sphi 0, %s115
      %s117 = sphi 0, %s115
      %s118 = sphi 0, %s117
      %s132 = sphi 0, %s118
      %s136 = sphi 0, %s136
      %s138 = sphi 0, %s136
      %s139 = sphi 0, %s138
      %s153 = sphi 0, %s139
      %s157 = sphi 0, %s157
      %s159 = sphi 0, %s157
      %s160 = sphi 0, %s159
      %s174 = sphi 0, %s160
      %s178 = sphi 0, %s178
      %s180 = sphi 0, %s178
      %s181 = sphi 0, %s180
      %s195 = sphi 0, %s181
      %s199 = sphi 0, %s199
      %s201 = sphi 0, %s199
      %s202 = sphi 0, %s201
      %s216 = sphi 0, %s202
      %s222 = sphi 0, %s224
      %s225 = sphi 0, %s222
      %s226 = sphi 0, %s225
      %s242 = sphi 0, %s226
    $region4: #{simple_cnn_forward.1} parent=1 // loop_header_branch
      %21 = sbr.rel (%p19) target = $region8
    $region5: #{simple_cnn_forward.1} parent=1 // loop_body
      %s23 = ssub.s32 %s18, 1
      %s24 = ssub.s32 %s18, 2
      %s25 = sadd.s32 %s18, 1
      %s26 = ssub.s32 %s18, %s25
      %p27 = scmp.eq.s32.totalorder %s26, 0
      %s29 = sadd.s32 %s28, 1
      %s30 = scalar_select %p27, %s28, %s29
      %p33 = pneg %p27
      %p34 = scmp.eq.s32.totalorder %s18, 1
      %p35 = por %p33, %p34
      %p36 = scmp.ne.s32.totalorder %s28, %s31
      %p37 = scmp.eq.s32.totalorder %s18, 0
      %p38 = por %p36, %p37
      %p39 = scmp.ne.s32.totalorder %s28, %s31
      %p40 = scmp.eq.s32.totalorder %s23, 1
      %p41 = por %p39, %p40
      %p42 = scmp.ne.s32.totalorder %s31, %s32
      %p43 = scmp.eq.s32.totalorder %s23, 0
      %p44 = por %p42, %p43
      %p45 = scmp.ne.s32.totalorder %s31, %s32
      %p46 = scmp.eq.s32.totalorder %s24, 1
      %p47 = por %p45, %p46
      %p49 = scmp.ne.s32.totalorder %s32, %s48
      %p50 = scmp.eq.s32.totalorder %s24, 0
      %p51 = por %p49, %p50
      %s53 = sadd.s32 %s52, 1
      %p56 = scmp.eq.s32.totalorder %s18, 1
      %p57 = scmp.ne.s32.totalorder %s52, %s54
      %p58 = scmp.eq.s32.totalorder %s18, 0
      %p59 = por %p57, %p58
      %p60 = scmp.ne.s32.totalorder %s52, %s54
      %p61 = scmp.eq.s32.totalorder %s23, 1
      %p62 = por %p60, %p61
      %p63 = scmp.ne.s32.totalorder %s54, %s55
      %p64 = scmp.eq.s32.totalorder %s23, 0
      %p65 = por %p63, %p64
      %p66 = scmp.ne.s32.totalorder %s54, %s55
      %p67 = scmp.eq.s32.totalorder %s24, 1
      %p68 = por %p66, %p67
      %p70 = scmp.ne.s32.totalorder %s55, %s69
      %p71 = scmp.eq.s32.totalorder %s24, 0
      %p72 = por %p70, %p71
      %s74 = sadd.s32 %s73, 1
      %p77 = scmp.eq.s32.totalorder %s18, 1
      %p78 = scmp.ne.s32.totalorder %s73, %s75
      %p79 = scmp.eq.s32.totalorder %s18, 0
      %p80 = por %p78, %p79
      %p81 = scmp.ne.s32.totalorder %s73, %s75
      %p82 = scmp.eq.s32.totalorder %s23, 1
      %p83 = por %p81, %p82
      %p84 = scmp.ne.s32.totalorder %s75, %s76
      %p85 = scmp.eq.s32.totalorder %s23, 0
      %p86 = por %p84, %p85
      %p87 = scmp.ne.s32.totalorder %s75, %s76
      %p88 = scmp.eq.s32.totalorder %s24, 1
      %p89 = por %p87, %p88
      %p91 = scmp.ne.s32.totalorder %s76, %s90
      %p92 = scmp.eq.s32.totalorder %s24, 0
      %p93 = por %p91, %p92
      %s95 = sadd.s32 %s94, 1
      %p98 = scmp.eq.s32.totalorder %s18, 1
      %p99 = scmp.ne.s32.totalorder %s94, %s96
      %p100 = scmp.eq.s32.totalorder %s18, 0
      %p101 = por %p99, %p100
      %p102 = scmp.ne.s32.totalorder %s94, %s96
      %p103 = scmp.eq.s32.totalorder %s23, 1
      %p104 = por %p102, %p103
      %p105 = scmp.ne.s32.totalorder %s96, %s97
      %p106 = scmp.eq.s32.totalorder %s23, 0
      %p107 = por %p105, %p106
      %p108 = scmp.ne.s32.totalorder %s96, %s97
      %p109 = scmp.eq.s32.totalorder %s24, 1
      %p110 = por %p108, %p109
      %p112 = scmp.ne.s32.totalorder %s97, %s111
      %p113 = scmp.eq.s32.totalorder %s24, 0
      %p114 = por %p112, %p113
      %s116 = sadd.s32 %s115, 1
      %p119 = scmp.eq.s32.totalorder %s18, 1
      %p120 = scmp.ne.s32.totalorder %s115, %s117
      %p121 = scmp.eq.s32.totalorder %s18, 0
      %p122 = por %p120, %p121
      %p123 = scmp.ne.s32.totalorder %s115, %s117
      %p124 = scmp.eq.s32.totalorder %s23, 1
      %p125 = por %p123, %p124
      %p126 = scmp.ne.s32.totalorder %s117, %s118
      %p127 = scmp.eq.s32.totalorder %s23, 0
      %p128 = por %p126, %p127
      %p129 = scmp.ne.s32.totalorder %s117, %s118
      %p130 = scmp.eq.s32.totalorder %s24, 1
      %p131 = por %p129, %p130
      %p133 = scmp.ne.s32.totalorder %s118, %s132
      %p134 = scmp.eq.s32.totalorder %s24, 0
      %p135 = por %p133, %p134
      %s137 = sadd.s32 %s136, 1
      %p140 = scmp.eq.s32.totalorder %s18, 1
      %p141 = scmp.ne.s32.totalorder %s136, %s138
      %p142 = scmp.eq.s32.totalorder %s18, 0
      %p143 = por %p141, %p142
      %p144 = scmp.ne.s32.totalorder %s136, %s138
      %p145 = scmp.eq.s32.totalorder %s23, 1
      %p146 = por %p144, %p145
      %p147 = scmp.ne.s32.totalorder %s138, %s139
      %p148 = scmp.eq.s32.totalorder %s23, 0
      %p149 = por %p147, %p148
      %p150 = scmp.ne.s32.totalorder %s138, %s139
      %p151 = scmp.eq.s32.totalorder %s24, 1
      %p152 = por %p150, %p151
      %p154 = scmp.ne.s32.totalorder %s139, %s153
      %p155 = scmp.eq.s32.totalorder %s24, 0
      %p156 = por %p154, %p155
      %s158 = sadd.s32 %s157, 1
      %p161 = scmp.eq.s32.totalorder %s18, 1
      %p162 = scmp.ne.s32.totalorder %s157, %s159
      %p163 = scmp.eq.s32.totalorder %s18, 0
      %p164 = por %p162, %p163
      %p165 = scmp.ne.s32.totalorder %s157, %s159
      %p166 = scmp.eq.s32.totalorder %s23, 1
      %p167 = por %p165, %p166
      %p168 = scmp.ne.s32.totalorder %s159, %s160
      %p169 = scmp.eq.s32.totalorder %s23, 0
      %p170 = por %p168, %p169
      %p171 = scmp.ne.s32.totalorder %s159, %s160
      %p172 = scmp.eq.s32.totalorder %s24, 1
      %p173 = por %p171, %p172
      %p175 = scmp.ne.s32.totalorder %s160, %s174
      %p176 = scmp.eq.s32.totalorder %s24, 0
      %p177 = por %p175, %p176
      %s179 = sadd.s32 %s178, 1
      %p182 = scmp.eq.s32.totalorder %s18, 1
      %p183 = scmp.ne.s32.totalorder %s178, %s180
      %p184 = scmp.eq.s32.totalorder %s18, 0
      %p185 = por %p183, %p184
      %p186 = scmp.ne.s32.totalorder %s178, %s180
      %p187 = scmp.eq.s32.totalorder %s23, 1
      %p188 = por %p186, %p187
      %p189 = scmp.ne.s32.totalorder %s180, %s181
      %p190 = scmp.eq.s32.totalorder %s23, 0
      %p191 = por %p189, %p190
      %p192 = scmp.ne.s32.totalorder %s180, %s181
      %p193 = scmp.eq.s32.totalorder %s24, 1
      %p194 = por %p192, %p193
      %p196 = scmp.ne.s32.totalorder %s181, %s195
      %p197 = scmp.eq.s32.totalorder %s24, 0
      %p198 = por %p196, %p197
      %s200 = sadd.s32 %s199, 1
      %p203 = scmp.eq.s32.totalorder %s18, 1
      %p204 = scmp.ne.s32.totalorder %s199, %s201
      %p205 = scmp.eq.s32.totalorder %s18, 0
      %p206 = por %p204, %p205
      %p207 = scmp.ne.s32.totalorder %s199, %s201
      %p208 = scmp.eq.s32.totalorder %s23, 1
      %p209 = por %p207, %p208
      %p210 = scmp.ne.s32.totalorder %s201, %s202
      %p211 = scmp.eq.s32.totalorder %s23, 0
      %p212 = por %p210, %p211
      %p213 = scmp.ne.s32.totalorder %s201, %s202
      %p214 = scmp.eq.s32.totalorder %s24, 1
      %p215 = por %p213, %p214
      %p217 = scmp.ne.s32.totalorder %s202, %s216
      %p218 = scmp.eq.s32.totalorder %s24, 0
      %p219 = por %p217, %p218
      %s220 = ssub.s32 %s18, %s25
      %p221 = scmp.eq.s32.totalorder %s220, 0
      %s223 = sadd.s32 %s222, 1
      %s224 = scalar_select %p221, %s222, %s223
      %p227 = pneg %p221
      %p228 = scmp.eq.s32.totalorder %s18, 1
      %p229 = por %p227, %p228
      %p230 = scmp.ne.s32.totalorder %s222, %s225
      %p231 = scmp.eq.s32.totalorder %s18, 0
      %p232 = por %p230, %p231
      %p233 = scmp.ne.s32.totalorder %s222, %s225
      %p234 = scmp.eq.s32.totalorder %s23, 1
      %p235 = por %p233, %p234
      %p236 = scmp.ne.s32.totalorder %s225, %s226
      %p237 = scmp.eq.s32.totalorder %s23, 0
      %p238 = por %p236, %p237
      %p239 = scmp.ne.s32.totalorder %s225, %s226
      %p240 = scmp.eq.s32.totalorder %s24, 1
      %p241 = por %p239, %p240
      %p243 = scmp.ne.s32.totalorder %s226, %s242
      %p244 = scmp.eq.s32.totalorder %s24, 0
      %p245 = por %p243, %p244
      %p246 = scmp.le.s32.totalorder 1, %s18
      %p247 = scmp.lt.s32.totalorder %s18, 3
      %p248 = pnand %p246, %p247
      %p249 = pneg %p248
      // Predicated region
      $region9: #{simple_cnn_forward.1} parent=5 // pred_check
        _
      $region10: #{simple_cnn_forward.1} parent=5 // pred_check_branch
        %251 = sbr.rel (%p248) target = $region12
      $region11: #{simple_cnn_forward.1} parent=5 // pred_region
        %s252 = ssub.s32 %s18, 1
        // Predicated region
        $region13: #{simple_cnn_forward.1} parent=11 // pred_check
          %p253 = pneg %p65
        $region14: #{simple_cnn_forward.1} parent=11 // pred_check_branch
          %255 = sbr.rel (%p253) target = $region16
        $region15: #{simple_cnn_forward.1} parent=11 // pred_region
          _
        $region16: #{simple_cnn_forward.1} parent=11 // pred_fallthru
          _
        // Predicated region
        $region17: #{simple_cnn_forward.1} parent=11 // pred_check
          %p256 = pneg %p86
        $region18: #{simple_cnn_forward.1} parent=11 // pred_check_branch
          %258 = sbr.rel (%p256) target = $region20
        $region19: #{simple_cnn_forward.1} parent=11 // pred_region
          _
        $region20: #{simple_cnn_forward.1} parent=11 // pred_fallthru
          _
        // Predicated region
        $region21: #{simple_cnn_forward.1} parent=11 // pred_check
          %p259 = pneg %p107
        $region22: #{simple_cnn_forward.1} parent=11 // pred_check_branch
          %261 = sbr.rel (%p259) target = $region24
        $region23: #{simple_cnn_forward.1} parent=11 // pred_region
          _
        $region24: #{simple_cnn_forward.1} parent=11 // pred_fallthru
          _
        // Predicated region
        $region25: #{simple_cnn_forward.1} parent=11 // pred_check
          %p262 = pneg %p128
        $region26: #{simple_cnn_forward.1} parent=11 // pred_check_branch
          %264 = sbr.rel (%p262) target = $region28
        $region27: #{simple_cnn_forward.1} parent=11 // pred_region
          _
        $region28: #{simple_cnn_forward.1} parent=11 // pred_fallthru
          _
        // Predicated region
        $region29: #{simple_cnn_forward.1} parent=11 // pred_check
          %p265 = pneg %p149
        $region30: #{simple_cnn_forward.1} parent=11 // pred_check_branch
          %267 = sbr.rel (%p265) target = $region32
        $region31: #{simple_cnn_forward.1} parent=11 // pred_region
          _
        $region32: #{simple_cnn_forward.1} parent=11 // pred_fallthru
          _
        // Predicated region
        $region33: #{simple_cnn_forward.1} parent=11 // pred_check
          %p268 = pneg %p170
        $region34: #{simple_cnn_forward.1} parent=11 // pred_check_branch
          %270 = sbr.rel (%p268) target = $region36
        $region35: #{simple_cnn_forward.1} parent=11 // pred_region
          _
        $region36: #{simple_cnn_forward.1} parent=11 // pred_fallthru
          _
        // Predicated region
        $region37: #{simple_cnn_forward.1} parent=11 // pred_check
          %p271 = pneg %p191
        $region38: #{simple_cnn_forward.1} parent=11 // pred_check_branch
          %273 = sbr.rel (%p271) target = $region40
        $region39: #{simple_cnn_forward.1} parent=11 // pred_region
          _
        $region40: #{simple_cnn_forward.1} parent=11 // pred_fallthru
          _
        // Predicated region
        $region41: #{simple_cnn_forward.1} parent=11 // pred_check
          %p274 = pneg %p212
        $region42: #{simple_cnn_forward.1} parent=11 // pred_check_branch
          %276 = sbr.rel (%p274) target = $region44
        $region43: #{simple_cnn_forward.1} parent=11 // pred_region
          _
        $region44: #{simple_cnn_forward.1} parent=11 // pred_fallthru
          _
      $region12: #{simple_cnn_forward.1} parent=5 // pred_fallthru
        _
      %p277 = scmp.lt.s32.totalorder %s18, 2
      // Predicated region
      $region45: #{simple_cnn_forward.1} parent=5 // pred_check
        %p278 = pneg %p277
      $region46: #{simple_cnn_forward.1} parent=5 // pred_check_branch
        %280 = sbr.rel (%p278) target = $region48
      $region47: #{simple_cnn_forward.1} parent=5 // pred_region
        // Predicated region
        $region49: #{simple_cnn_forward.1} parent=47 // pred_check
          %p281 = pneg %p38
        $region50: #{simple_cnn_forward.1} parent=47 // pred_check_branch
          %283 = sbr.rel (%p281) target = $region52
        $region51: #{simple_cnn_forward.1} parent=47 // pred_region
          %p284 = scmp.lt.s32.totalorder %s18, 1
          %s285 = scalar_select %p284, %s18, 1
          %s286 = smul.addr %s285, 112
          %s287 = smul.addr %s286, 4
          %s288 = scalar_lea.vmem %s0, %s287
        $region52: #{simple_cnn_forward.1} parent=47 // pred_fallthru
          _
      $region48: #{simple_cnn_forward.1} parent=5 // pred_fallthru
        _
      %p289 = scmp.le.s32.totalorder 1, %s18
      %p290 = scmp.lt.s32.totalorder %s18, 3
      %p291 = pnand %p289, %p290
      %p292 = pneg %p291
      // Predicated region
      $region53: #{simple_cnn_forward.1} parent=5 // pred_check
        _
      $region54: #{simple_cnn_forward.1} parent=5 // pred_check_branch
        %294 = sbr.rel (%p291) target = $region56
      $region55: #{simple_cnn_forward.1} parent=5 // pred_region
        %s295 = ssub.s32 %s18, 1
        %p296 = scmp.lt.s32.totalorder %s23, 1
        %s297 = scalar_select %p296, %s23, 1
        %s298 = smul.addr %s297, 112
        %s299 = smul.addr %s298, 4
        %s300 = scalar_lea.vmem %s0, %s299
        %p301 = pneg %p44
        %p302 = pneg %p41
        %p303 = pneg %p65
        %p304 = pneg %p62
        %p305 = pneg %p86
        %p306 = pneg %p83
        %p307 = pneg %p107
        %p308 = pneg %p104
        %p309 = pneg %p128
        %p310 = pneg %p125
        %p311 = pneg %p149
        %p312 = pneg %p146
        %p313 = pneg %p170
        %p314 = pneg %p167
        %p315 = pneg %p191
        %p316 = pneg %p188
        %p317 = pneg %p212
        %p318 = pneg %p209
        %p319 = pneg %p238
        %p320 = pneg %p235
        %s321 = sand.u32 %s225, 1
        %s322 = scalar_lea.sflag [#allocation7], %s321
        %s323 = sand.u32 %s225, 1
        %s324 = scalar_lea.vmem [#allocation6], %s323
        %p325 = scmp.lt.s32.totalorder %s23, 1
        %s326 = scalar_select %p325, %s23, 1
        %s327 = smul.addr %s326, 112
        %s328 = smul.addr %s327, 4
        %s329 = scalar_lea.vmem %s0, %s328
        %v331 = vld [vmem:[%s329] sm:$0xf]
        %v332 = vld [vmem:[%s329 + $0x4] sm:$0xf]
        %v333 = vld [vmem:[%s329 + $0x8] sm:$0xf]
        %v334 = vld [vmem:[%s329 + $0xc] sm:$0xf]
        %v335 = vld [vmem:[%s329 + $0x10] sm:$0xf]
        %v336 = vld [vmem:[%s329 + $0x14] sm:$0xf]
        %v337 = vld [vmem:[%s329 + $0x18] sm:$0xf]
        %v338 = vld [vmem:[%s329 + $0x1c] sm:$0xf]
        %v339 = vld [vmem:[%s329 + $0x20] sm:$0xf]
        %v340 = vld [vmem:[%s329 + $0x24] sm:$0xf]
        %v341 = vld [vmem:[%s329 + $0x28] sm:$0xf]
        %v342 = vld [vmem:[%s329 + $0x2c] sm:$0xf]
        %v343 = vld [vmem:[%s329 + $0x30] sm:$0xf]
        %v344 = vld [vmem:[%s329 + $0x34] sm:$0xf]
        %v345 = vld [vmem:[%s329 + $0x38] sm:$0xf]
        %v346 = vld [vmem:[%s329 + $0x3c] sm:$0xf]
        %v347 = vld [vmem:[%s329 + $0x40] sm:$0xf]
        %v348 = vld [vmem:[%s329 + $0x44] sm:$0xf]
        %v349 = vld [vmem:[%s329 + $0x48] sm:$0xf]
        %v350 = vld [vmem:[%s329 + $0x4c] sm:$0xf]
        %v351 = vld [vmem:[%s329 + $0x50] sm:$0xf]
        %v352 = vld [vmem:[%s329 + $0x54] sm:$0xf]
        %v353 = vld [vmem:[%s329 + $0x58] sm:$0xf]
        %v354 = vld [vmem:[%s329 + $0x5c] sm:$0xf]
        %v355 = vld [vmem:[%s329 + $0x60] sm:$0xf]
        %v356 = vld [vmem:[%s329 + $0x64] sm:$0xf]
        %v357 = vld [vmem:[%s329 + $0x68] sm:$0xf]
        %v358 = vld [vmem:[%s329 + $0x6c] sm:$0xf]
        %v359 = vld [vmem:[%s329 + $0x70] sm:$0xf]
        %v360 = vld [vmem:[%s329 + $0x74] sm:$0xf]
        %v361 = vld [vmem:[%s329 + $0x78] sm:$0xf]
        %v362 = vld [vmem:[%s329 + $0x7c] sm:$0xf]
        %v363 = vld [vmem:[%s329 + $0x80] sm:$0xf]
        %v364 = vld [vmem:[%s329 + $0x84] sm:$0xf]
        %v365 = vld [vmem:[%s329 + $0x88] sm:$0xf]
        %v366 = vld [vmem:[%s329 + $0x8c] sm:$0xf]
        %v367 = vld [vmem:[%s329 + $0x90] sm:$0xf]
        %v368 = vld [vmem:[%s329 + $0x94] sm:$0xf]
        %v369 = vld [vmem:[%s329 + $0x98] sm:$0xf]
        %v370 = vld [vmem:[%s329 + $0x9c] sm:$0xf]
        %v371 = vld [vmem:[%s329 + $0xa0] sm:$0xf]
        %v372 = vld [vmem:[%s329 + $0xa4] sm:$0xf]
        %v373 = vld [vmem:[%s329 + $0xa8] sm:$0xf]
        %v374 = vld [vmem:[%s329 + $0xac] sm:$0xf]
        %v375 = vld [vmem:[%s329 + $0xb0] sm:$0xf]
        %v376 = vld [vmem:[%s329 + $0xb4] sm:$0xf]
        %v377 = vld [vmem:[%s329 + $0xb8] sm:$0xf]
        %v378 = vld [vmem:[%s329 + $0xbc] sm:$0xf]
        %v379 = vld [vmem:[%s329 + $0xc0] sm:$0xf]
        %v380 = vld [vmem:[%s329 + $0xc4] sm:$0xf]
        %v381 = vld [vmem:[%s329 + $0xc8] sm:$0xf]
        %v382 = vld [vmem:[%s329 + $0xcc] sm:$0xf]
        %v383 = vld [vmem:[%s329 + $0xd0] sm:$0xf]
        %v384 = vld [vmem:[%s329 + $0xd4] sm:$0xf]
        %v385 = vld [vmem:[%s329 + $0xd8] sm:$0xf]
        %v386 = vld [vmem:[%s329 + $0xdc] sm:$0xf]
        %v387 = vld [vmem:[%s329 + $0xe0] sm:$0xf]
        %v388 = vld [vmem:[%s329 + $0xe4] sm:$0xf]
        %v389 = vld [vmem:[%s329 + $0xe8] sm:$0xf]
        %v390 = vld [vmem:[%s329 + $0xec] sm:$0xf]
        %v391 = vld [vmem:[%s329 + $0xf0] sm:$0xf]
        %v392 = vld [vmem:[%s329 + $0xf4] sm:$0xf]
        %v393 = vld [vmem:[%s329 + $0xf8] sm:$0xf]
        %v394 = vld [vmem:[%s329 + $0xfc] sm:$0xf]
        %v395 = vld [vmem:[%s329 + $0x100] sm:$0xf]
        %v396 = vld [vmem:[%s329 + $0x104] sm:$0xf]
        %v397 = vld [vmem:[%s329 + $0x108] sm:$0xf]
        %v398 = vld [vmem:[%s329 + $0x10c] sm:$0xf]
        %v399 = vld [vmem:[%s329 + $0x110] sm:$0xf]
        %v400 = vld [vmem:[%s329 + $0x114] sm:$0xf]
        %v401 = vld [vmem:[%s329 + $0x118] sm:$0xf]
        %v402 = vld [vmem:[%s329 + $0x11c] sm:$0xf]
        %v403 = vld [vmem:[%s329 + $0x120] sm:$0xf]
        %v404 = vld [vmem:[%s329 + $0x124] sm:$0xf]
        %v405 = vld [vmem:[%s329 + $0x128] sm:$0xf]
        %v406 = vld [vmem:[%s329 + $0x12c] sm:$0xf]
        %v407 = vld [vmem:[%s329 + $0x130] sm:$0xf]
        %v408 = vld [vmem:[%s329 + $0x134] sm:$0xf]
        %v409 = vld [vmem:[%s329 + $0x138] sm:$0xf]
        %v410 = vld [vmem:[%s329 + $0x13c] sm:$0xf]
        %v411 = vld [vmem:[%s329 + $0x140] sm:$0xf]
        %v412 = vld [vmem:[%s329 + $0x144] sm:$0xf]
        %v413 = vld [vmem:[%s329 + $0x148] sm:$0xf]
        %v414 = vld [vmem:[%s329 + $0x14c] sm:$0xf]
        %v415 = vld [vmem:[%s329 + $0x150] sm:$0xf]
        %v416 = vld [vmem:[%s329 + $0x154] sm:$0xf]
        %v417 = vld [vmem:[%s329 + $0x158] sm:$0xf]
        %v418 = vld [vmem:[%s329 + $0x15c] sm:$0xf]
        %v419 = vld [vmem:[%s329 + $0x160] sm:$0xf]
        %v420 = vld [vmem:[%s329 + $0x164] sm:$0xf]
        %v421 = vld [vmem:[%s329 + $0x168] sm:$0xf]
        %v422 = vld [vmem:[%s329 + $0x16c] sm:$0xf]
        %v423 = vld [vmem:[%s329 + $0x170] sm:$0xf]
        %v424 = vld [vmem:[%s329 + $0x174] sm:$0xf]
        %v425 = vld [vmem:[%s329 + $0x178] sm:$0xf]
        %v426 = vld [vmem:[%s329 + $0x17c] sm:$0xf]
        %v427 = vld [vmem:[%s329 + $0x180] sm:$0xf]
        %v428 = vld [vmem:[%s329 + $0x184] sm:$0xf]
        %v429 = vld [vmem:[%s329 + $0x188] sm:$0xf]
        %v430 = vld [vmem:[%s329 + $0x18c] sm:$0xf]
        %v431 = vld [vmem:[%s329 + $0x190] sm:$0xf]
        %v432 = vld [vmem:[%s329 + $0x194] sm:$0xf]
        %v433 = vld [vmem:[%s329 + $0x198] sm:$0xf]
        %v434 = vld [vmem:[%s329 + $0x19c] sm:$0xf]
        %v435 = vld [vmem:[%s329 + $0x1a0] sm:$0xf]
        %v436 = vld [vmem:[%s329 + $0x1a4] sm:$0xf]
        %v437 = vld [vmem:[%s329 + $0x1a8] sm:$0xf]
        %v438 = vld [vmem:[%s329 + $0x1ac] sm:$0xf]
        %v439 = vld [vmem:[%s329 + $0x1b0] sm:$0xf]
        %v440 = vld [vmem:[%s329 + $0x1b4] sm:$0xf]
        %v441 = vld [vmem:[%s329 + $0x1b8] sm:$0xf]
        %v442 = vld [vmem:[%s329 + $0x1bc] sm:$0xf]
        %v443 = vld [vmem:[%s1] sm:$0xf]
        %v444 = vld [vmem:[%s1 + $0x4] sm:$0xf]
        %v445 = vld [vmem:[%s2] sm:$0x1]
        %v447 = vperm.slane %v445, 0
        %v561 = vunpack.c.l.b16 %v331
        %v562 = vunpack.c.l.b16 %v332
        %v563 = vunpack.c.l.b16 %v333
        %v564 = vunpack.c.l.b16 %v334
        %v565 = vunpack.c.l.b16 %v335
        %v566 = vunpack.c.l.b16 %v336
        %v567 = vunpack.c.l.b16 %v337
        %v568 = vunpack.c.l.b16 %v338
        %v569 = vunpack.c.l.b16 %v339
        %v570 = vunpack.c.l.b16 %v340
        %v571 = vunpack.c.l.b16 %v341
        %v572 = vunpack.c.l.b16 %v342
        %v573 = vunpack.c.l.b16 %v343
        %v574 = vunpack.c.l.b16 %v344
        %v575 = vunpack.c.l.b16 %v345
        %v576 = vunpack.c.l.b16 %v346
        %v577 = vunpack.c.l.b16 %v347
        %v578 = vunpack.c.l.b16 %v348
        %v579 = vunpack.c.l.b16 %v349
        %v580 = vunpack.c.l.b16 %v350
        %v581 = vunpack.c.l.b16 %v351
        %v582 = vunpack.c.l.b16 %v352
        %v583 = vunpack.c.l.b16 %v353
        %v584 = vunpack.c.l.b16 %v354
        %v585 = vunpack.c.l.b16 %v355
        %v586 = vunpack.c.l.b16 %v356
        %v587 = vunpack.c.l.b16 %v357
        %v588 = vunpack.c.l.b16 %v358
        %v589 = vunpack.c.l.b16 %v359
        %v590 = vunpack.c.l.b16 %v360
        %v591 = vunpack.c.l.b16 %v361
        %v592 = vunpack.c.l.b16 %v362
        %v593 = vunpack.c.l.b16 %v363
        %v594 = vunpack.c.l.b16 %v364
        %v595 = vunpack.c.l.b16 %v365
        %v596 = vunpack.c.l.b16 %v366
        %v597 = vunpack.c.l.b16 %v367
        %v598 = vunpack.c.l.b16 %v368
        %v599 = vunpack.c.l.b16 %v369
        %v600 = vunpack.c.l.b16 %v370
        %v601 = vunpack.c.l.b16 %v371
        %v602 = vunpack.c.l.b16 %v372
        %v603 = vunpack.c.l.b16 %v373
        %v604 = vunpack.c.l.b16 %v374
        %v605 = vunpack.c.l.b16 %v375
        %v606 = vunpack.c.l.b16 %v376
        %v607 = vunpack.c.l.b16 %v377
        %v608 = vunpack.c.l.b16 %v378
        %v609 = vunpack.c.l.b16 %v379
        %v610 = vunpack.c.l.b16 %v380
        %v611 = vunpack.c.l.b16 %v381
        %v612 = vunpack.c.l.b16 %v382
        %v613 = vunpack.c.l.b16 %v383
        %v614 = vunpack.c.l.b16 %v384
        %v615 = vunpack.c.l.b16 %v385
        %v616 = vunpack.c.l.b16 %v386
        %v617 = vunpack.c.l.b16 %v387
        %v618 = vunpack.c.l.b16 %v388
        %v619 = vunpack.c.l.b16 %v389
        %v620 = vunpack.c.l.b16 %v390
        %v621 = vunpack.c.l.b16 %v391
        %v622 = vunpack.c.l.b16 %v392
        %v623 = vunpack.c.l.b16 %v393
        %v624 = vunpack.c.l.b16 %v394
        %v625 = vunpack.c.l.b16 %v395
        %v626 = vunpack.c.l.b16 %v396
        %v627 = vunpack.c.l.b16 %v397
        %v628 = vunpack.c.l.b16 %v398
        %v629 = vunpack.c.l.b16 %v399
        %v630 = vunpack.c.l.b16 %v400
        %v631 = vunpack.c.l.b16 %v401
        %v632 = vunpack.c.l.b16 %v402
        %v633 = vunpack.c.l.b16 %v403
        %v634 = vunpack.c.l.b16 %v404
        %v635 = vunpack.c.l.b16 %v405
        %v636 = vunpack.c.l.b16 %v406
        %v637 = vunpack.c.l.b16 %v407
        %v638 = vunpack.c.l.b16 %v408
        %v639 = vunpack.c.l.b16 %v409
        %v640 = vunpack.c.l.b16 %v410
        %v641 = vunpack.c.l.b16 %v411
        %v642 = vunpack.c.l.b16 %v412
        %v643 = vunpack.c.l.b16 %v413
        %v644 = vunpack.c.l.b16 %v414
        %v645 = vunpack.c.l.b16 %v415
        %v646 = vunpack.c.l.b16 %v416
        %v647 = vunpack.c.l.b16 %v417
        %v648 = vunpack.c.l.b16 %v418
        %v649 = vunpack.c.l.b16 %v419
        %v650 = vunpack.c.l.b16 %v420
        %v651 = vunpack.c.l.b16 %v421
        %v652 = vunpack.c.l.b16 %v422
        %v653 = vunpack.c.l.b16 %v423
        %v654 = vunpack.c.l.b16 %v424
        %v655 = vunpack.c.l.b16 %v425
        %v656 = vunpack.c.l.b16 %v426
        %v657 = vunpack.c.l.b16 %v427
        %v658 = vunpack.c.l.b16 %v428
        %v659 = vunpack.c.l.b16 %v429
        %v660 = vunpack.c.l.b16 %v430
        %v661 = vunpack.c.l.b16 %v431
        %v662 = vunpack.c.l.b16 %v432
        %v663 = vunpack.c.l.b16 %v433
        %v664 = vunpack.c.l.b16 %v434
        %v665 = vunpack.c.l.b16 %v435
        %v666 = vunpack.c.l.b16 %v436
        %v667 = vunpack.c.l.b16 %v437
        %v668 = vunpack.c.l.b16 %v438
        %v669 = vunpack.c.l.b16 %v439
        %v670 = vunpack.c.l.b16 %v440
        %v671 = vunpack.c.l.b16 %v441
        %v672 = vunpack.c.l.b16 %v442
        %v673 = vpack.c.b16 %v562, %v561
        %v674 = vpack.c.b16 %v564, %v563
        %v675 = vpack.c.b16 %v566, %v565
        %v676 = vpack.c.b16 %v568, %v567
        %v677 = vpack.c.b16 %v570, %v569
        %v678 = vpack.c.b16 %v572, %v571
        %v679 = vpack.c.b16 %v574, %v573
        %v680 = vpack.c.b16 %v576, %v575
        %v681 = vpack.c.b16 %v578, %v577
        %v682 = vpack.c.b16 %v580, %v579
        %v683 = vpack.c.b16 %v582, %v581
        %v684 = vpack.c.b16 %v584, %v583
        %v685 = vpack.c.b16 %v586, %v585
        %v686 = vpack.c.b16 %v588, %v587
        %v687 = vpack.c.b16 %v590, %v589
        %v688 = vpack.c.b16 %v592, %v591
        %v689 = vpack.c.b16 %v594, %v593
        %v690 = vpack.c.b16 %v596, %v595
        %v691 = vpack.c.b16 %v598, %v597
        %v692 = vpack.c.b16 %v600, %v599
        %v693 = vpack.c.b16 %v602, %v601
        %v694 = vpack.c.b16 %v604, %v603
        %v695 = vpack.c.b16 %v606, %v605
        %v696 = vpack.c.b16 %v608, %v607
        %v697 = vpack.c.b16 %v610, %v609
        %v698 = vpack.c.b16 %v612, %v611
        %v699 = vpack.c.b16 %v614, %v613
        %v700 = vpack.c.b16 %v616, %v615
        %v701 = vpack.c.b16 %v618, %v617
        %v702 = vpack.c.b16 %v620, %v619
        %v703 = vpack.c.b16 %v622, %v621
        %v704 = vpack.c.b16 %v624, %v623
        %v705 = vpack.c.b16 %v626, %v625
        %v706 = vpack.c.b16 %v628, %v627
        %v707 = vpack.c.b16 %v630, %v629
        %v708 = vpack.c.b16 %v632, %v631
        %v709 = vpack.c.b16 %v634, %v633
        %v710 = vpack.c.b16 %v636, %v635
        %v711 = vpack.c.b16 %v638, %v637
        %v712 = vpack.c.b16 %v640, %v639
        %v713 = vpack.c.b16 %v642, %v641
        %v714 = vpack.c.b16 %v644, %v643
        %v715 = vpack.c.b16 %v646, %v645
        %v716 = vpack.c.b16 %v648, %v647
        %v717 = vpack.c.b16 %v650, %v649
        %v718 = vpack.c.b16 %v652, %v651
        %v719 = vpack.c.b16 %v654, %v653
        %v720 = vpack.c.b16 %v656, %v655
        %v721 = vpack.c.b16 %v658, %v657
        %v722 = vpack.c.b16 %v660, %v659
        %v723 = vpack.c.b16 %v662, %v661
        %v724 = vpack.c.b16 %v664, %v663
        %v725 = vpack.c.b16 %v666, %v665
        %v726 = vpack.c.b16 %v668, %v667
        %v727 = vpack.c.b16 %v670, %v669
        %v728 = vpack.c.b16 %v672, %v671
        %v731 = vunpack.c.l.b16 %v443
        %v732 = vunpack.c.l.b16 %v444
        %v733 = vpack.c.b16 %v732, %v731
        %vm735 = vcmask 130048
        %v737 = vsel %vm735, %v673, 0
        %v740 = vsel %vm735, %v674, 0
        %v743 = vsel %vm735, %v675, 0
        %v746 = vsel %vm735, %v676, 0
        %v749 = vsel %vm735, %v677, 0
        %v752 = vsel %vm735, %v678, 0
        %v755 = vsel %vm735, %v679, 0
        %v758 = vsel %vm735, %v680, 0
        %v761 = vsel %vm735, %v681, 0
        %v764 = vsel %vm735, %v682, 0
        %v767 = vsel %vm735, %v683, 0
        %v770 = vsel %vm735, %v684, 0
        %v773 = vsel %vm735, %v685, 0
        %v776 = vsel %vm735, %v686, 0
        %v779 = vsel %vm735, %v687, 0
        %v782 = vsel %vm735, %v688, 0
        %v785 = vsel %vm735, %v689, 0
        %v788 = vsel %vm735, %v690, 0
        %v791 = vsel %vm735, %v691, 0
        %v794 = vsel %vm735, %v692, 0
        %v797 = vsel %vm735, %v693, 0
        %v800 = vsel %vm735, %v694, 0
        %v803 = vsel %vm735, %v695, 0
        %v806 = vsel %vm735, %v696, 0
        %v809 = vsel %vm735, %v697, 0
        %v812 = vsel %vm735, %v698, 0
        %v815 = vsel %vm735, %v699, 0
        %v818 = vsel %vm735, %v700, 0
        %v821 = vsel %vm735, %v701, 0
        %v824 = vsel %vm735, %v702, 0
        %v827 = vsel %vm735, %v703, 0
        %v830 = vsel %vm735, %v704, 0
        %v833 = vsel %vm735, %v705, 0
        %v836 = vsel %vm735, %v706, 0
        %v839 = vsel %vm735, %v707, 0
        %v842 = vsel %vm735, %v708, 0
        %v845 = vsel %vm735, %v709, 0
        %v848 = vsel %vm735, %v710, 0
        %v851 = vsel %vm735, %v711, 0
        %v854 = vsel %vm735, %v712, 0
        %v857 = vsel %vm735, %v713, 0
        %v860 = vsel %vm735, %v714, 0
        %v863 = vsel %vm735, %v715, 0
        %v866 = vsel %vm735, %v716, 0
        %v869 = vsel %vm735, %v717, 0
        %v872 = vsel %vm735, %v718, 0
        %v875 = vsel %vm735, %v719, 0
        %v878 = vsel %vm735, %v720, 0
        %v881 = vsel %vm735, %v721, 0
        %v884 = vsel %vm735, %v722, 0
        %v887 = vsel %vm735, %v723, 0
        %v890 = vsel %vm735, %v724, 0
        %v893 = vsel %vm735, %v725, 0
        %v896 = vsel %vm735, %v726, 0
        %v899 = vsel %vm735, %v727, 0
        %v902 = vsel %vm735, %v728, 0
        %904 = vmatpush.bf16.msra.mxu0 0
        %905 = vmatpush.bf16.msra.mxu0 0
        %906 = vmatpush.bf16.msra.mxu0 0
        %907 = vmatpush.bf16.msra.mxu0 0
        %908 = vmatpush.bf16.msra.mxu0 0
        %909 = vmatpush.bf16.msra.mxu0 0
        %910 = vmatpush.bf16.msra.mxu0 0
        %911 = vmatpush.bf16.msra.mxu0 %v733
        %912 = vmatmul.bf16.gmra.mxu0 %v737
        %v913 = vpop.f32.mrf.mxu0
        %v914 = vadd.f32 %v447, %v913
        %v915 = vpop.f32.mrf.mxu0
        %v916 = vadd.f32 %v447, %v915
        %917 = vmatmul.bf16.gmra.mxu0 %v740
        %v918 = vpop.f32.mrf.mxu0
        %v919 = vadd.f32 %v447, %v918
        %v920 = vpop.f32.mrf.mxu0
        %v921 = vadd.f32 %v447, %v920
        %922 = vmatmul.bf16.gmra.mxu0 %v743
        %v923 = vpop.f32.mrf.mxu0
        %v924 = vadd.f32 %v447, %v923
        %v925 = vpop.f32.mrf.mxu0
        %v926 = vadd.f32 %v447, %v925
        %927 = vmatmul.bf16.gmra.mxu0 %v746
        %v928 = vpop.f32.mrf.mxu0
        %v929 = vadd.f32 %v447, %v928
        %v930 = vpop.f32.mrf.mxu0
        %v931 = vadd.f32 %v447, %v930
        %932 = vmatmul.bf16.gmra.mxu0 %v749
        %v933 = vpop.f32.mrf.mxu0
        %v934 = vadd.f32 %v447, %v933
        %v935 = vpop.f32.mrf.mxu0
        %v936 = vadd.f32 %v447, %v935
        %937 = vmatmul.bf16.gmra.mxu0 %v752
        %v938 = vpop.f32.mrf.mxu0
        %v939 = vadd.f32 %v447, %v938
        %v940 = vpop.f32.mrf.mxu0
        %v941 = vadd.f32 %v447, %v940
        %942 = vmatmul.bf16.gmra.mxu0 %v755
        %v943 = vpop.f32.mrf.mxu0
        %v944 = vadd.f32 %v447, %v943
        %v945 = vpop.f32.mrf.mxu0
        %v946 = vadd.f32 %v447, %v945
        %947 = vmatmul.bf16.gmra.mxu0 %v758
        %v948 = vpop.f32.mrf.mxu0
        %v949 = vadd.f32 %v447, %v948
        %v950 = vpop.f32.mrf.mxu0
        %v951 = vadd.f32 %v447, %v950
        %952 = vmatmul.bf16.gmra.mxu0 %v761
        %v953 = vpop.f32.mrf.mxu0
        %v954 = vadd.f32 %v447, %v953
        %v955 = vpop.f32.mrf.mxu0
        %v956 = vadd.f32 %v447, %v955
        %957 = vmatmul.bf16.gmra.mxu0 %v764
        %v958 = vpop.f32.mrf.mxu0
        %v959 = vadd.f32 %v447, %v958
        %v960 = vpop.f32.mrf.mxu0
        %v961 = vadd.f32 %v447, %v960
        %962 = vmatmul.bf16.gmra.mxu0 %v767
        %v963 = vpop.f32.mrf.mxu0
        %v964 = vadd.f32 %v447, %v963
        %v965 = vpop.f32.mrf.mxu0
        %v966 = vadd.f32 %v447, %v965
        %967 = vmatmul.bf16.gmra.mxu0 %v770
        %v968 = vpop.f32.mrf.mxu0
        %v969 = vadd.f32 %v447, %v968
        %v970 = vpop.f32.mrf.mxu0
        %v971 = vadd.f32 %v447, %v970
        %972 = vmatmul.bf16.gmra.mxu0 %v773
        %v973 = vpop.f32.mrf.mxu0
        %v974 = vadd.f32 %v447, %v973
        %v975 = vpop.f32.mrf.mxu0
        %v976 = vadd.f32 %v447, %v975
        %977 = vmatmul.bf16.gmra.mxu0 %v776
        %v978 = vpop.f32.mrf.mxu0
        %v979 = vadd.f32 %v447, %v978
        %v980 = vpop.f32.mrf.mxu0
        %v981 = vadd.f32 %v447, %v980
        %982 = vmatmul.bf16.gmra.mxu0 %v779
        %v983 = vpop.f32.mrf.mxu0
        %v984 = vadd.f32 %v447, %v983
        %v985 = vpop.f32.mrf.mxu0
        %v986 = vadd.f32 %v447, %v985
        %987 = vmatmul.bf16.gmra.mxu0 %v782
        %v988 = vpop.f32.mrf.mxu0
        %v989 = vadd.f32 %v447, %v988
        %v990 = vpop.f32.mrf.mxu0
        %v991 = vadd.f32 %v447, %v990
        %992 = vmatmul.bf16.gmra.mxu0 %v785
        %v993 = vpop.f32.mrf.mxu0
        %v994 = vadd.f32 %v447, %v993
        %v995 = vpop.f32.mrf.mxu0
        %v996 = vadd.f32 %v447, %v995
        %997 = vmatmul.bf16.gmra.mxu0 %v788
        %v998 = vpop.f32.mrf.mxu0
        %v999 = vadd.f32 %v447, %v998
        %v1000 = vpop.f32.mrf.mxu0
        %v1001 = vadd.f32 %v447, %v1000
        %1002 = vmatmul.bf16.gmra.mxu0 %v791
        %v1003 = vpop.f32.mrf.mxu0
        %v1004 = vadd.f32 %v447, %v1003
        %v1005 = vpop.f32.mrf.mxu0
        %v1006 = vadd.f32 %v447, %v1005
        %1007 = vmatmul.bf16.gmra.mxu0 %v794
        %v1008 = vpop.f32.mrf.mxu0
        %v1009 = vadd.f32 %v447, %v1008
        %v1010 = vpop.f32.mrf.mxu0
        %v1011 = vadd.f32 %v447, %v1010
        %1012 = vmatmul.bf16.gmra.mxu0 %v797
        %v1013 = vpop.f32.mrf.mxu0
        %v1014 = vadd.f32 %v447, %v1013
        %v1015 = vpop.f32.mrf.mxu0
        %v1016 = vadd.f32 %v447, %v1015
        %1017 = vmatmul.bf16.gmra.mxu0 %v800
        %v1018 = vpop.f32.mrf.mxu0
        %v1019 = vadd.f32 %v447, %v1018
        %v1020 = vpop.f32.mrf.mxu0
        %v1021 = vadd.f32 %v447, %v1020
        %1022 = vmatmul.bf16.gmra.mxu0 %v803
        %v1023 = vpop.f32.mrf.mxu0
        %v1024 = vadd.f32 %v447, %v1023
        %v1025 = vpop.f32.mrf.mxu0
        %v1026 = vadd.f32 %v447, %v1025
        %1027 = vmatmul.bf16.gmra.mxu0 %v806
        %v1028 = vpop.f32.mrf.mxu0
        %v1029 = vadd.f32 %v447, %v1028
        %v1030 = vpop.f32.mrf.mxu0
        %v1031 = vadd.f32 %v447, %v1030
        %1032 = vmatmul.bf16.gmra.mxu0 %v809
        %v1033 = vpop.f32.mrf.mxu0
        %v1034 = vadd.f32 %v447, %v1033
        %v1035 = vpop.f32.mrf.mxu0
        %v1036 = vadd.f32 %v447, %v1035
        %1037 = vmatmul.bf16.gmra.mxu0 %v812
        %v1038 = vpop.f32.mrf.mxu0
        %v1039 = vadd.f32 %v447, %v1038
        %v1040 = vpop.f32.mrf.mxu0
        %v1041 = vadd.f32 %v447, %v1040
        %1042 = vmatmul.bf16.gmra.mxu0 %v815
        %v1043 = vpop.f32.mrf.mxu0
        %v1044 = vadd.f32 %v447, %v1043
        %v1045 = vpop.f32.mrf.mxu0
        %v1046 = vadd.f32 %v447, %v1045
        %1047 = vmatmul.bf16.gmra.mxu0 %v818
        %v1048 = vpop.f32.mrf.mxu0
        %v1049 = vadd.f32 %v447, %v1048
        %v1050 = vpop.f32.mrf.mxu0
        %v1051 = vadd.f32 %v447, %v1050
        %1052 = vmatmul.bf16.gmra.mxu0 %v821
        %v1053 = vpop.f32.mrf.mxu0
        %v1054 = vadd.f32 %v447, %v1053
        %v1055 = vpop.f32.mrf.mxu0
        %v1056 = vadd.f32 %v447, %v1055
        %1057 = vmatmul.bf16.gmra.mxu0 %v824
        %v1058 = vpop.f32.mrf.mxu0
        %v1059 = vadd.f32 %v447, %v1058
        %v1060 = vpop.f32.mrf.mxu0
        %v1061 = vadd.f32 %v447, %v1060
        %1062 = vmatmul.bf16.gmra.mxu0 %v827
        %v1063 = vpop.f32.mrf.mxu0
        %v1064 = vadd.f32 %v447, %v1063
        %v1065 = vpop.f32.mrf.mxu0
        %v1066 = vadd.f32 %v447, %v1065
        %1067 = vmatmul.bf16.gmra.mxu0 %v830
        %v1068 = vpop.f32.mrf.mxu0
        %v1069 = vadd.f32 %v447, %v1068
        %v1070 = vpop.f32.mrf.mxu0
        %v1071 = vadd.f32 %v447, %v1070
        %1072 = vmatmul.bf16.gmra.mxu0 %v833
        %v1073 = vpop.f32.mrf.mxu0
        %v1074 = vadd.f32 %v447, %v1073
        %v1075 = vpop.f32.mrf.mxu0
        %v1076 = vadd.f32 %v447, %v1075
        %1077 = vmatmul.bf16.gmra.mxu0 %v836
        %v1078 = vpop.f32.mrf.mxu0
        %v1079 = vadd.f32 %v447, %v1078
        %v1080 = vpop.f32.mrf.mxu0
        %v1081 = vadd.f32 %v447, %v1080
        %1082 = vmatmul.bf16.gmra.mxu0 %v839
        %v1083 = vpop.f32.mrf.mxu0
        %v1084 = vadd.f32 %v447, %v1083
        %v1085 = vpop.f32.mrf.mxu0
        %v1086 = vadd.f32 %v447, %v1085
        %1087 = vmatmul.bf16.gmra.mxu0 %v842
        %v1088 = vpop.f32.mrf.mxu0
        %v1089 = vadd.f32 %v447, %v1088
        %v1090 = vpop.f32.mrf.mxu0
        %v1091 = vadd.f32 %v447, %v1090
        %1092 = vmatmul.bf16.gmra.mxu0 %v845
        %v1093 = vpop.f32.mrf.mxu0
        %v1094 = vadd.f32 %v447, %v1093
        %v1095 = vpop.f32.mrf.mxu0
        %v1096 = vadd.f32 %v447, %v1095
        %1097 = vmatmul.bf16.gmra.mxu0 %v848
        %v1098 = vpop.f32.mrf.mxu0
        %v1099 = vadd.f32 %v447, %v1098
        %v1100 = vpop.f32.mrf.mxu0
        %v1101 = vadd.f32 %v447, %v1100
        %1102 = vmatmul.bf16.gmra.mxu0 %v851
        %v1103 = vpop.f32.mrf.mxu0
        %v1104 = vadd.f32 %v447, %v1103
        %v1105 = vpop.f32.mrf.mxu0
        %v1106 = vadd.f32 %v447, %v1105
        %1107 = vmatmul.bf16.gmra.mxu0 %v854
        %v1108 = vpop.f32.mrf.mxu0
        %v1109 = vadd.f32 %v447, %v1108
        %v1110 = vpop.f32.mrf.mxu0
        %v1111 = vadd.f32 %v447, %v1110
        %1112 = vmatmul.bf16.gmra.mxu0 %v857
        %v1113 = vpop.f32.mrf.mxu0
        %v1114 = vadd.f32 %v447, %v1113
        %v1115 = vpop.f32.mrf.mxu0
        %v1116 = vadd.f32 %v447, %v1115
        %1117 = vmatmul.bf16.gmra.mxu0 %v860
        %v1118 = vpop.f32.mrf.mxu0
        %v1119 = vadd.f32 %v447, %v1118
        %v1120 = vpop.f32.mrf.mxu0
        %v1121 = vadd.f32 %v447, %v1120
        %1122 = vmatmul.bf16.gmra.mxu0 %v863
        %v1123 = vpop.f32.mrf.mxu0
        %v1124 = vadd.f32 %v447, %v1123
        %v1125 = vpop.f32.mrf.mxu0
        %v1126 = vadd.f32 %v447, %v1125
        %1127 = vmatmul.bf16.gmra.mxu0 %v866
        %v1128 = vpop.f32.mrf.mxu0
        %v1129 = vadd.f32 %v447, %v1128
        %v1130 = vpop.f32.mrf.mxu0
        %v1131 = vadd.f32 %v447, %v1130
        %1132 = vmatmul.bf16.gmra.mxu0 %v869
        %v1133 = vpop.f32.mrf.mxu0
        %v1134 = vadd.f32 %v447, %v1133
        %v1135 = vpop.f32.mrf.mxu0
        %v1136 = vadd.f32 %v447, %v1135
        %1137 = vmatmul.bf16.gmra.mxu0 %v872
        %v1138 = vpop.f32.mrf.mxu0
        %v1139 = vadd.f32 %v447, %v1138
        %v1140 = vpop.f32.mrf.mxu0
        %v1141 = vadd.f32 %v447, %v1140
        %1142 = vmatmul.bf16.gmra.mxu0 %v875
        %v1143 = vpop.f32.mrf.mxu0
        %v1144 = vadd.f32 %v447, %v1143
        %v1145 = vpop.f32.mrf.mxu0
        %v1146 = vadd.f32 %v447, %v1145
        %1147 = vmatmul.bf16.gmra.mxu0 %v878
        %v1148 = vpop.f32.mrf.mxu0
        %v1149 = vadd.f32 %v447, %v1148
        %v1150 = vpop.f32.mrf.mxu0
        %v1151 = vadd.f32 %v447, %v1150
        %1152 = vmatmul.bf16.gmra.mxu0 %v881
        %v1153 = vpop.f32.mrf.mxu0
        %v1154 = vadd.f32 %v447, %v1153
        %v1155 = vpop.f32.mrf.mxu0
        %v1156 = vadd.f32 %v447, %v1155
        %1157 = vmatmul.bf16.gmra.mxu0 %v884
        %v1158 = vpop.f32.mrf.mxu0
        %v1159 = vadd.f32 %v447, %v1158
        %v1160 = vpop.f32.mrf.mxu0
        %v1161 = vadd.f32 %v447, %v1160
        %1162 = vmatmul.bf16.gmra.mxu0 %v887
        %v1163 = vpop.f32.mrf.mxu0
        %v1164 = vadd.f32 %v447, %v1163
        %v1165 = vpop.f32.mrf.mxu0
        %v1166 = vadd.f32 %v447, %v1165
        %1167 = vmatmul.bf16.gmra.mxu0 %v890
        %v1168 = vpop.f32.mrf.mxu0
        %v1169 = vadd.f32 %v447, %v1168
        %v1170 = vpop.f32.mrf.mxu0
        %v1171 = vadd.f32 %v447, %v1170
        %1172 = vmatmul.bf16.gmra.mxu0 %v893
        %v1173 = vpop.f32.mrf.mxu0
        %v1174 = vadd.f32 %v447, %v1173
        %v1175 = vpop.f32.mrf.mxu0
        %v1176 = vadd.f32 %v447, %v1175
        %1177 = vmatmul.bf16.gmra.mxu0 %v896
        %v1178 = vpop.f32.mrf.mxu0
        %v1179 = vadd.f32 %v447, %v1178
        %v1180 = vpop.f32.mrf.mxu0
        %v1181 = vadd.f32 %v447, %v1180
        %1182 = vmatmul.bf16.gmra.mxu0 %v899
        %v1183 = vpop.f32.mrf.mxu0
        %v1184 = vadd.f32 %v447, %v1183
        %v1185 = vpop.f32.mrf.mxu0
        %v1186 = vadd.f32 %v447, %v1185
        %1187 = vmatmul.bf16.gmra.mxu0 %v902
        %v1188 = vpop.f32.mrf.mxu0
        %v1189 = vadd.f32 %v447, %v1188
        %v1190 = vpop.f32.mrf.mxu0
        %v1191 = vadd.f32 %v447, %v1190
        %1192 = vdwg.mxu0
        %v1193 = vmax.f32 %v914, 0.0
        %v1194 = vmax.f32 %v916, 0.0
        %v1195 = vmax.f32 %v919, 0.0
        %v1196 = vmax.f32 %v921, 0.0
        %v1197 = vmax.f32 %v924, 0.0
        %v1198 = vmax.f32 %v926, 0.0
        %v1199 = vmax.f32 %v929, 0.0
        %v1200 = vmax.f32 %v931, 0.0
        %v1201 = vmax.f32 %v934, 0.0
        %v1202 = vmax.f32 %v936, 0.0
        %v1203 = vmax.f32 %v939, 0.0
        %v1204 = vmax.f32 %v941, 0.0
        %v1205 = vmax.f32 %v944, 0.0
        %v1206 = vmax.f32 %v946, 0.0
        %v1207 = vmax.f32 %v949, 0.0
        %v1208 = vmax.f32 %v951, 0.0
        %v1209 = vmax.f32 %v954, 0.0
        %v1210 = vmax.f32 %v956, 0.0
        %v1211 = vmax.f32 %v959, 0.0
        %v1212 = vmax.f32 %v961, 0.0
        %v1213 = vmax.f32 %v964, 0.0
        %v1214 = vmax.f32 %v966, 0.0
        %v1215 = vmax.f32 %v969, 0.0
        %v1216 = vmax.f32 %v971, 0.0
        %v1217 = vmax.f32 %v974, 0.0
        %v1218 = vmax.f32 %v976, 0.0
        %v1219 = vmax.f32 %v979, 0.0
        %v1220 = vmax.f32 %v981, 0.0
        %v1221 = vmax.f32 %v984, 0.0
        %v1222 = vmax.f32 %v986, 0.0
        %v1223 = vmax.f32 %v989, 0.0
        %v1224 = vmax.f32 %v991, 0.0
        %v1225 = vmax.f32 %v994, 0.0
        %v1226 = vmax.f32 %v996, 0.0
        %v1227 = vmax.f32 %v999, 0.0
        %v1228 = vmax.f32 %v1001, 0.0
        %v1229 = vmax.f32 %v1004, 0.0
        %v1230 = vmax.f32 %v1006, 0.0
        %v1231 = vmax.f32 %v1009, 0.0
        %v1232 = vmax.f32 %v1011, 0.0
        %v1233 = vmax.f32 %v1014, 0.0
        %v1234 = vmax.f32 %v1016, 0.0
        %v1235 = vmax.f32 %v1019, 0.0
        %v1236 = vmax.f32 %v1021, 0.0
        %v1237 = vmax.f32 %v1024, 0.0
        %v1238 = vmax.f32 %v1026, 0.0
        %v1239 = vmax.f32 %v1029, 0.0
        %v1240 = vmax.f32 %v1031, 0.0
        %v1241 = vmax.f32 %v1034, 0.0
        %v1242 = vmax.f32 %v1036, 0.0
        %v1243 = vmax.f32 %v1039, 0.0
        %v1244 = vmax.f32 %v1041, 0.0
        %v1245 = vmax.f32 %v1044, 0.0
        %v1246 = vmax.f32 %v1046, 0.0
        %v1247 = vmax.f32 %v1049, 0.0
        %v1248 = vmax.f32 %v1051, 0.0
        %v1249 = vmax.f32 %v1054, 0.0
        %v1250 = vmax.f32 %v1056, 0.0
        %v1251 = vmax.f32 %v1059, 0.0
        %v1252 = vmax.f32 %v1061, 0.0
        %v1253 = vmax.f32 %v1064, 0.0
        %v1254 = vmax.f32 %v1066, 0.0
        %v1255 = vmax.f32 %v1069, 0.0
        %v1256 = vmax.f32 %v1071, 0.0
        %v1257 = vmax.f32 %v1074, 0.0
        %v1258 = vmax.f32 %v1076, 0.0
        %v1259 = vmax.f32 %v1079, 0.0
        %v1260 = vmax.f32 %v1081, 0.0
        %v1261 = vmax.f32 %v1084, 0.0
        %v1262 = vmax.f32 %v1086, 0.0
        %v1263 = vmax.f32 %v1089, 0.0
        %v1264 = vmax.f32 %v1091, 0.0
        %v1265 = vmax.f32 %v1094, 0.0
        %v1266 = vmax.f32 %v1096, 0.0
        %v1267 = vmax.f32 %v1099, 0.0
        %v1268 = vmax.f32 %v1101, 0.0
        %v1269 = vmax.f32 %v1104, 0.0
        %v1270 = vmax.f32 %v1106, 0.0
        %v1271 = vmax.f32 %v1109, 0.0
        %v1272 = vmax.f32 %v1111, 0.0
        %v1273 = vmax.f32 %v1114, 0.0
        %v1274 = vmax.f32 %v1116, 0.0
        %v1275 = vmax.f32 %v1119, 0.0
        %v1276 = vmax.f32 %v1121, 0.0
        %v1277 = vmax.f32 %v1124, 0.0
        %v1278 = vmax.f32 %v1126, 0.0
        %v1279 = vmax.f32 %v1129, 0.0
        %v1280 = vmax.f32 %v1131, 0.0
        %v1281 = vmax.f32 %v1134, 0.0
        %v1282 = vmax.f32 %v1136, 0.0
        %v1283 = vmax.f32 %v1139, 0.0
        %v1284 = vmax.f32 %v1141, 0.0
        %v1285 = vmax.f32 %v1144, 0.0
        %v1286 = vmax.f32 %v1146, 0.0
        %v1287 = vmax.f32 %v1149, 0.0
        %v1288 = vmax.f32 %v1151, 0.0
        %v1289 = vmax.f32 %v1154, 0.0
        %v1290 = vmax.f32 %v1156, 0.0
        %v1291 = vmax.f32 %v1159, 0.0
        %v1292 = vmax.f32 %v1161, 0.0
        %v1293 = vmax.f32 %v1164, 0.0
        %v1294 = vmax.f32 %v1166, 0.0
        %v1295 = vmax.f32 %v1169, 0.0
        %v1296 = vmax.f32 %v1171, 0.0
        %v1297 = vmax.f32 %v1174, 0.0
        %v1298 = vmax.f32 %v1176, 0.0
        %v1299 = vmax.f32 %v1179, 0.0
        %v1300 = vmax.f32 %v1181, 0.0
        %v1301 = vmax.f32 %v1184, 0.0
        %v1302 = vmax.f32 %v1186, 0.0
        %v1303 = vmax.f32 %v1189, 0.0
        %v1304 = vmax.f32 %v1191, 0.0
        %vm1305 = vcmask 261120
        %1306 = vst.msk [vmem:[#allocation2] sm:$0xff] %vm1305, %v1193
        %1307 = vst.msk [vmem:[#allocation2 + $0x8] sm:$0xff] %vm1305, %v1194
        %1308 = vst.msk [vmem:[#allocation2 + $0x10] sm:$0xff] %vm1305, %v1195
        %1309 = vst.msk [vmem:[#allocation2 + $0x18] sm:$0xff] %vm1305, %v1196
        %1310 = vst.msk [vmem:[#allocation2 + $0x20] sm:$0xff] %vm1305, %v1197
        %1311 = vst.msk [vmem:[#allocation2 + $0x28] sm:$0xff] %vm1305, %v1198
        %1312 = vst.msk [vmem:[#allocation2 + $0x30] sm:$0xff] %vm1305, %v1199
        %1313 = vst.msk [vmem:[#allocation2 + $0x38] sm:$0xff] %vm1305, %v1200
        %1314 = vst.msk [vmem:[#allocation2 + $0x40] sm:$0xff] %vm1305, %v1201
        %1315 = vst.msk [vmem:[#allocation2 + $0x48] sm:$0xff] %vm1305, %v1202
        %1316 = vst.msk [vmem:[#allocation2 + $0x50] sm:$0xff] %vm1305, %v1203
        %1317 = vst.msk [vmem:[#allocation2 + $0x58] sm:$0xff] %vm1305, %v1204
        %1318 = vst.msk [vmem:[#allocation2 + $0x60] sm:$0xff] %vm1305, %v1205
        %1319 = vst.msk [vmem:[#allocation2 + $0x68] sm:$0xff] %vm1305, %v1206
        %1320 = vst.msk [vmem:[#allocation2 + $0x70] sm:$0xff] %vm1305, %v1207
        %1321 = vst.msk [vmem:[#allocation2 + $0x78] sm:$0xff] %vm1305, %v1208
        %1322 = vst.msk [vmem:[#allocation2 + $0x80] sm:$0xff] %vm1305, %v1209
        %1323 = vst.msk [vmem:[#allocation2 + $0x88] sm:$0xff] %vm1305, %v1210
        %1324 = vst.msk [vmem:[#allocation2 + $0x90] sm:$0xff] %vm1305, %v1211
        %1325 = vst.msk [vmem:[#allocation2 + $0x98] sm:$0xff] %vm1305, %v1212
        %1326 = vst.msk [vmem:[#allocation2 + $0xa0] sm:$0xff] %vm1305, %v1213
        %1327 = vst.msk [vmem:[#allocation2 + $0xa8] sm:$0xff] %vm1305, %v1214
        %1328 = vst.msk [vmem:[#allocation2 + $0xb0] sm:$0xff] %vm1305, %v1215
        %1329 = vst.msk [vmem:[#allocation2 + $0xb8] sm:$0xff] %vm1305, %v1216
        %1330 = vst.msk [vmem:[#allocation2 + $0xc0] sm:$0xff] %vm1305, %v1217
        %1331 = vst.msk [vmem:[#allocation2 + $0xc8] sm:$0xff] %vm1305, %v1218
        %1332 = vst.msk [vmem:[#allocation2 + $0xd0] sm:$0xff] %vm1305, %v1219
        %1333 = vst.msk [vmem:[#allocation2 + $0xd8] sm:$0xff] %vm1305, %v1220
        %1334 = vst.msk [vmem:[#allocation2 + $0xe0] sm:$0xff] %vm1305, %v1221
        %1335 = vst.msk [vmem:[#allocation2 + $0xe8] sm:$0xff] %vm1305, %v1222
        %1336 = vst.msk [vmem:[#allocation2 + $0xf0] sm:$0xff] %vm1305, %v1223
        %1337 = vst.msk [vmem:[#allocation2 + $0xf8] sm:$0xff] %vm1305, %v1224
        %1338 = vst.msk [vmem:[#allocation2 + $0x100] sm:$0xff] %vm1305, %v1225
        %1339 = vst.msk [vmem:[#allocation2 + $0x108] sm:$0xff] %vm1305, %v1226
        %1340 = vst.msk [vmem:[#allocation2 + $0x110] sm:$0xff] %vm1305, %v1227
        %1341 = vst.msk [vmem:[#allocation2 + $0x118] sm:$0xff] %vm1305, %v1228
        %1342 = vst.msk [vmem:[#allocation2 + $0x120] sm:$0xff] %vm1305, %v1229
        %1343 = vst.msk [vmem:[#allocation2 + $0x128] sm:$0xff] %vm1305, %v1230
        %1344 = vst.msk [vmem:[#allocation2 + $0x130] sm:$0xff] %vm1305, %v1231
        %1345 = vst.msk [vmem:[#allocation2 + $0x138] sm:$0xff] %vm1305, %v1232
        %1346 = vst.msk [vmem:[#allocation2 + $0x140] sm:$0xff] %vm1305, %v1233
        %1347 = vst.msk [vmem:[#allocation2 + $0x148] sm:$0xff] %vm1305, %v1234
        %1348 = vst.msk [vmem:[#allocation2 + $0x150] sm:$0xff] %vm1305, %v1235
        %1349 = vst.msk [vmem:[#allocation2 + $0x158] sm:$0xff] %vm1305, %v1236
        %1350 = vst.msk [vmem:[#allocation2 + $0x160] sm:$0xff] %vm1305, %v1237
        %1351 = vst.msk [vmem:[#allocation2 + $0x168] sm:$0xff] %vm1305, %v1238
        %1352 = vst.msk [vmem:[#allocation2 + $0x170] sm:$0xff] %vm1305, %v1239
        %1353 = vst.msk [vmem:[#allocation2 + $0x178] sm:$0xff] %vm1305, %v1240
        %1354 = vst.msk [vmem:[#allocation2 + $0x180] sm:$0xff] %vm1305, %v1241
        %1355 = vst.msk [vmem:[#allocation2 + $0x188] sm:$0xff] %vm1305, %v1242
        %1356 = vst.msk [vmem:[#allocation2 + $0x190] sm:$0xff] %vm1305, %v1243
        %1357 = vst.msk [vmem:[#allocation2 + $0x198] sm:$0xff] %vm1305, %v1244
        %1358 = vst.msk [vmem:[#allocation2 + $0x1a0] sm:$0xff] %vm1305, %v1245
        %1359 = vst.msk [vmem:[#allocation2 + $0x1a8] sm:$0xff] %vm1305, %v1246
        %1360 = vst.msk [vmem:[#allocation2 + $0x1b0] sm:$0xff] %vm1305, %v1247
        %1361 = vst.msk [vmem:[#allocation2 + $0x1b8] sm:$0xff] %vm1305, %v1248
        %1362 = vst.msk [vmem:[#allocation2 + $0x1c0] sm:$0xff] %vm1305, %v1249
        %1363 = vst.msk [vmem:[#allocation2 + $0x1c8] sm:$0xff] %vm1305, %v1250
        %1364 = vst.msk [vmem:[#allocation2 + $0x1d0] sm:$0xff] %vm1305, %v1251
        %1365 = vst.msk [vmem:[#allocation2 + $0x1d8] sm:$0xff] %vm1305, %v1252
        %1366 = vst.msk [vmem:[#allocation2 + $0x1e0] sm:$0xff] %vm1305, %v1253
        %1367 = vst.msk [vmem:[#allocation2 + $0x1e8] sm:$0xff] %vm1305, %v1254
        %1368 = vst.msk [vmem:[#allocation2 + $0x1f0] sm:$0xff] %vm1305, %v1255
        %1369 = vst.msk [vmem:[#allocation2 + $0x1f8] sm:$0xff] %vm1305, %v1256
        %1370 = vst.msk [vmem:[#allocation2 + $0x200] sm:$0xff] %vm1305, %v1257
        %1371 = vst.msk [vmem:[#allocation2 + $0x208] sm:$0xff] %vm1305, %v1258
        %1372 = vst.msk [vmem:[#allocation2 + $0x210] sm:$0xff] %vm1305, %v1259
        %1373 = vst.msk [vmem:[#allocation2 + $0x218] sm:$0xff] %vm1305, %v1260
        %1374 = vst.msk [vmem:[#allocation2 + $0x220] sm:$0xff] %vm1305, %v1261
        %1375 = vst.msk [vmem:[#allocation2 + $0x228] sm:$0xff] %vm1305, %v1262
        %1376 = vst.msk [vmem:[#allocation2 + $0x230] sm:$0xff] %vm1305, %v1263
        %1377 = vst.msk [vmem:[#allocation2 + $0x238] sm:$0xff] %vm1305, %v1264
        %1378 = vst.msk [vmem:[#allocation2 + $0x240] sm:$0xff] %vm1305, %v1265
        %1379 = vst.msk [vmem:[#allocation2 + $0x248] sm:$0xff] %vm1305, %v1266
        %1380 = vst.msk [vmem:[#allocation2 + $0x250] sm:$0xff] %vm1305, %v1267
        %1381 = vst.msk [vmem:[#allocation2 + $0x258] sm:$0xff] %vm1305, %v1268
        %1382 = vst.msk [vmem:[#allocation2 + $0x260] sm:$0xff] %vm1305, %v1269
        %1383 = vst.msk [vmem:[#allocation2 + $0x268] sm:$0xff] %vm1305, %v1270
        %1384 = vst.msk [vmem:[#allocation2 + $0x270] sm:$0xff] %vm1305, %v1271
        %1385 = vst.msk [vmem:[#allocation2 + $0x278] sm:$0xff] %vm1305, %v1272
        %1386 = vst.msk [vmem:[#allocation2 + $0x280] sm:$0xff] %vm1305, %v1273
        %1387 = vst.msk [vmem:[#allocation2 + $0x288] sm:$0xff] %vm1305, %v1274
        %1388 = vst.msk [vmem:[#allocation2 + $0x290] sm:$0xff] %vm1305, %v1275
        %1389 = vst.msk [vmem:[#allocation2 + $0x298] sm:$0xff] %vm1305, %v1276
        %1390 = vst.msk [vmem:[#allocation2 + $0x2a0] sm:$0xff] %vm1305, %v1277
        %1391 = vst.msk [vmem:[#allocation2 + $0x2a8] sm:$0xff] %vm1305, %v1278
        %1392 = vst.msk [vmem:[#allocation2 + $0x2b0] sm:$0xff] %vm1305, %v1279
        %1393 = vst.msk [vmem:[#allocation2 + $0x2b8] sm:$0xff] %vm1305, %v1280
        %1394 = vst.msk [vmem:[#allocation2 + $0x2c0] sm:$0xff] %vm1305, %v1281
        %1395 = vst.msk [vmem:[#allocation2 + $0x2c8] sm:$0xff] %vm1305, %v1282
        %1396 = vst.msk [vmem:[#allocation2 + $0x2d0] sm:$0xff] %vm1305, %v1283
        %1397 = vst.msk [vmem:[#allocation2 + $0x2d8] sm:$0xff] %vm1305, %v1284
        %1398 = vst.msk [vmem:[#allocation2 + $0x2e0] sm:$0xff] %vm1305, %v1285
        %1399 = vst.msk [vmem:[#allocation2 + $0x2e8] sm:$0xff] %vm1305, %v1286
        %1400 = vst.msk [vmem:[#allocation2 + $0x2f0] sm:$0xff] %vm1305, %v1287
        %1401 = vst.msk [vmem:[#allocation2 + $0x2f8] sm:$0xff] %vm1305, %v1288
        %1402 = vst.msk [vmem:[#allocation2 + $0x300] sm:$0xff] %vm1305, %v1289
        %1403 = vst.msk [vmem:[#allocation2 + $0x308] sm:$0xff] %vm1305, %v1290
        %1404 = vst.msk [vmem:[#allocation2 + $0x310] sm:$0xff] %vm1305, %v1291
        %1405 = vst.msk [vmem:[#allocation2 + $0x318] sm:$0xff] %vm1305, %v1292
        %1406 = vst.msk [vmem:[#allocation2 + $0x320] sm:$0xff] %vm1305, %v1293
        %1407 = vst.msk [vmem:[#allocation2 + $0x328] sm:$0xff] %vm1305, %v1294
        %1408 = vst.msk [vmem:[#allocation2 + $0x330] sm:$0xff] %vm1305, %v1295
        %1409 = vst.msk [vmem:[#allocation2 + $0x338] sm:$0xff] %vm1305, %v1296
        %1410 = vst.msk [vmem:[#allocation2 + $0x340] sm:$0xff] %vm1305, %v1297
        %1411 = vst.msk [vmem:[#allocation2 + $0x348] sm:$0xff] %vm1305, %v1298
        %1412 = vst.msk [vmem:[#allocation2 + $0x350] sm:$0xff] %vm1305, %v1299
        %1413 = vst.msk [vmem:[#allocation2 + $0x358] sm:$0xff] %vm1305, %v1300
        %1414 = vst.msk [vmem:[#allocation2 + $0x360] sm:$0xff] %vm1305, %v1301
        %1415 = vst.msk [vmem:[#allocation2 + $0x368] sm:$0xff] %vm1305, %v1302
        %1416 = vst.msk [vmem:[#allocation2 + $0x370] sm:$0xff] %vm1305, %v1303
        %1417 = vst.msk [vmem:[#allocation2 + $0x378] sm:$0xff] %vm1305, %v1304
        %vm1418 = vcmask 257024
        %1419 = vst.msk [vmem:[#allocation3] sm:$0xf] %vm1418, 0
        %1420 = vst.msk [vmem:[#allocation3 + $0x4] sm:$0xf] %vm1418, 0
        %1421 = vst.msk [vmem:[#allocation3 + $0x78] sm:$0xf] %vm1418, 0
        %1422 = vst.msk [vmem:[#allocation3 + $0x7c] sm:$0xf] %vm1418, 0
        %1423 = vst.msk [vmem:[#allocation3 + $0x80] sm:$0xf] %vm1418, 0
        %1424 = vst.msk [vmem:[#allocation3 + $0x84] sm:$0xf] %vm1418, 0
        %v1425 = vld [vmem:[#allocation2] ss:$2 sm:$0xff]
        %s1426 = scalar_lea.vmem [#allocation2], 16
        %v1427 = vld [vmem:[%s1426] ss:$2 sm:$0xff]
        %s1428 = scalar_lea.vmem [#allocation2], 1
        %v1429 = vld [vmem:[%s1428] ss:$2 sm:$0xff]
        %s1430 = scalar_lea.vmem [#allocation2], 17
        %v1431 = vld [vmem:[%s1430] ss:$2 sm:$0xff]
        %s1432 = scalar_lea.vmem [#allocation2], 32
        %v1433 = vld [vmem:[%s1432] ss:$2 sm:$0xff]
        %s1434 = scalar_lea.vmem [#allocation2], 48
        %v1435 = vld [vmem:[%s1434] ss:$2 sm:$0xff]
        %s1436 = scalar_lea.vmem [#allocation2], 33
        %v1437 = vld [vmem:[%s1436] ss:$2 sm:$0xff]
        %s1438 = scalar_lea.vmem [#allocation2], 49
        %v1439 = vld [vmem:[%s1438] ss:$2 sm:$0xff]
        %v1440 = vmax.f32 %v1425, %v1429
        %v1441 = vmax.f32 %v1427, %v1431
        %v1442 = vmax.f32 %v1433, %v1437
        %v1443 = vmax.f32 %v1435, %v1439
        %v1444 = vmax.f32 %v1440, %v1442
        %v1445 = vmax.f32 %v1441, %v1443
        %vm1448 = vcmask 1040384
        %v1449 = vrot.slane %v1444, 7
        %v1450 = vrot.slane %v1445, 7
        %v1451 = vsel %vm1448, %v1449, %v1450
        %v1454 = vsel %vm1448, 0.0, %v1449
        %vm1455 = vcmask 1046528
        %v1456 = vsel %vm1455, %v1451, 0.0
        %v1457 = vpack.c.bf16 %v1454, %v1454
        %v1458 = vpack.c.bf16 %v1456, %v1456
        %1459 = vst.msk [vmem:[#allocation3 + $0x8] sm:$0xf] %vm1418, %v1457
        %1460 = vst.msk [vmem:[#allocation3 + $0xc] sm:$0xf] %vm1418, %v1458
        %s1461 = scalar_lea.vmem [#allocation2], 64
        %v1462 = vld [vmem:[%s1461] ss:$2 sm:$0xff]
        %s1463 = scalar_lea.vmem [#allocation2], 80
        %v1464 = vld [vmem:[%s1463] ss:$2 sm:$0xff]
        %s1465 = scalar_lea.vmem [#allocation2], 65
        %v1466 = vld [vmem:[%s1465] ss:$2 sm:$0xff]
        %s1467 = scalar_lea.vmem [#allocation2], 81
        %v1468 = vld [vmem:[%s1467] ss:$2 sm:$0xff]
        %s1469 = scalar_lea.vmem [#allocation2], 96
        %v1470 = vld [vmem:[%s1469] ss:$2 sm:$0xff]
        %s1471 = scalar_lea.vmem [#allocation2], 112
        %v1472 = vld [vmem:[%s1471] ss:$2 sm:$0xff]
        %s1473 = scalar_lea.vmem [#allocation2], 97
        %v1474 = vld [vmem:[%s1473] ss:$2 sm:$0xff]
        %s1475 = scalar_lea.vmem [#allocation2], 113
        %v1476 = vld [vmem:[%s1475] ss:$2 sm:$0xff]
        %v1477 = vmax.f32 %v1462, %v1466
        %v1478 = vmax.f32 %v1464, %v1468
        %v1479 = vmax.f32 %v1470, %v1474
        %v1480 = vmax.f32 %v1472, %v1476
        %v1481 = vmax.f32 %v1477, %v1479
        %v1482 = vmax.f32 %v1478, %v1480
        %v1485 = vrot.slane %v1481, 7
        %v1486 = vrot.slane %v1482, 7
        %v1487 = vsel %vm1448, %v1485, %v1486
        %v1490 = vsel %vm1448, 0.0, %v1485
        %v1491 = vsel %vm1455, %v1487, 0.0
        %v1492 = vpack.c.bf16 %v1490, %v1490
        %v1493 = vpack.c.bf16 %v1491, %v1491
        %1494 = vst.msk [vmem:[#allocation3 + $0x10] sm:$0xf] %vm1418, %v1492
        %1495 = vst.msk [vmem:[#allocation3 + $0x14] sm:$0xf] %vm1418, %v1493
        %s1496 = scalar_lea.vmem [#allocation2], 128
        %v1497 = vld [vmem:[%s1496] ss:$2 sm:$0xff]
        %s1498 = scalar_lea.vmem [#allocation2], 144
        %v1499 = vld [vmem:[%s1498] ss:$2 sm:$0xff]
        %s1500 = scalar_lea.vmem [#allocation2], 129
        %v1501 = vld [vmem:[%s1500] ss:$2 sm:$0xff]
        %s1502 = scalar_lea.vmem [#allocation2], 145
        %v1503 = vld [vmem:[%s1502] ss:$2 sm:$0xff]
        %s1504 = scalar_lea.vmem [#allocation2], 160
        %v1505 = vld [vmem:[%s1504] ss:$2 sm:$0xff]
        %s1506 = scalar_lea.vmem [#allocation2], 176
        %v1507 = vld [vmem:[%s1506] ss:$2 sm:$0xff]
        %s1508 = scalar_lea.vmem [#allocation2], 161
        %v1509 = vld [vmem:[%s1508] ss:$2 sm:$0xff]
        %s1510 = scalar_lea.vmem [#allocation2], 177
        %v1511 = vld [vmem:[%s1510] ss:$2 sm:$0xff]
        %v1512 = vmax.f32 %v1497, %v1501
        %v1513 = vmax.f32 %v1499, %v1503
        %v1514 = vmax.f32 %v1505, %v1509
        %v1515 = vmax.f32 %v1507, %v1511
        %v1516 = vmax.f32 %v1512, %v1514
        %v1517 = vmax.f32 %v1513, %v1515
        %v1520 = vrot.slane %v1516, 7
        %v1521 = vrot.slane %v1517, 7
        %v1522 = vsel %vm1448, %v1520, %v1521
        %v1525 = vsel %vm1448, 0.0, %v1520
        %v1526 = vsel %vm1455, %v1522, 0.0
        %v1527 = vpack.c.bf16 %v1525, %v1525
        %v1528 = vpack.c.bf16 %v1526, %v1526
        %1529 = vst.msk [vmem:[#allocation3 + $0x18] sm:$0xf] %vm1418, %v1527
        %1530 = vst.msk [vmem:[#allocation3 + $0x1c] sm:$0xf] %vm1418, %v1528
        %s1531 = scalar_lea.vmem [#allocation2], 192
        %v1532 = vld [vmem:[%s1531] ss:$2 sm:$0xff]
        %s1533 = scalar_lea.vmem [#allocation2], 208
        %v1534 = vld [vmem:[%s1533] ss:$2 sm:$0xff]
        %s1535 = scalar_lea.vmem [#allocation2], 193
        %v1536 = vld [vmem:[%s1535] ss:$2 sm:$0xff]
        %s1537 = scalar_lea.vmem [#allocation2], 209
        %v1538 = vld [vmem:[%s1537] ss:$2 sm:$0xff]
        %s1539 = scalar_lea.vmem [#allocation2], 224
        %v1540 = vld [vmem:[%s1539] ss:$2 sm:$0xff]
        %s1541 = scalar_lea.vmem [#allocation2], 240
        %v1542 = vld [vmem:[%s1541] ss:$2 sm:$0xff]
        %s1543 = scalar_lea.vmem [#allocation2], 225
        %v1544 = vld [vmem:[%s1543] ss:$2 sm:$0xff]
        %s1545 = scalar_lea.vmem [#allocation2], 241
        %v1546 = vld [vmem:[%s1545] ss:$2 sm:$0xff]
        %v1547 = vmax.f32 %v1532, %v1536
        %v1548 = vmax.f32 %v1534, %v1538
        %v1549 = vmax.f32 %v1540, %v1544
        %v1550 = vmax.f32 %v1542, %v1546
        %v1551 = vmax.f32 %v1547, %v1549
        %v1552 = vmax.f32 %v1548, %v1550
        %v1555 = vrot.slane %v1551, 7
        %v1556 = vrot.slane %v1552, 7
        %v1557 = vsel %vm1448, %v1555, %v1556
        %v1560 = vsel %vm1448, 0.0, %v1555
        %v1561 = vsel %vm1455, %v1557, 0.0
        %v1562 = vpack.c.bf16 %v1560, %v1560
        %v1563 = vpack.c.bf16 %v1561, %v1561
        %1564 = vst.msk [vmem:[#allocation3 + $0x20] sm:$0xf] %vm1418, %v1562
        %1565 = vst.msk [vmem:[#allocation3 + $0x24] sm:$0xf] %vm1418, %v1563
        %s1566 = scalar_lea.vmem [#allocation2], 256
        %v1567 = vld [vmem:[%s1566] ss:$2 sm:$0xff]
        %s1568 = scalar_lea.vmem [#allocation2], 272
        %v1569 = vld [vmem:[%s1568] ss:$2 sm:$0xff]
        %s1570 = scalar_lea.vmem [#allocation2], 257
        %v1571 = vld [vmem:[%s1570] ss:$2 sm:$0xff]
        %s1572 = scalar_lea.vmem [#allocation2], 273
        %v1573 = vld [vmem:[%s1572] ss:$2 sm:$0xff]
        %s1574 = scalar_lea.vmem [#allocation2], 288
        %v1575 = vld [vmem:[%s1574] ss:$2 sm:$0xff]
        %s1576 = scalar_lea.vmem [#allocation2], 304
        %v1577 = vld [vmem:[%s1576] ss:$2 sm:$0xff]
        %s1578 = scalar_lea.vmem [#allocation2], 289
        %v1579 = vld [vmem:[%s1578] ss:$2 sm:$0xff]
        %s1580 = scalar_lea.vmem [#allocation2], 305
        %v1581 = vld [vmem:[%s1580] ss:$2 sm:$0xff]
        %v1582 = vmax.f32 %v1567, %v1571
        %v1583 = vmax.f32 %v1569, %v1573
        %v1584 = vmax.f32 %v1575, %v1579
        %v1585 = vmax.f32 %v1577, %v1581
        %v1586 = vmax.f32 %v1582, %v1584
        %v1587 = vmax.f32 %v1583, %v1585
        %v1590 = vrot.slane %v1586, 7
        %v1591 = vrot.slane %v1587, 7
        %v1592 = vsel %vm1448, %v1590, %v1591
        %v1595 = vsel %vm1448, 0.0, %v1590
        %v1596 = vsel %vm1455, %v1592, 0.0
        %v1597 = vpack.c.bf16 %v1595, %v1595
        %v1598 = vpack.c.bf16 %v1596, %v1596
        %1599 = vst.msk [vmem:[#allocation3 + $0x28] sm:$0xf] %vm1418, %v1597
        %1600 = vst.msk [vmem:[#allocation3 + $0x2c] sm:$0xf] %vm1418, %v1598
        %s1601 = scalar_lea.vmem [#allocation2], 320
        %v1602 = vld [vmem:[%s1601] ss:$2 sm:$0xff]
        %s1603 = scalar_lea.vmem [#allocation2], 336
        %v1604 = vld [vmem:[%s1603] ss:$2 sm:$0xff]
        %s1605 = scalar_lea.vmem [#allocation2], 321
        %v1606 = vld [vmem:[%s1605] ss:$2 sm:$0xff]
        %s1607 = scalar_lea.vmem [#allocation2], 337
        %v1608 = vld [vmem:[%s1607] ss:$2 sm:$0xff]
        %s1609 = scalar_lea.vmem [#allocation2], 352
        %v1610 = vld [vmem:[%s1609] ss:$2 sm:$0xff]
        %s1611 = scalar_lea.vmem [#allocation2], 368
        %v1612 = vld [vmem:[%s1611] ss:$2 sm:$0xff]
        %s1613 = scalar_lea.vmem [#allocation2], 353
        %v1614 = vld [vmem:[%s1613] ss:$2 sm:$0xff]
        %s1615 = scalar_lea.vmem [#allocation2], 369
        %v1616 = vld [vmem:[%s1615] ss:$2 sm:$0xff]
        %v1617 = vmax.f32 %v1602, %v1606
        %v1618 = vmax.f32 %v1604, %v1608
        %v1619 = vmax.f32 %v1610, %v1614
        %v1620 = vmax.f32 %v1612, %v1616
        %v1621 = vmax.f32 %v1617, %v1619
        %v1622 = vmax.f32 %v1618, %v1620
        %v1625 = vrot.slane %v1621, 7
        %v1626 = vrot.slane %v1622, 7
        %v1627 = vsel %vm1448, %v1625, %v1626
        %v1630 = vsel %vm1448, 0.0, %v1625
        %v1631 = vsel %vm1455, %v1627, 0.0
        %v1632 = vpack.c.bf16 %v1630, %v1630
        %v1633 = vpack.c.bf16 %v1631, %v1631
        %1634 = vst.msk [vmem:[#allocation3 + $0x30] sm:$0xf] %vm1418, %v1632
        %1635 = vst.msk [vmem:[#allocation3 + $0x34] sm:$0xf] %vm1418, %v1633
        %s1636 = scalar_lea.vmem [#allocation2], 384
        %v1637 = vld [vmem:[%s1636] ss:$2 sm:$0xff]
        %s1638 = scalar_lea.vmem [#allocation2], 400
        %v1639 = vld [vmem:[%s1638] ss:$2 sm:$0xff]
        %s1640 = scalar_lea.vmem [#allocation2], 385
        %v1641 = vld [vmem:[%s1640] ss:$2 sm:$0xff]
        %s1642 = scalar_lea.vmem [#allocation2], 401
        %v1643 = vld [vmem:[%s1642] ss:$2 sm:$0xff]
        %s1644 = scalar_lea.vmem [#allocation2], 416
        %v1645 = vld [vmem:[%s1644] ss:$2 sm:$0xff]
        %s1646 = scalar_lea.vmem [#allocation2], 432
        %v1647 = vld [vmem:[%s1646] ss:$2 sm:$0xff]
        %s1648 = scalar_lea.vmem [#allocation2], 417
        %v1649 = vld [vmem:[%s1648] ss:$2 sm:$0xff]
        %s1650 = scalar_lea.vmem [#allocation2], 433
        %v1651 = vld [vmem:[%s1650] ss:$2 sm:$0xff]
        %v1652 = vmax.f32 %v1637, %v1641
        %v1653 = vmax.f32 %v1639, %v1643
        %v1654 = vmax.f32 %v1645, %v1649
        %v1655 = vmax.f32 %v1647, %v1651
        %v1656 = vmax.f32 %v1652, %v1654
        %v1657 = vmax.f32 %v1653, %v1655
        %v1660 = vrot.slane %v1656, 7
        %v1661 = vrot.slane %v1657, 7
        %v1662 = vsel %vm1448, %v1660, %v1661
        %v1665 = vsel %vm1448, 0.0, %v1660
        %v1666 = vsel %vm1455, %v1662, 0.0
        %v1667 = vpack.c.bf16 %v1665, %v1665
        %v1668 = vpack.c.bf16 %v1666, %v1666
        %1669 = vst.msk [vmem:[#allocation3 + $0x38] sm:$0xf] %vm1418, %v1667
        %1670 = vst.msk [vmem:[#allocation3 + $0x3c] sm:$0xf] %vm1418, %v1668
        %s1671 = scalar_lea.vmem [#allocation2], 448
        %v1672 = vld [vmem:[%s1671] ss:$2 sm:$0xff]
        %s1673 = scalar_lea.vmem [#allocation2], 464
        %v1674 = vld [vmem:[%s1673] ss:$2 sm:$0xff]
        %s1675 = scalar_lea.vmem [#allocation2], 449
        %v1676 = vld [vmem:[%s1675] ss:$2 sm:$0xff]
        %s1677 = scalar_lea.vmem [#allocation2], 465
        %v1678 = vld [vmem:[%s1677] ss:$2 sm:$0xff]
        %s1679 = scalar_lea.vmem [#allocation2], 480
        %v1680 = vld [vmem:[%s1679] ss:$2 sm:$0xff]
        %s1681 = scalar_lea.vmem [#allocation2], 496
        %v1682 = vld [vmem:[%s1681] ss:$2 sm:$0xff]
        %s1683 = scalar_lea.vmem [#allocation2], 481
        %v1684 = vld [vmem:[%s1683] ss:$2 sm:$0xff]
        %s1685 = scalar_lea.vmem [#allocation2], 497
        %v1686 = vld [vmem:[%s1685] ss:$2 sm:$0xff]
        %v1687 = vmax.f32 %v1672, %v1676
        %v1688 = vmax.f32 %v1674, %v1678
        %v1689 = vmax.f32 %v1680, %v1684
        %v1690 = vmax.f32 %v1682, %v1686
        %v1691 = vmax.f32 %v1687, %v1689
        %v1692 = vmax.f32 %v1688, %v1690
        %v1695 = vrot.slane %v1691, 7
        %v1696 = vrot.slane %v1692, 7
        %v1697 = vsel %vm1448, %v1695, %v1696
        %v1700 = vsel %vm1448, 0.0, %v1695
        %v1701 = vsel %vm1455, %v1697, 0.0
        %v1702 = vpack.c.bf16 %v1700, %v1700
        %v1703 = vpack.c.bf16 %v1701, %v1701
        %1704 = vst.msk [vmem:[#allocation3 + $0x40] sm:$0xf] %vm1418, %v1702
        %1705 = vst.msk [vmem:[#allocation3 + $0x44] sm:$0xf] %vm1418, %v1703
        %s1706 = scalar_lea.vmem [#allocation2], 512
        %v1707 = vld [vmem:[%s1706] ss:$2 sm:$0xff]
        %s1708 = scalar_lea.vmem [#allocation2], 528
        %v1709 = vld [vmem:[%s1708] ss:$2 sm:$0xff]
        %s1710 = scalar_lea.vmem [#allocation2], 513
        %v1711 = vld [vmem:[%s1710] ss:$2 sm:$0xff]
        %s1712 = scalar_lea.vmem [#allocation2], 529
        %v1713 = vld [vmem:[%s1712] ss:$2 sm:$0xff]
        %s1714 = scalar_lea.vmem [#allocation2], 544
        %v1715 = vld [vmem:[%s1714] ss:$2 sm:$0xff]
        %s1716 = scalar_lea.vmem [#allocation2], 560
        %v1717 = vld [vmem:[%s1716] ss:$2 sm:$0xff]
        %s1718 = scalar_lea.vmem [#allocation2], 545
        %v1719 = vld [vmem:[%s1718] ss:$2 sm:$0xff]
        %s1720 = scalar_lea.vmem [#allocation2], 561
        %v1721 = vld [vmem:[%s1720] ss:$2 sm:$0xff]
        %v1722 = vmax.f32 %v1707, %v1711
        %v1723 = vmax.f32 %v1709, %v1713
        %v1724 = vmax.f32 %v1715, %v1719
        %v1725 = vmax.f32 %v1717, %v1721
        %v1726 = vmax.f32 %v1722, %v1724
        %v1727 = vmax.f32 %v1723, %v1725
        %v1730 = vrot.slane %v1726, 7
        %v1731 = vrot.slane %v1727, 7
        %v1732 = vsel %vm1448, %v1730, %v1731
        %v1735 = vsel %vm1448, 0.0, %v1730
        %v1736 = vsel %vm1455, %v1732, 0.0
        %v1737 = vpack.c.bf16 %v1735, %v1735
        %v1738 = vpack.c.bf16 %v1736, %v1736
        %1739 = vst.msk [vmem:[#allocation3 + $0x48] sm:$0xf] %vm1418, %v1737
        %1740 = vst.msk [vmem:[#allocation3 + $0x4c] sm:$0xf] %vm1418, %v1738
        %s1741 = scalar_lea.vmem [#allocation2], 576
        %v1742 = vld [vmem:[%s1741] ss:$2 sm:$0xff]
        %s1743 = scalar_lea.vmem [#allocation2], 592
        %v1744 = vld [vmem:[%s1743] ss:$2 sm:$0xff]
        %s1745 = scalar_lea.vmem [#allocation2], 577
        %v1746 = vld [vmem:[%s1745] ss:$2 sm:$0xff]
        %s1747 = scalar_lea.vmem [#allocation2], 593
        %v1748 = vld [vmem:[%s1747] ss:$2 sm:$0xff]
        %s1749 = scalar_lea.vmem [#allocation2], 608
        %v1750 = vld [vmem:[%s1749] ss:$2 sm:$0xff]
        %s1751 = scalar_lea.vmem [#allocation2], 624
        %v1752 = vld [vmem:[%s1751] ss:$2 sm:$0xff]
        %s1753 = scalar_lea.vmem [#allocation2], 609
        %v1754 = vld [vmem:[%s1753] ss:$2 sm:$0xff]
        %s1755 = scalar_lea.vmem [#allocation2], 625
        %v1756 = vld [vmem:[%s1755] ss:$2 sm:$0xff]
        %v1757 = vmax.f32 %v1742, %v1746
        %v1758 = vmax.f32 %v1744, %v1748
        %v1759 = vmax.f32 %v1750, %v1754
        %v1760 = vmax.f32 %v1752, %v1756
        %v1761 = vmax.f32 %v1757, %v1759
        %v1762 = vmax.f32 %v1758, %v1760
        %v1765 = vrot.slane %v1761, 7
        %v1766 = vrot.slane %v1762, 7
        %v1767 = vsel %vm1448, %v1765, %v1766
        %v1770 = vsel %vm1448, 0.0, %v1765
        %v1771 = vsel %vm1455, %v1767, 0.0
        %v1772 = vpack.c.bf16 %v1770, %v1770
        %v1773 = vpack.c.bf16 %v1771, %v1771
        %1774 = vst.msk [vmem:[#allocation3 + $0x50] sm:$0xf] %vm1418, %v1772
        %1775 = vst.msk [vmem:[#allocation3 + $0x54] sm:$0xf] %vm1418, %v1773
        %s1776 = scalar_lea.vmem [#allocation2], 640
        %v1777 = vld [vmem:[%s1776] ss:$2 sm:$0xff]
        %s1778 = scalar_lea.vmem [#allocation2], 656
        %v1779 = vld [vmem:[%s1778] ss:$2 sm:$0xff]
        %s1780 = scalar_lea.vmem [#allocation2], 641
        %v1781 = vld [vmem:[%s1780] ss:$2 sm:$0xff]
        %s1782 = scalar_lea.vmem [#allocation2], 657
        %v1783 = vld [vmem:[%s1782] ss:$2 sm:$0xff]
        %s1784 = scalar_lea.vmem [#allocation2], 672
        %v1785 = vld [vmem:[%s1784] ss:$2 sm:$0xff]
        %s1786 = scalar_lea.vmem [#allocation2], 688
        %v1787 = vld [vmem:[%s1786] ss:$2 sm:$0xff]
        %s1788 = scalar_lea.vmem [#allocation2], 673
        %v1789 = vld [vmem:[%s1788] ss:$2 sm:$0xff]
        %s1790 = scalar_lea.vmem [#allocation2], 689
        %v1791 = vld [vmem:[%s1790] ss:$2 sm:$0xff]
        %v1792 = vmax.f32 %v1777, %v1781
        %v1793 = vmax.f32 %v1779, %v1783
        %v1794 = vmax.f32 %v1785, %v1789
        %v1795 = vmax.f32 %v1787, %v1791
        %v1796 = vmax.f32 %v1792, %v1794
        %v1797 = vmax.f32 %v1793, %v1795
        %v1800 = vrot.slane %v1796, 7
        %v1801 = vrot.slane %v1797, 7
        %v1802 = vsel %vm1448, %v1800, %v1801
        %v1805 = vsel %vm1448, 0.0, %v1800
        %v1806 = vsel %vm1455, %v1802, 0.0
        %v1807 = vpack.c.bf16 %v1805, %v1805
        %v1808 = vpack.c.bf16 %v1806, %v1806
        %1809 = vst.msk [vmem:[#allocation3 + $0x58] sm:$0xf] %vm1418, %v1807
        %1810 = vst.msk [vmem:[#allocation3 + $0x5c] sm:$0xf] %vm1418, %v1808
        %s1811 = scalar_lea.vmem [#allocation2], 704
        %v1812 = vld [vmem:[%s1811] ss:$2 sm:$0xff]
        %s1813 = scalar_lea.vmem [#allocation2], 720
        %v1814 = vld [vmem:[%s1813] ss:$2 sm:$0xff]
        %s1815 = scalar_lea.vmem [#allocation2], 705
        %v1816 = vld [vmem:[%s1815] ss:$2 sm:$0xff]
        %s1817 = scalar_lea.vmem [#allocation2], 721
        %v1818 = vld [vmem:[%s1817] ss:$2 sm:$0xff]
        %s1819 = scalar_lea.vmem [#allocation2], 736
        %v1820 = vld [vmem:[%s1819] ss:$2 sm:$0xff]
        %s1821 = scalar_lea.vmem [#allocation2], 752
        %v1822 = vld [vmem:[%s1821] ss:$2 sm:$0xff]
        %s1823 = scalar_lea.vmem [#allocation2], 737
        %v1824 = vld [vmem:[%s1823] ss:$2 sm:$0xff]
        %s1825 = scalar_lea.vmem [#allocation2], 753
        %v1826 = vld [vmem:[%s1825] ss:$2 sm:$0xff]
        %v1827 = vmax.f32 %v1812, %v1816
        %v1828 = vmax.f32 %v1814, %v1818
        %v1829 = vmax.f32 %v1820, %v1824
        %v1830 = vmax.f32 %v1822, %v1826
        %v1831 = vmax.f32 %v1827, %v1829
        %v1832 = vmax.f32 %v1828, %v1830
        %v1835 = vrot.slane %v1831, 7
        %v1836 = vrot.slane %v1832, 7
        %v1837 = vsel %vm1448, %v1835, %v1836
        %v1840 = vsel %vm1448, 0.0, %v1835
        %v1841 = vsel %vm1455, %v1837, 0.0
        %v1842 = vpack.c.bf16 %v1840, %v1840
        %v1843 = vpack.c.bf16 %v1841, %v1841
        %1844 = vst.msk [vmem:[#allocation3 + $0x60] sm:$0xf] %vm1418, %v1842
        %1845 = vst.msk [vmem:[#allocation3 + $0x64] sm:$0xf] %vm1418, %v1843
        %s1846 = scalar_lea.vmem [#allocation2], 768
        %v1847 = vld [vmem:[%s1846] ss:$2 sm:$0xff]
        %s1848 = scalar_lea.vmem [#allocation2], 784
        %v1849 = vld [vmem:[%s1848] ss:$2 sm:$0xff]
        %s1850 = scalar_lea.vmem [#allocation2], 769
        %v1851 = vld [vmem:[%s1850] ss:$2 sm:$0xff]
        %s1852 = scalar_lea.vmem [#allocation2], 785
        %v1853 = vld [vmem:[%s1852] ss:$2 sm:$0xff]
        %s1854 = scalar_lea.vmem [#allocation2], 800
        %v1855 = vld [vmem:[%s1854] ss:$2 sm:$0xff]
        %s1856 = scalar_lea.vmem [#allocation2], 816
        %v1857 = vld [vmem:[%s1856] ss:$2 sm:$0xff]
        %s1858 = scalar_lea.vmem [#allocation2], 801
        %v1859 = vld [vmem:[%s1858] ss:$2 sm:$0xff]
        %s1860 = scalar_lea.vmem [#allocation2], 817
        %v1861 = vld [vmem:[%s1860] ss:$2 sm:$0xff]
        %v1862 = vmax.f32 %v1847, %v1851
        %v1863 = vmax.f32 %v1849, %v1853
        %v1864 = vmax.f32 %v1855, %v1859
        %v1865 = vmax.f32 %v1857, %v1861
        %v1866 = vmax.f32 %v1862, %v1864
        %v1867 = vmax.f32 %v1863, %v1865
        %v1870 = vrot.slane %v1866, 7
        %v1871 = vrot.slane %v1867, 7
        %v1872 = vsel %vm1448, %v1870, %v1871
        %v1875 = vsel %vm1448, 0.0, %v1870
        %v1876 = vsel %vm1455, %v1872, 0.0
        %v1877 = vpack.c.bf16 %v1875, %v1875
        %v1878 = vpack.c.bf16 %v1876, %v1876
        %1879 = vst.msk [vmem:[#allocation3 + $0x68] sm:$0xf] %vm1418, %v1877
        %1880 = vst.msk [vmem:[#allocation3 + $0x6c] sm:$0xf] %vm1418, %v1878
        %s1881 = scalar_lea.vmem [#allocation2], 832
        %v1882 = vld [vmem:[%s1881] ss:$2 sm:$0xff]
        %s1883 = scalar_lea.vmem [#allocation2], 848
        %v1884 = vld [vmem:[%s1883] ss:$2 sm:$0xff]
        %s1885 = scalar_lea.vmem [#allocation2], 833
        %v1886 = vld [vmem:[%s1885] ss:$2 sm:$0xff]
        %s1887 = scalar_lea.vmem [#allocation2], 849
        %v1888 = vld [vmem:[%s1887] ss:$2 sm:$0xff]
        %s1889 = scalar_lea.vmem [#allocation2], 864
        %v1890 = vld [vmem:[%s1889] ss:$2 sm:$0xff]
        %s1891 = scalar_lea.vmem [#allocation2], 880
        %v1892 = vld [vmem:[%s1891] ss:$2 sm:$0xff]
        %s1893 = scalar_lea.vmem [#allocation2], 865
        %v1894 = vld [vmem:[%s1893] ss:$2 sm:$0xff]
        %s1895 = scalar_lea.vmem [#allocation2], 881
        %v1896 = vld [vmem:[%s1895] ss:$2 sm:$0xff]
        %v1897 = vmax.f32 %v1882, %v1886
        %v1898 = vmax.f32 %v1884, %v1888
        %v1899 = vmax.f32 %v1890, %v1894
        %v1900 = vmax.f32 %v1892, %v1896
        %v1901 = vmax.f32 %v1897, %v1899
        %v1902 = vmax.f32 %v1898, %v1900
        %v1905 = vrot.slane %v1901, 7
        %v1906 = vrot.slane %v1902, 7
        %v1907 = vsel %vm1448, %v1905, %v1906
        %v1910 = vsel %vm1448, 0.0, %v1905
        %v1911 = vsel %vm1455, %v1907, 0.0
        %v1912 = vpack.c.bf16 %v1910, %v1910
        %v1913 = vpack.c.bf16 %v1911, %v1911
        %1914 = vst.msk [vmem:[#allocation3 + $0x70] sm:$0xf] %vm1418, %v1912
        %1915 = vst.msk [vmem:[#allocation3 + $0x74] sm:$0xf] %vm1418, %v1913
        %v1916 = vld [vmem:[%s3] sm:$0xf]
        %v1917 = vld [vmem:[%s3 + $0x4] sm:$0xf]
        %v1918 = vld [vmem:[%s3 + $0x8] sm:$0xf]
        %v1919 = vld [vmem:[%s3 + $0xc] sm:$0xf]
        %v1920 = vld [vmem:[%s3 + $0x10] sm:$0xf]
        %v1921 = vld [vmem:[%s3 + $0x14] sm:$0xf]
        %v1922 = vld [vmem:[%s3 + $0x18] sm:$0xf]
        %v1923 = vld [vmem:[%s3 + $0x1c] sm:$0xf]
        %v1924 = vld [vmem:[%s3 + $0x20] sm:$0xf]
        %v1925 = vld [vmem:[%s3 + $0x24] sm:$0xf]
        %v1926 = vld [vmem:[%s3 + $0x28] sm:$0xf]
        %v1927 = vld [vmem:[%s3 + $0x2c] sm:$0xf]
        %v1928 = vld [vmem:[%s3 + $0x30] sm:$0xf]
        %v1929 = vld [vmem:[%s3 + $0x34] sm:$0xf]
        %v1930 = vld [vmem:[%s3 + $0x38] sm:$0xf]
        %v1931 = vld [vmem:[%s3 + $0x3c] sm:$0xf]
        %v1932 = vld [vmem:[%s3 + $0x40] sm:$0xf]
        %v1933 = vld [vmem:[%s3 + $0x44] sm:$0xf]
        %v1934 = vld [vmem:[%s3 + $0x48] sm:$0xf]
        %v1935 = vld [vmem:[%s3 + $0x4c] sm:$0xf]
        %v1936 = vld [vmem:[%s3 + $0x50] sm:$0xf]
        %v1937 = vld [vmem:[%s3 + $0x54] sm:$0xf]
        %v1938 = vld [vmem:[%s3 + $0x58] sm:$0xf]
        %v1939 = vld [vmem:[%s3 + $0x5c] sm:$0xf]
        %v1940 = vld [vmem:[%s3 + $0x60] sm:$0xf]
        %v1941 = vld [vmem:[%s3 + $0x64] sm:$0xf]
        %v1942 = vld [vmem:[%s3 + $0x68] sm:$0xf]
        %v1943 = vld [vmem:[%s3 + $0x6c] sm:$0xf]
        %v1944 = vld [vmem:[%s3 + $0x70] sm:$0xf]
        %v1945 = vld [vmem:[%s3 + $0x74] sm:$0xf]
        %v1946 = vld [vmem:[%s3 + $0x78] sm:$0xf]
        %v1947 = vld [vmem:[%s3 + $0x7c] sm:$0xf]
        %v1948 = vld [vmem:[%s3 + $0x80] sm:$0xf]
        %v1949 = vld [vmem:[%s3 + $0x84] sm:$0xf]
        %v1950 = vld [vmem:[%s3 + $0x88] sm:$0xf]
        %v1951 = vld [vmem:[%s3 + $0x8c] sm:$0xf]
        %v1952 = vld [vmem:[%s4] sm:$0x1]
        %v1953 = vld [vmem:[#allocation3] sm:$0xf]
        %v1954 = vld [vmem:[#allocation3 + $0x4] sm:$0xf]
        %v1955 = vld [vmem:[#allocation3 + $0x8] sm:$0xf]
        %v1956 = vld [vmem:[#allocation3 + $0xc] sm:$0xf]
        %v1957 = vld [vmem:[#allocation3 + $0x10] sm:$0xf]
        %v1958 = vld [vmem:[#allocation3 + $0x14] sm:$0xf]
        %v1959 = vld [vmem:[#allocation3 + $0x18] sm:$0xf]
        %v1960 = vld [vmem:[#allocation3 + $0x1c] sm:$0xf]
        %v1961 = vld [vmem:[#allocation3 + $0x20] sm:$0xf]
        %v1962 = vld [vmem:[#allocation3 + $0x24] sm:$0xf]
        %v1963 = vld [vmem:[#allocation3 + $0x28] sm:$0xf]
        %v1964 = vld [vmem:[#allocation3 + $0x2c] sm:$0xf]
        %v1965 = vld [vmem:[#allocation3 + $0x30] sm:$0xf]
        %v1966 = vld [vmem:[#allocation3 + $0x34] sm:$0xf]
        %v1967 = vld [vmem:[#allocation3 + $0x38] sm:$0x1]
        %v1968 = vld [vmem:[#allocation3] sm:$0xe]
        %v1969 = vld [vmem:[#allocation3 + $0x38] sm:$0xf]
        %v1970 = vld [vmem:[#allocation3 + $0x3c] sm:$0xf]
        %v1971 = vld [vmem:[#allocation3 + $0x40] sm:$0x1]
        %v1972 = vld [vmem:[#allocation3 + $0x8] sm:$0xe]
        %v1973 = vld [vmem:[#allocation3 + $0x40] sm:$0xf]
        %v1974 = vld [vmem:[#allocation3 + $0x44] sm:$0xf]
        %v1975 = vld [vmem:[#allocation3 + $0x48] sm:$0x1]
        %v1976 = vld [vmem:[#allocation3 + $0x10] sm:$0xe]
        %v1991 = vunpack.c.l.b16 %v1953
        %v1992 = vunpack.c.l.b16 %v1954
        %v1993 = vunpack.c.l.b16 %v1955
        %v1994 = vunpack.c.l.b16 %v1956
        %v1995 = vunpack.c.l.b16 %v1957
        %v1996 = vunpack.c.l.b16 %v1958
        %v1997 = vunpack.c.l.b16 %v1959
        %v1998 = vunpack.c.l.b16 %v1960
        %v1999 = vunpack.c.l.b16 %v1961
        %v2000 = vunpack.c.l.b16 %v1962
        %v2001 = vunpack.c.l.b16 %v1963
        %v2002 = vunpack.c.l.b16 %v1964
        %v2003 = vunpack.c.l.b16 %v1965
        %v2004 = vunpack.c.l.b16 %v1966
        %v2005 = vpack.c.b16 %v1992, %v1991
        %v2006 = vpack.c.b16 %v1994, %v1993
        %v2007 = vpack.c.b16 %v1996, %v1995
        %v2008 = vpack.c.b16 %v1998, %v1997
        %v2009 = vpack.c.b16 %v2000, %v1999
        %v2010 = vpack.c.b16 %v2002, %v2001
        %v2011 = vpack.c.b16 %v2004, %v2003
        %v2013 = vunpack.c.l.b16 %v1967
        %v2014 = vpack.c.b16 %v2013, %v2013
        %vm2015 = vsmask.f32 7424
        %v2017 = vshrl.u32 %v2005, 16
        %v2019 = vshll.u32 %v2005, 16
        %v2021 = vrot.slane %v2019, 1
        %v2022 = vor.u32 %v2017, %v2021
        %v2024 = vshll.u32 %v2006, 16
        %v2026 = vrot.slane %v2024, 1
        %v2027 = vsel %vm2015, %v2022, %v2026
        %v2028 = vshrl.u32 %v2006, 16
        %v2030 = vor.u32 %v2028, %v2026
        %v2032 = vshll.u32 %v2007, 16
        %v2034 = vrot.slane %v2032, 1
        %v2035 = vsel %vm2015, %v2030, %v2034
        %v2036 = vshrl.u32 %v2007, 16
        %v2038 = vor.u32 %v2036, %v2034
        %v2040 = vshll.u32 %v2008, 16
        %v2042 = vrot.slane %v2040, 1
        %v2043 = vsel %vm2015, %v2038, %v2042
        %v2044 = vshrl.u32 %v2008, 16
        %v2046 = vor.u32 %v2044, %v2042
        %v2048 = vshll.u32 %v2009, 16
        %v2050 = vrot.slane %v2048, 1
        %v2051 = vsel %vm2015, %v2046, %v2050
        %v2052 = vshrl.u32 %v2009, 16
        %v2054 = vor.u32 %v2052, %v2050
        %v2056 = vshll.u32 %v2010, 16
        %v2058 = vrot.slane %v2056, 1
        %v2059 = vsel %vm2015, %v2054, %v2058
        %v2060 = vshrl.u32 %v2010, 16
        %v2062 = vor.u32 %v2060, %v2058
        %v2064 = vshll.u32 %v2011, 16
        %v2066 = vrot.slane %v2064, 1
        %v2067 = vsel %vm2015, %v2062, %v2066
        %v2068 = vshrl.u32 %v2011, 16
        %v2070 = vor.u32 %v2068, %v2066
        %v2072 = vshll.u32 %v2014, 16
        %v2074 = vrot.slane %v2072, 1
        %v2075 = vsel %vm2015, %v2070, %v2074
        %2076 = vrot.lane.b32.xlu0 %v2027, 32
        %v2077 = vpop.permute.xlu0 %2076
        %2078 = vrot.lane.b32.xlu0 %v2035, 32
        %v2079 = vpop.permute.xlu0 %2078
        %2080 = vrot.lane.b32.xlu0 %v2043, 32
        %v2081 = vpop.permute.xlu0 %2080
        %2082 = vrot.lane.b32.xlu0 %v2051, 32
        %v2083 = vpop.permute.xlu0 %2082
        %2084 = vrot.lane.b32.xlu0 %v2059, 32
        %v2085 = vpop.permute.xlu0 %2084
        %2086 = vrot.lane.b32.xlu0 %v2067, 32
        %v2087 = vpop.permute.xlu0 %2086
        %2088 = vrot.lane.b32.xlu0 %v2075, 32
        %v2089 = vpop.permute.xlu0 %2088
        %v2091 = vunpack.c.l.b16 %v1968
        %v2092 = vpack.c.b16 %v1992, %v2091
        %vm2093 = vcmask 1046528
        %v2094 = vrot.slane %v2092, 1
        %v2095 = vrot.slane %v2006, 1
        %v2096 = vsel %vm2093, %v2094, %v2095
        %v2097 = vrot.slane %v2007, 1
        %v2098 = vsel %vm2093, %v2095, %v2097
        %v2099 = vrot.slane %v2008, 1
        %v2100 = vsel %vm2093, %v2097, %v2099
        %v2101 = vrot.slane %v2009, 1
        %v2102 = vsel %vm2093, %v2099, %v2101
        %v2103 = vrot.slane %v2010, 1
        %v2104 = vsel %vm2093, %v2101, %v2103
        %v2105 = vrot.slane %v2011, 1
        %v2106 = vsel %vm2093, %v2103, %v2105
        %v2107 = vrot.slane %v2014, 1
        %v2108 = vsel %vm2093, %v2105, %v2107
        %2109 = vrot.lane.b32.xlu0 %v2096, 64
        %v2110 = vpop.permute.xlu0 %2109
        %2111 = vrot.lane.b32.xlu0 %v2098, 64
        %v2112 = vpop.permute.xlu0 %2111
        %2113 = vrot.lane.b32.xlu0 %v2100, 64
        %v2114 = vpop.permute.xlu0 %2113
        %2115 = vrot.lane.b32.xlu0 %v2102, 64
        %v2116 = vpop.permute.xlu0 %2115
        %2117 = vrot.lane.b32.xlu0 %v2104, 64
        %v2118 = vpop.permute.xlu0 %2117
        %2119 = vrot.lane.b32.xlu0 %v2106, 64
        %v2120 = vpop.permute.xlu0 %2119
        %2121 = vrot.lane.b32.xlu0 %v2108, 64
        %v2122 = vpop.permute.xlu0 %2121
        %v2125 = vunpack.c.l.b16 %v1969
        %v2126 = vunpack.c.l.b16 %v1970
        %v2127 = vpack.c.b16 %v2126, %v2125
        %2128 = vrot.lane.b32.xlu0 %v2006, 96
        %v2129 = vpop.permute.xlu0 %2128
        %2130 = vrot.lane.b32.xlu0 %v2007, 96
        %v2131 = vpop.permute.xlu0 %2130
        %2132 = vrot.lane.b32.xlu0 %v2008, 96
        %v2133 = vpop.permute.xlu0 %2132
        %2134 = vrot.lane.b32.xlu0 %v2009, 96
        %v2135 = vpop.permute.xlu0 %2134
        %2136 = vrot.lane.b32.xlu0 %v2010, 96
        %v2137 = vpop.permute.xlu0 %2136
        %2138 = vrot.lane.b32.xlu0 %v2011, 96
        %v2139 = vpop.permute.xlu0 %2138
        %2140 = vrot.lane.b32.xlu0 %v2127, 96
        %v2141 = vpop.permute.xlu0 %2140
        %v2143 = vunpack.c.l.b16 %v1971
        %v2144 = vpack.c.b16 %v2143, %v2143
        %v2146 = vshll.u32 %v2127, 16
        %v2148 = vrot.slane %v2146, 1
        %v2149 = vsel %vm2015, %v2070, %v2148
        %v2150 = vshrl.u32 %v2127, 16
        %v2152 = vor.u32 %v2150, %v2148
        %v2154 = vshll.u32 %v2144, 16
        %v2156 = vrot.slane %v2154, 1
        %v2157 = vsel %vm2015, %v2152, %v2156
        %v2159 = vunpack.c.l.b16 %v1972
        %v2160 = vpack.c.b16 %v1994, %v2159
        %v2161 = vrot.slane %v2160, 1
        %v2162 = vsel %vm2093, %v2161, %v2097
        %v2163 = vrot.slane %v2127, 1
        %v2164 = vsel %vm2093, %v2105, %v2163
        %v2165 = vrot.slane %v2144, 1
        %v2166 = vsel %vm2093, %v2163, %v2165
        %2167 = vrot.lane.b32.xlu0 %v2162, 32
        %v2168 = vpop.permute.xlu0 %2167
        %2169 = vrot.lane.b32.xlu0 %v2100, 32
        %v2170 = vpop.permute.xlu0 %2169
        %2171 = vrot.lane.b32.xlu0 %v2102, 32
        %v2172 = vpop.permute.xlu0 %2171
        %2173 = vrot.lane.b32.xlu0 %v2104, 32
        %v2174 = vpop.permute.xlu0 %2173
        %2175 = vrot.lane.b32.xlu0 %v2106, 32
        %v2176 = vpop.permute.xlu0 %2175
        %2177 = vrot.lane.b32.xlu0 %v2164, 32
        %v2178 = vpop.permute.xlu0 %2177
        %2179 = vrot.lane.b32.xlu0 %v2166, 32
        %v2180 = vpop.permute.xlu0 %2179
        %v2183 = vunpack.c.l.b16 %v1973
        %v2184 = vunpack.c.l.b16 %v1974
        %v2185 = vpack.c.b16 %v2184, %v2183
        %2186 = vrot.lane.b32.xlu0 %v2007, 64
        %v2187 = vpop.permute.xlu0 %2186
        %2188 = vrot.lane.b32.xlu0 %v2008, 64
        %v2189 = vpop.permute.xlu0 %2188
        %2190 = vrot.lane.b32.xlu0 %v2009, 64
        %v2191 = vpop.permute.xlu0 %2190
        %2192 = vrot.lane.b32.xlu0 %v2010, 64
        %v2193 = vpop.permute.xlu0 %2192
        %2194 = vrot.lane.b32.xlu0 %v2011, 64
        %v2195 = vpop.permute.xlu0 %2194
        %2196 = vrot.lane.b32.xlu0 %v2127, 64
        %v2197 = vpop.permute.xlu0 %2196
        %2198 = vrot.lane.b32.xlu0 %v2185, 64
        %v2199 = vpop.permute.xlu0 %2198
        %v2201 = vunpack.c.l.b16 %v1975
        %v2202 = vpack.c.b16 %v2201, %v2201
        %v2204 = vshll.u32 %v2185, 16
        %v2206 = vrot.slane %v2204, 1
        %v2207 = vsel %vm2015, %v2152, %v2206
        %v2208 = vshrl.u32 %v2185, 16
        %v2210 = vor.u32 %v2208, %v2206
        %v2212 = vshll.u32 %v2202, 16
        %v2214 = vrot.slane %v2212, 1
        %v2215 = vsel %vm2015, %v2210, %v2214
        %2216 = vrot.lane.b32.xlu0 %v2043, 96
        %v2217 = vpop.permute.xlu0 %2216
        %2218 = vrot.lane.b32.xlu0 %v2051, 96
        %v2219 = vpop.permute.xlu0 %2218
        %2220 = vrot.lane.b32.xlu0 %v2059, 96
        %v2221 = vpop.permute.xlu0 %2220
        %2222 = vrot.lane.b32.xlu0 %v2067, 96
        %v2223 = vpop.permute.xlu0 %2222
        %2224 = vrot.lane.b32.xlu0 %v2149, 96
        %v2225 = vpop.permute.xlu0 %2224
        %2226 = vrot.lane.b32.xlu0 %v2207, 96
        %v2227 = vpop.permute.xlu0 %2226
        %2228 = vrot.lane.b32.xlu0 %v2215, 96
        %v2229 = vpop.permute.xlu0 %2228
        %v2231 = vunpack.c.l.b16 %v1976
        %v2232 = vpack.c.b16 %v1996, %v2231
        %v2233 = vrot.slane %v2232, 1
        %v2234 = vsel %vm2093, %v2233, %v2099
        %v2235 = vrot.slane %v2185, 1
        %v2236 = vsel %vm2093, %v2163, %v2235
        %v2237 = vrot.slane %v2202, 1
        %v2238 = vsel %vm2093, %v2235, %v2237
        %v2240 = vsel %vm1305, %v2005, %v2077
        %v2242 = vsel %vm1305, %v2006, %v2079
        %v2244 = vsel %vm1305, %v2007, %v2081
        %v2246 = vsel %vm1305, %v2008, %v2083
        %v2248 = vsel %vm1305, %v2009, %v2085
        %v2250 = vsel %vm1305, %v2010, %v2087
        %v2252 = vsel %vm1305, %v2011, %v2089
        %vm2253 = vcmask 523264
        %v2255 = vsel %vm2253, %v2240, %v2110
        %v2257 = vsel %vm2253, %v2242, %v2112
        %v2259 = vsel %vm2253, %v2244, %v2114
        %v2261 = vsel %vm2253, %v2246, %v2116
        %v2263 = vsel %vm2253, %v2248, %v2118
        %v2265 = vsel %vm2253, %v2250, %v2120
        %v2267 = vsel %vm2253, %v2252, %v2122
        %vm2268 = vcmask 785408
        %v2270 = vsel %vm2268, %v2255, %v2129
        %v2273 = vsel %vm2268, %v2257, %v2131
        %v2276 = vsel %vm2268, %v2259, %v2133
        %v2279 = vsel %vm2268, %v2261, %v2135
        %v2282 = vsel %vm2268, %v2263, %v2137
        %v2285 = vsel %vm2268, %v2265, %v2139
        %v2288 = vsel %vm2268, %v2267, %v2141
        %v2292 = vsel %vm1305, %v2035, %v2168
        %v2295 = vsel %vm1305, %v2043, %v2170
        %v2298 = vsel %vm1305, %v2051, %v2172
        %v2301 = vsel %vm1305, %v2059, %v2174
        %v2304 = vsel %vm1305, %v2067, %v2176
        %v2307 = vsel %vm1305, %v2149, %v2178
        %v2310 = vsel %vm1305, %v2157, %v2180
        %v2312 = vsel %vm2253, %v2292, %v2187
        %v2314 = vsel %vm2253, %v2295, %v2189
        %v2316 = vsel %vm2253, %v2298, %v2191
        %v2318 = vsel %vm2253, %v2301, %v2193
        %v2320 = vsel %vm2253, %v2304, %v2195
        %v2322 = vsel %vm2253, %v2307, %v2197
        %v2324 = vsel %vm2253, %v2310, %v2199
        %v2326 = vsel %vm2268, %v2312, %v2217
        %v2329 = vsel %vm2268, %v2314, %v2219
        %v2332 = vsel %vm2268, %v2316, %v2221
        %v2335 = vsel %vm2268, %v2318, %v2223
        %v2338 = vsel %vm2268, %v2320, %v2225
        %v2341 = vsel %vm2268, %v2322, %v2227
        %v2344 = vsel %vm2268, %v2324, %v2229
        %v2347 = vperm.slane %v1952, 0
        %v2385 = vunpack.c.l.b16 %v1916
        %v2386 = vunpack.c.l.b16 %v1917
        %v2387 = vunpack.c.l.b16 %v1918
        %v2388 = vunpack.c.l.b16 %v1919
        %v2389 = vunpack.c.l.b16 %v1920
        %v2390 = vunpack.c.l.b16 %v1921
        %v2391 = vunpack.c.l.b16 %v1922
        %v2392 = vunpack.c.l.b16 %v1923
        %v2393 = vunpack.c.l.b16 %v1924
        %v2394 = vunpack.c.l.b16 %v1925
        %v2395 = vunpack.c.l.b16 %v1926
        %v2396 = vunpack.c.l.b16 %v1927
        %v2397 = vunpack.c.l.b16 %v1928
        %v2398 = vunpack.c.l.b16 %v1929
        %v2399 = vunpack.c.l.b16 %v1930
        %v2400 = vunpack.c.l.b16 %v1931
        %v2401 = vunpack.c.l.b16 %v1932
        %v2402 = vunpack.c.l.b16 %v1933
        %v2403 = vunpack.c.l.b16 %v1934
        %v2404 = vunpack.c.l.b16 %v1935
        %v2405 = vunpack.c.l.b16 %v1936
        %v2406 = vunpack.c.l.b16 %v1937
        %v2407 = vunpack.c.l.b16 %v1938
        %v2408 = vunpack.c.l.b16 %v1939
        %v2409 = vunpack.c.l.b16 %v1940
        %v2410 = vunpack.c.l.b16 %v1941
        %v2411 = vunpack.c.l.b16 %v1942
        %v2412 = vunpack.c.l.b16 %v1943
        %v2413 = vunpack.c.l.b16 %v1944
        %v2414 = vunpack.c.l.b16 %v1945
        %v2415 = vunpack.c.l.b16 %v1946
        %v2416 = vunpack.c.l.b16 %v1947
        %v2417 = vunpack.c.l.b16 %v1948
        %v2418 = vunpack.c.l.b16 %v1949
        %v2419 = vunpack.c.l.b16 %v1950
        %v2420 = vunpack.c.l.b16 %v1951
        %v2421 = vpack.c.b16 %v2386, %v2385
        %v2422 = vpack.c.b16 %v2388, %v2387
        %v2423 = vpack.c.b16 %v2390, %v2389
        %v2424 = vpack.c.b16 %v2392, %v2391
        %v2425 = vpack.c.b16 %v2394, %v2393
        %v2426 = vpack.c.b16 %v2396, %v2395
        %v2427 = vpack.c.b16 %v2398, %v2397
        %v2428 = vpack.c.b16 %v2400, %v2399
        %v2429 = vpack.c.b16 %v2402, %v2401
        %v2430 = vpack.c.b16 %v2404, %v2403
        %v2431 = vpack.c.b16 %v2406, %v2405
        %v2432 = vpack.c.b16 %v2408, %v2407
        %v2433 = vpack.c.b16 %v2410, %v2409
        %v2434 = vpack.c.b16 %v2412, %v2411
        %v2435 = vpack.c.b16 %v2414, %v2413
        %v2436 = vpack.c.b16 %v2416, %v2415
        %v2437 = vpack.c.b16 %v2418, %v2417
        %v2438 = vpack.c.b16 %v2420, %v2419
        %v2458 = vsel %vm1305, %v2234, 0
        %v2461 = vsel %vm1305, %v2102, 0
        %v2464 = vsel %vm1305, %v2104, 0
        %v2467 = vsel %vm1305, %v2106, 0
        %v2470 = vsel %vm1305, %v2164, 0
        %v2473 = vsel %vm1305, %v2236, 0
        %v2476 = vsel %vm1305, %v2238, 0
        %2478 = vmatpush.bf16.msra.mxu0 %v2428
        %2479 = vmatpush.bf16.msra.mxu0 %v2427
        %2480 = vmatpush.bf16.msra.mxu0 %v2426
        %2481 = vmatpush.bf16.msra.mxu0 %v2425
        %2482 = vmatpush.bf16.msra.mxu0 %v2424
        %2483 = vmatpush.bf16.msra.mxu0 %v2423
        %2484 = vmatpush.bf16.msra.mxu0 %v2422
        %2485 = vmatpush.bf16.msra.mxu0 %v2421
        %2486 = vmatmul.bf16.gmra.mxu0 %v2270
        %v2487 = vpop.f32.mrf.mxu0
        %v2488 = vadd.f32 %v2347, %v2487
        %v2489 = vpop.f32.mrf.mxu0
        %v2490 = vadd.f32 %v2347, %v2489
        %2491 = vmatmul.bf16.gmra.mxu0 %v2273
        %v2492 = vpop.f32.mrf.mxu0
        %v2493 = vadd.f32 %v2347, %v2492
        %v2494 = vpop.f32.mrf.mxu0
        %v2495 = vadd.f32 %v2347, %v2494
        %2496 = vmatmul.bf16.gmra.mxu0 %v2276
        %v2497 = vpop.f32.mrf.mxu0
        %v2498 = vadd.f32 %v2347, %v2497
        %v2499 = vpop.f32.mrf.mxu0
        %v2500 = vadd.f32 %v2347, %v2499
        %2501 = vmatmul.bf16.gmra.mxu0 %v2279
        %v2502 = vpop.f32.mrf.mxu0
        %v2503 = vadd.f32 %v2347, %v2502
        %v2504 = vpop.f32.mrf.mxu0
        %v2505 = vadd.f32 %v2347, %v2504
        %2506 = vmatmul.bf16.gmra.mxu0 %v2282
        %v2507 = vpop.f32.mrf.mxu0
        %v2508 = vadd.f32 %v2347, %v2507
        %v2509 = vpop.f32.mrf.mxu0
        %v2510 = vadd.f32 %v2347, %v2509
        %2511 = vmatmul.bf16.gmra.mxu0 %v2285
        %v2512 = vpop.f32.mrf.mxu0
        %v2513 = vadd.f32 %v2347, %v2512
        %v2514 = vpop.f32.mrf.mxu0
        %v2515 = vadd.f32 %v2347, %v2514
        %2516 = vmatmul.bf16.gmra.mxu0 %v2288
        %v2517 = vpop.f32.mrf.mxu0
        %v2518 = vadd.f32 %v2347, %v2517
        %v2519 = vpop.f32.mrf.mxu0
        %v2520 = vadd.f32 %v2347, %v2519
        %2521 = vdwg.mxu0
        %2522 = vmatpush.bf16.msra.mxu0 %v2436
        %2523 = vmatpush.bf16.msra.mxu0 %v2435
        %2524 = vmatpush.bf16.msra.mxu0 %v2434
        %2525 = vmatpush.bf16.msra.mxu0 %v2433
        %2526 = vmatpush.bf16.msra.mxu0 %v2432
        %2527 = vmatpush.bf16.msra.mxu0 %v2431
        %2528 = vmatpush.bf16.msra.mxu0 %v2430
        %2529 = vmatpush.bf16.msra.mxu0 %v2429
        %2530 = vmatmul.bf16.gmra.mxu0 %v2326
        %v2531 = vpop.f32.mrf.mxu0
        %v2532 = vadd.f32 %v2488, %v2531
        %v2533 = vpop.f32.mrf.mxu0
        %v2534 = vadd.f32 %v2490, %v2533
        %2535 = vmatmul.bf16.gmra.mxu0 %v2329
        %v2536 = vpop.f32.mrf.mxu0
        %v2537 = vadd.f32 %v2493, %v2536
        %v2538 = vpop.f32.mrf.mxu0
        %v2539 = vadd.f32 %v2495, %v2538
        %2540 = vmatmul.bf16.gmra.mxu0 %v2332
        %v2541 = vpop.f32.mrf.mxu0
        %v2542 = vadd.f32 %v2498, %v2541
        %v2543 = vpop.f32.mrf.mxu0
        %v2544 = vadd.f32 %v2500, %v2543
        %2545 = vmatmul.bf16.gmra.mxu0 %v2335
        %v2546 = vpop.f32.mrf.mxu0
        %v2547 = vadd.f32 %v2503, %v2546
        %v2548 = vpop.f32.mrf.mxu0
        %v2549 = vadd.f32 %v2505, %v2548
        %2550 = vmatmul.bf16.gmra.mxu0 %v2338
        %v2551 = vpop.f32.mrf.mxu0
        %v2552 = vadd.f32 %v2508, %v2551
        %v2553 = vpop.f32.mrf.mxu0
        %v2554 = vadd.f32 %v2510, %v2553
        %2555 = vmatmul.bf16.gmra.mxu0 %v2341
        %v2556 = vpop.f32.mrf.mxu0
        %v2557 = vadd.f32 %v2513, %v2556
        %v2558 = vpop.f32.mrf.mxu0
        %v2559 = vadd.f32 %v2515, %v2558
        %2560 = vmatmul.bf16.gmra.mxu0 %v2344
        %v2561 = vpop.f32.mrf.mxu0
        %v2562 = vadd.f32 %v2518, %v2561
        %v2563 = vpop.f32.mrf.mxu0
        %v2564 = vadd.f32 %v2520, %v2563
        %2565 = vdwg.mxu0
        %2566 = vmatpush.bf16.msra.mxu0 0
        %2567 = vmatpush.bf16.msra.mxu0 0
        %2568 = vmatpush.bf16.msra.mxu0 0
        %2569 = vmatpush.bf16.msra.mxu0 0
        %2570 = vmatpush.bf16.msra.mxu0 0
        %2571 = vmatpush.bf16.msra.mxu0 0
        %2572 = vmatpush.bf16.msra.mxu0 %v2438
        %2573 = vmatpush.bf16.msra.mxu0 %v2437
        %2574 = vmatmul.bf16.gmra.mxu0 %v2458
        %v2575 = vpop.f32.mrf.mxu0
        %v2576 = vadd.f32 %v2532, %v2575
        %v2577 = vpop.f32.mrf.mxu0
        %v2578 = vadd.f32 %v2534, %v2577
        %2579 = vmatmul.bf16.gmra.mxu0 %v2461
        %v2580 = vpop.f32.mrf.mxu0
        %v2581 = vadd.f32 %v2537, %v2580
        %v2582 = vpop.f32.mrf.mxu0
        %v2583 = vadd.f32 %v2539, %v2582
        %2584 = vmatmul.bf16.gmra.mxu0 %v2464
        %v2585 = vpop.f32.mrf.mxu0
        %v2586 = vadd.f32 %v2542, %v2585
        %v2587 = vpop.f32.mrf.mxu0
        %v2588 = vadd.f32 %v2544, %v2587
        %2589 = vmatmul.bf16.gmra.mxu0 %v2467
        %v2590 = vpop.f32.mrf.mxu0
        %v2591 = vadd.f32 %v2547, %v2590
        %v2592 = vpop.f32.mrf.mxu0
        %v2593 = vadd.f32 %v2549, %v2592
        %2594 = vmatmul.bf16.gmra.mxu0 %v2470
        %v2595 = vpop.f32.mrf.mxu0
        %v2596 = vadd.f32 %v2552, %v2595
        %v2597 = vpop.f32.mrf.mxu0
        %v2598 = vadd.f32 %v2554, %v2597
        %2599 = vmatmul.bf16.gmra.mxu0 %v2473
        %v2600 = vpop.f32.mrf.mxu0
        %v2601 = vadd.f32 %v2557, %v2600
        %v2602 = vpop.f32.mrf.mxu0
        %v2603 = vadd.f32 %v2559, %v2602
        %2604 = vmatmul.bf16.gmra.mxu0 %v2476
        %v2605 = vpop.f32.mrf.mxu0
        %v2606 = vadd.f32 %v2562, %v2605
        %v2607 = vpop.f32.mrf.mxu0
        %v2608 = vadd.f32 %v2564, %v2607
        %2609 = vdwg.mxu0
        %v2610 = vmax.f32 %v2576, 0.0
        %v2611 = vmax.f32 %v2578, 0.0
        %v2612 = vmax.f32 %v2581, 0.0
        %v2613 = vmax.f32 %v2583, 0.0
        %v2614 = vmax.f32 %v2586, 0.0
        %v2615 = vmax.f32 %v2588, 0.0
        %v2616 = vmax.f32 %v2591, 0.0
        %v2617 = vmax.f32 %v2593, 0.0
        %v2618 = vmax.f32 %v2596, 0.0
        %v2619 = vmax.f32 %v2598, 0.0
        %v2620 = vmax.f32 %v2601, 0.0
        %v2621 = vmax.f32 %v2603, 0.0
        %v2622 = vmax.f32 %v2606, 0.0
        %v2623 = vmax.f32 %v2608, 0.0
        %2624 = vst.msk [vmem:[#allocation4] sm:$0xff] %vm2253, %v2610
        %2625 = vst.msk [vmem:[#allocation4 + $0x8] sm:$0xff] %vm2253, %v2611
        %2626 = vst.msk [vmem:[#allocation4 + $0x10] sm:$0xff] %vm2253, %v2612
        %2627 = vst.msk [vmem:[#allocation4 + $0x18] sm:$0xff] %vm2253, %v2613
        %2628 = vst.msk [vmem:[#allocation4 + $0x20] sm:$0xff] %vm2253, %v2614
        %2629 = vst.msk [vmem:[#allocation4 + $0x28] sm:$0xff] %vm2253, %v2615
        %2630 = vst.msk [vmem:[#allocation4 + $0x30] sm:$0xff] %vm2253, %v2616
        %2631 = vst.msk [vmem:[#allocation4 + $0x38] sm:$0xff] %vm2253, %v2617
        %2632 = vst.msk [vmem:[#allocation4 + $0x40] sm:$0xff] %vm2253, %v2618
        %2633 = vst.msk [vmem:[#allocation4 + $0x48] sm:$0xff] %vm2253, %v2619
        %2634 = vst.msk [vmem:[#allocation4 + $0x50] sm:$0xff] %vm2253, %v2620
        %2635 = vst.msk [vmem:[#allocation4 + $0x58] sm:$0xff] %vm2253, %v2621
        %2636 = vst.msk [vmem:[#allocation4 + $0x60] sm:$0xff] %vm2253, %v2622
        %2637 = vst.msk [vmem:[#allocation4 + $0x68] sm:$0xff] %vm2253, %v2623
        %v2638 = vld [vmem:[#allocation3 + $0x38] sm:$0xf]
        %v2639 = vld [vmem:[#allocation3 + $0x3c] sm:$0xf]
        %v2640 = vld [vmem:[#allocation3 + $0x40] sm:$0xf]
        %v2641 = vld [vmem:[#allocation3 + $0x44] sm:$0xf]
        %v2642 = vld [vmem:[#allocation3 + $0x48] sm:$0xf]
        %v2643 = vld [vmem:[#allocation3 + $0x4c] sm:$0xf]
        %v2644 = vld [vmem:[#allocation3 + $0x50] sm:$0xf]
        %v2645 = vld [vmem:[#allocation3 + $0x54] sm:$0xf]
        %v2646 = vld [vmem:[#allocation3 + $0x58] sm:$0xf]
        %v2647 = vld [vmem:[#allocation3 + $0x5c] sm:$0xf]
        %v2648 = vld [vmem:[#allocation3 + $0x60] sm:$0xf]
        %v2649 = vld [vmem:[#allocation3 + $0x64] sm:$0xf]
        %v2650 = vld [vmem:[#allocation3 + $0x68] sm:$0xf]
        %v2651 = vld [vmem:[#allocation3 + $0x6c] sm:$0xf]
        %v2652 = vld [vmem:[#allocation3 + $0x70] sm:$0x1]
        %v2653 = vld [vmem:[#allocation3 + $0x38] sm:$0xe]
        %v2654 = vld [vmem:[#allocation3 + $0x70] sm:$0xf]
        %v2655 = vld [vmem:[#allocation3 + $0x74] sm:$0xf]
        %v2656 = vld [vmem:[#allocation3 + $0x78] sm:$0x1]
        %v2657 = vld [vmem:[#allocation3 + $0x40] sm:$0xe]
        %v2658 = vld [vmem:[#allocation3 + $0x78] sm:$0xf]
        %v2659 = vld [vmem:[#allocation3 + $0x7c] sm:$0xf]
        %v2660 = vld [vmem:[#allocation3 + $0x80] sm:$0x1]
        %v2661 = vld [vmem:[#allocation3 + $0x48] sm:$0xe]
        %v2676 = vunpack.c.l.b16 %v2638
        %v2677 = vunpack.c.l.b16 %v2639
        %v2678 = vunpack.c.l.b16 %v2640
        %v2679 = vunpack.c.l.b16 %v2641
        %v2680 = vunpack.c.l.b16 %v2642
        %v2681 = vunpack.c.l.b16 %v2643
        %v2682 = vunpack.c.l.b16 %v2644
        %v2683 = vunpack.c.l.b16 %v2645
        %v2684 = vunpack.c.l.b16 %v2646
        %v2685 = vunpack.c.l.b16 %v2647
        %v2686 = vunpack.c.l.b16 %v2648
        %v2687 = vunpack.c.l.b16 %v2649
        %v2688 = vunpack.c.l.b16 %v2650
        %v2689 = vunpack.c.l.b16 %v2651
        %v2690 = vpack.c.b16 %v2677, %v2676
        %v2691 = vpack.c.b16 %v2679, %v2678
        %v2692 = vpack.c.b16 %v2681, %v2680
        %v2693 = vpack.c.b16 %v2683, %v2682
        %v2694 = vpack.c.b16 %v2685, %v2684
        %v2695 = vpack.c.b16 %v2687, %v2686
        %v2696 = vpack.c.b16 %v2689, %v2688
        %v2698 = vunpack.c.l.b16 %v2652
        %v2699 = vpack.c.b16 %v2698, %v2698
        %v2701 = vshrl.u32 %v2690, 16
        %v2703 = vshll.u32 %v2690, 16
        %v2705 = vrot.slane %v2703, 1
        %v2706 = vor.u32 %v2701, %v2705
        %v2708 = vshll.u32 %v2691, 16
        %v2710 = vrot.slane %v2708, 1
        %v2711 = vsel %vm2015, %v2706, %v2710
        %v2712 = vshrl.u32 %v2691, 16
        %v2714 = vor.u32 %v2712, %v2710
        %v2716 = vshll.u32 %v2692, 16
        %v2718 = vrot.slane %v2716, 1
        %v2719 = vsel %vm2015, %v2714, %v2718
        %v2720 = vshrl.u32 %v2692, 16
        %v2722 = vor.u32 %v2720, %v2718
        %v2724 = vshll.u32 %v2693, 16
        %v2726 = vrot.slane %v2724, 1
        %v2727 = vsel %vm2015, %v2722, %v2726
        %v2728 = vshrl.u32 %v2693, 16
        %v2730 = vor.u32 %v2728, %v2726
        %v2732 = vshll.u32 %v2694, 16
        %v2734 = vrot.slane %v2732, 1
        %v2735 = vsel %vm2015, %v2730, %v2734
        %v2736 = vshrl.u32 %v2694, 16
        %v2738 = vor.u32 %v2736, %v2734
        %v2740 = vshll.u32 %v2695, 16
        %v2742 = vrot.slane %v2740, 1
        %v2743 = vsel %vm2015, %v2738, %v2742
        %v2744 = vshrl.u32 %v2695, 16
        %v2746 = vor.u32 %v2744, %v2742
        %v2748 = vshll.u32 %v2696, 16
        %v2750 = vrot.slane %v2748, 1
        %v2751 = vsel %vm2015, %v2746, %v2750
        %v2752 = vshrl.u32 %v2696, 16
        %v2754 = vor.u32 %v2752, %v2750
        %v2756 = vshll.u32 %v2699, 16
        %v2758 = vrot.slane %v2756, 1
        %v2759 = vsel %vm2015, %v2754, %v2758
        %2760 = vrot.lane.b32.xlu0 %v2711, 32
        %v2761 = vpop.permute.xlu0 %2760
        %2762 = vrot.lane.b32.xlu0 %v2719, 32
        %v2763 = vpop.permute.xlu0 %2762
        %2764 = vrot.lane.b32.xlu0 %v2727, 32
        %v2765 = vpop.permute.xlu0 %2764
        %2766 = vrot.lane.b32.xlu0 %v2735, 32
        %v2767 = vpop.permute.xlu0 %2766
        %2768 = vrot.lane.b32.xlu0 %v2743, 32
        %v2769 = vpop.permute.xlu0 %2768
        %2770 = vrot.lane.b32.xlu0 %v2751, 32
        %v2771 = vpop.permute.xlu0 %2770
        %2772 = vrot.lane.b32.xlu0 %v2759, 32
        %v2773 = vpop.permute.xlu0 %2772
        %v2775 = vunpack.c.l.b16 %v2653
        %v2776 = vpack.c.b16 %v2677, %v2775
        %v2777 = vrot.slane %v2776, 1
        %v2778 = vrot.slane %v2691, 1
        %v2779 = vsel %vm2093, %v2777, %v2778
        %v2780 = vrot.slane %v2692, 1
        %v2781 = vsel %vm2093, %v2778, %v2780
        %v2782 = vrot.slane %v2693, 1
        %v2783 = vsel %vm2093, %v2780, %v2782
        %v2784 = vrot.slane %v2694, 1
        %v2785 = vsel %vm2093, %v2782, %v2784
        %v2786 = vrot.slane %v2695, 1
        %v2787 = vsel %vm2093, %v2784, %v2786
        %v2788 = vrot.slane %v2696, 1
        %v2789 = vsel %vm2093, %v2786, %v2788
        %v2790 = vrot.slane %v2699, 1
        %v2791 = vsel %vm2093, %v2788, %v2790
        %2792 = vrot.lane.b32.xlu0 %v2779, 64
        %v2793 = vpop.permute.xlu0 %2792
        %2794 = vrot.lane.b32.xlu0 %v2781, 64
        %v2795 = vpop.permute.xlu0 %2794
        %2796 = vrot.lane.b32.xlu0 %v2783, 64
        %v2797 = vpop.permute.xlu0 %2796
        %2798 = vrot.lane.b32.xlu0 %v2785, 64
        %v2799 = vpop.permute.xlu0 %2798
        %2800 = vrot.lane.b32.xlu0 %v2787, 64
        %v2801 = vpop.permute.xlu0 %2800
        %2802 = vrot.lane.b32.xlu0 %v2789, 64
        %v2803 = vpop.permute.xlu0 %2802
        %2804 = vrot.lane.b32.xlu0 %v2791, 64
        %v2805 = vpop.permute.xlu0 %2804
        %v2808 = vunpack.c.l.b16 %v2654
        %v2809 = vunpack.c.l.b16 %v2655
        %v2810 = vpack.c.b16 %v2809, %v2808
        %2811 = vrot.lane.b32.xlu0 %v2691, 96
        %v2812 = vpop.permute.xlu0 %2811
        %2813 = vrot.lane.b32.xlu0 %v2692, 96
        %v2814 = vpop.permute.xlu0 %2813
        %2815 = vrot.lane.b32.xlu0 %v2693, 96
        %v2816 = vpop.permute.xlu0 %2815
        %2817 = vrot.lane.b32.xlu0 %v2694, 96
        %v2818 = vpop.permute.xlu0 %2817
        %2819 = vrot.lane.b32.xlu0 %v2695, 96
        %v2820 = vpop.permute.xlu0 %2819
        %2821 = vrot.lane.b32.xlu0 %v2696, 96
        %v2822 = vpop.permute.xlu0 %2821
        %2823 = vrot.lane.b32.xlu0 %v2810, 96
        %v2824 = vpop.permute.xlu0 %2823
        %v2826 = vunpack.c.l.b16 %v2656
        %v2827 = vpack.c.b16 %v2826, %v2826
        %v2829 = vshll.u32 %v2810, 16
        %v2831 = vrot.slane %v2829, 1
        %v2832 = vsel %vm2015, %v2754, %v2831
        %v2833 = vshrl.u32 %v2810, 16
        %v2835 = vor.u32 %v2833, %v2831
        %v2837 = vshll.u32 %v2827, 16
        %v2839 = vrot.slane %v2837, 1
        %v2840 = vsel %vm2015, %v2835, %v2839
        %v2842 = vunpack.c.l.b16 %v2657
        %v2843 = vpack.c.b16 %v2679, %v2842
        %v2844 = vrot.slane %v2843, 1
        %v2845 = vsel %vm2093, %v2844, %v2780
        %v2846 = vrot.slane %v2810, 1
        %v2847 = vsel %vm2093, %v2788, %v2846
        %v2848 = vrot.slane %v2827, 1
        %v2849 = vsel %vm2093, %v2846, %v2848
        %2850 = vrot.lane.b32.xlu0 %v2845, 32
        %v2851 = vpop.permute.xlu0 %2850
        %2852 = vrot.lane.b32.xlu0 %v2783, 32
        %v2853 = vpop.permute.xlu0 %2852
        %2854 = vrot.lane.b32.xlu0 %v2785, 32
        %v2855 = vpop.permute.xlu0 %2854
        %2856 = vrot.lane.b32.xlu0 %v2787, 32
        %v2857 = vpop.permute.xlu0 %2856
        %2858 = vrot.lane.b32.xlu0 %v2789, 32
        %v2859 = vpop.permute.xlu0 %2858
        %2860 = vrot.lane.b32.xlu0 %v2847, 32
        %v2861 = vpop.permute.xlu0 %2860
        %2862 = vrot.lane.b32.xlu0 %v2849, 32
        %v2863 = vpop.permute.xlu0 %2862
        %v2866 = vunpack.c.l.b16 %v2658
        %v2867 = vunpack.c.l.b16 %v2659
        %v2868 = vpack.c.b16 %v2867, %v2866
        %2869 = vrot.lane.b32.xlu0 %v2692, 64
        %v2870 = vpop.permute.xlu0 %2869
        %2871 = vrot.lane.b32.xlu0 %v2693, 64
        %v2872 = vpop.permute.xlu0 %2871
        %2873 = vrot.lane.b32.xlu0 %v2694, 64
        %v2874 = vpop.permute.xlu0 %2873
        %2875 = vrot.lane.b32.xlu0 %v2695, 64
        %v2876 = vpop.permute.xlu0 %2875
        %2877 = vrot.lane.b32.xlu0 %v2696, 64
        %v2878 = vpop.permute.xlu0 %2877
        %2879 = vrot.lane.b32.xlu0 %v2810, 64
        %v2880 = vpop.permute.xlu0 %2879
        %2881 = vrot.lane.b32.xlu0 %v2868, 64
        %v2882 = vpop.permute.xlu0 %2881
        %v2884 = vunpack.c.l.b16 %v2660
        %v2885 = vpack.c.b16 %v2884, %v2884
        %v2887 = vshll.u32 %v2868, 16
        %v2889 = vrot.slane %v2887, 1
        %v2890 = vsel %vm2015, %v2835, %v2889
        %v2891 = vshrl.u32 %v2868, 16
        %v2893 = vor.u32 %v2891, %v2889
        %v2895 = vshll.u32 %v2885, 16
        %v2897 = vrot.slane %v2895, 1
        %v2898 = vsel %vm2015, %v2893, %v2897
        %2899 = vrot.lane.b32.xlu0 %v2727, 96
        %v2900 = vpop.permute.xlu0 %2899
        %2901 = vrot.lane.b32.xlu0 %v2735, 96
        %v2902 = vpop.permute.xlu0 %2901
        %2903 = vrot.lane.b32.xlu0 %v2743, 96
        %v2904 = vpop.permute.xlu0 %2903
        %2905 = vrot.lane.b32.xlu0 %v2751, 96
        %v2906 = vpop.permute.xlu0 %2905
        %2907 = vrot.lane.b32.xlu0 %v2832, 96
        %v2908 = vpop.permute.xlu0 %2907
        %2909 = vrot.lane.b32.xlu0 %v2890, 96
        %v2910 = vpop.permute.xlu0 %2909
        %2911 = vrot.lane.b32.xlu0 %v2898, 96
        %v2912 = vpop.permute.xlu0 %2911
        %v2914 = vunpack.c.l.b16 %v2661
        %v2915 = vpack.c.b16 %v2681, %v2914
        %v2916 = vrot.slane %v2915, 1
        %v2917 = vsel %vm2093, %v2916, %v2782
        %v2918 = vrot.slane %v2868, 1
        %v2919 = vsel %vm2093, %v2846, %v2918
        %v2920 = vrot.slane %v2885, 1
        %v2921 = vsel %vm2093, %v2918, %v2920
        %v2923 = vsel %vm1305, %v2690, %v2761
        %v2925 = vsel %vm1305, %v2691, %v2763
        %v2927 = vsel %vm1305, %v2692, %v2765
        %v2929 = vsel %vm1305, %v2693, %v2767
        %v2931 = vsel %vm1305, %v2694, %v2769
        %v2933 = vsel %vm1305, %v2695, %v2771
        %v2935 = vsel %vm1305, %v2696, %v2773
        %v2937 = vsel %vm2253, %v2923, %v2793
        %v2939 = vsel %vm2253, %v2925, %v2795
        %v2941 = vsel %vm2253, %v2927, %v2797
        %v2943 = vsel %vm2253, %v2929, %v2799
        %v2945 = vsel %vm2253, %v2931, %v2801
        %v2947 = vsel %vm2253, %v2933, %v2803
        %v2949 = vsel %vm2253, %v2935, %v2805
        %v2951 = vsel %vm2268, %v2937, %v2812
        %v2954 = vsel %vm2268, %v2939, %v2814
        %v2957 = vsel %vm2268, %v2941, %v2816
        %v2960 = vsel %vm2268, %v2943, %v2818
        %v2963 = vsel %vm2268, %v2945, %v2820
        %v2966 = vsel %vm2268, %v2947, %v2822
        %v2969 = vsel %vm2268, %v2949, %v2824
        %v2973 = vsel %vm1305, %v2719, %v2851
        %v2976 = vsel %vm1305, %v2727, %v2853
        %v2979 = vsel %vm1305, %v2735, %v2855
        %v2982 = vsel %vm1305, %v2743, %v2857
        %v2985 = vsel %vm1305, %v2751, %v2859
        %v2988 = vsel %vm1305, %v2832, %v2861
        %v2991 = vsel %vm1305, %v2840, %v2863
        %v2993 = vsel %vm2253, %v2973, %v2870
        %v2995 = vsel %vm2253, %v2976, %v2872
        %v2997 = vsel %vm2253, %v2979, %v2874
        %v2999 = vsel %vm2253, %v2982, %v2876
        %v3001 = vsel %vm2253, %v2985, %v2878
        %v3003 = vsel %vm2253, %v2988, %v2880
        %v3005 = vsel %vm2253, %v2991, %v2882
        %v3007 = vsel %vm2268, %v2993, %v2900
        %v3010 = vsel %vm2268, %v2995, %v2902
        %v3013 = vsel %vm2268, %v2997, %v2904
        %v3016 = vsel %vm2268, %v2999, %v2906
        %v3019 = vsel %vm2268, %v3001, %v2908
        %v3022 = vsel %vm2268, %v3003, %v2910
        %v3025 = vsel %vm2268, %v3005, %v2912
        %v3028 = vsel %vm1305, %v2917, 0
        %v3031 = vsel %vm1305, %v2785, 0
        %v3034 = vsel %vm1305, %v2787, 0
        %v3037 = vsel %vm1305, %v2789, 0
        %v3040 = vsel %vm1305, %v2847, 0
        %v3043 = vsel %vm1305, %v2919, 0
        %v3046 = vsel %vm1305, %v2921, 0
        %3048 = vmatpush.bf16.msra.mxu0 %v2428
        %3049 = vmatpush.bf16.msra.mxu0 %v2427
        %3050 = vmatpush.bf16.msra.mxu0 %v2426
        %3051 = vmatpush.bf16.msra.mxu0 %v2425
        %3052 = vmatpush.bf16.msra.mxu0 %v2424
        %3053 = vmatpush.bf16.msra.mxu0 %v2423
        %3054 = vmatpush.bf16.msra.mxu0 %v2422
        %3055 = vmatpush.bf16.msra.mxu0 %v2421
        %3056 = vmatmul.bf16.gmra.mxu0 %v2951
        %v3057 = vpop.f32.mrf.mxu0
        %v3058 = vadd.f32 %v2347, %v3057
        %v3059 = vpop.f32.mrf.mxu0
        %v3060 = vadd.f32 %v2347, %v3059
        %3061 = vmatmul.bf16.gmra.mxu0 %v2954
        %v3062 = vpop.f32.mrf.mxu0
        %v3063 = vadd.f32 %v2347, %v3062
        %v3064 = vpop.f32.mrf.mxu0
        %v3065 = vadd.f32 %v2347, %v3064
        %3066 = vmatmul.bf16.gmra.mxu0 %v2957
        %v3067 = vpop.f32.mrf.mxu0
        %v3068 = vadd.f32 %v2347, %v3067
        %v3069 = vpop.f32.mrf.mxu0
        %v3070 = vadd.f32 %v2347, %v3069
        %3071 = vmatmul.bf16.gmra.mxu0 %v2960
        %v3072 = vpop.f32.mrf.mxu0
        %v3073 = vadd.f32 %v2347, %v3072
        %v3074 = vpop.f32.mrf.mxu0
        %v3075 = vadd.f32 %v2347, %v3074
        %3076 = vmatmul.bf16.gmra.mxu0 %v2963
        %v3077 = vpop.f32.mrf.mxu0
        %v3078 = vadd.f32 %v2347, %v3077
        %v3079 = vpop.f32.mrf.mxu0
        %v3080 = vadd.f32 %v2347, %v3079
        %3081 = vmatmul.bf16.gmra.mxu0 %v2966
        %v3082 = vpop.f32.mrf.mxu0
        %v3083 = vadd.f32 %v2347, %v3082
        %v3084 = vpop.f32.mrf.mxu0
        %v3085 = vadd.f32 %v2347, %v3084
        %3086 = vmatmul.bf16.gmra.mxu0 %v2969
        %v3087 = vpop.f32.mrf.mxu0
        %v3088 = vadd.f32 %v2347, %v3087
        %v3089 = vpop.f32.mrf.mxu0
        %v3090 = vadd.f32 %v2347, %v3089
        %3091 = vdwg.mxu0
        %3092 = vmatpush.bf16.msra.mxu0 %v2436
        %3093 = vmatpush.bf16.msra.mxu0 %v2435
        %3094 = vmatpush.bf16.msra.mxu0 %v2434
        %3095 = vmatpush.bf16.msra.mxu0 %v2433
        %3096 = vmatpush.bf16.msra.mxu0 %v2432
        %3097 = vmatpush.bf16.msra.mxu0 %v2431
        %3098 = vmatpush.bf16.msra.mxu0 %v2430
        %3099 = vmatpush.bf16.msra.mxu0 %v2429
        %3100 = vmatmul.bf16.gmra.mxu0 %v3007
        %v3101 = vpop.f32.mrf.mxu0
        %v3102 = vadd.f32 %v3058, %v3101
        %v3103 = vpop.f32.mrf.mxu0
        %v3104 = vadd.f32 %v3060, %v3103
        %3105 = vmatmul.bf16.gmra.mxu0 %v3010
        %v3106 = vpop.f32.mrf.mxu0
        %v3107 = vadd.f32 %v3063, %v3106
        %v3108 = vpop.f32.mrf.mxu0
        %v3109 = vadd.f32 %v3065, %v3108
        %3110 = vmatmul.bf16.gmra.mxu0 %v3013
        %v3111 = vpop.f32.mrf.mxu0
        %v3112 = vadd.f32 %v3068, %v3111
        %v3113 = vpop.f32.mrf.mxu0
        %v3114 = vadd.f32 %v3070, %v3113
        %3115 = vmatmul.bf16.gmra.mxu0 %v3016
        %v3116 = vpop.f32.mrf.mxu0
        %v3117 = vadd.f32 %v3073, %v3116
        %v3118 = vpop.f32.mrf.mxu0
        %v3119 = vadd.f32 %v3075, %v3118
        %3120 = vmatmul.bf16.gmra.mxu0 %v3019
        %v3121 = vpop.f32.mrf.mxu0
        %v3122 = vadd.f32 %v3078, %v3121
        %v3123 = vpop.f32.mrf.mxu0
        %v3124 = vadd.f32 %v3080, %v3123
        %3125 = vmatmul.bf16.gmra.mxu0 %v3022
        %v3126 = vpop.f32.mrf.mxu0
        %v3127 = vadd.f32 %v3083, %v3126
        %v3128 = vpop.f32.mrf.mxu0
        %v3129 = vadd.f32 %v3085, %v3128
        %3130 = vmatmul.bf16.gmra.mxu0 %v3025
        %v3131 = vpop.f32.mrf.mxu0
        %v3132 = vadd.f32 %v3088, %v3131
        %v3133 = vpop.f32.mrf.mxu0
        %v3134 = vadd.f32 %v3090, %v3133
        %3135 = vdwg.mxu0
        %3136 = vmatpush.bf16.msra.mxu0 0
        %3137 = vmatpush.bf16.msra.mxu0 0
        %3138 = vmatpush.bf16.msra.mxu0 0
        %3139 = vmatpush.bf16.msra.mxu0 0
        %3140 = vmatpush.bf16.msra.mxu0 0
        %3141 = vmatpush.bf16.msra.mxu0 0
        %3142 = vmatpush.bf16.msra.mxu0 %v2438
        %3143 = vmatpush.bf16.msra.mxu0 %v2437
        %3144 = vmatmul.bf16.gmra.mxu0 %v3028
        %v3145 = vpop.f32.mrf.mxu0
        %v3146 = vadd.f32 %v3102, %v3145
        %v3147 = vpop.f32.mrf.mxu0
        %v3148 = vadd.f32 %v3104, %v3147
        %3149 = vmatmul.bf16.gmra.mxu0 %v3031
        %v3150 = vpop.f32.mrf.mxu0
        %v3151 = vadd.f32 %v3107, %v3150
        %v3152 = vpop.f32.mrf.mxu0
        %v3153 = vadd.f32 %v3109, %v3152
        %3154 = vmatmul.bf16.gmra.mxu0 %v3034
        %v3155 = vpop.f32.mrf.mxu0
        %v3156 = vadd.f32 %v3112, %v3155
        %v3157 = vpop.f32.mrf.mxu0
        %v3158 = vadd.f32 %v3114, %v3157
        %3159 = vmatmul.bf16.gmra.mxu0 %v3037
        %v3160 = vpop.f32.mrf.mxu0
        %v3161 = vadd.f32 %v3117, %v3160
        %v3162 = vpop.f32.mrf.mxu0
        %v3163 = vadd.f32 %v3119, %v3162
        %3164 = vmatmul.bf16.gmra.mxu0 %v3040
        %v3165 = vpop.f32.mrf.mxu0
        %v3166 = vadd.f32 %v3122, %v3165
        %v3167 = vpop.f32.mrf.mxu0
        %v3168 = vadd.f32 %v3124, %v3167
        %3169 = vmatmul.bf16.gmra.mxu0 %v3043
        %v3170 = vpop.f32.mrf.mxu0
        %v3171 = vadd.f32 %v3127, %v3170
        %v3172 = vpop.f32.mrf.mxu0
        %v3173 = vadd.f32 %v3129, %v3172
        %3174 = vmatmul.bf16.gmra.mxu0 %v3046
        %v3175 = vpop.f32.mrf.mxu0
        %v3176 = vadd.f32 %v3132, %v3175
        %v3177 = vpop.f32.mrf.mxu0
        %v3178 = vadd.f32 %v3134, %v3177
        %3179 = vdwg.mxu0
        %v3180 = vmax.f32 %v3146, 0.0
        %v3181 = vmax.f32 %v3148, 0.0
        %v3182 = vmax.f32 %v3151, 0.0
        %v3183 = vmax.f32 %v3153, 0.0
        %v3184 = vmax.f32 %v3156, 0.0
        %v3185 = vmax.f32 %v3158, 0.0
        %v3186 = vmax.f32 %v3161, 0.0
        %v3187 = vmax.f32 %v3163, 0.0
        %v3188 = vmax.f32 %v3166, 0.0
        %v3189 = vmax.f32 %v3168, 0.0
        %v3190 = vmax.f32 %v3171, 0.0
        %v3191 = vmax.f32 %v3173, 0.0
        %v3192 = vmax.f32 %v3176, 0.0
        %v3193 = vmax.f32 %v3178, 0.0
        %3194 = vst.msk [vmem:[#allocation4 + $0x70] sm:$0xff] %vm2253, %v3180
        %3195 = vst.msk [vmem:[#allocation4 + $0x78] sm:$0xff] %vm2253, %v3181
        %3196 = vst.msk [vmem:[#allocation4 + $0x80] sm:$0xff] %vm2253, %v3182
        %3197 = vst.msk [vmem:[#allocation4 + $0x88] sm:$0xff] %vm2253, %v3183
        %3198 = vst.msk [vmem:[#allocation4 + $0x90] sm:$0xff] %vm2253, %v3184
        %3199 = vst.msk [vmem:[#allocation4 + $0x98] sm:$0xff] %vm2253, %v3185
        %3200 = vst.msk [vmem:[#allocation4 + $0xa0] sm:$0xff] %vm2253, %v3186
        %3201 = vst.msk [vmem:[#allocation4 + $0xa8] sm:$0xff] %vm2253, %v3187
        %3202 = vst.msk [vmem:[#allocation4 + $0xb0] sm:$0xff] %vm2253, %v3188
        %3203 = vst.msk [vmem:[#allocation4 + $0xb8] sm:$0xff] %vm2253, %v3189
        %3204 = vst.msk [vmem:[#allocation4 + $0xc0] sm:$0xff] %vm2253, %v3190
        %3205 = vst.msk [vmem:[#allocation4 + $0xc8] sm:$0xff] %vm2253, %v3191
        %3206 = vst.msk [vmem:[#allocation4 + $0xd0] sm:$0xff] %vm2253, %v3192
        %3207 = vst.msk [vmem:[#allocation4 + $0xd8] sm:$0xff] %vm2253, %v3193
        %v3208 = vld [vmem:[#allocation4] ss:$2 sm:$0xff]
        %s3209 = scalar_lea.vmem [#allocation4], 1
        %v3210 = vld [vmem:[%s3209] ss:$2 sm:$0xff]
        %s3211 = scalar_lea.vmem [#allocation4], 16
        %v3212 = vld [vmem:[%s3211] ss:$2 sm:$0xff]
        %s3213 = scalar_lea.vmem [#allocation4], 17
        %v3214 = vld [vmem:[%s3213] ss:$2 sm:$0xff]
        %v3215 = vmax.f32 %v3208, %v3210
        %v3216 = vmax.f32 %v3212, %v3214
        %v3217 = vmax.f32 %v3215, %v3216
        %v3218 = vpack.c.bf16 %v3217, %v3217
        %vm3219 = vcmask 516096
        %vm3220 = vsmask.f32 256
        %vm3221 = vmand %vm3219, %vm3220
        %v3222 = vld [vmem:[#allocation5] sm:$0x1]
        %v3223 = vsel %vm3221, %v3218, %v3222
        %3224 = vst [vmem:[#allocation5] sm:$0x1] %v3223
        %v3226 = vrot.slane %v3218, 3
        %v3229 = vsel %vm1448, %v3218, %v3226
        %v3230 = vshrl.u32 %v3229, 16
        %v3232 = vrot.slane %v3230, 7
        %v3233 = vrot.slane %v3232, 1
        %3234 = vrot.lane.b32.xlu0 %v3233, 64
        %v3235 = vpop.permute.xlu0 %3234
        %vm3237 = vcmask 1040896
        %vm3238 = vmand %vm3237, %vm3220
        %v3239 = vld [vmem:[#allocation5] sm:$0x1]
        %v3240 = vsel %vm3238, %v3235, %v3239
        %3241 = vst [vmem:[#allocation5] sm:$0x1] %v3240
        %3242 = vst [vmem:[#allocation1] sm:$0xff] %v3218
        %s3243 = scalar_lea.vmem [#allocation1], 1
        %v3244 = vld [vmem:[%s3243] ss:$4 sm:$0xff]
        %v3246 = vld [vmem:[#allocation5 + $0x1] sm:$0x1]
        %v3247 = vsel %vm3221, %v3244, %v3246
        %3248 = vst [vmem:[#allocation5 + $0x1] sm:$0x1] %v3247
        %3249 = vst [vmem:[#allocation1] sm:$0xff] %v3218
        %s3250 = scalar_lea.vmem [#allocation1], 1
        %v3251 = vld [vmem:[%s3250] ss:$4 sm:$0xff]
        %v3252 = vshrl.u32 %v3251, 16
        %v3254 = vrot.slane %v3252, 7
        %v3255 = vrot.slane %v3254, 1
        %3256 = vrot.lane.b32.xlu0 %v3255, 64
        %v3257 = vpop.permute.xlu0 %3256
        %v3259 = vld [vmem:[#allocation5 + $0x1] sm:$0x1]
        %v3260 = vsel %vm3238, %v3257, %v3259
        %3261 = vst [vmem:[#allocation5 + $0x1] sm:$0x1] %v3260
        %3262 = vst [vmem:[#allocation1] sm:$0xff] %v3218
        %s3263 = scalar_lea.vmem [#allocation1], 2
        %v3264 = vld [vmem:[%s3263] ss:$4 sm:$0xff]
        %v3266 = vld [vmem:[#allocation5 + $0x2] sm:$0x1]
        %v3267 = vsel %vm3221, %v3264, %v3266
        %3268 = vst [vmem:[#allocation5 + $0x2] sm:$0x1] %v3267
        %3269 = vst [vmem:[#allocation1] sm:$0xff] %v3218
        %s3270 = scalar_lea.vmem [#allocation1], 2
        %v3271 = vld [vmem:[%s3270] ss:$4 sm:$0xff]
        %v3272 = vshrl.u32 %v3271, 16
        %v3274 = vrot.slane %v3272, 7
        %v3275 = vrot.slane %v3274, 1
        %3276 = vrot.lane.b32.xlu0 %v3275, 64
        %v3277 = vpop.permute.xlu0 %3276
        %v3279 = vld [vmem:[#allocation5 + $0x2] sm:$0x1]
        %v3280 = vsel %vm3238, %v3277, %v3279
        %3281 = vst [vmem:[#allocation5 + $0x2] sm:$0x1] %v3280
        %3282 = vst [vmem:[#allocation1] sm:$0xff] %v3218
        %s3283 = scalar_lea.vmem [#allocation1], 3
        %v3284 = vld [vmem:[%s3283] ss:$4 sm:$0xff]
        %v3286 = vld [vmem:[#allocation5 + $0x3] sm:$0x1]
        %v3287 = vsel %vm3221, %v3284, %v3286
        %3288 = vst [vmem:[#allocation5 + $0x3] sm:$0x1] %v3287
        %s3289 = scalar_lea.vmem [#allocation4], 32
        %v3290 = vld [vmem:[%s3289] ss:$2 sm:$0xff]
        %s3291 = scalar_lea.vmem [#allocation4], 33
        %v3292 = vld [vmem:[%s3291] ss:$2 sm:$0xff]
        %s3293 = scalar_lea.vmem [#allocation4], 48
        %v3294 = vld [vmem:[%s3293] ss:$2 sm:$0xff]
        %s3295 = scalar_lea.vmem [#allocation4], 49
        %v3296 = vld [vmem:[%s3295] ss:$2 sm:$0xff]
        %v3297 = vmax.f32 %v3290, %v3292
        %v3298 = vmax.f32 %v3294, %v3296
        %v3299 = vmax.f32 %v3297, %v3298
        %v3300 = vpack.c.bf16 %v3299, %v3299
        %v3302 = vrot.slane %v3300, 3
        %v3305 = vsel %vm1448, %v3300, %v3302
        %3307 = vrot.lane.b32.xlu0 %v3305, 64
        %v3308 = vpop.permute.xlu0 %3307
        %v3310 = vld [vmem:[#allocation5 + $0x3] sm:$0x1]
        %v3311 = vsel %vm3238, %v3308, %v3310
        %3312 = vst [vmem:[#allocation5 + $0x3] sm:$0x1] %v3311
        %v3313 = vshrl.u32 %v3305, 16
        %v3315 = vrot.slane %v3313, 7
        %v3316 = vrot.slane %v3315, 1
        %v3318 = vld [vmem:[#allocation5 + $0x4] sm:$0x1]
        %v3319 = vsel %vm3221, %v3316, %v3318
        %3320 = vst [vmem:[#allocation5 + $0x4] sm:$0x1] %v3319
        %3321 = vst [vmem:[#allocation1] sm:$0xff] %v3300
        %s3322 = scalar_lea.vmem [#allocation1], 1
        %v3323 = vld [vmem:[%s3322] ss:$4 sm:$0xff]
        %3325 = vrot.lane.b32.xlu0 %v3323, 64
        %v3326 = vpop.permute.xlu0 %3325
        %v3328 = vld [vmem:[#allocation5 + $0x4] sm:$0x1]
        %v3329 = vsel %vm3238, %v3326, %v3328
        %3330 = vst [vmem:[#allocation5 + $0x4] sm:$0x1] %v3329
        %3331 = vst [vmem:[#allocation1] sm:$0xff] %v3300
        %s3332 = scalar_lea.vmem [#allocation1], 1
        %v3333 = vld [vmem:[%s3332] ss:$4 sm:$0xff]
        %v3334 = vshrl.u32 %v3333, 16
        %v3336 = vrot.slane %v3334, 7
        %v3337 = vrot.slane %v3336, 1
        %v3339 = vld [vmem:[#allocation5 + $0x5] sm:$0x1]
        %v3340 = vsel %vm3221, %v3337, %v3339
        %3341 = vst [vmem:[#allocation5 + $0x5] sm:$0x1] %v3340
        %3342 = vst [vmem:[#allocation1] sm:$0xff] %v3300
        %s3343 = scalar_lea.vmem [#allocation1], 2
        %v3344 = vld [vmem:[%s3343] ss:$4 sm:$0xff]
        %3346 = vrot.lane.b32.xlu0 %v3344, 64
        %v3347 = vpop.permute.xlu0 %3346
        %v3349 = vld [vmem:[#allocation5 + $0x5] sm:$0x1]
        %v3350 = vsel %vm3238, %v3347, %v3349
        %3351 = vst [vmem:[#allocation5 + $0x5] sm:$0x1] %v3350
        %3352 = vst [vmem:[#allocation1] sm:$0xff] %v3300
        %s3353 = scalar_lea.vmem [#allocation1], 2
        %v3354 = vld [vmem:[%s3353] ss:$4 sm:$0xff]
        %v3355 = vshrl.u32 %v3354, 16
        %v3357 = vrot.slane %v3355, 7
        %v3358 = vrot.slane %v3357, 1
        %v3360 = vld [vmem:[#allocation5 + $0x6] sm:$0x1]
        %v3361 = vsel %vm3221, %v3358, %v3360
        %3362 = vst [vmem:[#allocation5 + $0x6] sm:$0x1] %v3361
        %3363 = vst [vmem:[#allocation1] sm:$0xff] %v3300
        %s3364 = scalar_lea.vmem [#allocation1], 3
        %v3365 = vld [vmem:[%s3364] ss:$4 sm:$0xff]
        %3367 = vrot.lane.b32.xlu0 %v3365, 64
        %v3368 = vpop.permute.xlu0 %3367
        %v3370 = vld [vmem:[#allocation5 + $0x6] sm:$0x1]
        %v3371 = vsel %vm3238, %v3368, %v3370
        %3372 = vst [vmem:[#allocation5 + $0x6] sm:$0x1] %v3371
        %s3373 = scalar_lea.vmem [#allocation4], 64
        %v3374 = vld [vmem:[%s3373] ss:$2 sm:$0xff]
        %s3375 = scalar_lea.vmem [#allocation4], 65
        %v3376 = vld [vmem:[%s3375] ss:$2 sm:$0xff]
        %s3377 = scalar_lea.vmem [#allocation4], 80
        %v3378 = vld [vmem:[%s3377] ss:$2 sm:$0xff]
        %s3379 = scalar_lea.vmem [#allocation4], 81
        %v3380 = vld [vmem:[%s3379] ss:$2 sm:$0xff]
        %v3381 = vmax.f32 %v3374, %v3376
        %v3382 = vmax.f32 %v3378, %v3380
        %v3383 = vmax.f32 %v3381, %v3382
        %v3384 = vpack.c.bf16 %v3383, %v3383
        %v3385 = vld [vmem:[#allocation5 + $0x7] sm:$0x1]
        %v3386 = vsel %vm3221, %v3384, %v3385
        %3387 = vst [vmem:[#allocation5 + $0x7] sm:$0x1] %v3386
        %v3389 = vrot.slane %v3384, 3
        %v3392 = vsel %vm1448, %v3384, %v3389
        %v3393 = vshrl.u32 %v3392, 16
        %v3395 = vrot.slane %v3393, 7
        %v3396 = vrot.slane %v3395, 1
        %3397 = vrot.lane.b32.xlu0 %v3396, 64
        %v3398 = vpop.permute.xlu0 %3397
        %v3400 = vld [vmem:[#allocation5 + $0x7] sm:$0x1]
        %v3401 = vsel %vm3238, %v3398, %v3400
        %3402 = vst [vmem:[#allocation5 + $0x7] sm:$0x1] %v3401
        %3403 = vst [vmem:[#allocation1] sm:$0xff] %v3384
        %s3404 = scalar_lea.vmem [#allocation1], 1
        %v3405 = vld [vmem:[%s3404] ss:$4 sm:$0xff]
        %v3407 = vld [vmem:[#allocation5 + $0x8] sm:$0x1]
        %v3408 = vsel %vm3221, %v3405, %v3407
        %3409 = vst [vmem:[#allocation5 + $0x8] sm:$0x1] %v3408
        %3410 = vst [vmem:[#allocation1] sm:$0xff] %v3384
        %s3411 = scalar_lea.vmem [#allocation1], 1
        %v3412 = vld [vmem:[%s3411] ss:$4 sm:$0xff]
        %v3413 = vshrl.u32 %v3412, 16
        %v3415 = vrot.slane %v3413, 7
        %v3416 = vrot.slane %v3415, 1
        %3417 = vrot.lane.b32.xlu0 %v3416, 64
        %v3418 = vpop.permute.xlu0 %3417
        %v3420 = vld [vmem:[#allocation5 + $0x8] sm:$0x1]
        %v3421 = vsel %vm3238, %v3418, %v3420
        %3422 = vst [vmem:[#allocation5 + $0x8] sm:$0x1] %v3421
        %3423 = vst [vmem:[#allocation1] sm:$0xff] %v3384
        %s3424 = scalar_lea.vmem [#allocation1], 2
        %v3425 = vld [vmem:[%s3424] ss:$4 sm:$0xff]
        %v3427 = vld [vmem:[#allocation5 + $0x9] sm:$0x1]
        %v3428 = vsel %vm3221, %v3425, %v3427
        %3429 = vst [vmem:[#allocation5 + $0x9] sm:$0x1] %v3428
        %3430 = vst [vmem:[#allocation1] sm:$0xff] %v3384
        %s3431 = scalar_lea.vmem [#allocation1], 2
        %v3432 = vld [vmem:[%s3431] ss:$4 sm:$0xff]
        %v3433 = vshrl.u32 %v3432, 16
        %v3435 = vrot.slane %v3433, 7
        %v3436 = vrot.slane %v3435, 1
        %3437 = vrot.lane.b32.xlu0 %v3436, 64
        %v3438 = vpop.permute.xlu0 %3437
        %v3440 = vld [vmem:[#allocation5 + $0x9] sm:$0x1]
        %v3441 = vsel %vm3238, %v3438, %v3440
        %3442 = vst [vmem:[#allocation5 + $0x9] sm:$0x1] %v3441
        %3443 = vst [vmem:[#allocation1] sm:$0xff] %v3384
        %s3444 = scalar_lea.vmem [#allocation1], 3
        %v3445 = vld [vmem:[%s3444] ss:$4 sm:$0xff]
        %v3447 = vld [vmem:[#allocation5 + $0xa] sm:$0x1]
        %v3448 = vsel %vm3221, %v3445, %v3447
        %3449 = vst [vmem:[#allocation5 + $0xa] sm:$0x1] %v3448
        %s3450 = scalar_lea.vmem [#allocation4], 96
        %v3451 = vld [vmem:[%s3450] ss:$2 sm:$0xff]
        %s3452 = scalar_lea.vmem [#allocation4], 97
        %v3453 = vld [vmem:[%s3452] ss:$2 sm:$0xff]
        %s3454 = scalar_lea.vmem [#allocation4], 112
        %v3455 = vld [vmem:[%s3454] ss:$2 sm:$0xff]
        %s3456 = scalar_lea.vmem [#allocation4], 113
        %v3457 = vld [vmem:[%s3456] ss:$2 sm:$0xff]
        %v3458 = vmax.f32 %v3451, %v3453
        %v3459 = vmax.f32 %v3455, %v3457
        %v3460 = vmax.f32 %v3458, %v3459
        %v3461 = vpack.c.bf16 %v3460, %v3460
        %v3463 = vrot.slane %v3461, 3
        %v3466 = vsel %vm1448, %v3461, %v3463
        %3468 = vrot.lane.b32.xlu0 %v3466, 64
        %v3469 = vpop.permute.xlu0 %3468
        %v3471 = vld [vmem:[#allocation5 + $0xa] sm:$0x1]
        %v3472 = vsel %vm3238, %v3469, %v3471
        %3473 = vst [vmem:[#allocation5 + $0xa] sm:$0x1] %v3472
        %v3474 = vshrl.u32 %v3466, 16
        %v3476 = vrot.slane %v3474, 7
        %v3477 = vrot.slane %v3476, 1
        %v3479 = vld [vmem:[#allocation5 + $0xb] sm:$0x1]
        %v3480 = vsel %vm3221, %v3477, %v3479
        %3481 = vst [vmem:[#allocation5 + $0xb] sm:$0x1] %v3480
        %3482 = vst [vmem:[#allocation1] sm:$0xff] %v3461
        %s3483 = scalar_lea.vmem [#allocation1], 1
        %v3484 = vld [vmem:[%s3483] ss:$4 sm:$0xff]
        %3486 = vrot.lane.b32.xlu0 %v3484, 64
        %v3487 = vpop.permute.xlu0 %3486
        %v3489 = vld [vmem:[#allocation5 + $0xb] sm:$0x1]
        %v3490 = vsel %vm3238, %v3487, %v3489
        %3491 = vst [vmem:[#allocation5 + $0xb] sm:$0x1] %v3490
        %3492 = vst [vmem:[#allocation1] sm:$0xff] %v3461
        %s3493 = scalar_lea.vmem [#allocation1], 1
        %v3494 = vld [vmem:[%s3493] ss:$4 sm:$0xff]
        %v3495 = vshrl.u32 %v3494, 16
        %v3497 = vrot.slane %v3495, 7
        %v3498 = vrot.slane %v3497, 1
        %v3500 = vld [vmem:[#allocation5 + $0xc] sm:$0x1]
        %v3501 = vsel %vm3221, %v3498, %v3500
        %3502 = vst [vmem:[#allocation5 + $0xc] sm:$0x1] %v3501
        %3503 = vst [vmem:[#allocation1] sm:$0xff] %v3461
        %s3504 = scalar_lea.vmem [#allocation1], 2
        %v3505 = vld [vmem:[%s3504] ss:$4 sm:$0xff]
        %3507 = vrot.lane.b32.xlu0 %v3505, 64
        %v3508 = vpop.permute.xlu0 %3507
        %v3510 = vld [vmem:[#allocation5 + $0xc] sm:$0x1]
        %v3511 = vsel %vm3238, %v3508, %v3510
        %3512 = vst [vmem:[#allocation5 + $0xc] sm:$0x1] %v3511
        %3513 = vst [vmem:[#allocation1] sm:$0xff] %v3461
        %s3514 = scalar_lea.vmem [#allocation1], 2
        %v3515 = vld [vmem:[%s3514] ss:$4 sm:$0xff]
        %v3516 = vshrl.u32 %v3515, 16
        %v3518 = vrot.slane %v3516, 7
        %v3519 = vrot.slane %v3518, 1
        %v3521 = vld [vmem:[#allocation5 + $0xd] sm:$0x1]
        %v3522 = vsel %vm3221, %v3519, %v3521
        %3523 = vst [vmem:[#allocation5 + $0xd] sm:$0x1] %v3522
        %3524 = vst [vmem:[#allocation1] sm:$0xff] %v3461
        %s3525 = scalar_lea.vmem [#allocation1], 3
        %v3526 = vld [vmem:[%s3525] ss:$4 sm:$0xff]
        %3528 = vrot.lane.b32.xlu0 %v3526, 64
        %v3529 = vpop.permute.xlu0 %3528
        %v3531 = vld [vmem:[#allocation5 + $0xd] sm:$0x1]
        %v3532 = vsel %vm3238, %v3529, %v3531
        %3533 = vst [vmem:[#allocation5 + $0xd] sm:$0x1] %v3532
        %s3534 = scalar_lea.vmem [#allocation4], 128
        %v3535 = vld [vmem:[%s3534] ss:$2 sm:$0xff]
        %s3536 = scalar_lea.vmem [#allocation4], 129
        %v3537 = vld [vmem:[%s3536] ss:$2 sm:$0xff]
        %s3538 = scalar_lea.vmem [#allocation4], 144
        %v3539 = vld [vmem:[%s3538] ss:$2 sm:$0xff]
        %s3540 = scalar_lea.vmem [#allocation4], 145
        %v3541 = vld [vmem:[%s3540] ss:$2 sm:$0xff]
        %v3542 = vmax.f32 %v3535, %v3537
        %v3543 = vmax.f32 %v3539, %v3541
        %v3544 = vmax.f32 %v3542, %v3543
        %v3545 = vpack.c.bf16 %v3544, %v3544
        %v3546 = vld [vmem:[#allocation5 + $0xe] sm:$0x1]
        %v3547 = vsel %vm3221, %v3545, %v3546
        %3548 = vst [vmem:[#allocation5 + $0xe] sm:$0x1] %v3547
        %v3550 = vrot.slane %v3545, 3
        %v3553 = vsel %vm1448, %v3545, %v3550
        %v3554 = vshrl.u32 %v3553, 16
        %v3556 = vrot.slane %v3554, 7
        %v3557 = vrot.slane %v3556, 1
        %3558 = vrot.lane.b32.xlu0 %v3557, 64
        %v3559 = vpop.permute.xlu0 %3558
        %v3561 = vld [vmem:[#allocation5 + $0xe] sm:$0x1]
        %v3562 = vsel %vm3238, %v3559, %v3561
        %3563 = vst [vmem:[#allocation5 + $0xe] sm:$0x1] %v3562
        %3564 = vst [vmem:[#allocation1] sm:$0xff] %v3545
        %s3565 = scalar_lea.vmem [#allocation1], 1
        %v3566 = vld [vmem:[%s3565] ss:$4 sm:$0xff]
        %v3568 = vld [vmem:[#allocation5 + $0xf] sm:$0x1]
        %v3569 = vsel %vm3221, %v3566, %v3568
        %3570 = vst [vmem:[#allocation5 + $0xf] sm:$0x1] %v3569
        %3571 = vst [vmem:[#allocation1] sm:$0xff] %v3545
        %s3572 = scalar_lea.vmem [#allocation1], 1
        %v3573 = vld [vmem:[%s3572] ss:$4 sm:$0xff]
        %v3574 = vshrl.u32 %v3573, 16
        %v3576 = vrot.slane %v3574, 7
        %v3577 = vrot.slane %v3576, 1
        %3578 = vrot.lane.b32.xlu0 %v3577, 64
        %v3579 = vpop.permute.xlu0 %3578
        %v3581 = vld [vmem:[#allocation5 + $0xf] sm:$0x1]
        %v3582 = vsel %vm3238, %v3579, %v3581
        %3583 = vst [vmem:[#allocation5 + $0xf] sm:$0x1] %v3582
        %3584 = vst [vmem:[#allocation1] sm:$0xff] %v3545
        %s3585 = scalar_lea.vmem [#allocation1], 2
        %v3586 = vld [vmem:[%s3585] ss:$4 sm:$0xff]
        %v3588 = vld [vmem:[#allocation5 + $0x10] sm:$0x1]
        %v3589 = vsel %vm3221, %v3586, %v3588
        %3590 = vst [vmem:[#allocation5 + $0x10] sm:$0x1] %v3589
        %3591 = vst [vmem:[#allocation1] sm:$0xff] %v3545
        %s3592 = scalar_lea.vmem [#allocation1], 2
        %v3593 = vld [vmem:[%s3592] ss:$4 sm:$0xff]
        %v3594 = vshrl.u32 %v3593, 16
        %v3596 = vrot.slane %v3594, 7
        %v3597 = vrot.slane %v3596, 1
        %3598 = vrot.lane.b32.xlu0 %v3597, 64
        %v3599 = vpop.permute.xlu0 %3598
        %v3601 = vld [vmem:[#allocation5 + $0x10] sm:$0x1]
        %v3602 = vsel %vm3238, %v3599, %v3601
        %3603 = vst [vmem:[#allocation5 + $0x10] sm:$0x1] %v3602
        %3604 = vst [vmem:[#allocation1] sm:$0xff] %v3545
        %s3605 = scalar_lea.vmem [#allocation1], 3
        %v3606 = vld [vmem:[%s3605] ss:$4 sm:$0xff]
        %v3608 = vld [vmem:[#allocation5 + $0x11] sm:$0x1]
        %v3609 = vsel %vm3221, %v3606, %v3608
        %3610 = vst [vmem:[#allocation5 + $0x11] sm:$0x1] %v3609
        %s3611 = scalar_lea.vmem [#allocation4], 160
        %v3612 = vld [vmem:[%s3611] ss:$2 sm:$0xff]
        %s3613 = scalar_lea.vmem [#allocation4], 161
        %v3614 = vld [vmem:[%s3613] ss:$2 sm:$0xff]
        %s3615 = scalar_lea.vmem [#allocation4], 176
        %v3616 = vld [vmem:[%s3615] ss:$2 sm:$0xff]
        %s3617 = scalar_lea.vmem [#allocation4], 177
        %v3618 = vld [vmem:[%s3617] ss:$2 sm:$0xff]
        %v3619 = vmax.f32 %v3612, %v3614
        %v3620 = vmax.f32 %v3616, %v3618
        %v3621 = vmax.f32 %v3619, %v3620
        %v3622 = vpack.c.bf16 %v3621, %v3621
        %v3624 = vrot.slane %v3622, 3
        %v3627 = vsel %vm1448, %v3622, %v3624
        %3629 = vrot.lane.b32.xlu0 %v3627, 64
        %v3630 = vpop.permute.xlu0 %3629
        %v3632 = vld [vmem:[#allocation5 + $0x11] sm:$0x1]
        %v3633 = vsel %vm3238, %v3630, %v3632
        %3634 = vst [vmem:[#allocation5 + $0x11] sm:$0x1] %v3633
        %v3635 = vshrl.u32 %v3627, 16
        %v3637 = vrot.slane %v3635, 7
        %v3638 = vrot.slane %v3637, 1
        %v3640 = vld [vmem:[#allocation5 + $0x12] sm:$0x1]
        %v3641 = vsel %vm3221, %v3638, %v3640
        %3642 = vst [vmem:[#allocation5 + $0x12] sm:$0x1] %v3641
        %3643 = vst [vmem:[#allocation1] sm:$0xff] %v3622
        %s3644 = scalar_lea.vmem [#allocation1], 1
        %v3645 = vld [vmem:[%s3644] ss:$4 sm:$0xff]
        %3647 = vrot.lane.b32.xlu0 %v3645, 64
        %v3648 = vpop.permute.xlu0 %3647
        %v3650 = vld [vmem:[#allocation5 + $0x12] sm:$0x1]
        %v3651 = vsel %vm3238, %v3648, %v3650
        %3652 = vst [vmem:[#allocation5 + $0x12] sm:$0x1] %v3651
        %3653 = vst [vmem:[#allocation1] sm:$0xff] %v3622
        %s3654 = scalar_lea.vmem [#allocation1], 1
        %v3655 = vld [vmem:[%s3654] ss:$4 sm:$0xff]
        %v3656 = vshrl.u32 %v3655, 16
        %v3658 = vrot.slane %v3656, 7
        %v3659 = vrot.slane %v3658, 1
        %v3661 = vld [vmem:[#allocation5 + $0x13] sm:$0x1]
        %v3662 = vsel %vm3221, %v3659, %v3661
        %3663 = vst [vmem:[#allocation5 + $0x13] sm:$0x1] %v3662
        %3664 = vst [vmem:[#allocation1] sm:$0xff] %v3622
        %s3665 = scalar_lea.vmem [#allocation1], 2
        %v3666 = vld [vmem:[%s3665] ss:$4 sm:$0xff]
        %3668 = vrot.lane.b32.xlu0 %v3666, 64
        %v3669 = vpop.permute.xlu0 %3668
        %v3671 = vld [vmem:[#allocation5 + $0x13] sm:$0x1]
        %v3672 = vsel %vm3238, %v3669, %v3671
        %3673 = vst [vmem:[#allocation5 + $0x13] sm:$0x1] %v3672
        %3674 = vst [vmem:[#allocation1] sm:$0xff] %v3622
        %s3675 = scalar_lea.vmem [#allocation1], 2
        %v3676 = vld [vmem:[%s3675] ss:$4 sm:$0xff]
        %v3677 = vshrl.u32 %v3676, 16
        %v3679 = vrot.slane %v3677, 7
        %v3680 = vrot.slane %v3679, 1
        %v3682 = vld [vmem:[#allocation5 + $0x14] sm:$0x1]
        %v3683 = vsel %vm3221, %v3680, %v3682
        %3684 = vst [vmem:[#allocation5 + $0x14] sm:$0x1] %v3683
        %3685 = vst [vmem:[#allocation1] sm:$0xff] %v3622
        %s3686 = scalar_lea.vmem [#allocation1], 3
        %v3687 = vld [vmem:[%s3686] ss:$4 sm:$0xff]
        %3689 = vrot.lane.b32.xlu0 %v3687, 64
        %v3690 = vpop.permute.xlu0 %3689
        %v3692 = vld [vmem:[#allocation5 + $0x14] sm:$0x1]
        %v3693 = vsel %vm3238, %v3690, %v3692
        %3694 = vst [vmem:[#allocation5 + $0x14] sm:$0x1] %v3693
        %s3695 = scalar_lea.vmem [#allocation4], 192
        %v3696 = vld [vmem:[%s3695] ss:$2 sm:$0xff]
        %s3697 = scalar_lea.vmem [#allocation4], 193
        %v3698 = vld [vmem:[%s3697] ss:$2 sm:$0xff]
        %s3699 = scalar_lea.vmem [#allocation4], 208
        %v3700 = vld [vmem:[%s3699] ss:$2 sm:$0xff]
        %s3701 = scalar_lea.vmem [#allocation4], 209
        %v3702 = vld [vmem:[%s3701] ss:$2 sm:$0xff]
        %v3703 = vmax.f32 %v3696, %v3698
        %v3704 = vmax.f32 %v3700, %v3702
        %v3705 = vmax.f32 %v3703, %v3704
        %v3706 = vpack.c.bf16 %v3705, %v3705
        %v3707 = vld [vmem:[#allocation5 + $0x15] sm:$0x1]
        %v3708 = vsel %vm3221, %v3706, %v3707
        %3709 = vst [vmem:[#allocation5 + $0x15] sm:$0x1] %v3708
        %v3711 = vrot.slane %v3706, 3
        %v3714 = vsel %vm1448, %v3706, %v3711
        %v3715 = vshrl.u32 %v3714, 16
        %v3717 = vrot.slane %v3715, 7
        %v3718 = vrot.slane %v3717, 1
        %3719 = vrot.lane.b32.xlu0 %v3718, 64
        %v3720 = vpop.permute.xlu0 %3719
        %v3722 = vld [vmem:[#allocation5 + $0x15] sm:$0x1]
        %v3723 = vsel %vm3238, %v3720, %v3722
        %3724 = vst [vmem:[#allocation5 + $0x15] sm:$0x1] %v3723
        %3725 = vst [vmem:[#allocation1] sm:$0xff] %v3706
        %s3726 = scalar_lea.vmem [#allocation1], 1
        %v3727 = vld [vmem:[%s3726] ss:$4 sm:$0xff]
        %v3729 = vld [vmem:[#allocation5 + $0x16] sm:$0x1]
        %v3730 = vsel %vm3221, %v3727, %v3729
        %3731 = vst [vmem:[#allocation5 + $0x16] sm:$0x1] %v3730
        %3732 = vst [vmem:[#allocation1] sm:$0xff] %v3706
        %s3733 = scalar_lea.vmem [#allocation1], 1
        %v3734 = vld [vmem:[%s3733] ss:$4 sm:$0xff]
        %v3735 = vshrl.u32 %v3734, 16
        %v3737 = vrot.slane %v3735, 7
        %v3738 = vrot.slane %v3737, 1
        %3739 = vrot.lane.b32.xlu0 %v3738, 64
        %v3740 = vpop.permute.xlu0 %3739
        %v3742 = vld [vmem:[#allocation5 + $0x16] sm:$0x1]
        %v3743 = vsel %vm3238, %v3740, %v3742
        %3744 = vst [vmem:[#allocation5 + $0x16] sm:$0x1] %v3743
        %3745 = vst [vmem:[#allocation1] sm:$0xff] %v3706
        %s3746 = scalar_lea.vmem [#allocation1], 2
        %v3747 = vld [vmem:[%s3746] ss:$4 sm:$0xff]
        %v3749 = vld [vmem:[#allocation5 + $0x17] sm:$0x1]
        %v3750 = vsel %vm3221, %v3747, %v3749
        %3751 = vst [vmem:[#allocation5 + $0x17] sm:$0x1] %v3750
        %3752 = vst [vmem:[#allocation1] sm:$0xff] %v3706
        %s3753 = scalar_lea.vmem [#allocation1], 2
        %v3754 = vld [vmem:[%s3753] ss:$4 sm:$0xff]
        %v3755 = vshrl.u32 %v3754, 16
        %v3757 = vrot.slane %v3755, 7
        %v3758 = vrot.slane %v3757, 1
        %3759 = vrot.lane.b32.xlu0 %v3758, 64
        %v3760 = vpop.permute.xlu0 %3759
        %v3762 = vld [vmem:[#allocation5 + $0x17] sm:$0x1]
        %v3763 = vsel %vm3238, %v3760, %v3762
        %3764 = vst [vmem:[#allocation5 + $0x17] sm:$0x1] %v3763
        %3765 = vst [vmem:[#allocation1] sm:$0xff] %v3706
        %s3766 = scalar_lea.vmem [#allocation1], 3
        %v3767 = vld [vmem:[%s3766] ss:$4 sm:$0xff]
        %v3769 = vld [vmem:[#allocation5 + $0x18] sm:$0x1]
        %v3770 = vsel %vm3221, %v3767, %v3769
        %3771 = vst [vmem:[#allocation5 + $0x18] sm:$0x1] %v3770
        %v3772 = vld [vmem:[#allocation5] sm:$0xff]
        %v3773 = vld [vmem:[#allocation5 + $0x8] sm:$0xff]
        %v3774 = vld [vmem:[#allocation5 + $0x10] sm:$0xff]
        %v3775 = vld [vmem:[#allocation5 + $0x18] sm:$0x1]
        %v3776 = vld [vmem:[%s5] sm:$0xf]
        %v3777 = vld [vmem:[%s5 + $0x4] sm:$0xf]
        %v3778 = vld [vmem:[%s5 + $0x8] sm:$0xf]
        %v3779 = vld [vmem:[%s5 + $0xc] sm:$0xf]
        %v3780 = vld [vmem:[%s5 + $0x10] sm:$0xf]
        %v3781 = vld [vmem:[%s5 + $0x14] sm:$0xf]
        %v3782 = vld [vmem:[%s5 + $0x18] sm:$0xf]
        %v3783 = vld [vmem:[%s5 + $0x1c] sm:$0xf]
        %v3784 = vld [vmem:[%s5 + $0x20] sm:$0xf]
        %v3785 = vld [vmem:[%s5 + $0x24] sm:$0xf]
        %v3786 = vld [vmem:[%s5 + $0x28] sm:$0xf]
        %v3787 = vld [vmem:[%s5 + $0x2c] sm:$0xf]
        %v3788 = vld [vmem:[%s5 + $0x30] sm:$0xf]
        %v3789 = vld [vmem:[%s5 + $0x34] sm:$0xf]
        %v3790 = vld [vmem:[%s5 + $0x38] sm:$0xf]
        %v3791 = vld [vmem:[%s5 + $0x3c] sm:$0xf]
        %v3792 = vld [vmem:[%s5 + $0x40] sm:$0xf]
        %v3793 = vld [vmem:[%s5 + $0x44] sm:$0xf]
        %v3794 = vld [vmem:[%s5 + $0x48] sm:$0xf]
        %v3795 = vld [vmem:[%s5 + $0x4c] sm:$0xf]
        %v3796 = vld [vmem:[%s5 + $0x50] sm:$0xf]
        %v3797 = vld [vmem:[%s5 + $0x54] sm:$0xf]
        %v3798 = vld [vmem:[%s5 + $0x58] sm:$0xf]
        %v3799 = vld [vmem:[%s5 + $0x5c] sm:$0xf]
        %v3800 = vld [vmem:[%s5 + $0x60] sm:$0xf]
        %v3801 = vld [vmem:[%s5 + $0x64] sm:$0xf]
        %v3802 = vld [vmem:[%s5 + $0x68] sm:$0xf]
        %v3803 = vld [vmem:[%s5 + $0x6c] sm:$0xf]
        %v3804 = vld [vmem:[%s5 + $0x70] sm:$0xf]
        %v3805 = vld [vmem:[%s5 + $0x74] sm:$0xf]
        %v3806 = vld [vmem:[%s5 + $0x78] sm:$0xf]
        %v3807 = vld [vmem:[%s5 + $0x7c] sm:$0xf]
        %v3808 = vld [vmem:[%s5 + $0x80] sm:$0xf]
        %v3809 = vld [vmem:[%s5 + $0x84] sm:$0xf]
        %v3810 = vld [vmem:[%s5 + $0x88] sm:$0xf]
        %v3811 = vld [vmem:[%s5 + $0x8c] sm:$0xf]
        %v3812 = vld [vmem:[%s5 + $0x90] sm:$0xf]
        %v3813 = vld [vmem:[%s5 + $0x94] sm:$0xf]
        %v3814 = vld [vmem:[%s5 + $0x98] sm:$0xf]
        %v3815 = vld [vmem:[%s5 + $0x9c] sm:$0xf]
        %v3816 = vld [vmem:[%s5 + $0xa0] sm:$0xf]
        %v3817 = vld [vmem:[%s5 + $0xa4] sm:$0xf]
        %v3818 = vld [vmem:[%s5 + $0xa8] sm:$0xf]
        %v3819 = vld [vmem:[%s5 + $0xac] sm:$0xf]
        %v3820 = vld [vmem:[%s5 + $0xb0] sm:$0xf]
        %v3821 = vld [vmem:[%s5 + $0xb4] sm:$0xf]
        %v3822 = vld [vmem:[%s5 + $0xb8] sm:$0xf]
        %v3823 = vld [vmem:[%s5 + $0xbc] sm:$0xf]
        %v3824 = vld [vmem:[%s5 + $0xc0] sm:$0xf]
        %v3825 = vld [vmem:[%s5 + $0xc4] sm:$0xf]
        %v3826 = vld [vmem:[%s5 + $0xc8] sm:$0xf]
        %v3827 = vld [vmem:[%s5 + $0xcc] sm:$0xf]
        %v3828 = vld [vmem:[%s5 + $0xd0] sm:$0xf]
        %v3829 = vld [vmem:[%s5 + $0xd4] sm:$0xf]
        %v3830 = vld [vmem:[%s5 + $0xd8] sm:$0xf]
        %v3831 = vld [vmem:[%s5 + $0xdc] sm:$0xf]
        %v3832 = vld [vmem:[%s5 + $0xe0] sm:$0xf]
        %v3833 = vld [vmem:[%s5 + $0xe4] sm:$0xf]
        %v3834 = vld [vmem:[%s5 + $0xe8] sm:$0xf]
        %v3835 = vld [vmem:[%s5 + $0xec] sm:$0xf]
        %v3836 = vld [vmem:[%s5 + $0xf0] sm:$0xf]
        %v3837 = vld [vmem:[%s5 + $0xf4] sm:$0xf]
        %v3838 = vld [vmem:[%s5 + $0xf8] sm:$0xf]
        %v3839 = vld [vmem:[%s5 + $0xfc] sm:$0xf]
        %v3840 = vld [vmem:[%s5 + $0x100] sm:$0xf]
        %v3841 = vld [vmem:[%s5 + $0x104] sm:$0xf]
        %v3842 = vld [vmem:[%s5 + $0x108] sm:$0xf]
        %v3843 = vld [vmem:[%s5 + $0x10c] sm:$0xf]
        %v3844 = vld [vmem:[%s5 + $0x110] sm:$0xf]
        %v3845 = vld [vmem:[%s5 + $0x114] sm:$0xf]
        %v3846 = vld [vmem:[%s5 + $0x118] sm:$0xf]
        %v3847 = vld [vmem:[%s5 + $0x11c] sm:$0xf]
        %v3848 = vld [vmem:[%s5 + $0x120] sm:$0xf]
        %v3849 = vld [vmem:[%s5 + $0x124] sm:$0xf]
        %v3850 = vld [vmem:[%s5 + $0x128] sm:$0xf]
        %v3851 = vld [vmem:[%s5 + $0x12c] sm:$0xf]
        %v3852 = vld [vmem:[%s5 + $0x130] sm:$0xf]
        %v3853 = vld [vmem:[%s5 + $0x134] sm:$0xf]
        %v3854 = vld [vmem:[%s5 + $0x138] sm:$0xf]
        %v3855 = vld [vmem:[%s5 + $0x13c] sm:$0xf]
        %v3856 = vld [vmem:[%s5 + $0x140] sm:$0xf]
        %v3857 = vld [vmem:[%s5 + $0x144] sm:$0xf]
        %v3858 = vld [vmem:[%s5 + $0x148] sm:$0xf]
        %v3859 = vld [vmem:[%s5 + $0x14c] sm:$0xf]
        %v3860 = vld [vmem:[%s5 + $0x150] sm:$0xf]
        %v3861 = vld [vmem:[%s5 + $0x154] sm:$0xf]
        %v3862 = vld [vmem:[%s5 + $0x158] sm:$0xf]
        %v3863 = vld [vmem:[%s5 + $0x15c] sm:$0xf]
        %v3864 = vld [vmem:[%s5 + $0x160] sm:$0xf]
        %v3865 = vld [vmem:[%s5 + $0x164] sm:$0xf]
        %v3866 = vld [vmem:[%s5 + $0x168] sm:$0xf]
        %v3867 = vld [vmem:[%s5 + $0x16c] sm:$0xf]
        %v3868 = vld [vmem:[%s5 + $0x170] sm:$0xf]
        %v3869 = vld [vmem:[%s5 + $0x174] sm:$0xf]
        %v3870 = vld [vmem:[%s5 + $0x178] sm:$0xf]
        %v3871 = vld [vmem:[%s5 + $0x17c] sm:$0xf]
        %v3872 = vld [vmem:[%s5 + $0x180] sm:$0xf]
        %v3873 = vld [vmem:[%s5 + $0x184] sm:$0xf]
        %v3874 = vld [vmem:[%s5 + $0x188] sm:$0xf]
        %v3875 = vld [vmem:[%s5 + $0x18c] sm:$0xf]
        %v3876 = vld [vmem:[%s5 + $0x190] sm:$0xf]
        %v3877 = vld [vmem:[%s5 + $0x194] sm:$0xf]
        %v3878 = vld [vmem:[%s5 + $0x198] sm:$0xf]
        %v3879 = vld [vmem:[%s5 + $0x19c] sm:$0xf]
        %v3880 = vld [vmem:[%s5 + $0x1a0] sm:$0xf]
        %v3881 = vld [vmem:[%s5 + $0x1a4] sm:$0xf]
        %v3882 = vld [vmem:[%s5 + $0x1a8] sm:$0xf]
        %v3883 = vld [vmem:[%s5 + $0x1ac] sm:$0xf]
        %v3884 = vld [vmem:[%s5 + $0x1b0] sm:$0xf]
        %v3885 = vld [vmem:[%s5 + $0x1b4] sm:$0xf]
        %v3886 = vld [vmem:[%s5 + $0x1b8] sm:$0xf]
        %v3887 = vld [vmem:[%s5 + $0x1bc] sm:$0xf]
        %v3888 = vld [vmem:[%s5 + $0x1c0] sm:$0xf]
        %v3889 = vld [vmem:[%s5 + $0x1c4] sm:$0xf]
        %v3890 = vld [vmem:[%s5 + $0x1c8] sm:$0xf]
        %v3891 = vld [vmem:[%s5 + $0x1cc] sm:$0xf]
        %v3892 = vld [vmem:[%s5 + $0x1d0] sm:$0xf]
        %v3893 = vld [vmem:[%s5 + $0x1d4] sm:$0xf]
        %v3894 = vld [vmem:[%s5 + $0x1d8] sm:$0xf]
        %v3895 = vld [vmem:[%s5 + $0x1dc] sm:$0xf]
        %v3896 = vld [vmem:[%s5 + $0x1e0] sm:$0xf]
        %v3897 = vld [vmem:[%s5 + $0x1e4] sm:$0xf]
        %v3898 = vld [vmem:[%s5 + $0x1e8] sm:$0xf]
        %v3899 = vld [vmem:[%s5 + $0x1ec] sm:$0xf]
        %v3900 = vld [vmem:[%s5 + $0x1f0] sm:$0xf]
        %v3901 = vld [vmem:[%s5 + $0x1f4] sm:$0xf]
        %v3902 = vld [vmem:[%s5 + $0x1f8] sm:$0xf]
        %v3903 = vld [vmem:[%s5 + $0x1fc] sm:$0xf]
        %v3904 = vld [vmem:[%s5 + $0x200] sm:$0xf]
        %v3905 = vld [vmem:[%s5 + $0x204] sm:$0xf]
        %v3906 = vld [vmem:[%s5 + $0x208] sm:$0xf]
        %v3907 = vld [vmem:[%s5 + $0x20c] sm:$0xf]
        %v3908 = vld [vmem:[%s5 + $0x210] sm:$0xf]
        %v3909 = vld [vmem:[%s5 + $0x214] sm:$0xf]
        %v3910 = vld [vmem:[%s5 + $0x218] sm:$0xf]
        %v3911 = vld [vmem:[%s5 + $0x21c] sm:$0xf]
        %v3912 = vld [vmem:[%s5 + $0x220] sm:$0xf]
        %v3913 = vld [vmem:[%s5 + $0x224] sm:$0xf]
        %v3914 = vld [vmem:[%s5 + $0x228] sm:$0xf]
        %v3915 = vld [vmem:[%s5 + $0x22c] sm:$0xf]
        %v3916 = vld [vmem:[%s5 + $0x230] sm:$0xf]
        %v3917 = vld [vmem:[%s5 + $0x234] sm:$0xf]
        %v3918 = vld [vmem:[%s5 + $0x238] sm:$0xf]
        %v3919 = vld [vmem:[%s5 + $0x23c] sm:$0xf]
        %v3920 = vld [vmem:[%s5 + $0x240] sm:$0xf]
        %v3921 = vld [vmem:[%s5 + $0x244] sm:$0xf]
        %v3922 = vld [vmem:[%s5 + $0x248] sm:$0xf]
        %v3923 = vld [vmem:[%s5 + $0x24c] sm:$0xf]
        %v3924 = vld [vmem:[%s5 + $0x250] sm:$0xf]
        %v3925 = vld [vmem:[%s5 + $0x254] sm:$0xf]
        %v3926 = vld [vmem:[%s5 + $0x258] sm:$0xf]
        %v3927 = vld [vmem:[%s5 + $0x25c] sm:$0xf]
        %v3928 = vld [vmem:[%s5 + $0x260] sm:$0xf]
        %v3929 = vld [vmem:[%s5 + $0x264] sm:$0xf]
        %v3930 = vld [vmem:[%s5 + $0x268] sm:$0xf]
        %v3931 = vld [vmem:[%s5 + $0x26c] sm:$0xf]
        %v3932 = vld [vmem:[%s5 + $0x270] sm:$0xf]
        %v3933 = vld [vmem:[%s5 + $0x274] sm:$0xf]
        %v3934 = vld [vmem:[%s5 + $0x278] sm:$0xf]
        %v3935 = vld [vmem:[%s5 + $0x27c] sm:$0xf]
        %v3936 = vld [vmem:[%s5 + $0x280] sm:$0xf]
        %v3937 = vld [vmem:[%s5 + $0x284] sm:$0xf]
        %v3938 = vld [vmem:[%s5 + $0x288] sm:$0xf]
        %v3939 = vld [vmem:[%s5 + $0x28c] sm:$0xf]
        %v3940 = vld [vmem:[%s5 + $0x290] sm:$0xf]
        %v3941 = vld [vmem:[%s5 + $0x294] sm:$0xf]
        %v3942 = vld [vmem:[%s5 + $0x298] sm:$0xf]
        %v3943 = vld [vmem:[%s5 + $0x29c] sm:$0xf]
        %v3944 = vld [vmem:[%s5 + $0x2a0] sm:$0xf]
        %v3945 = vld [vmem:[%s5 + $0x2a4] sm:$0xf]
        %v3946 = vld [vmem:[%s5 + $0x2a8] sm:$0xf]
        %v3947 = vld [vmem:[%s5 + $0x2ac] sm:$0xf]
        %v3948 = vld [vmem:[%s5 + $0x2b0] sm:$0xf]
        %v3949 = vld [vmem:[%s5 + $0x2b4] sm:$0xf]
        %v3950 = vld [vmem:[%s5 + $0x2b8] sm:$0xf]
        %v3951 = vld [vmem:[%s5 + $0x2bc] sm:$0xf]
        %v3952 = vld [vmem:[%s5 + $0x2c0] sm:$0xf]
        %v3953 = vld [vmem:[%s5 + $0x2c4] sm:$0xf]
        %v3954 = vld [vmem:[%s5 + $0x2c8] sm:$0xf]
        %v3955 = vld [vmem:[%s5 + $0x2cc] sm:$0xf]
        %v3956 = vld [vmem:[%s5 + $0x2d0] sm:$0xf]
        %v3957 = vld [vmem:[%s5 + $0x2d4] sm:$0xf]
        %v3958 = vld [vmem:[%s5 + $0x2d8] sm:$0xf]
        %v3959 = vld [vmem:[%s5 + $0x2dc] sm:$0xf]
        %v3960 = vld [vmem:[%s5 + $0x2e0] sm:$0xf]
        %v3961 = vld [vmem:[%s5 + $0x2e4] sm:$0xf]
        %v3962 = vld [vmem:[%s5 + $0x2e8] sm:$0xf]
        %v3963 = vld [vmem:[%s5 + $0x2ec] sm:$0xf]
        %v3964 = vld [vmem:[%s5 + $0x2f0] sm:$0xf]
        %v3965 = vld [vmem:[%s5 + $0x2f4] sm:$0xf]
        %v3966 = vld [vmem:[%s5 + $0x2f8] sm:$0xf]
        %v3967 = vld [vmem:[%s5 + $0x2fc] sm:$0xf]
        %v3968 = vld [vmem:[%s5 + $0x300] sm:$0xf]
        %v3969 = vld [vmem:[%s5 + $0x304] sm:$0xf]
        %v3970 = vld [vmem:[%s5 + $0x308] sm:$0xf]
        %v3971 = vld [vmem:[%s5 + $0x30c] sm:$0xf]
        %v3972 = vld [vmem:[%s5 + $0x310] sm:$0xf]
        %v3973 = vld [vmem:[%s5 + $0x314] sm:$0xf]
        %v3974 = vld [vmem:[%s5 + $0x318] sm:$0xf]
        %v3975 = vld [vmem:[%s5 + $0x31c] sm:$0xf]
        %v3976 = vld [vmem:[%s5 + $0x320] sm:$0xf]
        %v3977 = vld [vmem:[%s5 + $0x324] sm:$0xf]
        %v3978 = vld [vmem:[%s5 + $0x328] sm:$0xf]
        %v3979 = vld [vmem:[%s5 + $0x32c] sm:$0xf]
        %v3980 = vld [vmem:[%s5 + $0x330] sm:$0xf]
        %v3981 = vld [vmem:[%s5 + $0x334] sm:$0xf]
        %v3982 = vld [vmem:[%s5 + $0x338] sm:$0xf]
        %v3983 = vld [vmem:[%s5 + $0x33c] sm:$0xf]
        %v3984 = vld [vmem:[%s5 + $0x340] sm:$0xf]
        %v3985 = vld [vmem:[%s5 + $0x344] sm:$0xf]
        %v3986 = vld [vmem:[%s5 + $0x348] sm:$0xf]
        %v3987 = vld [vmem:[%s5 + $0x34c] sm:$0xf]
        %v3988 = vld [vmem:[%s5 + $0x350] sm:$0xf]
        %v3989 = vld [vmem:[%s5 + $0x354] sm:$0xf]
        %v3990 = vld [vmem:[%s5 + $0x358] sm:$0xf]
        %v3991 = vld [vmem:[%s5 + $0x35c] sm:$0xf]
        %v3992 = vld [vmem:[%s5 + $0x360] sm:$0xf]
        %v3993 = vld [vmem:[%s5 + $0x364] sm:$0xf]
        %v3994 = vld [vmem:[%s5 + $0x368] sm:$0xf]
        %v3995 = vld [vmem:[%s5 + $0x36c] sm:$0xf]
        %v3996 = vld [vmem:[%s5 + $0x370] sm:$0xf]
        %v3997 = vld [vmem:[%s5 + $0x374] sm:$0xf]
        %v3998 = vld [vmem:[%s5 + $0x378] sm:$0xf]
        %v3999 = vld [vmem:[%s5 + $0x37c] sm:$0xf]
        %v4000 = vld [vmem:[%s5 + $0x380] sm:$0xf]
        %v4001 = vld [vmem:[%s5 + $0x384] sm:$0xf]
        %v4002 = vld [vmem:[%s5 + $0x388] sm:$0xf]
        %v4003 = vld [vmem:[%s5 + $0x38c] sm:$0xf]
        %v4004 = vld [vmem:[%s5 + $0x390] sm:$0xf]
        %v4005 = vld [vmem:[%s5 + $0x394] sm:$0xf]
        %v4006 = vld [vmem:[%s5 + $0x398] sm:$0xf]
        %v4007 = vld [vmem:[%s5 + $0x39c] sm:$0xf]
        %v4008 = vld [vmem:[%s5 + $0x3a0] sm:$0xf]
        %v4009 = vld [vmem:[%s5 + $0x3a4] sm:$0xf]
        %v4010 = vld [vmem:[%s5 + $0x3a8] sm:$0xf]
        %v4011 = vld [vmem:[%s5 + $0x3ac] sm:$0xf]
        %v4012 = vld [vmem:[%s5 + $0x3b0] sm:$0xf]
        %v4013 = vld [vmem:[%s5 + $0x3b4] sm:$0xf]
        %v4014 = vld [vmem:[%s5 + $0x3b8] sm:$0xf]
        %v4015 = vld [vmem:[%s5 + $0x3bc] sm:$0xf]
        %v4016 = vld [vmem:[%s5 + $0x3c0] sm:$0xf]
        %v4017 = vld [vmem:[%s5 + $0x3c4] sm:$0xf]
        %v4018 = vld [vmem:[%s5 + $0x3c8] sm:$0xf]
        %v4019 = vld [vmem:[%s5 + $0x3cc] sm:$0xf]
        %v4020 = vld [vmem:[%s5 + $0x3d0] sm:$0xf]
        %v4021 = vld [vmem:[%s5 + $0x3d4] sm:$0xf]
        %v4022 = vld [vmem:[%s5 + $0x3d8] sm:$0xf]
        %v4023 = vld [vmem:[%s5 + $0x3dc] sm:$0xf]
        %v4024 = vld [vmem:[%s5 + $0x3e0] sm:$0xf]
        %v4025 = vld [vmem:[%s5 + $0x3e4] sm:$0xf]
        %v4026 = vld [vmem:[%s5 + $0x3e8] sm:$0xf]
        %v4027 = vld [vmem:[%s5 + $0x3ec] sm:$0xf]
        %v4028 = vld [vmem:[%s5 + $0x3f0] sm:$0xf]
        %v4029 = vld [vmem:[%s5 + $0x3f4] sm:$0xf]
        %v4030 = vld [vmem:[%s5 + $0x3f8] sm:$0xf]
        %v4031 = vld [vmem:[%s5 + $0x3fc] sm:$0xf]
        %v4032 = vld [vmem:[%s5 + $0x400] sm:$0xf]
        %v4033 = vld [vmem:[%s5 + $0x404] sm:$0xf]
        %v4034 = vld [vmem:[%s5 + $0x408] sm:$0xf]
        %v4035 = vld [vmem:[%s5 + $0x40c] sm:$0xf]
        %v4036 = vld [vmem:[%s5 + $0x410] sm:$0xf]
        %v4037 = vld [vmem:[%s5 + $0x414] sm:$0xf]
        %v4038 = vld [vmem:[%s5 + $0x418] sm:$0xf]
        %v4039 = vld [vmem:[%s5 + $0x41c] sm:$0xf]
        %v4040 = vld [vmem:[%s5 + $0x420] sm:$0xf]
        %v4041 = vld [vmem:[%s5 + $0x424] sm:$0xf]
        %v4042 = vld [vmem:[%s5 + $0x428] sm:$0xf]
        %v4043 = vld [vmem:[%s5 + $0x42c] sm:$0xf]
        %v4044 = vld [vmem:[%s5 + $0x430] sm:$0xf]
        %v4045 = vld [vmem:[%s5 + $0x434] sm:$0xf]
        %v4046 = vld [vmem:[%s5 + $0x438] sm:$0xf]
        %v4047 = vld [vmem:[%s5 + $0x43c] sm:$0xf]
        %v4048 = vld [vmem:[%s5 + $0x440] sm:$0xf]
        %v4049 = vld [vmem:[%s5 + $0x444] sm:$0xf]
        %v4050 = vld [vmem:[%s5 + $0x448] sm:$0xf]
        %v4051 = vld [vmem:[%s5 + $0x44c] sm:$0xf]
        %v4052 = vld [vmem:[%s5 + $0x450] sm:$0xf]
        %v4053 = vld [vmem:[%s5 + $0x454] sm:$0xf]
        %v4054 = vld [vmem:[%s5 + $0x458] sm:$0xf]
        %v4055 = vld [vmem:[%s5 + $0x45c] sm:$0xf]
        %v4056 = vld [vmem:[%s5 + $0x460] sm:$0xf]
        %v4057 = vld [vmem:[%s5 + $0x464] sm:$0xf]
        %v4058 = vld [vmem:[%s5 + $0x468] sm:$0xf]
        %v4059 = vld [vmem:[%s5 + $0x46c] sm:$0xf]
        %v4060 = vld [vmem:[%s5 + $0x470] sm:$0xf]
        %v4061 = vld [vmem:[%s5 + $0x474] sm:$0xf]
        %v4062 = vld [vmem:[%s5 + $0x478] sm:$0xf]
        %v4063 = vld [vmem:[%s5 + $0x47c] sm:$0xf]
        %v4064 = vld [vmem:[%s5 + $0x480] sm:$0xf]
        %v4065 = vld [vmem:[%s5 + $0x484] sm:$0xf]
        %v4066 = vld [vmem:[%s5 + $0x488] sm:$0xf]
        %v4067 = vld [vmem:[%s5 + $0x48c] sm:$0xf]
        %v4068 = vld [vmem:[%s5 + $0x490] sm:$0xf]
        %v4069 = vld [vmem:[%s5 + $0x494] sm:$0xf]
        %v4070 = vld [vmem:[%s5 + $0x498] sm:$0xf]
        %v4071 = vld [vmem:[%s5 + $0x49c] sm:$0xf]
        %v4072 = vld [vmem:[%s5 + $0x4a0] sm:$0xf]
        %v4073 = vld [vmem:[%s5 + $0x4a4] sm:$0xf]
        %v4074 = vld [vmem:[%s5 + $0x4a8] sm:$0xf]
        %v4075 = vld [vmem:[%s5 + $0x4ac] sm:$0xf]
        %v4076 = vld [vmem:[%s5 + $0x4b0] sm:$0xf]
        %v4077 = vld [vmem:[%s5 + $0x4b4] sm:$0xf]
        %v4078 = vld [vmem:[%s5 + $0x4b8] sm:$0xf]
        %v4079 = vld [vmem:[%s5 + $0x4bc] sm:$0xf]
        %v4080 = vld [vmem:[%s5 + $0x4c0] sm:$0xf]
        %v4081 = vld [vmem:[%s5 + $0x4c4] sm:$0xf]
        %v4082 = vld [vmem:[%s5 + $0x4c8] sm:$0xf]
        %v4083 = vld [vmem:[%s5 + $0x4cc] sm:$0xf]
        %v4084 = vld [vmem:[%s5 + $0x4d0] sm:$0xf]
        %v4085 = vld [vmem:[%s5 + $0x4d4] sm:$0xf]
        %v4086 = vld [vmem:[%s5 + $0x4d8] sm:$0xf]
        %v4087 = vld [vmem:[%s5 + $0x4dc] sm:$0xf]
        %v4088 = vld [vmem:[%s5 + $0x4e0] sm:$0xf]
        %v4089 = vld [vmem:[%s5 + $0x4e4] sm:$0xf]
        %v4090 = vld [vmem:[%s5 + $0x4e8] sm:$0xf]
        %v4091 = vld [vmem:[%s5 + $0x4ec] sm:$0xf]
        %v4092 = vld [vmem:[%s5 + $0x4f0] sm:$0xf]
        %v4093 = vld [vmem:[%s5 + $0x4f4] sm:$0xf]
        %v4094 = vld [vmem:[%s5 + $0x4f8] sm:$0xf]
        %v4095 = vld [vmem:[%s5 + $0x4fc] sm:$0xf]
        %v4096 = vld [vmem:[%s5 + $0x500] sm:$0xf]
        %v4097 = vld [vmem:[%s5 + $0x504] sm:$0xf]
        %v4098 = vld [vmem:[%s5 + $0x508] sm:$0xf]
        %v4099 = vld [vmem:[%s5 + $0x50c] sm:$0xf]
        %v4100 = vld [vmem:[%s5 + $0x510] sm:$0xf]
        %v4101 = vld [vmem:[%s5 + $0x514] sm:$0xf]
        %v4102 = vld [vmem:[%s5 + $0x518] sm:$0xf]
        %v4103 = vld [vmem:[%s5 + $0x51c] sm:$0xf]
        %v4104 = vld [vmem:[%s5 + $0x520] sm:$0xf]
        %v4105 = vld [vmem:[%s5 + $0x524] sm:$0xf]
        %v4106 = vld [vmem:[%s5 + $0x528] sm:$0xf]
        %v4107 = vld [vmem:[%s5 + $0x52c] sm:$0xf]
        %v4108 = vld [vmem:[%s5 + $0x530] sm:$0xf]
        %v4109 = vld [vmem:[%s5 + $0x534] sm:$0xf]
        %v4110 = vld [vmem:[%s5 + $0x538] sm:$0xf]
        %v4111 = vld [vmem:[%s5 + $0x53c] sm:$0xf]
        %v4112 = vld [vmem:[%s5 + $0x540] sm:$0xf]
        %v4113 = vld [vmem:[%s5 + $0x544] sm:$0xf]
        %v4114 = vld [vmem:[%s5 + $0x548] sm:$0xf]
        %v4115 = vld [vmem:[%s5 + $0x54c] sm:$0xf]
        %v4116 = vld [vmem:[%s5 + $0x550] sm:$0xf]
        %v4117 = vld [vmem:[%s5 + $0x554] sm:$0xf]
        %v4118 = vld [vmem:[%s5 + $0x558] sm:$0xf]
        %v4119 = vld [vmem:[%s5 + $0x55c] sm:$0xf]
        %v4120 = vld [vmem:[%s5 + $0x560] sm:$0xf]
        %v4121 = vld [vmem:[%s5 + $0x564] sm:$0xf]
        %v4122 = vld [vmem:[%s5 + $0x568] sm:$0xf]
        %v4123 = vld [vmem:[%s5 + $0x56c] sm:$0xf]
        %v4124 = vld [vmem:[%s5 + $0x570] sm:$0xf]
        %v4125 = vld [vmem:[%s5 + $0x574] sm:$0xf]
        %v4126 = vld [vmem:[%s5 + $0x578] sm:$0xf]
        %v4127 = vld [vmem:[%s5 + $0x57c] sm:$0xf]
        %v4128 = vld [vmem:[%s5 + $0x580] sm:$0xf]
        %v4129 = vld [vmem:[%s5 + $0x584] sm:$0xf]
        %v4130 = vld [vmem:[%s5 + $0x588] sm:$0xf]
        %v4131 = vld [vmem:[%s5 + $0x58c] sm:$0xf]
        %v4132 = vld [vmem:[%s5 + $0x590] sm:$0xf]
        %v4133 = vld [vmem:[%s5 + $0x594] sm:$0xf]
        %v4134 = vld [vmem:[%s5 + $0x598] sm:$0xf]
        %v4135 = vld [vmem:[%s5 + $0x59c] sm:$0xf]
        %v4136 = vld [vmem:[%s5 + $0x5a0] sm:$0xf]
        %v4137 = vld [vmem:[%s5 + $0x5a4] sm:$0xf]
        %v4138 = vld [vmem:[%s5 + $0x5a8] sm:$0xf]
        %v4139 = vld [vmem:[%s5 + $0x5ac] sm:$0xf]
        %v4140 = vld [vmem:[%s5 + $0x5b0] sm:$0xf]
        %v4141 = vld [vmem:[%s5 + $0x5b4] sm:$0xf]
        %v4142 = vld [vmem:[%s5 + $0x5b8] sm:$0xf]
        %v4143 = vld [vmem:[%s5 + $0x5bc] sm:$0xf]
        %v4144 = vld [vmem:[%s5 + $0x5c0] sm:$0xf]
        %v4145 = vld [vmem:[%s5 + $0x5c4] sm:$0xf]
        %v4146 = vld [vmem:[%s5 + $0x5c8] sm:$0xf]
        %v4147 = vld [vmem:[%s5 + $0x5cc] sm:$0xf]
        %v4148 = vld [vmem:[%s5 + $0x5d0] sm:$0xf]
        %v4149 = vld [vmem:[%s5 + $0x5d4] sm:$0xf]
        %v4150 = vld [vmem:[%s5 + $0x5d8] sm:$0xf]
        %v4151 = vld [vmem:[%s5 + $0x5dc] sm:$0xf]
        %v4152 = vld [vmem:[%s5 + $0x5e0] sm:$0xf]
        %v4153 = vld [vmem:[%s5 + $0x5e4] sm:$0xf]
        %v4154 = vld [vmem:[%s5 + $0x5e8] sm:$0xf]
        %v4155 = vld [vmem:[%s5 + $0x5ec] sm:$0xf]
        %v4156 = vld [vmem:[%s5 + $0x5f0] sm:$0xf]
        %v4157 = vld [vmem:[%s5 + $0x5f4] sm:$0xf]
        %v4158 = vld [vmem:[%s5 + $0x5f8] sm:$0xf]
        %v4159 = vld [vmem:[%s5 + $0x5fc] sm:$0xf]
        %v4160 = vld [vmem:[%s5 + $0x600] sm:$0xf]
        %v4161 = vld [vmem:[%s5 + $0x604] sm:$0xf]
        %v4162 = vld [vmem:[%s5 + $0x608] sm:$0xf]
        %v4163 = vld [vmem:[%s5 + $0x60c] sm:$0xf]
        %v4164 = vld [vmem:[%s5 + $0x610] sm:$0xf]
        %v4165 = vld [vmem:[%s5 + $0x614] sm:$0xf]
        %v4166 = vld [vmem:[%s5 + $0x618] sm:$0xf]
        %v4167 = vld [vmem:[%s5 + $0x61c] sm:$0xf]
        %v4168 = vld [vmem:[%s6] sm:$0x1]
        %4170 = vst [vmem:[#allocation1] ss:$9 sm:$0xff] %v3772
        %v4171 = vld [vmem:[#allocation1] sm:$0xff]
        %v4172 = vld [vmem:[#allocation1 + $0x9] sm:$0xff]
        %v4173 = vld [vmem:[#allocation1 + $0x12] sm:$0xff]
        %v4174 = vld [vmem:[#allocation1 + $0x1b] sm:$0xff]
        %v4175 = vld [vmem:[#allocation1 + $0x24] sm:$0xff]
        %v4176 = vld [vmem:[#allocation1 + $0x2d] sm:$0xff]
        %v4177 = vld [vmem:[#allocation1 + $0x36] sm:$0xff]
        %v4178 = vld [vmem:[#allocation1 + $0x3f] sm:$0xff]
        %4180 = vst [vmem:[#allocation1] ss:$9 sm:$0xff] %v3773
        %v4181 = vld [vmem:[#allocation1] sm:$0xff]
        %v4182 = vld [vmem:[#allocation1 + $0x9] sm:$0xff]
        %v4183 = vld [vmem:[#allocation1 + $0x12] sm:$0xff]
        %v4184 = vld [vmem:[#allocation1 + $0x1b] sm:$0xff]
        %v4185 = vld [vmem:[#allocation1 + $0x24] sm:$0xff]
        %v4186 = vld [vmem:[#allocation1 + $0x2d] sm:$0xff]
        %v4187 = vld [vmem:[#allocation1 + $0x36] sm:$0xff]
        %v4188 = vld [vmem:[#allocation1 + $0x3f] sm:$0xff]
        %4190 = vst [vmem:[#allocation1] ss:$9 sm:$0xff] %v3774
        %v4191 = vld [vmem:[#allocation1] sm:$0xff]
        %v4192 = vld [vmem:[#allocation1 + $0x9] sm:$0xff]
        %v4193 = vld [vmem:[#allocation1 + $0x12] sm:$0xff]
        %v4194 = vld [vmem:[#allocation1 + $0x1b] sm:$0xff]
        %v4195 = vld [vmem:[#allocation1 + $0x24] sm:$0xff]
        %v4196 = vld [vmem:[#allocation1 + $0x2d] sm:$0xff]
        %v4197 = vld [vmem:[#allocation1 + $0x36] sm:$0xff]
        %v4198 = vld [vmem:[#allocation1 + $0x3f] sm:$0xff]
        %4200 = vst [vmem:[#allocation1] ss:$9 sm:$0xff] %v3775
        %v4201 = vld [vmem:[#allocation1] sm:$0xff]
        %v4618 = vunpack.c.l.b16 %v3776
        %v4619 = vunpack.c.l.b16 %v3777
        %v4620 = vunpack.c.l.b16 %v3778
        %v4621 = vunpack.c.l.b16 %v3779
        %v4622 = vunpack.c.l.b16 %v3780
        %v4623 = vunpack.c.l.b16 %v3781
        %v4624 = vunpack.c.l.b16 %v3782
        %v4625 = vunpack.c.l.b16 %v3783
        %v4626 = vunpack.c.l.b16 %v3784
        %v4627 = vunpack.c.l.b16 %v3785
        %v4628 = vunpack.c.l.b16 %v3786
        %v4629 = vunpack.c.l.b16 %v3787
        %v4630 = vunpack.c.l.b16 %v3788
        %v4631 = vunpack.c.l.b16 %v3789
        %v4632 = vunpack.c.l.b16 %v3790
        %v4633 = vunpack.c.l.b16 %v3791
        %v4634 = vunpack.c.l.b16 %v3792
        %v4635 = vunpack.c.l.b16 %v3793
        %v4636 = vunpack.c.l.b16 %v3794
        %v4637 = vunpack.c.l.b16 %v3795
        %v4638 = vunpack.c.l.b16 %v3796
        %v4639 = vunpack.c.l.b16 %v3797
        %v4640 = vunpack.c.l.b16 %v3798
        %v4641 = vunpack.c.l.b16 %v3799
        %v4642 = vunpack.c.l.b16 %v3800
        %v4643 = vunpack.c.l.b16 %v3801
        %v4644 = vunpack.c.l.b16 %v3802
        %v4645 = vunpack.c.l.b16 %v3803
        %v4646 = vunpack.c.l.b16 %v3804
        %v4647 = vunpack.c.l.b16 %v3805
        %v4648 = vunpack.c.l.b16 %v3806
        %v4649 = vunpack.c.l.b16 %v3807
        %v4650 = vunpack.c.l.b16 %v3808
        %v4651 = vunpack.c.l.b16 %v3809
        %v4652 = vunpack.c.l.b16 %v3810
        %v4653 = vunpack.c.l.b16 %v3811
        %v4654 = vunpack.c.l.b16 %v3812
        %v4655 = vunpack.c.l.b16 %v3813
        %v4656 = vunpack.c.l.b16 %v3814
        %v4657 = vunpack.c.l.b16 %v3815
        %v4658 = vunpack.c.l.b16 %v3816
        %v4659 = vunpack.c.l.b16 %v3817
        %v4660 = vunpack.c.l.b16 %v3818
        %v4661 = vunpack.c.l.b16 %v3819
        %v4662 = vunpack.c.l.b16 %v3820
        %v4663 = vunpack.c.l.b16 %v3821
        %v4664 = vunpack.c.l.b16 %v3822
        %v4665 = vunpack.c.l.b16 %v3823
        %v4666 = vunpack.c.l.b16 %v3824
        %v4667 = vunpack.c.l.b16 %v3825
        %v4668 = vunpack.c.l.b16 %v3826
        %v4669 = vunpack.c.l.b16 %v3827
        %v4670 = vunpack.c.l.b16 %v3828
        %v4671 = vunpack.c.l.b16 %v3829
        %v4672 = vunpack.c.l.b16 %v3830
        %v4673 = vunpack.c.l.b16 %v3831
        %v4674 = vunpack.c.l.b16 %v3832
        %v4675 = vunpack.c.l.b16 %v3833
        %v4676 = vunpack.c.l.b16 %v3834
        %v4677 = vunpack.c.l.b16 %v3835
        %v4678 = vunpack.c.l.b16 %v3836
        %v4679 = vunpack.c.l.b16 %v3837
        %v4680 = vunpack.c.l.b16 %v3838
        %v4681 = vunpack.c.l.b16 %v3839
        %v4682 = vunpack.c.l.b16 %v3840
        %v4683 = vunpack.c.l.b16 %v3841
        %v4684 = vunpack.c.l.b16 %v3842
        %v4685 = vunpack.c.l.b16 %v3843
        %v4686 = vunpack.c.l.b16 %v3844
        %v4687 = vunpack.c.l.b16 %v3845
        %v4688 = vunpack.c.l.b16 %v3846
        %v4689 = vunpack.c.l.b16 %v3847
        %v4690 = vunpack.c.l.b16 %v3848
        %v4691 = vunpack.c.l.b16 %v3849
        %v4692 = vunpack.c.l.b16 %v3850
        %v4693 = vunpack.c.l.b16 %v3851
        %v4694 = vunpack.c.l.b16 %v3852
        %v4695 = vunpack.c.l.b16 %v3853
        %v4696 = vunpack.c.l.b16 %v3854
        %v4697 = vunpack.c.l.b16 %v3855
        %v4698 = vunpack.c.l.b16 %v3856
        %v4699 = vunpack.c.l.b16 %v3857
        %v4700 = vunpack.c.l.b16 %v3858
        %v4701 = vunpack.c.l.b16 %v3859
        %v4702 = vunpack.c.l.b16 %v3860
        %v4703 = vunpack.c.l.b16 %v3861
        %v4704 = vunpack.c.l.b16 %v3862
        %v4705 = vunpack.c.l.b16 %v3863
        %v4706 = vunpack.c.l.b16 %v3864
        %v4707 = vunpack.c.l.b16 %v3865
        %v4708 = vunpack.c.l.b16 %v3866
        %v4709 = vunpack.c.l.b16 %v3867
        %v4710 = vunpack.c.l.b16 %v3868
        %v4711 = vunpack.c.l.b16 %v3869
        %v4712 = vunpack.c.l.b16 %v3870
        %v4713 = vunpack.c.l.b16 %v3871
        %v4714 = vunpack.c.l.b16 %v3872
        %v4715 = vunpack.c.l.b16 %v3873
        %v4716 = vunpack.c.l.b16 %v3874
        %v4717 = vunpack.c.l.b16 %v3875
        %v4718 = vunpack.c.l.b16 %v3876
        %v4719 = vunpack.c.l.b16 %v3877
        %v4720 = vunpack.c.l.b16 %v3878
        %v4721 = vunpack.c.l.b16 %v3879
        %v4722 = vunpack.c.l.b16 %v3880
        %v4723 = vunpack.c.l.b16 %v3881
        %v4724 = vunpack.c.l.b16 %v3882
        %v4725 = vunpack.c.l.b16 %v3883
        %v4726 = vunpack.c.l.b16 %v3884
        %v4727 = vunpack.c.l.b16 %v3885
        %v4728 = vunpack.c.l.b16 %v3886
        %v4729 = vunpack.c.l.b16 %v3887
        %v4730 = vunpack.c.l.b16 %v3888
        %v4731 = vunpack.c.l.b16 %v3889
        %v4732 = vunpack.c.l.b16 %v3890
        %v4733 = vunpack.c.l.b16 %v3891
        %v4734 = vunpack.c.l.b16 %v3892
        %v4735 = vunpack.c.l.b16 %v3893
        %v4736 = vunpack.c.l.b16 %v3894
        %v4737 = vunpack.c.l.b16 %v3895
        %v4738 = vunpack.c.l.b16 %v3896
        %v4739 = vunpack.c.l.b16 %v3897
        %v4740 = vunpack.c.l.b16 %v3898
        %v4741 = vunpack.c.l.b16 %v3899
        %v4742 = vunpack.c.l.b16 %v3900
        %v4743 = vunpack.c.l.b16 %v3901
        %v4744 = vunpack.c.l.b16 %v3902
        %v4745 = vunpack.c.l.b16 %v3903
        %v4746 = vunpack.c.l.b16 %v3904
        %v4747 = vunpack.c.l.b16 %v3905
        %v4748 = vunpack.c.l.b16 %v3906
        %v4749 = vunpack.c.l.b16 %v3907
        %v4750 = vunpack.c.l.b16 %v3908
        %v4751 = vunpack.c.l.b16 %v3909
        %v4752 = vunpack.c.l.b16 %v3910
        %v4753 = vunpack.c.l.b16 %v3911
        %v4754 = vunpack.c.l.b16 %v3912
        %v4755 = vunpack.c.l.b16 %v3913
        %v4756 = vunpack.c.l.b16 %v3914
        %v4757 = vunpack.c.l.b16 %v3915
        %v4758 = vunpack.c.l.b16 %v3916
        %v4759 = vunpack.c.l.b16 %v3917
        %v4760 = vunpack.c.l.b16 %v3918
        %v4761 = vunpack.c.l.b16 %v3919
        %v4762 = vunpack.c.l.b16 %v3920
        %v4763 = vunpack.c.l.b16 %v3921
        %v4764 = vunpack.c.l.b16 %v3922
        %v4765 = vunpack.c.l.b16 %v3923
        %v4766 = vunpack.c.l.b16 %v3924
        %v4767 = vunpack.c.l.b16 %v3925
        %v4768 = vunpack.c.l.b16 %v3926
        %v4769 = vunpack.c.l.b16 %v3927
        %v4770 = vunpack.c.l.b16 %v3928
        %v4771 = vunpack.c.l.b16 %v3929
        %v4772 = vunpack.c.l.b16 %v3930
        %v4773 = vunpack.c.l.b16 %v3931
        %v4774 = vunpack.c.l.b16 %v3932
        %v4775 = vunpack.c.l.b16 %v3933
        %v4776 = vunpack.c.l.b16 %v3934
        %v4777 = vunpack.c.l.b16 %v3935
        %v4778 = vunpack.c.l.b16 %v3936
        %v4779 = vunpack.c.l.b16 %v3937
        %v4780 = vunpack.c.l.b16 %v3938
        %v4781 = vunpack.c.l.b16 %v3939
        %v4782 = vunpack.c.l.b16 %v3940
        %v4783 = vunpack.c.l.b16 %v3941
        %v4784 = vunpack.c.l.b16 %v3942
        %v4785 = vunpack.c.l.b16 %v3943
        %v4786 = vunpack.c.l.b16 %v3944
        %v4787 = vunpack.c.l.b16 %v3945
        %v4788 = vunpack.c.l.b16 %v3946
        %v4789 = vunpack.c.l.b16 %v3947
        %v4790 = vunpack.c.l.b16 %v3948
        %v4791 = vunpack.c.l.b16 %v3949
        %v4792 = vunpack.c.l.b16 %v3950
        %v4793 = vunpack.c.l.b16 %v3951
        %v4794 = vunpack.c.l.b16 %v3952
        %v4795 = vunpack.c.l.b16 %v3953
        %v4796 = vunpack.c.l.b16 %v3954
        %v4797 = vunpack.c.l.b16 %v3955
        %v4798 = vunpack.c.l.b16 %v3956
        %v4799 = vunpack.c.l.b16 %v3957
        %v4800 = vunpack.c.l.b16 %v3958
        %v4801 = vunpack.c.l.b16 %v3959
        %v4802 = vunpack.c.l.b16 %v3960
        %v4803 = vunpack.c.l.b16 %v3961
        %v4804 = vunpack.c.l.b16 %v3962
        %v4805 = vunpack.c.l.b16 %v3963
        %v4806 = vunpack.c.l.b16 %v3964
        %v4807 = vunpack.c.l.b16 %v3965
        %v4808 = vunpack.c.l.b16 %v3966
        %v4809 = vunpack.c.l.b16 %v3967
        %v4810 = vunpack.c.l.b16 %v3968
        %v4811 = vunpack.c.l.b16 %v3969
        %v4812 = vunpack.c.l.b16 %v3970
        %v4813 = vunpack.c.l.b16 %v3971
        %v4814 = vunpack.c.l.b16 %v3972
        %v4815 = vunpack.c.l.b16 %v3973
        %v4816 = vunpack.c.l.b16 %v3974
        %v4817 = vunpack.c.l.b16 %v3975
        %v4818 = vunpack.c.l.b16 %v3976
        %v4819 = vunpack.c.l.b16 %v3977
        %v4820 = vunpack.c.l.b16 %v3978
        %v4821 = vunpack.c.l.b16 %v3979
        %v4822 = vunpack.c.l.b16 %v3980
        %v4823 = vunpack.c.l.b16 %v3981
        %v4824 = vunpack.c.l.b16 %v3982
        %v4825 = vunpack.c.l.b16 %v3983
        %v4826 = vunpack.c.l.b16 %v3984
        %v4827 = vunpack.c.l.b16 %v3985
        %v4828 = vunpack.c.l.b16 %v3986
        %v4829 = vunpack.c.l.b16 %v3987
        %v4830 = vunpack.c.l.b16 %v3988
        %v4831 = vunpack.c.l.b16 %v3989
        %v4832 = vunpack.c.l.b16 %v3990
        %v4833 = vunpack.c.l.b16 %v3991
        %v4834 = vunpack.c.l.b16 %v3992
        %v4835 = vunpack.c.l.b16 %v3993
        %v4836 = vunpack.c.l.b16 %v3994
        %v4837 = vunpack.c.l.b16 %v3995
        %v4838 = vunpack.c.l.b16 %v3996
        %v4839 = vunpack.c.l.b16 %v3997
        %v4840 = vunpack.c.l.b16 %v3998
        %v4841 = vunpack.c.l.b16 %v3999
        %v4842 = vunpack.c.l.b16 %v4000
        %v4843 = vunpack.c.l.b16 %v4001
        %v4844 = vunpack.c.l.b16 %v4002
        %v4845 = vunpack.c.l.b16 %v4003
        %v4846 = vunpack.c.l.b16 %v4004
        %v4847 = vunpack.c.l.b16 %v4005
        %v4848 = vunpack.c.l.b16 %v4006
        %v4849 = vunpack.c.l.b16 %v4007
        %v4850 = vunpack.c.l.b16 %v4008
        %v4851 = vunpack.c.l.b16 %v4009
        %v4852 = vunpack.c.l.b16 %v4010
        %v4853 = vunpack.c.l.b16 %v4011
        %v4854 = vunpack.c.l.b16 %v4012
        %v4855 = vunpack.c.l.b16 %v4013
        %v4856 = vunpack.c.l.b16 %v4014
        %v4857 = vunpack.c.l.b16 %v4015
        %v4858 = vunpack.c.l.b16 %v4016
        %v4859 = vunpack.c.l.b16 %v4017
        %v4860 = vunpack.c.l.b16 %v4018
        %v4861 = vunpack.c.l.b16 %v4019
        %v4862 = vunpack.c.l.b16 %v4020
        %v4863 = vunpack.c.l.b16 %v4021
        %v4864 = vunpack.c.l.b16 %v4022
        %v4865 = vunpack.c.l.b16 %v4023
        %v4866 = vunpack.c.l.b16 %v4024
        %v4867 = vunpack.c.l.b16 %v4025
        %v4868 = vunpack.c.l.b16 %v4026
        %v4869 = vunpack.c.l.b16 %v4027
        %v4870 = vunpack.c.l.b16 %v4028
        %v4871 = vunpack.c.l.b16 %v4029
        %v4872 = vunpack.c.l.b16 %v4030
        %v4873 = vunpack.c.l.b16 %v4031
        %v4874 = vunpack.c.l.b16 %v4032
        %v4875 = vunpack.c.l.b16 %v4033
        %v4876 = vunpack.c.l.b16 %v4034
        %v4877 = vunpack.c.l.b16 %v4035
        %v4878 = vunpack.c.l.b16 %v4036
        %v4879 = vunpack.c.l.b16 %v4037
        %v4880 = vunpack.c.l.b16 %v4038
        %v4881 = vunpack.c.l.b16 %v4039
        %v4882 = vunpack.c.l.b16 %v4040
        %v4883 = vunpack.c.l.b16 %v4041
        %v4884 = vunpack.c.l.b16 %v4042
        %v4885 = vunpack.c.l.b16 %v4043
        %v4886 = vunpack.c.l.b16 %v4044
        %v4887 = vunpack.c.l.b16 %v4045
        %v4888 = vunpack.c.l.b16 %v4046
        %v4889 = vunpack.c.l.b16 %v4047
        %v4890 = vunpack.c.l.b16 %v4048
        %v4891 = vunpack.c.l.b16 %v4049
        %v4892 = vunpack.c.l.b16 %v4050
        %v4893 = vunpack.c.l.b16 %v4051
        %v4894 = vunpack.c.l.b16 %v4052
        %v4895 = vunpack.c.l.b16 %v4053
        %v4896 = vunpack.c.l.b16 %v4054
        %v4897 = vunpack.c.l.b16 %v4055
        %v4898 = vunpack.c.l.b16 %v4056
        %v4899 = vunpack.c.l.b16 %v4057
        %v4900 = vunpack.c.l.b16 %v4058
        %v4901 = vunpack.c.l.b16 %v4059
        %v4902 = vunpack.c.l.b16 %v4060
        %v4903 = vunpack.c.l.b16 %v4061
        %v4904 = vunpack.c.l.b16 %v4062
        %v4905 = vunpack.c.l.b16 %v4063
        %v4906 = vunpack.c.l.b16 %v4064
        %v4907 = vunpack.c.l.b16 %v4065
        %v4908 = vunpack.c.l.b16 %v4066
        %v4909 = vunpack.c.l.b16 %v4067
        %v4910 = vunpack.c.l.b16 %v4068
        %v4911 = vunpack.c.l.b16 %v4069
        %v4912 = vunpack.c.l.b16 %v4070
        %v4913 = vunpack.c.l.b16 %v4071
        %v4914 = vunpack.c.l.b16 %v4072
        %v4915 = vunpack.c.l.b16 %v4073
        %v4916 = vunpack.c.l.b16 %v4074
        %v4917 = vunpack.c.l.b16 %v4075
        %v4918 = vunpack.c.l.b16 %v4076
        %v4919 = vunpack.c.l.b16 %v4077
        %v4920 = vunpack.c.l.b16 %v4078
        %v4921 = vunpack.c.l.b16 %v4079
        %v4922 = vunpack.c.l.b16 %v4080
        %v4923 = vunpack.c.l.b16 %v4081
        %v4924 = vunpack.c.l.b16 %v4082
        %v4925 = vunpack.c.l.b16 %v4083
        %v4926 = vunpack.c.l.b16 %v4084
        %v4927 = vunpack.c.l.b16 %v4085
        %v4928 = vunpack.c.l.b16 %v4086
        %v4929 = vunpack.c.l.b16 %v4087
        %v4930 = vunpack.c.l.b16 %v4088
        %v4931 = vunpack.c.l.b16 %v4089
        %v4932 = vunpack.c.l.b16 %v4090
        %v4933 = vunpack.c.l.b16 %v4091
        %v4934 = vunpack.c.l.b16 %v4092
        %v4935 = vunpack.c.l.b16 %v4093
        %v4936 = vunpack.c.l.b16 %v4094
        %v4937 = vunpack.c.l.b16 %v4095
        %v4938 = vunpack.c.l.b16 %v4096
        %v4939 = vunpack.c.l.b16 %v4097
        %v4940 = vunpack.c.l.b16 %v4098
        %v4941 = vunpack.c.l.b16 %v4099
        %v4942 = vunpack.c.l.b16 %v4100
        %v4943 = vunpack.c.l.b16 %v4101
        %v4944 = vunpack.c.l.b16 %v4102
        %v4945 = vunpack.c.l.b16 %v4103
        %v4946 = vunpack.c.l.b16 %v4104
        %v4947 = vunpack.c.l.b16 %v4105
        %v4948 = vunpack.c.l.b16 %v4106
        %v4949 = vunpack.c.l.b16 %v4107
        %v4950 = vunpack.c.l.b16 %v4108
        %v4951 = vunpack.c.l.b16 %v4109
        %v4952 = vunpack.c.l.b16 %v4110
        %v4953 = vunpack.c.l.b16 %v4111
        %v4954 = vunpack.c.l.b16 %v4112
        %v4955 = vunpack.c.l.b16 %v4113
        %v4956 = vunpack.c.l.b16 %v4114
        %v4957 = vunpack.c.l.b16 %v4115
        %v4958 = vunpack.c.l.b16 %v4116
        %v4959 = vunpack.c.l.b16 %v4117
        %v4960 = vunpack.c.l.b16 %v4118
        %v4961 = vunpack.c.l.b16 %v4119
        %v4962 = vunpack.c.l.b16 %v4120
        %v4963 = vunpack.c.l.b16 %v4121
        %v4964 = vunpack.c.l.b16 %v4122
        %v4965 = vunpack.c.l.b16 %v4123
        %v4966 = vunpack.c.l.b16 %v4124
        %v4967 = vunpack.c.l.b16 %v4125
        %v4968 = vunpack.c.l.b16 %v4126
        %v4969 = vunpack.c.l.b16 %v4127
        %v4970 = vunpack.c.l.b16 %v4128
        %v4971 = vunpack.c.l.b16 %v4129
        %v4972 = vunpack.c.l.b16 %v4130
        %v4973 = vunpack.c.l.b16 %v4131
        %v4974 = vunpack.c.l.b16 %v4132
        %v4975 = vunpack.c.l.b16 %v4133
        %v4976 = vunpack.c.l.b16 %v4134
        %v4977 = vunpack.c.l.b16 %v4135
        %v4978 = vunpack.c.l.b16 %v4136
        %v4979 = vunpack.c.l.b16 %v4137
        %v4980 = vunpack.c.l.b16 %v4138
        %v4981 = vunpack.c.l.b16 %v4139
        %v4982 = vunpack.c.l.b16 %v4140
        %v4983 = vunpack.c.l.b16 %v4141
        %v4984 = vunpack.c.l.b16 %v4142
        %v4985 = vunpack.c.l.b16 %v4143
        %v4986 = vunpack.c.l.b16 %v4144
        %v4987 = vunpack.c.l.b16 %v4145
        %v4988 = vunpack.c.l.b16 %v4146
        %v4989 = vunpack.c.l.b16 %v4147
        %v4990 = vunpack.c.l.b16 %v4148
        %v4991 = vunpack.c.l.b16 %v4149
        %v4992 = vunpack.c.l.b16 %v4150
        %v4993 = vunpack.c.l.b16 %v4151
        %v4994 = vunpack.c.l.b16 %v4152
        %v4995 = vunpack.c.l.b16 %v4153
        %v4996 = vunpack.c.l.b16 %v4154
        %v4997 = vunpack.c.l.b16 %v4155
        %v4998 = vunpack.c.l.b16 %v4156
        %v4999 = vunpack.c.l.b16 %v4157
        %v5000 = vunpack.c.l.b16 %v4158
        %v5001 = vunpack.c.l.b16 %v4159
        %v5002 = vunpack.c.l.b16 %v4160
        %v5003 = vunpack.c.l.b16 %v4161
        %v5004 = vunpack.c.l.b16 %v4162
        %v5005 = vunpack.c.l.b16 %v4163
        %v5006 = vunpack.c.l.b16 %v4164
        %v5007 = vunpack.c.l.b16 %v4165
        %v5008 = vunpack.c.l.b16 %v4166
        %v5009 = vunpack.c.l.b16 %v4167
        %v5010 = vpack.c.b16 %v4619, %v4618
        %v5011 = vpack.c.b16 %v4621, %v4620
        %v5012 = vpack.c.b16 %v4623, %v4622
        %v5013 = vpack.c.b16 %v4625, %v4624
        %v5014 = vpack.c.b16 %v4627, %v4626
        %v5015 = vpack.c.b16 %v4629, %v4628
        %v5016 = vpack.c.b16 %v4631, %v4630
        %v5017 = vpack.c.b16 %v4633, %v4632
        %v5018 = vpack.c.b16 %v4635, %v4634
        %v5019 = vpack.c.b16 %v4637, %v4636
        %v5020 = vpack.c.b16 %v4639, %v4638
        %v5021 = vpack.c.b16 %v4641, %v4640
        %v5022 = vpack.c.b16 %v4643, %v4642
        %v5023 = vpack.c.b16 %v4645, %v4644
        %v5024 = vpack.c.b16 %v4647, %v4646
        %v5025 = vpack.c.b16 %v4649, %v4648
        %v5026 = vpack.c.b16 %v4651, %v4650
        %v5027 = vpack.c.b16 %v4653, %v4652
        %v5028 = vpack.c.b16 %v4655, %v4654
        %v5029 = vpack.c.b16 %v4657, %v4656
        %v5030 = vpack.c.b16 %v4659, %v4658
        %v5031 = vpack.c.b16 %v4661, %v4660
        %v5032 = vpack.c.b16 %v4663, %v4662
        %v5033 = vpack.c.b16 %v4665, %v4664
        %v5034 = vpack.c.b16 %v4667, %v4666
        %v5035 = vpack.c.b16 %v4669, %v4668
        %v5036 = vpack.c.b16 %v4671, %v4670
        %v5037 = vpack.c.b16 %v4673, %v4672
        %v5038 = vpack.c.b16 %v4675, %v4674
        %v5039 = vpack.c.b16 %v4677, %v4676
        %v5040 = vpack.c.b16 %v4679, %v4678
        %v5041 = vpack.c.b16 %v4681, %v4680
        %v5042 = vpack.c.b16 %v4683, %v4682
        %v5043 = vpack.c.b16 %v4685, %v4684
        %v5044 = vpack.c.b16 %v4687, %v4686
        %v5045 = vpack.c.b16 %v4689, %v4688
        %v5046 = vpack.c.b16 %v4691, %v4690
        %v5047 = vpack.c.b16 %v4693, %v4692
        %v5048 = vpack.c.b16 %v4695, %v4694
        %v5049 = vpack.c.b16 %v4697, %v4696
        %v5050 = vpack.c.b16 %v4699, %v4698
        %v5051 = vpack.c.b16 %v4701, %v4700
        %v5052 = vpack.c.b16 %v4703, %v4702
        %v5053 = vpack.c.b16 %v4705, %v4704
        %v5054 = vpack.c.b16 %v4707, %v4706
        %v5055 = vpack.c.b16 %v4709, %v4708
        %v5056 = vpack.c.b16 %v4711, %v4710
        %v5057 = vpack.c.b16 %v4713, %v4712
        %v5058 = vpack.c.b16 %v4715, %v4714
        %v5059 = vpack.c.b16 %v4717, %v4716
        %v5060 = vpack.c.b16 %v4719, %v4718
        %v5061 = vpack.c.b16 %v4721, %v4720
        %v5062 = vpack.c.b16 %v4723, %v4722
        %v5063 = vpack.c.b16 %v4725, %v4724
        %v5064 = vpack.c.b16 %v4727, %v4726
        %v5065 = vpack.c.b16 %v4729, %v4728
        %v5066 = vpack.c.b16 %v4731, %v4730
        %v5067 = vpack.c.b16 %v4733, %v4732
        %v5068 = vpack.c.b16 %v4735, %v4734
        %v5069 = vpack.c.b16 %v4737, %v4736
        %v5070 = vpack.c.b16 %v4739, %v4738
        %v5071 = vpack.c.b16 %v4741, %v4740
        %v5072 = vpack.c.b16 %v4743, %v4742
        %v5073 = vpack.c.b16 %v4745, %v4744
        %v5074 = vpack.c.b16 %v4747, %v4746
        %v5075 = vpack.c.b16 %v4749, %v4748
        %v5076 = vpack.c.b16 %v4751, %v4750
        %v5077 = vpack.c.b16 %v4753, %v4752
        %v5078 = vpack.c.b16 %v4755, %v4754
        %v5079 = vpack.c.b16 %v4757, %v4756
        %v5080 = vpack.c.b16 %v4759, %v4758
        %v5081 = vpack.c.b16 %v4761, %v4760
        %v5082 = vpack.c.b16 %v4763, %v4762
        %v5083 = vpack.c.b16 %v4765, %v4764
        %v5084 = vpack.c.b16 %v4767, %v4766
        %v5085 = vpack.c.b16 %v4769, %v4768
        %v5086 = vpack.c.b16 %v4771, %v4770
        %v5087 = vpack.c.b16 %v4773, %v4772
        %v5088 = vpack.c.b16 %v4775, %v4774
        %v5089 = vpack.c.b16 %v4777, %v4776
        %v5090 = vpack.c.b16 %v4779, %v4778
        %v5091 = vpack.c.b16 %v4781, %v4780
        %v5092 = vpack.c.b16 %v4783, %v4782
        %v5093 = vpack.c.b16 %v4785, %v4784
        %v5094 = vpack.c.b16 %v4787, %v4786
        %v5095 = vpack.c.b16 %v4789, %v4788
        %v5096 = vpack.c.b16 %v4791, %v4790
        %v5097 = vpack.c.b16 %v4793, %v4792
        %v5098 = vpack.c.b16 %v4795, %v4794
        %v5099 = vpack.c.b16 %v4797, %v4796
        %v5100 = vpack.c.b16 %v4799, %v4798
        %v5101 = vpack.c.b16 %v4801, %v4800
        %v5102 = vpack.c.b16 %v4803, %v4802
        %v5103 = vpack.c.b16 %v4805, %v4804
        %v5104 = vpack.c.b16 %v4807, %v4806
        %v5105 = vpack.c.b16 %v4809, %v4808
        %v5106 = vpack.c.b16 %v4811, %v4810
        %v5107 = vpack.c.b16 %v4813, %v4812
        %v5108 = vpack.c.b16 %v4815, %v4814
        %v5109 = vpack.c.b16 %v4817, %v4816
        %v5110 = vpack.c.b16 %v4819, %v4818
        %v5111 = vpack.c.b16 %v4821, %v4820
        %v5112 = vpack.c.b16 %v4823, %v4822
        %v5113 = vpack.c.b16 %v4825, %v4824
        %v5114 = vpack.c.b16 %v4827, %v4826
        %v5115 = vpack.c.b16 %v4829, %v4828
        %v5116 = vpack.c.b16 %v4831, %v4830
        %v5117 = vpack.c.b16 %v4833, %v4832
        %v5118 = vpack.c.b16 %v4835, %v4834
        %v5119 = vpack.c.b16 %v4837, %v4836
        %v5120 = vpack.c.b16 %v4839, %v4838
        %v5121 = vpack.c.b16 %v4841, %v4840
        %v5122 = vpack.c.b16 %v4843, %v4842
        %v5123 = vpack.c.b16 %v4845, %v4844
        %v5124 = vpack.c.b16 %v4847, %v4846
        %v5125 = vpack.c.b16 %v4849, %v4848
        %v5126 = vpack.c.b16 %v4851, %v4850
        %v5127 = vpack.c.b16 %v4853, %v4852
        %v5128 = vpack.c.b16 %v4855, %v4854
        %v5129 = vpack.c.b16 %v4857, %v4856
        %v5130 = vpack.c.b16 %v4859, %v4858
        %v5131 = vpack.c.b16 %v4861, %v4860
        %v5132 = vpack.c.b16 %v4863, %v4862
        %v5133 = vpack.c.b16 %v4865, %v4864
        %v5134 = vpack.c.b16 %v4867, %v4866
        %v5135 = vpack.c.b16 %v4869, %v4868
        %v5136 = vpack.c.b16 %v4871, %v4870
        %v5137 = vpack.c.b16 %v4873, %v4872
        %v5138 = vpack.c.b16 %v4875, %v4874
        %v5139 = vpack.c.b16 %v4877, %v4876
        %v5140 = vpack.c.b16 %v4879, %v4878
        %v5141 = vpack.c.b16 %v4881, %v4880
        %v5142 = vpack.c.b16 %v4883, %v4882
        %v5143 = vpack.c.b16 %v4885, %v4884
        %v5144 = vpack.c.b16 %v4887, %v4886
        %v5145 = vpack.c.b16 %v4889, %v4888
        %v5146 = vpack.c.b16 %v4891, %v4890
        %v5147 = vpack.c.b16 %v4893, %v4892
        %v5148 = vpack.c.b16 %v4895, %v4894
        %v5149 = vpack.c.b16 %v4897, %v4896
        %v5150 = vpack.c.b16 %v4899, %v4898
        %v5151 = vpack.c.b16 %v4901, %v4900
        %v5152 = vpack.c.b16 %v4903, %v4902
        %v5153 = vpack.c.b16 %v4905, %v4904
        %v5154 = vpack.c.b16 %v4907, %v4906
        %v5155 = vpack.c.b16 %v4909, %v4908
        %v5156 = vpack.c.b16 %v4911, %v4910
        %v5157 = vpack.c.b16 %v4913, %v4912
        %v5158 = vpack.c.b16 %v4915, %v4914
        %v5159 = vpack.c.b16 %v4917, %v4916
        %v5160 = vpack.c.b16 %v4919, %v4918
        %v5161 = vpack.c.b16 %v4921, %v4920
        %v5162 = vpack.c.b16 %v4923, %v4922
        %v5163 = vpack.c.b16 %v4925, %v4924
        %v5164 = vpack.c.b16 %v4927, %v4926
        %v5165 = vpack.c.b16 %v4929, %v4928
        %v5166 = vpack.c.b16 %v4931, %v4930
        %v5167 = vpack.c.b16 %v4933, %v4932
        %v5168 = vpack.c.b16 %v4935, %v4934
        %v5169 = vpack.c.b16 %v4937, %v4936
        %v5170 = vpack.c.b16 %v4939, %v4938
        %v5171 = vpack.c.b16 %v4941, %v4940
        %v5172 = vpack.c.b16 %v4943, %v4942
        %v5173 = vpack.c.b16 %v4945, %v4944
        %v5174 = vpack.c.b16 %v4947, %v4946
        %v5175 = vpack.c.b16 %v4949, %v4948
        %v5176 = vpack.c.b16 %v4951, %v4950
        %v5177 = vpack.c.b16 %v4953, %v4952
        %v5178 = vpack.c.b16 %v4955, %v4954
        %v5179 = vpack.c.b16 %v4957, %v4956
        %v5180 = vpack.c.b16 %v4959, %v4958
        %v5181 = vpack.c.b16 %v4961, %v4960
        %v5182 = vpack.c.b16 %v4963, %v4962
        %v5183 = vpack.c.b16 %v4965, %v4964
        %v5184 = vpack.c.b16 %v4967, %v4966
        %v5185 = vpack.c.b16 %v4969, %v4968
        %v5186 = vpack.c.b16 %v4971, %v4970
        %v5187 = vpack.c.b16 %v4973, %v4972
        %v5188 = vpack.c.b16 %v4975, %v4974
        %v5189 = vpack.c.b16 %v4977, %v4976
        %v5190 = vpack.c.b16 %v4979, %v4978
        %v5191 = vpack.c.b16 %v4981, %v4980
        %v5192 = vpack.c.b16 %v4983, %v4982
        %v5193 = vpack.c.b16 %v4985, %v4984
        %v5194 = vpack.c.b16 %v4987, %v4986
        %v5195 = vpack.c.b16 %v4989, %v4988
        %v5196 = vpack.c.b16 %v4991, %v4990
        %v5197 = vpack.c.b16 %v4993, %v4992
        %v5198 = vpack.c.b16 %v4995, %v4994
        %v5199 = vpack.c.b16 %v4997, %v4996
        %v5200 = vpack.c.b16 %v4999, %v4998
        %v5201 = vpack.c.b16 %v5001, %v5000
        %v5202 = vpack.c.b16 %v5003, %v5002
        %v5203 = vpack.c.b16 %v5005, %v5004
        %v5204 = vpack.c.b16 %v5007, %v5006
        %v5205 = vpack.c.b16 %v5009, %v5008
        %v5402 = vsel %vm2253, %v4201, 0
        %5404 = vmatpush.bf16.msra.mxu0 %v5017
        %5405 = vmatpush.bf16.msra.mxu0 %v5016
        %5406 = vmatpush.bf16.msra.mxu0 %v5015
        %5407 = vmatpush.bf16.msra.mxu0 %v5014
        %5408 = vmatpush.bf16.msra.mxu0 %v5013
        %5409 = vmatpush.bf16.msra.mxu0 %v5012
        %5410 = vmatpush.bf16.msra.mxu0 %v5011
        %5411 = vmatpush.bf16.msra.mxu0 %v5010
        %5412 = vmatmul.bf16.gmra.mxu0 %v4171
        %v5413 = vpop.f32.mrf.mxu0
        %v5414 = vadd.f32 %v4168, %v5413
        %v5415 = vpop.f32.mrf.mxu0
        %5416 = vdwg.mxu0
        %5417 = vmatpush.bf16.msra.mxu0 %v5025
        %5418 = vmatpush.bf16.msra.mxu0 %v5024
        %5419 = vmatpush.bf16.msra.mxu0 %v5023
        %5420 = vmatpush.bf16.msra.mxu0 %v5022
        %5421 = vmatpush.bf16.msra.mxu0 %v5021
        %5422 = vmatpush.bf16.msra.mxu0 %v5020
        %5423 = vmatpush.bf16.msra.mxu0 %v5019
        %5424 = vmatpush.bf16.msra.mxu0 %v5018
        %5425 = vmatmul.bf16.gmra.mxu0 %v4172
        %v5426 = vpop.f32.mrf.mxu0
        %v5427 = vadd.f32 %v5414, %v5426
        %v5428 = vpop.f32.mrf.mxu0
        %5429 = vdwg.mxu0
        %5430 = vmatpush.bf16.msra.mxu0 %v5033
        %5431 = vmatpush.bf16.msra.mxu0 %v5032
        %5432 = vmatpush.bf16.msra.mxu0 %v5031
        %5433 = vmatpush.bf16.msra.mxu0 %v5030
        %5434 = vmatpush.bf16.msra.mxu0 %v5029
        %5435 = vmatpush.bf16.msra.mxu0 %v5028
        %5436 = vmatpush.bf16.msra.mxu0 %v5027
        %5437 = vmatpush.bf16.msra.mxu0 %v5026
        %5438 = vmatmul.bf16.gmra.mxu0 %v4173
        %v5439 = vpop.f32.mrf.mxu0
        %v5440 = vadd.f32 %v5427, %v5439
        %v5441 = vpop.f32.mrf.mxu0
        %5442 = vdwg.mxu0
        %5443 = vmatpush.bf16.msra.mxu0 %v5041
        %5444 = vmatpush.bf16.msra.mxu0 %v5040
        %5445 = vmatpush.bf16.msra.mxu0 %v5039
        %5446 = vmatpush.bf16.msra.mxu0 %v5038
        %5447 = vmatpush.bf16.msra.mxu0 %v5037
        %5448 = vmatpush.bf16.msra.mxu0 %v5036
        %5449 = vmatpush.bf16.msra.mxu0 %v5035
        %5450 = vmatpush.bf16.msra.mxu0 %v5034
        %5451 = vmatmul.bf16.gmra.mxu0 %v4174
        %v5452 = vpop.f32.mrf.mxu0
        %v5453 = vadd.f32 %v5440, %v5452
        %v5454 = vpop.f32.mrf.mxu0
        %5455 = vdwg.mxu0
        %5456 = vmatpush.bf16.msra.mxu0 %v5049
        %5457 = vmatpush.bf16.msra.mxu0 %v5048
        %5458 = vmatpush.bf16.msra.mxu0 %v5047
        %5459 = vmatpush.bf16.msra.mxu0 %v5046
        %5460 = vmatpush.bf16.msra.mxu0 %v5045
        %5461 = vmatpush.bf16.msra.mxu0 %v5044
        %5462 = vmatpush.bf16.msra.mxu0 %v5043
        %5463 = vmatpush.bf16.msra.mxu0 %v5042
        %5464 = vmatmul.bf16.gmra.mxu0 %v4175
        %v5465 = vpop.f32.mrf.mxu0
        %v5466 = vadd.f32 %v5453, %v5465
        %v5467 = vpop.f32.mrf.mxu0
        %5468 = vdwg.mxu0
        %5469 = vmatpush.bf16.msra.mxu0 %v5057
        %5470 = vmatpush.bf16.msra.mxu0 %v5056
        %5471 = vmatpush.bf16.msra.mxu0 %v5055
        %5472 = vmatpush.bf16.msra.mxu0 %v5054
        %5473 = vmatpush.bf16.msra.mxu0 %v5053
        %5474 = vmatpush.bf16.msra.mxu0 %v5052
        %5475 = vmatpush.bf16.msra.mxu0 %v5051
        %5476 = vmatpush.bf16.msra.mxu0 %v5050
        %5477 = vmatmul.bf16.gmra.mxu0 %v4176
        %v5478 = vpop.f32.mrf.mxu0
        %v5479 = vadd.f32 %v5466, %v5478
        %v5480 = vpop.f32.mrf.mxu0
        %5481 = vdwg.mxu0
        %5482 = vmatpush.bf16.msra.mxu0 %v5065
        %5483 = vmatpush.bf16.msra.mxu0 %v5064
        %5484 = vmatpush.bf16.msra.mxu0 %v5063
        %5485 = vmatpush.bf16.msra.mxu0 %v5062
        %5486 = vmatpush.bf16.msra.mxu0 %v5061
        %5487 = vmatpush.bf16.msra.mxu0 %v5060
        %5488 = vmatpush.bf16.msra.mxu0 %v5059
        %5489 = vmatpush.bf16.msra.mxu0 %v5058
        %5490 = vmatmul.bf16.gmra.mxu0 %v4177
        %v5491 = vpop.f32.mrf.mxu0
        %v5492 = vadd.f32 %v5479, %v5491
        %v5493 = vpop.f32.mrf.mxu0
        %5494 = vdwg.mxu0
        %5495 = vmatpush.bf16.msra.mxu0 %v5073
        %5496 = vmatpush.bf16.msra.mxu0 %v5072
        %5497 = vmatpush.bf16.msra.mxu0 %v5071
        %5498 = vmatpush.bf16.msra.mxu0 %v5070
        %5499 = vmatpush.bf16.msra.mxu0 %v5069
        %5500 = vmatpush.bf16.msra.mxu0 %v5068
        %5501 = vmatpush.bf16.msra.mxu0 %v5067
        %5502 = vmatpush.bf16.msra.mxu0 %v5066
        %5503 = vmatmul.bf16.gmra.mxu0 %v4178
        %v5504 = vpop.f32.mrf.mxu0
        %v5505 = vadd.f32 %v5492, %v5504
        %v5506 = vpop.f32.mrf.mxu0
        %5507 = vdwg.mxu0
        %5508 = vmatpush.bf16.msra.mxu0 %v5081
        %5509 = vmatpush.bf16.msra.mxu0 %v5080
        %5510 = vmatpush.bf16.msra.mxu0 %v5079
        %5511 = vmatpush.bf16.msra.mxu0 %v5078
        %5512 = vmatpush.bf16.msra.mxu0 %v5077
        %5513 = vmatpush.bf16.msra.mxu0 %v5076
        %5514 = vmatpush.bf16.msra.mxu0 %v5075
        %5515 = vmatpush.bf16.msra.mxu0 %v5074
        %5516 = vmatmul.bf16.gmra.mxu0 %v4181
        %v5517 = vpop.f32.mrf.mxu0
        %v5518 = vadd.f32 %v5505, %v5517
        %v5519 = vpop.f32.mrf.mxu0
        %5520 = vdwg.mxu0
        %5521 = vmatpush.bf16.msra.mxu0 %v5089
        %5522 = vmatpush.bf16.msra.mxu0 %v5088
        %5523 = vmatpush.bf16.msra.mxu0 %v5087
        %5524 = vmatpush.bf16.msra.mxu0 %v5086
        %5525 = vmatpush.bf16.msra.mxu0 %v5085
        %5526 = vmatpush.bf16.msra.mxu0 %v5084
        %5527 = vmatpush.bf16.msra.mxu0 %v5083
        %5528 = vmatpush.bf16.msra.mxu0 %v5082
        %5529 = vmatmul.bf16.gmra.mxu0 %v4182
        %v5530 = vpop.f32.mrf.mxu0
        %v5531 = vadd.f32 %v5518, %v5530
        %v5532 = vpop.f32.mrf.mxu0
        %5533 = vdwg.mxu0
        %5534 = vmatpush.bf16.msra.mxu0 %v5097
        %5535 = vmatpush.bf16.msra.mxu0 %v5096
        %5536 = vmatpush.bf16.msra.mxu0 %v5095
        %5537 = vmatpush.bf16.msra.mxu0 %v5094
        %5538 = vmatpush.bf16.msra.mxu0 %v5093
        %5539 = vmatpush.bf16.msra.mxu0 %v5092
        %5540 = vmatpush.bf16.msra.mxu0 %v5091
        %5541 = vmatpush.bf16.msra.mxu0 %v5090
        %5542 = vmatmul.bf16.gmra.mxu0 %v4183
        %v5543 = vpop.f32.mrf.mxu0
        %v5544 = vadd.f32 %v5531, %v5543
        %v5545 = vpop.f32.mrf.mxu0
        %5546 = vdwg.mxu0
        %5547 = vmatpush.bf16.msra.mxu0 %v5105
        %5548 = vmatpush.bf16.msra.mxu0 %v5104
        %5549 = vmatpush.bf16.msra.mxu0 %v5103
        %5550 = vmatpush.bf16.msra.mxu0 %v5102
        %5551 = vmatpush.bf16.msra.mxu0 %v5101
        %5552 = vmatpush.bf16.msra.mxu0 %v5100
        %5553 = vmatpush.bf16.msra.mxu0 %v5099
        %5554 = vmatpush.bf16.msra.mxu0 %v5098
        %5555 = vmatmul.bf16.gmra.mxu0 %v4184
        %v5556 = vpop.f32.mrf.mxu0
        %v5557 = vadd.f32 %v5544, %v5556
        %v5558 = vpop.f32.mrf.mxu0
        %5559 = vdwg.mxu0
        %5560 = vmatpush.bf16.msra.mxu0 %v5113
        %5561 = vmatpush.bf16.msra.mxu0 %v5112
        %5562 = vmatpush.bf16.msra.mxu0 %v5111
        %5563 = vmatpush.bf16.msra.mxu0 %v5110
        %5564 = vmatpush.bf16.msra.mxu0 %v5109
        %5565 = vmatpush.bf16.msra.mxu0 %v5108
        %5566 = vmatpush.bf16.msra.mxu0 %v5107
        %5567 = vmatpush.bf16.msra.mxu0 %v5106
        %5568 = vmatmul.bf16.gmra.mxu0 %v4185
        %v5569 = vpop.f32.mrf.mxu0
        %v5570 = vadd.f32 %v5557, %v5569
        %v5571 = vpop.f32.mrf.mxu0
        %5572 = vdwg.mxu0
        %5573 = vmatpush.bf16.msra.mxu0 %v5121
        %5574 = vmatpush.bf16.msra.mxu0 %v5120
        %5575 = vmatpush.bf16.msra.mxu0 %v5119
        %5576 = vmatpush.bf16.msra.mxu0 %v5118
        %5577 = vmatpush.bf16.msra.mxu0 %v5117
        %5578 = vmatpush.bf16.msra.mxu0 %v5116
        %5579 = vmatpush.bf16.msra.mxu0 %v5115
        %5580 = vmatpush.bf16.msra.mxu0 %v5114
        %5581 = vmatmul.bf16.gmra.mxu0 %v4186
        %v5582 = vpop.f32.mrf.mxu0
        %v5583 = vadd.f32 %v5570, %v5582
        %v5584 = vpop.f32.mrf.mxu0
        %5585 = vdwg.mxu0
        %5586 = vmatpush.bf16.msra.mxu0 %v5129
        %5587 = vmatpush.bf16.msra.mxu0 %v5128
        %5588 = vmatpush.bf16.msra.mxu0 %v5127
        %5589 = vmatpush.bf16.msra.mxu0 %v5126
        %5590 = vmatpush.bf16.msra.mxu0 %v5125
        %5591 = vmatpush.bf16.msra.mxu0 %v5124
        %5592 = vmatpush.bf16.msra.mxu0 %v5123
        %5593 = vmatpush.bf16.msra.mxu0 %v5122
        %5594 = vmatmul.bf16.gmra.mxu0 %v4187
        %v5595 = vpop.f32.mrf.mxu0
        %v5596 = vadd.f32 %v5583, %v5595
        %v5597 = vpop.f32.mrf.mxu0
        %5598 = vdwg.mxu0
        %5599 = vmatpush.bf16.msra.mxu0 %v5137
        %5600 = vmatpush.bf16.msra.mxu0 %v5136
        %5601 = vmatpush.bf16.msra.mxu0 %v5135
        %5602 = vmatpush.bf16.msra.mxu0 %v5134
        %5603 = vmatpush.bf16.msra.mxu0 %v5133
        %5604 = vmatpush.bf16.msra.mxu0 %v5132
        %5605 = vmatpush.bf16.msra.mxu0 %v5131
        %5606 = vmatpush.bf16.msra.mxu0 %v5130
        %5607 = vmatmul.bf16.gmra.mxu0 %v4188
        %v5608 = vpop.f32.mrf.mxu0
        %v5609 = vadd.f32 %v5596, %v5608
        %v5610 = vpop.f32.mrf.mxu0
        %5611 = vdwg.mxu0
        %5612 = vmatpush.bf16.msra.mxu0 %v5145
        %5613 = vmatpush.bf16.msra.mxu0 %v5144
        %5614 = vmatpush.bf16.msra.mxu0 %v5143
        %5615 = vmatpush.bf16.msra.mxu0 %v5142
        %5616 = vmatpush.bf16.msra.mxu0 %v5141
        %5617 = vmatpush.bf16.msra.mxu0 %v5140
        %5618 = vmatpush.bf16.msra.mxu0 %v5139
        %5619 = vmatpush.bf16.msra.mxu0 %v5138
        %5620 = vmatmul.bf16.gmra.mxu0 %v4191
        %v5621 = vpop.f32.mrf.mxu0
        %v5622 = vadd.f32 %v5609, %v5621
        %v5623 = vpop.f32.mrf.mxu0
        %5624 = vdwg.mxu0
        %5625 = vmatpush.bf16.msra.mxu0 %v5153
        %5626 = vmatpush.bf16.msra.mxu0 %v5152
        %5627 = vmatpush.bf16.msra.mxu0 %v5151
        %5628 = vmatpush.bf16.msra.mxu0 %v5150
        %5629 = vmatpush.bf16.msra.mxu0 %v5149
        %5630 = vmatpush.bf16.msra.mxu0 %v5148
        %5631 = vmatpush.bf16.msra.mxu0 %v5147
        %5632 = vmatpush.bf16.msra.mxu0 %v5146
        %5633 = vmatmul.bf16.gmra.mxu0 %v4192
        %v5634 = vpop.f32.mrf.mxu0
        %v5635 = vadd.f32 %v5622, %v5634
        %v5636 = vpop.f32.mrf.mxu0
        %5637 = vdwg.mxu0
        %5638 = vmatpush.bf16.msra.mxu0 %v5161
        %5639 = vmatpush.bf16.msra.mxu0 %v5160
        %5640 = vmatpush.bf16.msra.mxu0 %v5159
        %5641 = vmatpush.bf16.msra.mxu0 %v5158
        %5642 = vmatpush.bf16.msra.mxu0 %v5157
        %5643 = vmatpush.bf16.msra.mxu0 %v5156
        %5644 = vmatpush.bf16.msra.mxu0 %v5155
        %5645 = vmatpush.bf16.msra.mxu0 %v5154
        %5646 = vmatmul.bf16.gmra.mxu0 %v4193
        %v5647 = vpop.f32.mrf.mxu0
        %v5648 = vadd.f32 %v5635, %v5647
        %v5649 = vpop.f32.mrf.mxu0
        %5650 = vdwg.mxu0
        %5651 = vmatpush.bf16.msra.mxu0 %v5169
        %5652 = vmatpush.bf16.msra.mxu0 %v5168
        %5653 = vmatpush.bf16.msra.mxu0 %v5167
        %5654 = vmatpush.bf16.msra.mxu0 %v5166
        %5655 = vmatpush.bf16.msra.mxu0 %v5165
        %5656 = vmatpush.bf16.msra.mxu0 %v5164
        %5657 = vmatpush.bf16.msra.mxu0 %v5163
        %5658 = vmatpush.bf16.msra.mxu0 %v5162
        %5659 = vmatmul.bf16.gmra.mxu0 %v4194
        %v5660 = vpop.f32.mrf.mxu0
        %v5661 = vadd.f32 %v5648, %v5660
        %v5662 = vpop.f32.mrf.mxu0
        %5663 = vdwg.mxu0
        %5664 = vmatpush.bf16.msra.mxu0 %v5177
        %5665 = vmatpush.bf16.msra.mxu0 %v5176
        %5666 = vmatpush.bf16.msra.mxu0 %v5175
        %5667 = vmatpush.bf16.msra.mxu0 %v5174
        %5668 = vmatpush.bf16.msra.mxu0 %v5173
        %5669 = vmatpush.bf16.msra.mxu0 %v5172
        %5670 = vmatpush.bf16.msra.mxu0 %v5171
        %5671 = vmatpush.bf16.msra.mxu0 %v5170
        %5672 = vmatmul.bf16.gmra.mxu0 %v4195
        %v5673 = vpop.f32.mrf.mxu0
        %v5674 = vadd.f32 %v5661, %v5673
        %v5675 = vpop.f32.mrf.mxu0
        %5676 = vdwg.mxu0
        %5677 = vmatpush.bf16.msra.mxu0 %v5185
        %5678 = vmatpush.bf16.msra.mxu0 %v5184
        %5679 = vmatpush.bf16.msra.mxu0 %v5183
        %5680 = vmatpush.bf16.msra.mxu0 %v5182
        %5681 = vmatpush.bf16.msra.mxu0 %v5181
        %5682 = vmatpush.bf16.msra.mxu0 %v5180
        %5683 = vmatpush.bf16.msra.mxu0 %v5179
        %5684 = vmatpush.bf16.msra.mxu0 %v5178
        %5685 = vmatmul.bf16.gmra.mxu0 %v4196
        %v5686 = vpop.f32.mrf.mxu0
        %v5687 = vadd.f32 %v5674, %v5686
        %v5688 = vpop.f32.mrf.mxu0
        %5689 = vdwg.mxu0
        %5690 = vmatpush.bf16.msra.mxu0 %v5193
        %5691 = vmatpush.bf16.msra.mxu0 %v5192
        %5692 = vmatpush.bf16.msra.mxu0 %v5191
        %5693 = vmatpush.bf16.msra.mxu0 %v5190
        %5694 = vmatpush.bf16.msra.mxu0 %v5189
        %5695 = vmatpush.bf16.msra.mxu0 %v5188
        %5696 = vmatpush.bf16.msra.mxu0 %v5187
        %5697 = vmatpush.bf16.msra.mxu0 %v5186
        %5698 = vmatmul.bf16.gmra.mxu0 %v4197
        %v5699 = vpop.f32.mrf.mxu0
        %v5700 = vadd.f32 %v5687, %v5699
        %v5701 = vpop.f32.mrf.mxu0
        %5702 = vdwg.mxu0
        %5703 = vmatpush.bf16.msra.mxu0 %v5201
        %5704 = vmatpush.bf16.msra.mxu0 %v5200
        %5705 = vmatpush.bf16.msra.mxu0 %v5199
        %5706 = vmatpush.bf16.msra.mxu0 %v5198
        %5707 = vmatpush.bf16.msra.mxu0 %v5197
        %5708 = vmatpush.bf16.msra.mxu0 %v5196
        %5709 = vmatpush.bf16.msra.mxu0 %v5195
        %5710 = vmatpush.bf16.msra.mxu0 %v5194
        %5711 = vmatmul.bf16.gmra.mxu0 %v4198
        %v5712 = vpop.f32.mrf.mxu0
        %v5713 = vadd.f32 %v5700, %v5712
        %v5714 = vpop.f32.mrf.mxu0
        %5715 = vdwg.mxu0
        %5716 = vmatpush.bf16.msra.mxu0 0
        %5717 = vmatpush.bf16.msra.mxu0 0
        %5718 = vmatpush.bf16.msra.mxu0 0
        %5719 = vmatpush.bf16.msra.mxu0 0
        %5720 = vmatpush.bf16.msra.mxu0 %v5205
        %5721 = vmatpush.bf16.msra.mxu0 %v5204
        %5722 = vmatpush.bf16.msra.mxu0 %v5203
        %5723 = vmatpush.bf16.msra.mxu0 %v5202
        %5724 = vmatmul.bf16.gmra.mxu0 %v5402
        %v5725 = vpop.f32.mrf.mxu0
        %v5726 = vadd.f32 %v5713, %v5725
        %v5727 = vpop.f32.mrf.mxu0
        %5728 = vdwg.mxu0
        %v5729 = vmax.f32 %v5726, 0.0
        %v5730 = vld [vmem:[%s7] sm:$0xff]
        %v5731 = vld [vmem:[%s7 + $0x8] sm:$0xff]
        %v5732 = vld [vmem:[%s7 + $0x10] sm:$0xff]
        %v5733 = vld [vmem:[%s7 + $0x18] sm:$0xff]
        %v5734 = vld [vmem:[%s7 + $0x20] sm:$0xff]
        %v5735 = vld [vmem:[%s7 + $0x28] sm:$0xff]
        %v5736 = vld [vmem:[%s7 + $0x30] sm:$0xff]
        %v5737 = vld [vmem:[%s7 + $0x38] sm:$0xff]
        %v5738 = vld [vmem:[%s7 + $0x40] sm:$0xff]
        %v5739 = vld [vmem:[%s7 + $0x48] sm:$0xff]
        %v5740 = vld [vmem:[%s7 + $0x50] sm:$0xff]
        %v5741 = vld [vmem:[%s7 + $0x58] sm:$0xff]
        %v5742 = vld [vmem:[%s7 + $0x60] sm:$0xff]
        %v5743 = vld [vmem:[%s7 + $0x68] sm:$0xff]
        %v5744 = vld [vmem:[%s7 + $0x70] sm:$0xff]
        %v5745 = vld [vmem:[%s7 + $0x78] sm:$0xff]
        %v5746 = vld [vmem:[%s8] sm:$0x1]
        %5747 = vmatpush.msra.mxu0 %v5745
        %5748 = vmatpush.msra.mxu0 %v5744
        %5749 = vmatpush.msra.mxu0 %v5743
        %5750 = vmatpush.msra.mxu0 %v5742
        %5751 = vmatpush.msra.mxu0 %v5741
        %5752 = vmatpush.msra.mxu0 %v5740
        %5753 = vmatpush.msra.mxu0 %v5739
        %5754 = vmatpush.msra.mxu0 %v5738
        %5755 = vmatpush.msra.mxu0 %v5737
        %5756 = vmatpush.msra.mxu0 %v5736
        %5757 = vmatpush.msra.mxu0 %v5735
        %5758 = vmatpush.msra.mxu0 %v5734
        %5759 = vmatpush.msra.mxu0 %v5733
        %5760 = vmatpush.msra.mxu0 %v5732
        %5761 = vmatpush.msra.mxu0 %v5731
        %5762 = vmatpush.msra.mxu0 %v5730
        %5763 = vmatmul.f32.gmra.mxu0 %v5729
        %v5764 = vpop.f32.mrf.mxu0
        %v5765 = vadd.f32 %v5746, %v5764
        %5766 = vdwg.mxu0
        %vm5767 = vcmask 8192
        %5768 = vst.msk [vmem:[%s324] sm:$0x1] %vm5767, %v5765
        %s5769 = sand.u32 %s225, 1
        %s5770 = scalar_lea.sflag [#allocation7], %s5769
        %s5771 = sand.u32 %s225, 1
        %s5772 = scalar_lea.vmem [#allocation6], %s5771
        // Predicated region
        $region57: #{simple_cnn_forward.1} parent=55 // pred_check
          %p5773 = pneg %p235
        $region58: #{simple_cnn_forward.1} parent=55 // pred_check_branch
          %5775 = sbr.rel (%p5773) target = $region60
        $region59: #{simple_cnn_forward.1} parent=55 // pred_region
          %5777 = vsyncadd %s5770, 0
          %s5778 = scalar_lea.hbm %s9, %s23
          %s5780 = sshll.u32 %s5772, 4
          %s5781 = int_to_ptr.vmem [resolvable:$true] %s5780
          %s5782 = sshll.u32 %s5778, 4
          %s5783 = int_to_ptr.hbm [resolvable:$true] %s5782
          %5785 = dma.vmem_to_hbm [thread:$0]  %s5781, 16, %s5783, %s5770
        $region60: #{simple_cnn_forward.1} parent=55 // pred_fallthru
          _
      $region56: #{simple_cnn_forward.1} parent=5 // pred_fallthru
        _
      %p5786 = scmp.le.s32.totalorder 2, %s18
      // Predicated region
      $region61: #{simple_cnn_forward.1} parent=5 // pred_check
        %p5787 = pneg %p5786
      $region62: #{simple_cnn_forward.1} parent=5 // pred_check_branch
        %5789 = sbr.rel (%p5787) target = $region64
      $region63: #{simple_cnn_forward.1} parent=5 // pred_region
        %s5790 = ssub.s32 %s18, 2
        // Predicated region
        $region65: #{simple_cnn_forward.1} parent=63 // pred_check
          %p5791 = pneg %p241
        $region66: #{simple_cnn_forward.1} parent=63 // pred_check_branch
          %5793 = sbr.rel (%p5791) target = $region68
        $region67: #{simple_cnn_forward.1} parent=63 // pred_region
          %s5794 = sand.u32 %s226, 1
          %s5795 = scalar_lea.sflag [#allocation7], %s5794
          %s5796 = sand.u32 %s226, 1
          %s5797 = scalar_lea.vmem [#allocation6], %s5796
          %5799 = dma.done %s5795, 16
        $region68: #{simple_cnn_forward.1} parent=63 // pred_fallthru
          _
      $region64: #{simple_cnn_forward.1} parent=5 // pred_fallthru
        _
    $region6: #{simple_cnn_forward.1} parent=1 // loop_footer
      %s22 = sadd.s32 1, %s18
    $region7: #{simple_cnn_forward.1} parent=1 // loop_footer_branch
      %17 = sbr.rel target = $region3
    $region8: #{simple_cnn_forward.1} parent=1 // loop_exit
      _
    %5800 = vsyncpa [#allocation7], 1
    %s5801 = scalar_lea.sflag [#allocation7], 1
    %5802 = vsyncpa %s5801, 1

</llo_original>
